<compile_context>
chip_gen: v7x
topology: tpu7x:2x2x1
jax: 0.10.0
libtpu: 0.0.40
codegen_flags: <defaults>
</compile_context>

<pallas_src>
import jax
import jax.numpy as jnp
from jax.experimental import pallas as pl
from jax.experimental.pallas import tpu as pltpu


def fusion_head_kernel(enc_ref, w_ref, bl_ref, pred_ref, m_sc, s_sc, acc_sc):
    # enc_ref : [TN, H]   one encoder layer's token tile (bf16 / native dtype)
    # w_ref   : [H, R+1]  fused weights: [:, :R] = hidden2label.T, [:, R] = fusion classifier
    # bl_ref  : [1, R]    hidden2label bias (f32)
    # pred_ref: [8, TN//8] int32 argmax predictions (row-major order == token order)
    # m_sc    : [TN, 1] f32 running max of layer logits
    # s_sc    : [TN, 1] f32 running sum of exp(layer logit - m)
    # acc_sc  : [TN, R] f32 running sum of exp(...) * (enc_l @ W_label)
    l = pl.program_id(1)
    R = bl_ref.shape[-1]

    @pl.when(l == 0)
    def _():
        m_sc[...] = jnp.full_like(m_sc, -jnp.inf)
        s_sc[...] = jnp.zeros_like(s_sc)
        acc_sc[...] = jnp.zeros_like(acc_sc)

    # One MXU projection per layer: enc_l @ [W_label | w_cls] -> (TN, R+1), f32 acc.
    proj = jnp.dot(enc_ref[...], w_ref[...], preferred_element_type=jnp.float32)
    ll = proj[:, R:]        # (TN, 1) dynamic-fusion layer logit (bias omitted: shift-invariant)
    pr = proj[:, :R]        # (TN, R) per-layer label projection

    # Online softmax over layers (flash-style rescale of the running accumulators).
    m_new = jnp.maximum(m_sc[...], ll)
    alpha = jnp.exp(m_sc[...] - m_new)          # rescale factor for old accumulators
    e = jnp.exp(ll - m_new)
    s_sc[...] = alpha * s_sc[...] + e
    acc_sc[...] = alpha * acc_sc[...] + e * pr
    m_sc[...] = m_new

    @pl.when(l == pl.num_programs(1) - 1)
    def _():
        s = s_sc[...]                           # (TN, 1), > 0
        # logits = acc / s + b  is argmax-equivalent to  acc + s * b  (s > 0): no divide.
        logits = acc_sc[...] + s * bl_ref[...]  # (TN, R)
        # argmax over relations, first-max tie-break (matches torch.argmax).
        iota = jax.lax.broadcasted_iota(jnp.int32, logits.shape, 1)
        is_max = logits == jnp.max(logits, axis=-1, keepdims=True)
        pred = jnp.min(jnp.where(is_max, iota, jnp.int32(R)), axis=-1)    # (TN,)
        pred_ref[...] = pred.reshape(pred_ref.shape).astype(jnp.int32)


def _vmem_capacity_bytes():
    cap = 128 << 20
    try:
        info = pltpu.get_tpu_info()
        cap = int(getattr(info, "vmem_capacity_bytes", cap))
    except Exception:
        pass
    return cap


def model_predict(enc, w_cls, b_cls, w_lab_t, b_lab, *, batch, seq,
                  compute_dtype=jnp.bfloat16, tn_max=4096):
    """Inference branch of Model.forward.

    enc     : [L, N=batch*seq, H] stacked encoder-layer hidden states
    w_cls   : [H, 1] dynamic-fusion classifier weight (nn.Linear(H, 1).weight.T)
    b_cls   : [1, 1] dynamic-fusion classifier bias (accepted for API parity, unused:
              softmax over layers is shift-invariant)
    w_lab_t : [H, R] hidden2label weight, transposed (nn.Linear(H, R).weight.T)
    b_lab   : [1, R] hidden2label bias
    Returns int32 predictions of shape [batch, seq].
    """
    del b_cls  # cannot affect the output; dropping it saves an input DMA
    L, N, H = enc.shape
    R = w_lab_t.shape[1]
    assert N == batch * seq

    # bf16 compute path: halves HBM traffic on the dominant enc read; MXU still
    # accumulates in f32.  (Ideally the encoder emits bf16 directly.)
    enc = enc.astype(compute_dtype)
    itemsize = jnp.dtype(compute_dtype).itemsize

    # --- token tile selection ---------------------------------------------
    # tn must be a multiple of 1024 so the (8, tn//8) int32 pred slab keeps a
    # lane-dense last dim (multiple of 128).  Cap tn so the double-buffered
    # (tn, H) enc slab uses at most ~half of physical VMEM, then shrink toward
    # 1024 to keep several grid steps per TensorCore when N is small.
    vmem_cap = _vmem_capacity_bytes()
    enc_budget = max(vmem_cap // 2, 8 << 20)
    tn_cap = max(1024, (enc_budget // (2 * H * itemsize)) // 1024 * 1024)
    tn = int(min(tn_max, tn_cap))
    while tn > 1024 and -(-N // tn) < 8:
        tn -= 1024
    tn = max(tn, 1024)

    # Pad token axis to a multiple of tn; padded tokens produce harmless
    # predictions that are sliced off below.
    grid_n = -(-N // tn)
    Np = grid_n * tn
    if Np != N:
        enc = jnp.pad(enc, ((0, 0), (0, Np - N), (0, 0)))

    # Fuse both projections into one MXU weight: [W_label | w_cls].
    w_cat = jnp.concatenate([w_lab_t, w_cls], axis=1).astype(compute_dtype)  # [H, R+1]
    b_lab = b_lab.astype(jnp.float32)

    # VMEM budget: double-buffered per-layer enc slab + output slab + weights +
    # scratch + slack, clamped below physical capacity minus headroom.
    enc_block = tn * H * itemsize
    out_block = tn * 4
    w_block = H * (R + 1) * itemsize + R * 4
    scratch = tn * 4 * 2 + tn * R * 4
    need = 2 * (enc_block + out_block + w_block) + scratch + (8 << 20)
    vmem_limit = int(min(max(need, 32 << 20), vmem_cap - (8 << 20)))

    out = pl.pallas_call(
        fusion_head_kernel,
        out_shape=jax.ShapeDtypeStruct((grid_n * 8, tn // 8), jnp.int32),
        grid_spec=pltpu.PrefetchScalarGridSpec(
            num_scalar_prefetch=0,
            grid=(grid_n, L),                                    # token tiles x layers
            in_specs=[
                pl.BlockSpec((None, tn, H), lambda i, l: (l, i, 0)),  # one layer slab
                pl.BlockSpec((H, R + 1), lambda i, l: (0, 0)),        # fused weights
                pl.BlockSpec((1, R), lambda i, l: (0, 0)),            # hidden2label bias
            ],
            out_specs=pl.BlockSpec((8, tn // 8), lambda i, l: (i, 0)),
            scratch_shapes=[
                pltpu.VMEM((tn, 1), jnp.float32),    # running max m
                pltpu.VMEM((tn, 1), jnp.float32),    # running sum s
                pltpu.VMEM((tn, R), jnp.float32),    # running weighted projection
            ],
        ),
        compiler_params=pltpu.CompilerParams(
            dimension_semantics=("parallel", "arbitrary"),
            vmem_limit_bytes=vmem_limit,
        ),
    )(enc, w_cat, b_lab)

    # Each (8, tn//8) slab is row-major token order; slabs stack in token order.
    return out.reshape(-1)[:N].reshape(batch, seq)


def reference_predict(enc, w_cls, b_cls, w_lab_t, b_lab, *, batch, seq):
    """Pure-JAX f32 reference mirroring PyTorch get_dym_layer + hidden2label + argmax."""
    prec = jax.lax.Precision.HIGHEST
    ll = jnp.einsum("lnh,hk->nlk", enc, w_cls, precision=prec)[..., 0] + b_cls[0, 0]
    dist = jax.nn.softmax(ll, axis=-1)                                   # [N, L]
    fused = jnp.einsum("nl,lnh->nh", dist, enc, precision=prec)          # [N, H]
    logits = jnp.dot(fused, w_lab_t, precision=prec) + b_lab[0]          # [N, R]
    pred = jnp.argmax(logits, axis=-1).astype(jnp.int32).reshape(batch, seq)
    return pred, logits.reshape(batch, seq, -1)


if __name__ == "__main__":
    # Small synthetic shapes consistent with the module's forward.
    L, B, S, H, R = 4, 4, 512, 32, 8    # layers, batch, seq, bert_hidden_size, relation_num
    N = B * S

    key = jax.random.PRNGKey(0)
    k_enc, k_wc, k_bc, k_wl, k_bl = jax.random.split(key, 5)

    # Stand-in for the pretrained encoder's per-layer hidden states.
    enc = jax.random.normal(k_enc, (L, N, H), dtype=jnp.float32)

    # Deterministic parameter init (shapes from nn.Linear(H,1) and nn.Linear(H,R)).
    w_cls = jax.random.normal(k_wc, (H, 1), dtype=jnp.float32) * 0.05
    b_cls = jax.random.normal(k_bc, (1, 1), dtype=jnp.float32) * 0.05
    w_lab_t = jax.random.normal(k_wl, (H, R), dtype=jnp.float32) * 0.05  # transposed Linear weight
    b_lab = jax.random.normal(k_bl, (1, R), dtype=jnp.float32) * 0.05

    pred = model_predict(enc, w_cls, b_cls, w_lab_t, b_lab, batch=B, seq=S)
    pred = jax.block_until_ready(pred)
    assert pred.shape == (B, S) and pred.dtype == jnp.int32

    ref_pred, ref_logits = reference_predict(enc, w_cls, b_cls, w_lab_t, b_lab,
                                             batch=B, seq=S)
    ref_pred = jax.block_until_ready(ref_pred)

    if not bool(jnp.all(pred == ref_pred)):
        # bf16 inputs + project-then-fuse ordering perturb logits slightly;
        # tolerate disagreement only where the f32 reference argmax is
        # numerically near-degenerate (tiny top-2 gap).
        top2 = jnp.sort(ref_logits, axis=-1)
        gap = top2[..., -1] - top2[..., -2]
        bad = (pred != ref_pred) & (gap > 2e-2)
        assert not bool(jnp.any(bad)), "Pallas kernel disagrees with JAX reference"

    print("KERNEL_OK")
</pallas_src>

<mosaic_0001>
module attributes {stable_mosaic.version = 11 : i64} {
  func.func @fusion_head_kernel(%arg0: i32, %arg1: i32, %arg2: memref<1x1024x32xbf16, #tpu.memory_space<vmem>>, %arg3: memref<32x9xbf16, #tpu.memory_space<vmem>>, %arg4: memref<1x8xf32, #tpu.memory_space<vmem>>, %arg5: memref<8x128xi32, #tpu.memory_space<vmem>>, %arg6: memref<1024x1xf32, #tpu.memory_space<vmem>>, %arg7: memref<1024x1xf32, #tpu.memory_space<vmem>>, %arg8: memref<1024x8xf32, #tpu.memory_space<vmem>>) attributes {dimension_semantics = [#tpu.dimension_semantics<parallel>, #tpu.dimension_semantics<arbitrary>], iteration_bounds = array<i64: 2, 4>, scalar_prefetch = 0 : i64, scratch_operands = 3 : i64, tpu.core_type = #tpu.core_type<tc>, window_params = [{transform_indices = @transform_0, window_bounds = array<i64: 1, 1024, 32>}, {pipeline_mode = #tpu.pipeline_mode<synchronous>, transform_indices = @transform_1, window_bounds = array<i64: 32, 9>}, {pipeline_mode = #tpu.pipeline_mode<synchronous>, transform_indices = @transform_2, window_bounds = array<i64: 1, 8>}, {transform_indices = @transform_3, window_bounds = array<i64: 8, 128>}]} {
    %c0_i32 = arith.constant 0 : i32
    %0 = arith.cmpi eq, %arg1, %c0_i32 : i32
    %1 = arith.extui %0 : i1 to i32
    %c0_i32_0 = arith.constant 0 : i32
    %2 = arith.cmpi ne, %1, %c0_i32_0 : i32
    scf.if %2 {
      %cst_20 = arith.constant 0xFF800000 : f32
      %31 = vector.broadcast %cst_20 : f32 to vector<1024x1xf32>
      %c0_21 = arith.constant 0 : index
      %c0_22 = arith.constant 0 : index
      %32 = vector.load %arg6[%c0_21, %c0_22] : memref<1024x1xf32, #tpu.memory_space<vmem>>, vector<1024x1xf32>
      tpu.vector_store %arg6[%c0_21, %c0_22], %31 {strides = array<i32>} : memref<1024x1xf32, #tpu.memory_space<vmem>>, vector<1024x1xf32>,
      %cst_23 = arith.constant 0.000000e+00 : f32
      %33 = vector.broadcast %cst_23 : f32 to vector<1024x1xf32>
      %c0_24 = arith.constant 0 : index
      %c0_25 = arith.constant 0 : index
      %34 = vector.load %arg7[%c0_24, %c0_25] : memref<1024x1xf32, #tpu.memory_space<vmem>>, vector<1024x1xf32>
      tpu.vector_store %arg7[%c0_24, %c0_25], %33 {strides = array<i32>} : memref<1024x1xf32, #tpu.memory_space<vmem>>, vector<1024x1xf32>,
      %cst_26 = arith.constant 0.000000e+00 : f32
      %35 = vector.broadcast %cst_26 : f32 to vector<1024x8xf32>
      %c0_27 = arith.constant 0 : index
      %c0_28 = arith.constant 0 : index
      %36 = vector.load %arg8[%c0_27, %c0_28] : memref<1024x8xf32, #tpu.memory_space<vmem>>, vector<1024x8xf32>
      tpu.vector_store %arg8[%c0_27, %c0_28], %35 {strides = array<i32>} : memref<1024x8xf32, #tpu.memory_space<vmem>>, vector<1024x8xf32>,
    } else {
    }
    %c0 = arith.constant 0 : index
    %c0_1 = arith.constant 0 : index
    %c0_2 = arith.constant 0 : index
    %3 = vector.load %arg2[%c0, %c0_1, %c0_2] : memref<1x1024x32xbf16, #tpu.memory_space<vmem>>, vector<1x1024x32xbf16>
    %4 = vector.shape_cast %3 : vector<1x1024x32xbf16> to vector<1024x32xbf16>
    %c0_3 = arith.constant 0 : index
    %c0_4 = arith.constant 0 : index
    %5 = vector.load %arg3[%c0_3, %c0_4] : memref<32x9xbf16, #tpu.memory_space<vmem>>, vector<32x9xbf16>
    %cst = arith.constant dense<0.000000e+00> : vector<1024x9xf32>
    %6 = tpu.matmul %4, %5, %cst {dimension_numbers = #tpu.dot_dimension_numbers<[1], [0], [0], [1], [0, 0, 1, 1], [], []>} : vector<1024x32xbf16>, vector<32x9xbf16>, vector<1024x9xf32> -> vector<1024x9xf32>
    %7 = vector.extract_strided_slice %6 {offsets = [0, 8], sizes = [1024, 1], strides = [1, 1]} : vector<1024x9xf32> to vector<1024x1xf32>
    %8 = vector.extract_strided_slice %6 {offsets = [0, 0], sizes = [1024, 8], strides = [1, 1]} : vector<1024x9xf32> to vector<1024x8xf32>
    %c0_5 = arith.constant 0 : index
    %c0_6 = arith.constant 0 : index
    %9 = vector.load %arg6[%c0_5, %c0_6] : memref<1024x1xf32, #tpu.memory_space<vmem>>, vector<1024x1xf32>
    %10 = arith.maximumf %9, %7 : vector<1024x1xf32>
    %c0_7 = arith.constant 0 : index
    %c0_8 = arith.constant 0 : index
    %11 = vector.load %arg6[%c0_7, %c0_8] : memref<1024x1xf32, #tpu.memory_space<vmem>>, vector<1024x1xf32>
    %12 = arith.subf %11, %10 : vector<1024x1xf32>
    %13 = math.exp %12 : vector<1024x1xf32>
    %14 = arith.subf %7, %10 : vector<1024x1xf32>
    %15 = math.exp %14 : vector<1024x1xf32>
    %c0_9 = arith.constant 0 : index
    %c0_10 = arith.constant 0 : index
    %16 = vector.load %arg7[%c0_9, %c0_10] : memref<1024x1xf32, #tpu.memory_space<vmem>>, vector<1024x1xf32>
    %17 = arith.mulf %13, %16 : vector<1024x1xf32>
    %18 = arith.addf %17, %15 : vector<1024x1xf32>
    %c0_11 = arith.constant 0 : index
    %c0_12 = arith.constant 0 : index
    %19 = vector.load %arg7[%c0_11, %c0_12] : memref<1024x1xf32, #tpu.memory_space<vmem>>, vector<1024x1xf32>
    tpu.vector_store %arg7[%c0_11, %c0_12], %18 {strides = array<i32>} : memref<1024x1xf32, #tpu.memory_space<vmem>>, vector<1024x1xf32>,
    %c0_13 = arith.constant 0 : index
    %c0_14 = arith.constant 0 : index
    %20 = vector.load %arg8[%c0_13, %c0_14] : memref<1024x8xf32, #tpu.memory_space<vmem>>, vector<1024x8xf32>
    %21 = vector.broadcast %13 : vector<1024x1xf32> to vector<1024x8xf32>
    %22 = arith.mulf %21, %20 : vector<1024x8xf32>
    %23 = vector.broadcast %15 : vector<1024x1xf32> to vector<1024x8xf32>
    %24 = arith.mulf %23, %8 : vector<1024x8xf32>
    %25 = arith.addf %22, %24 : vector<1024x8xf32>
    %c0_15 = arith.constant 0 : index
    %c0_16 = arith.constant 0 : index
    %26 = vector.load %arg8[%c0_15, %c0_16] : memref<1024x8xf32, #tpu.memory_space<vmem>>, vector<1024x8xf32>
    tpu.vector_store %arg8[%c0_15, %c0_16], %25 {strides = array<i32>} : memref<1024x8xf32, #tpu.memory_space<vmem>>, vector<1024x8xf32>,
    %c0_17 = arith.constant 0 : index
    %c0_18 = arith.constant 0 : index
    %27 = vector.load %arg6[%c0_17, %c0_18] : memref<1024x1xf32, #tpu.memory_space<vmem>>, vector<1024x1xf32>
    tpu.vector_store %arg6[%c0_17, %c0_18], %10 {strides = array<i32>} : memref<1024x1xf32, #tpu.memory_space<vmem>>, vector<1024x1xf32>,
    %c3_i32 = arith.constant 3 : i32
    %28 = arith.cmpi eq, %arg1, %c3_i32 : i32
    %29 = arith.extui %28 : i1 to i32
    %c0_i32_19 = arith.constant 0 : i32
    %30 = arith.cmpi ne, %29, %c0_i32_19 : i32
    scf.if %30 {
      %c0_20 = arith.constant 0 : index
      %c0_21 = arith.constant 0 : index
      %31 = vector.load %arg7[%c0_20, %c0_21] : memref<1024x1xf32, #tpu.memory_space<vmem>>, vector<1024x1xf32>
      %c0_22 = arith.constant 0 : index
      %c0_23 = arith.constant 0 : index
      %32 = vector.load %arg8[%c0_22, %c0_23] : memref<1024x8xf32, #tpu.memory_space<vmem>>, vector<1024x8xf32>
      %c0_24 = arith.constant 0 : index
      %c0_25 = arith.constant 0 : index
      %33 = vector.load %arg4[%c0_24, %c0_25] : memref<1x8xf32, #tpu.memory_space<vmem>>, vector<1x8xf32>
      %34 = vector.broadcast %31 : vector<1024x1xf32> to vector<1024x8xf32>
      %35 = vector.broadcast %33 : vector<1x8xf32> to vector<1024x8xf32>
      %36 = arith.mulf %34, %35 : vector<1024x8xf32>
      %37 = arith.addf %32, %36 : vector<1024x8xf32>
      %38 = tpu.iota {dimensions = array<i32: 1>} : vector<1024x8xi32>
      %cst_26 = arith.constant dense<0xFF800000> : vector<1024xf32>
      %39 = vector.multi_reduction <maximumf>, %37, %cst_26 [1] : vector<1024x8xf32> to vector<1024xf32>
      %40 = vector.shape_cast %39 : vector<1024xf32> to vector<1024x1xf32>
      %41 = vector.broadcast %40 : vector<1024x1xf32> to vector<1024x8xf32>
      %42 = arith.cmpf oeq, %37, %41 : vector<1024x8xf32>
      %c8_i32 = arith.constant 8 : i32
      %43 = vector.broadcast %c8_i32 : i32 to vector<1024x8xi32>
      %44 = arith.select %42, %38, %43 : vector<1024x8xi1>, vector<1024x8xi32>
      %cst_27 = arith.constant dense<2147483647> : vector<1024xi32>
      %45 = vector.multi_reduction <minsi>, %44, %cst_27 [1] : vector<1024x8xi32> to vector<1024xi32>
      %46 = vector.shape_cast %45 : vector<1024xi32> to vector<8x128xi32>
      %c0_28 = arith.constant 0 : index
      %c0_29 = arith.constant 0 : index
      %47 = vector.load %arg5[%c0_28, %c0_29] : memref<8x128xi32, #tpu.memory_space<vmem>>, vector<8x128xi32>
      tpu.vector_store %arg5[%c0_28, %c0_29], %46 {strides = array<i32>} : memref<8x128xi32, #tpu.memory_space<vmem>>, vector<8x128xi32>,
    } else {
    }
    return
  }
  func.func @transform_0(%arg0: i32, %arg1: i32) -> (i32, i32, i32) {
    %c0_i32 = arith.constant 0 : i32
    %c0_i32_0 = arith.constant 0 : i32
    return %arg1, %arg0, %c0_i32 : i32, i32, i32
  }
  func.func @transform_1(%arg0: i32, %arg1: i32) -> (i32, i32) {
    %c0_i32 = arith.constant 0 : i32
    %c0_i32_0 = arith.constant 0 : i32
    %c0_i32_1 = arith.constant 0 : i32
    return %c0_i32, %c0_i32_0 : i32, i32
  }
  func.func @transform_2(%arg0: i32, %arg1: i32) -> (i32, i32) {
    %c0_i32 = arith.constant 0 : i32
    %c0_i32_0 = arith.constant 0 : i32
    %c0_i32_1 = arith.constant 0 : i32
    return %c0_i32, %c0_i32_0 : i32, i32
  }
  func.func @transform_3(%arg0: i32, %arg1: i32) -> (i32, i32) {
    %c0_i32 = arith.constant 0 : i32
    %c0_i32_0 = arith.constant 0 : i32
    return %arg0, %c0_i32 : i32, i32
  }
}

</mosaic_0001>

<llo_original>
// kernel: tpu_custom_call.1
$region0: #{tpu_custom_call.1}
  #allocation0 [shape = 'u32[]', space=smem, size = 0x4, offset = 0x4, fixed_abs, tag = 'smem constant byte address 0x4 - core index']
  #allocation1 [shape = 'u32[144,128]{1,0:T(1,128)}', space=vmem, size = 0x12000, scoped, tag = 'internal scratch']
  #allocation2 [shape = 'f32[1024,1]{1,0:T(8,128)}', space=vmem, size = 0x80000, scoped, tag = 'scratch operand']
  #allocation3 [shape = 'f32[1024,1]{1,0:T(8,128)}', space=vmem, size = 0x80000, scoped, tag = 'scratch operand']
  #allocation4 [shape = 'f32[1024,8]{1,0:T(8,128)}', space=vmem, size = 0x80000, scoped, tag = 'scratch operand']
  %s0 = inlined_call_operand.vmem [shape: bf16[4,2048,32], index: 0, kind: input, shape index: {}]
  %s1 = inlined_call_operand.vmem [shape: bf16[32,9], index: 1, kind: input, shape index: {}]
  %s2 = inlined_call_operand.vmem [shape: f32[1,8], index: 2, kind: input, shape index: {}]
  %s3 = inlined_call_operand.hbm [shape: s32[16,128], index: 3, kind: output, shape index: {}]
  %s4 = sld [smem:[#allocation0]]
  $region53: #{tpu_custom_call.1} parent=0
    _
  %s6 = ssub.s32 1, %s4
  %s7 = scalar_select 0, %s6, %s4
  $region1: #{tpu_custom_call.1} parent=0
    #allocation5 [shape = 'u8[8192]{0}', space=vmem, size = 0x2000, scoped, tag = 'output window, operand 0']
    #allocation6 [shape = 's32[2]{0}', space=sflag, size = 0x8, scoped, tag = 'scoped memory for tpu_custom_call.1']
    %8 = vsyncpa [#allocation6], 0
    %s9 = scalar_lea.sflag [#allocation6], 1
    %10 = vsyncpa %s9, 0
    loop: start=0, step=1, limit=10
    $region2: #{tpu_custom_call.1} parent=1 // loop_pre_header
      _
    $region3: #{tpu_custom_call.1} parent=1 // loop_header
      %s12 = sphi 0, %s16
      %p13 = scmp.ge.s32.totalorder %s12, 10
      %s19 = sphi 0, %s31
      %s20 = sphi 0, %s27
      %s21 = sphi 0, %s19
      %s22 = sphi 0, %s20
      %s23 = sphi 0, %s21
      %s24 = sphi 0, %s22
      %s36 = sphi 0, %s38
      %s39 = sphi 0, %s36
      %s40 = sphi 0, %s39
      %s56 = sphi 0, %s40
      %s60 = sphi 0, %s60
      %s62 = sphi 0, %s60
      %s63 = sphi 0, %s62
      %s77 = sphi 0, %s63
      %s81 = sphi 0, %s81
      %s83 = sphi 0, %s81
      %s84 = sphi 0, %s83
      %s98 = sphi 0, %s84
      %s104 = sphi 0, %s106
      %s107 = sphi 0, %s104
      %s108 = sphi 0, %s107
      %s124 = sphi 0, %s108
    $region4: #{tpu_custom_call.1} parent=1 // loop_header_branch
      %15 = sbr.rel (%p13) target = $region8
    $region5: #{tpu_custom_call.1} parent=1 // loop_body
      %s17 = ssub.s32 %s12, 1
      %s18 = ssub.s32 %s12, 2
      %s25 = sadd.s32 1, %s20
      %p26 = scmp.ge.s32.totalorder %s25, 4
      %s27 = scalar_select %p26, 0, %s25
      %s28 = sadd.s32 1, %s19
      %s29 = scalar_select %p26, %s28, %s19
      %p30 = scmp.ge.s32.totalorder %s29, 2
      %s31 = scalar_select %p30, 0, %s29
      %s32 = ssub.s32 %s20, %s27
      %s33 = ssub.s32 %s19, %s31
      %s34 = sor.u32 %s32, %s33
      %p35 = scmp.eq.s32.totalorder %s34, 0
      %s37 = sadd.s32 %s36, 1
      %s38 = scalar_select %p35, %s36, %s37
      %p41 = pneg %p35
      %p42 = scmp.eq.s32.totalorder %s12, 7
      %p43 = por %p41, %p42
      %p44 = scmp.ne.s32.totalorder %s36, %s39
      %p45 = scmp.eq.s32.totalorder %s12, 0
      %p46 = por %p44, %p45
      %p47 = scmp.ne.s32.totalorder %s36, %s39
      %p48 = scmp.eq.s32.totalorder %s17, 7
      %p49 = por %p47, %p48
      %p50 = scmp.ne.s32.totalorder %s39, %s40
      %p51 = scmp.eq.s32.totalorder %s17, 0
      %p52 = por %p50, %p51
      %p53 = scmp.ne.s32.totalorder %s39, %s40
      %p54 = scmp.eq.s32.totalorder %s18, 7
      %p55 = por %p53, %p54
      %p57 = scmp.ne.s32.totalorder %s40, %s56
      %p58 = scmp.eq.s32.totalorder %s18, 0
      %p59 = por %p57, %p58
      %s61 = sadd.s32 %s60, 1
      %p64 = scmp.eq.s32.totalorder %s12, 7
      %p65 = scmp.ne.s32.totalorder %s60, %s62
      %p66 = scmp.eq.s32.totalorder %s12, 0
      %p67 = por %p65, %p66
      %p68 = scmp.ne.s32.totalorder %s60, %s62
      %p69 = scmp.eq.s32.totalorder %s17, 7
      %p70 = por %p68, %p69
      %p71 = scmp.ne.s32.totalorder %s62, %s63
      %p72 = scmp.eq.s32.totalorder %s17, 0
      %p73 = por %p71, %p72
      %p74 = scmp.ne.s32.totalorder %s62, %s63
      %p75 = scmp.eq.s32.totalorder %s18, 7
      %p76 = por %p74, %p75
      %p78 = scmp.ne.s32.totalorder %s63, %s77
      %p79 = scmp.eq.s32.totalorder %s18, 0
      %p80 = por %p78, %p79
      %s82 = sadd.s32 %s81, 1
      %p85 = scmp.eq.s32.totalorder %s12, 7
      %p86 = scmp.ne.s32.totalorder %s81, %s83
      %p87 = scmp.eq.s32.totalorder %s12, 0
      %p88 = por %p86, %p87
      %p89 = scmp.ne.s32.totalorder %s81, %s83
      %p90 = scmp.eq.s32.totalorder %s17, 7
      %p91 = por %p89, %p90
      %p92 = scmp.ne.s32.totalorder %s83, %s84
      %p93 = scmp.eq.s32.totalorder %s17, 0
      %p94 = por %p92, %p93
      %p95 = scmp.ne.s32.totalorder %s83, %s84
      %p96 = scmp.eq.s32.totalorder %s18, 7
      %p97 = por %p95, %p96
      %p99 = scmp.ne.s32.totalorder %s84, %s98
      %p100 = scmp.eq.s32.totalorder %s18, 0
      %p101 = por %p99, %p100
      %s102 = ssub.s32 %s19, %s31
      %p103 = scmp.eq.s32.totalorder %s102, 0
      %s105 = sadd.s32 %s104, 1
      %s106 = scalar_select %p103, %s104, %s105
      %p109 = pneg %p103
      %p110 = scmp.eq.s32.totalorder %s12, 7
      %p111 = por %p109, %p110
      %p112 = scmp.ne.s32.totalorder %s104, %s107
      %p113 = scmp.eq.s32.totalorder %s12, 0
      %p114 = por %p112, %p113
      %p115 = scmp.ne.s32.totalorder %s104, %s107
      %p116 = scmp.eq.s32.totalorder %s17, 7
      %p117 = por %p115, %p116
      %p118 = scmp.ne.s32.totalorder %s107, %s108
      %p119 = scmp.eq.s32.totalorder %s17, 0
      %p120 = por %p118, %p119
      %p121 = scmp.ne.s32.totalorder %s107, %s108
      %p122 = scmp.eq.s32.totalorder %s18, 7
      %p123 = por %p121, %p122
      %p125 = scmp.ne.s32.totalorder %s108, %s124
      %p126 = scmp.eq.s32.totalorder %s18, 0
      %p127 = por %p125, %p126
      %p128 = scmp.le.s32.totalorder 1, %s12
      %p129 = scmp.lt.s32.totalorder %s12, 9
      %p130 = pnand %p128, %p129
      %p131 = pneg %p130
      // Predicated region
      $region9: #{tpu_custom_call.1} parent=5 // pred_check
        _
      $region10: #{tpu_custom_call.1} parent=5 // pred_check_branch
        %133 = sbr.rel (%p130) target = $region12
      $region11: #{tpu_custom_call.1} parent=5 // pred_region
        %s134 = ssub.s32 %s12, 1
        // Predicated region
        $region13: #{tpu_custom_call.1} parent=11 // pred_check
          %p135 = pneg %p73
        $region14: #{tpu_custom_call.1} parent=11 // pred_check_branch
          %137 = sbr.rel (%p135) target = $region16
        $region15: #{tpu_custom_call.1} parent=11 // pred_region
          _
        $region16: #{tpu_custom_call.1} parent=11 // pred_fallthru
          _
        // Predicated region
        $region17: #{tpu_custom_call.1} parent=11 // pred_check
          %p138 = pneg %p94
        $region18: #{tpu_custom_call.1} parent=11 // pred_check_branch
          %140 = sbr.rel (%p138) target = $region20
        $region19: #{tpu_custom_call.1} parent=11 // pred_region
          _
        $region20: #{tpu_custom_call.1} parent=11 // pred_fallthru
          _
      $region12: #{tpu_custom_call.1} parent=5 // pred_fallthru
        _
      %p141 = scmp.lt.s32.totalorder %s12, 8
      // Predicated region
      $region21: #{tpu_custom_call.1} parent=5 // pred_check
        %p142 = pneg %p141
      $region22: #{tpu_custom_call.1} parent=5 // pred_check_branch
        %144 = sbr.rel (%p142) target = $region24
      $region23: #{tpu_custom_call.1} parent=5 // pred_region
        // Predicated region
        $region25: #{tpu_custom_call.1} parent=23 // pred_check
          %p145 = pneg %p46
        $region26: #{tpu_custom_call.1} parent=23 // pred_check_branch
          %147 = sbr.rel (%p145) target = $region28
        $region27: #{tpu_custom_call.1} parent=23 // pred_region
          %s148 = smul.u32 128, %s19
          %p149 = scmp.lt.s32.totalorder %s20, 3
          %s150 = scalar_select %p149, %s20, 3
          %p151 = scmp.lt.s32.totalorder %s148, 255
          %s152 = scalar_select %p151, %s148, 255
          %s153 = smul.addr %s150, 256
          %s154 = sadd.s32 %s152, %s153
          %s155 = smul.addr %s154, 4
          %s156 = scalar_lea.vmem %s0, %s155
          %s157 = smul.u32 128, %s19
        $region28: #{tpu_custom_call.1} parent=23 // pred_fallthru
          _
      $region24: #{tpu_custom_call.1} parent=5 // pred_fallthru
        _
      %p158 = scmp.le.s32.totalorder 1, %s12
      %p159 = scmp.lt.s32.totalorder %s12, 9
      %p160 = pnand %p158, %p159
      %p161 = pneg %p160
      // Predicated region
      $region29: #{tpu_custom_call.1} parent=5 // pred_check
        _
      $region30: #{tpu_custom_call.1} parent=5 // pred_check_branch
        %163 = sbr.rel (%p160) target = $region32
      $region31: #{tpu_custom_call.1} parent=5 // pred_region
        %s164 = ssub.s32 %s12, 1
        %s165 = smul.u32 128, %s21
        %p166 = scmp.lt.s32.totalorder %s22, 3
        %s167 = scalar_select %p166, %s22, 3
        %p168 = scmp.lt.s32.totalorder %s165, 255
        %s169 = scalar_select %p168, %s165, 255
        %s170 = smul.addr %s167, 256
        %s171 = sadd.s32 %s169, %s170
        %s172 = smul.addr %s171, 4
        %s173 = scalar_lea.vmem %s0, %s172
        %p174 = pneg %p52
        %p175 = pneg %p49
        %p176 = pneg %p73
        %p177 = pneg %p70
        %p178 = pneg %p94
        %p179 = pneg %p91
        %p180 = pneg %p120
        %p181 = pneg %p117
        %s182 = sand.u32 %s107, 1
        %s183 = scalar_lea.sflag [#allocation6], %s182
        %s184 = sand.u32 %s107, 1
        %s185 = smul.addr %s184, 8
        %s186 = scalar_lea.vmem [#allocation5], %s185
        %s187 = smul.u32 128, %s21
        %p188 = scmp.lt.s32.totalorder %s22, 3
        %s189 = scalar_select %p188, %s22, 3
        %p190 = scmp.lt.s32.totalorder %s187, 255
        %s191 = scalar_select %p190, %s187, 255
        %s192 = smul.addr %s189, 256
        %s193 = sadd.s32 %s191, %s192
        %s194 = smul.addr %s193, 4
        %s195 = scalar_lea.vmem %s0, %s194
        %s196 = smul.u32 128, %s21
        %p198 = scmp.eq.s32.totalorder %s22, 0
        // Predicated region
        $region33: #{tpu_custom_call.1} parent=31 // pred_check
          %p199 = pneg %p198
        $region34: #{tpu_custom_call.1} parent=31 // pred_check_branch
          %201 = sbr.rel (%p199) target = $region36
        $region35: #{tpu_custom_call.1} parent=31 // pred_region
          %vm202 = vcmask 7168
          %203 = vst.msk [vmem:[#allocation2] sm:$0xff] %vm202, -inf
          %204 = vst.msk [vmem:[#allocation2 + $0x8] sm:$0xff] %vm202, -inf
          %205 = vst.msk [vmem:[#allocation2 + $0x10] sm:$0xff] %vm202, -inf
          %206 = vst.msk [vmem:[#allocation2 + $0x18] sm:$0xff] %vm202, -inf
          %207 = vst.msk [vmem:[#allocation2 + $0x20] sm:$0xff] %vm202, -inf
          %208 = vst.msk [vmem:[#allocation2 + $0x28] sm:$0xff] %vm202, -inf
          %209 = vst.msk [vmem:[#allocation2 + $0x30] sm:$0xff] %vm202, -inf
          %210 = vst.msk [vmem:[#allocation2 + $0x38] sm:$0xff] %vm202, -inf
          %211 = vst.msk [vmem:[#allocation2 + $0x40] sm:$0xff] %vm202, -inf
          %212 = vst.msk [vmem:[#allocation2 + $0x48] sm:$0xff] %vm202, -inf
          %213 = vst.msk [vmem:[#allocation2 + $0x50] sm:$0xff] %vm202, -inf
          %214 = vst.msk [vmem:[#allocation2 + $0x58] sm:$0xff] %vm202, -inf
          %215 = vst.msk [vmem:[#allocation2 + $0x60] sm:$0xff] %vm202, -inf
          %216 = vst.msk [vmem:[#allocation2 + $0x68] sm:$0xff] %vm202, -inf
          %217 = vst.msk [vmem:[#allocation2 + $0x70] sm:$0xff] %vm202, -inf
          %218 = vst.msk [vmem:[#allocation2 + $0x78] sm:$0xff] %vm202, -inf
          %219 = vst.msk [vmem:[#allocation2 + $0x80] sm:$0xff] %vm202, -inf
          %220 = vst.msk [vmem:[#allocation2 + $0x88] sm:$0xff] %vm202, -inf
          %221 = vst.msk [vmem:[#allocation2 + $0x90] sm:$0xff] %vm202, -inf
          %222 = vst.msk [vmem:[#allocation2 + $0x98] sm:$0xff] %vm202, -inf
          %223 = vst.msk [vmem:[#allocation2 + $0xa0] sm:$0xff] %vm202, -inf
          %224 = vst.msk [vmem:[#allocation2 + $0xa8] sm:$0xff] %vm202, -inf
          %225 = vst.msk [vmem:[#allocation2 + $0xb0] sm:$0xff] %vm202, -inf
          %226 = vst.msk [vmem:[#allocation2 + $0xb8] sm:$0xff] %vm202, -inf
          %227 = vst.msk [vmem:[#allocation2 + $0xc0] sm:$0xff] %vm202, -inf
          %228 = vst.msk [vmem:[#allocation2 + $0xc8] sm:$0xff] %vm202, -inf
          %229 = vst.msk [vmem:[#allocation2 + $0xd0] sm:$0xff] %vm202, -inf
          %230 = vst.msk [vmem:[#allocation2 + $0xd8] sm:$0xff] %vm202, -inf
          %231 = vst.msk [vmem:[#allocation2 + $0xe0] sm:$0xff] %vm202, -inf
          %232 = vst.msk [vmem:[#allocation2 + $0xe8] sm:$0xff] %vm202, -inf
          %233 = vst.msk [vmem:[#allocation2 + $0xf0] sm:$0xff] %vm202, -inf
          %234 = vst.msk [vmem:[#allocation2 + $0xf8] sm:$0xff] %vm202, -inf
          %235 = vst.msk [vmem:[#allocation2 + $0x100] sm:$0xff] %vm202, -inf
          %236 = vst.msk [vmem:[#allocation2 + $0x108] sm:$0xff] %vm202, -inf
          %237 = vst.msk [vmem:[#allocation2 + $0x110] sm:$0xff] %vm202, -inf
          %238 = vst.msk [vmem:[#allocation2 + $0x118] sm:$0xff] %vm202, -inf
          %239 = vst.msk [vmem:[#allocation2 + $0x120] sm:$0xff] %vm202, -inf
          %240 = vst.msk [vmem:[#allocation2 + $0x128] sm:$0xff] %vm202, -inf
          %241 = vst.msk [vmem:[#allocation2 + $0x130] sm:$0xff] %vm202, -inf
          %242 = vst.msk [vmem:[#allocation2 + $0x138] sm:$0xff] %vm202, -inf
          %243 = vst.msk [vmem:[#allocation2 + $0x140] sm:$0xff] %vm202, -inf
          %244 = vst.msk [vmem:[#allocation2 + $0x148] sm:$0xff] %vm202, -inf
          %245 = vst.msk [vmem:[#allocation2 + $0x150] sm:$0xff] %vm202, -inf
          %246 = vst.msk [vmem:[#allocation2 + $0x158] sm:$0xff] %vm202, -inf
          %247 = vst.msk [vmem:[#allocation2 + $0x160] sm:$0xff] %vm202, -inf
          %248 = vst.msk [vmem:[#allocation2 + $0x168] sm:$0xff] %vm202, -inf
          %249 = vst.msk [vmem:[#allocation2 + $0x170] sm:$0xff] %vm202, -inf
          %250 = vst.msk [vmem:[#allocation2 + $0x178] sm:$0xff] %vm202, -inf
          %251 = vst.msk [vmem:[#allocation2 + $0x180] sm:$0xff] %vm202, -inf
          %252 = vst.msk [vmem:[#allocation2 + $0x188] sm:$0xff] %vm202, -inf
          %253 = vst.msk [vmem:[#allocation2 + $0x190] sm:$0xff] %vm202, -inf
          %254 = vst.msk [vmem:[#allocation2 + $0x198] sm:$0xff] %vm202, -inf
          %255 = vst.msk [vmem:[#allocation2 + $0x1a0] sm:$0xff] %vm202, -inf
          %256 = vst.msk [vmem:[#allocation2 + $0x1a8] sm:$0xff] %vm202, -inf
          %257 = vst.msk [vmem:[#allocation2 + $0x1b0] sm:$0xff] %vm202, -inf
          %258 = vst.msk [vmem:[#allocation2 + $0x1b8] sm:$0xff] %vm202, -inf
          %259 = vst.msk [vmem:[#allocation2 + $0x1c0] sm:$0xff] %vm202, -inf
          %260 = vst.msk [vmem:[#allocation2 + $0x1c8] sm:$0xff] %vm202, -inf
          %261 = vst.msk [vmem:[#allocation2 + $0x1d0] sm:$0xff] %vm202, -inf
          %262 = vst.msk [vmem:[#allocation2 + $0x1d8] sm:$0xff] %vm202, -inf
          %263 = vst.msk [vmem:[#allocation2 + $0x1e0] sm:$0xff] %vm202, -inf
          %264 = vst.msk [vmem:[#allocation2 + $0x1e8] sm:$0xff] %vm202, -inf
          %265 = vst.msk [vmem:[#allocation2 + $0x1f0] sm:$0xff] %vm202, -inf
          %266 = vst.msk [vmem:[#allocation2 + $0x1f8] sm:$0xff] %vm202, -inf
          %267 = vst.msk [vmem:[#allocation2 + $0x200] sm:$0xff] %vm202, -inf
          %268 = vst.msk [vmem:[#allocation2 + $0x208] sm:$0xff] %vm202, -inf
          %269 = vst.msk [vmem:[#allocation2 + $0x210] sm:$0xff] %vm202, -inf
          %270 = vst.msk [vmem:[#allocation2 + $0x218] sm:$0xff] %vm202, -inf
          %271 = vst.msk [vmem:[#allocation2 + $0x220] sm:$0xff] %vm202, -inf
          %272 = vst.msk [vmem:[#allocation2 + $0x228] sm:$0xff] %vm202, -inf
          %273 = vst.msk [vmem:[#allocation2 + $0x230] sm:$0xff] %vm202, -inf
          %274 = vst.msk [vmem:[#allocation2 + $0x238] sm:$0xff] %vm202, -inf
          %275 = vst.msk [vmem:[#allocation2 + $0x240] sm:$0xff] %vm202, -inf
          %276 = vst.msk [vmem:[#allocation2 + $0x248] sm:$0xff] %vm202, -inf
          %277 = vst.msk [vmem:[#allocation2 + $0x250] sm:$0xff] %vm202, -inf
          %278 = vst.msk [vmem:[#allocation2 + $0x258] sm:$0xff] %vm202, -inf
          %279 = vst.msk [vmem:[#allocation2 + $0x260] sm:$0xff] %vm202, -inf
          %280 = vst.msk [vmem:[#allocation2 + $0x268] sm:$0xff] %vm202, -inf
          %281 = vst.msk [vmem:[#allocation2 + $0x270] sm:$0xff] %vm202, -inf
          %282 = vst.msk [vmem:[#allocation2 + $0x278] sm:$0xff] %vm202, -inf
          %283 = vst.msk [vmem:[#allocation2 + $0x280] sm:$0xff] %vm202, -inf
          %284 = vst.msk [vmem:[#allocation2 + $0x288] sm:$0xff] %vm202, -inf
          %285 = vst.msk [vmem:[#allocation2 + $0x290] sm:$0xff] %vm202, -inf
          %286 = vst.msk [vmem:[#allocation2 + $0x298] sm:$0xff] %vm202, -inf
          %287 = vst.msk [vmem:[#allocation2 + $0x2a0] sm:$0xff] %vm202, -inf
          %288 = vst.msk [vmem:[#allocation2 + $0x2a8] sm:$0xff] %vm202, -inf
          %289 = vst.msk [vmem:[#allocation2 + $0x2b0] sm:$0xff] %vm202, -inf
          %290 = vst.msk [vmem:[#allocation2 + $0x2b8] sm:$0xff] %vm202, -inf
          %291 = vst.msk [vmem:[#allocation2 + $0x2c0] sm:$0xff] %vm202, -inf
          %292 = vst.msk [vmem:[#allocation2 + $0x2c8] sm:$0xff] %vm202, -inf
          %293 = vst.msk [vmem:[#allocation2 + $0x2d0] sm:$0xff] %vm202, -inf
          %294 = vst.msk [vmem:[#allocation2 + $0x2d8] sm:$0xff] %vm202, -inf
          %295 = vst.msk [vmem:[#allocation2 + $0x2e0] sm:$0xff] %vm202, -inf
          %296 = vst.msk [vmem:[#allocation2 + $0x2e8] sm:$0xff] %vm202, -inf
          %297 = vst.msk [vmem:[#allocation2 + $0x2f0] sm:$0xff] %vm202, -inf
          %298 = vst.msk [vmem:[#allocation2 + $0x2f8] sm:$0xff] %vm202, -inf
          %299 = vst.msk [vmem:[#allocation2 + $0x300] sm:$0xff] %vm202, -inf
          %300 = vst.msk [vmem:[#allocation2 + $0x308] sm:$0xff] %vm202, -inf
          %301 = vst.msk [vmem:[#allocation2 + $0x310] sm:$0xff] %vm202, -inf
          %302 = vst.msk [vmem:[#allocation2 + $0x318] sm:$0xff] %vm202, -inf
          %303 = vst.msk [vmem:[#allocation2 + $0x320] sm:$0xff] %vm202, -inf
          %304 = vst.msk [vmem:[#allocation2 + $0x328] sm:$0xff] %vm202, -inf
          %305 = vst.msk [vmem:[#allocation2 + $0x330] sm:$0xff] %vm202, -inf
          %306 = vst.msk [vmem:[#allocation2 + $0x338] sm:$0xff] %vm202, -inf
          %307 = vst.msk [vmem:[#allocation2 + $0x340] sm:$0xff] %vm202, -inf
          %308 = vst.msk [vmem:[#allocation2 + $0x348] sm:$0xff] %vm202, -inf
          %309 = vst.msk [vmem:[#allocation2 + $0x350] sm:$0xff] %vm202, -inf
          %310 = vst.msk [vmem:[#allocation2 + $0x358] sm:$0xff] %vm202, -inf
          %311 = vst.msk [vmem:[#allocation2 + $0x360] sm:$0xff] %vm202, -inf
          %312 = vst.msk [vmem:[#allocation2 + $0x368] sm:$0xff] %vm202, -inf
          %313 = vst.msk [vmem:[#allocation2 + $0x370] sm:$0xff] %vm202, -inf
          %314 = vst.msk [vmem:[#allocation2 + $0x378] sm:$0xff] %vm202, -inf
          %315 = vst.msk [vmem:[#allocation2 + $0x380] sm:$0xff] %vm202, -inf
          %316 = vst.msk [vmem:[#allocation2 + $0x388] sm:$0xff] %vm202, -inf
          %317 = vst.msk [vmem:[#allocation2 + $0x390] sm:$0xff] %vm202, -inf
          %318 = vst.msk [vmem:[#allocation2 + $0x398] sm:$0xff] %vm202, -inf
          %319 = vst.msk [vmem:[#allocation2 + $0x3a0] sm:$0xff] %vm202, -inf
          %320 = vst.msk [vmem:[#allocation2 + $0x3a8] sm:$0xff] %vm202, -inf
          %321 = vst.msk [vmem:[#allocation2 + $0x3b0] sm:$0xff] %vm202, -inf
          %322 = vst.msk [vmem:[#allocation2 + $0x3b8] sm:$0xff] %vm202, -inf
          %323 = vst.msk [vmem:[#allocation2 + $0x3c0] sm:$0xff] %vm202, -inf
          %324 = vst.msk [vmem:[#allocation2 + $0x3c8] sm:$0xff] %vm202, -inf
          %325 = vst.msk [vmem:[#allocation2 + $0x3d0] sm:$0xff] %vm202, -inf
          %326 = vst.msk [vmem:[#allocation2 + $0x3d8] sm:$0xff] %vm202, -inf
          %327 = vst.msk [vmem:[#allocation2 + $0x3e0] sm:$0xff] %vm202, -inf
          %328 = vst.msk [vmem:[#allocation2 + $0x3e8] sm:$0xff] %vm202, -inf
          %329 = vst.msk [vmem:[#allocation2 + $0x3f0] sm:$0xff] %vm202, -inf
          %330 = vst.msk [vmem:[#allocation2 + $0x3f8] sm:$0xff] %vm202, -inf
          %331 = vst.msk [vmem:[#allocation3] sm:$0xff] %vm202, 0.0
          %332 = vst.msk [vmem:[#allocation3 + $0x8] sm:$0xff] %vm202, 0.0
          %333 = vst.msk [vmem:[#allocation3 + $0x10] sm:$0xff] %vm202, 0.0
          %334 = vst.msk [vmem:[#allocation3 + $0x18] sm:$0xff] %vm202, 0.0
          %335 = vst.msk [vmem:[#allocation3 + $0x20] sm:$0xff] %vm202, 0.0
          %336 = vst.msk [vmem:[#allocation3 + $0x28] sm:$0xff] %vm202, 0.0
          %337 = vst.msk [vmem:[#allocation3 + $0x30] sm:$0xff] %vm202, 0.0
          %338 = vst.msk [vmem:[#allocation3 + $0x38] sm:$0xff] %vm202, 0.0
          %339 = vst.msk [vmem:[#allocation3 + $0x40] sm:$0xff] %vm202, 0.0
          %340 = vst.msk [vmem:[#allocation3 + $0x48] sm:$0xff] %vm202, 0.0
          %341 = vst.msk [vmem:[#allocation3 + $0x50] sm:$0xff] %vm202, 0.0
          %342 = vst.msk [vmem:[#allocation3 + $0x58] sm:$0xff] %vm202, 0.0
          %343 = vst.msk [vmem:[#allocation3 + $0x60] sm:$0xff] %vm202, 0.0
          %344 = vst.msk [vmem:[#allocation3 + $0x68] sm:$0xff] %vm202, 0.0
          %345 = vst.msk [vmem:[#allocation3 + $0x70] sm:$0xff] %vm202, 0.0
          %346 = vst.msk [vmem:[#allocation3 + $0x78] sm:$0xff] %vm202, 0.0
          %347 = vst.msk [vmem:[#allocation3 + $0x80] sm:$0xff] %vm202, 0.0
          %348 = vst.msk [vmem:[#allocation3 + $0x88] sm:$0xff] %vm202, 0.0
          %349 = vst.msk [vmem:[#allocation3 + $0x90] sm:$0xff] %vm202, 0.0
          %350 = vst.msk [vmem:[#allocation3 + $0x98] sm:$0xff] %vm202, 0.0
          %351 = vst.msk [vmem:[#allocation3 + $0xa0] sm:$0xff] %vm202, 0.0
          %352 = vst.msk [vmem:[#allocation3 + $0xa8] sm:$0xff] %vm202, 0.0
          %353 = vst.msk [vmem:[#allocation3 + $0xb0] sm:$0xff] %vm202, 0.0
          %354 = vst.msk [vmem:[#allocation3 + $0xb8] sm:$0xff] %vm202, 0.0
          %355 = vst.msk [vmem:[#allocation3 + $0xc0] sm:$0xff] %vm202, 0.0
          %356 = vst.msk [vmem:[#allocation3 + $0xc8] sm:$0xff] %vm202, 0.0
          %357 = vst.msk [vmem:[#allocation3 + $0xd0] sm:$0xff] %vm202, 0.0
          %358 = vst.msk [vmem:[#allocation3 + $0xd8] sm:$0xff] %vm202, 0.0
          %359 = vst.msk [vmem:[#allocation3 + $0xe0] sm:$0xff] %vm202, 0.0
          %360 = vst.msk [vmem:[#allocation3 + $0xe8] sm:$0xff] %vm202, 0.0
          %361 = vst.msk [vmem:[#allocation3 + $0xf0] sm:$0xff] %vm202, 0.0
          %362 = vst.msk [vmem:[#allocation3 + $0xf8] sm:$0xff] %vm202, 0.0
          %363 = vst.msk [vmem:[#allocation3 + $0x100] sm:$0xff] %vm202, 0.0
          %364 = vst.msk [vmem:[#allocation3 + $0x108] sm:$0xff] %vm202, 0.0
          %365 = vst.msk [vmem:[#allocation3 + $0x110] sm:$0xff] %vm202, 0.0
          %366 = vst.msk [vmem:[#allocation3 + $0x118] sm:$0xff] %vm202, 0.0
          %367 = vst.msk [vmem:[#allocation3 + $0x120] sm:$0xff] %vm202, 0.0
          %368 = vst.msk [vmem:[#allocation3 + $0x128] sm:$0xff] %vm202, 0.0
          %369 = vst.msk [vmem:[#allocation3 + $0x130] sm:$0xff] %vm202, 0.0
          %370 = vst.msk [vmem:[#allocation3 + $0x138] sm:$0xff] %vm202, 0.0
          %371 = vst.msk [vmem:[#allocation3 + $0x140] sm:$0xff] %vm202, 0.0
          %372 = vst.msk [vmem:[#allocation3 + $0x148] sm:$0xff] %vm202, 0.0
          %373 = vst.msk [vmem:[#allocation3 + $0x150] sm:$0xff] %vm202, 0.0
          %374 = vst.msk [vmem:[#allocation3 + $0x158] sm:$0xff] %vm202, 0.0
          %375 = vst.msk [vmem:[#allocation3 + $0x160] sm:$0xff] %vm202, 0.0
          %376 = vst.msk [vmem:[#allocation3 + $0x168] sm:$0xff] %vm202, 0.0
          %377 = vst.msk [vmem:[#allocation3 + $0x170] sm:$0xff] %vm202, 0.0
          %378 = vst.msk [vmem:[#allocation3 + $0x178] sm:$0xff] %vm202, 0.0
          %379 = vst.msk [vmem:[#allocation3 + $0x180] sm:$0xff] %vm202, 0.0
          %380 = vst.msk [vmem:[#allocation3 + $0x188] sm:$0xff] %vm202, 0.0
          %381 = vst.msk [vmem:[#allocation3 + $0x190] sm:$0xff] %vm202, 0.0
          %382 = vst.msk [vmem:[#allocation3 + $0x198] sm:$0xff] %vm202, 0.0
          %383 = vst.msk [vmem:[#allocation3 + $0x1a0] sm:$0xff] %vm202, 0.0
          %384 = vst.msk [vmem:[#allocation3 + $0x1a8] sm:$0xff] %vm202, 0.0
          %385 = vst.msk [vmem:[#allocation3 + $0x1b0] sm:$0xff] %vm202, 0.0
          %386 = vst.msk [vmem:[#allocation3 + $0x1b8] sm:$0xff] %vm202, 0.0
          %387 = vst.msk [vmem:[#allocation3 + $0x1c0] sm:$0xff] %vm202, 0.0
          %388 = vst.msk [vmem:[#allocation3 + $0x1c8] sm:$0xff] %vm202, 0.0
          %389 = vst.msk [vmem:[#allocation3 + $0x1d0] sm:$0xff] %vm202, 0.0
          %390 = vst.msk [vmem:[#allocation3 + $0x1d8] sm:$0xff] %vm202, 0.0
          %391 = vst.msk [vmem:[#allocation3 + $0x1e0] sm:$0xff] %vm202, 0.0
          %392 = vst.msk [vmem:[#allocation3 + $0x1e8] sm:$0xff] %vm202, 0.0
          %393 = vst.msk [vmem:[#allocation3 + $0x1f0] sm:$0xff] %vm202, 0.0
          %394 = vst.msk [vmem:[#allocation3 + $0x1f8] sm:$0xff] %vm202, 0.0
          %395 = vst.msk [vmem:[#allocation3 + $0x200] sm:$0xff] %vm202, 0.0
          %396 = vst.msk [vmem:[#allocation3 + $0x208] sm:$0xff] %vm202, 0.0
          %397 = vst.msk [vmem:[#allocation3 + $0x210] sm:$0xff] %vm202, 0.0
          %398 = vst.msk [vmem:[#allocation3 + $0x218] sm:$0xff] %vm202, 0.0
          %399 = vst.msk [vmem:[#allocation3 + $0x220] sm:$0xff] %vm202, 0.0
          %400 = vst.msk [vmem:[#allocation3 + $0x228] sm:$0xff] %vm202, 0.0
          %401 = vst.msk [vmem:[#allocation3 + $0x230] sm:$0xff] %vm202, 0.0
          %402 = vst.msk [vmem:[#allocation3 + $0x238] sm:$0xff] %vm202, 0.0
          %403 = vst.msk [vmem:[#allocation3 + $0x240] sm:$0xff] %vm202, 0.0
          %404 = vst.msk [vmem:[#allocation3 + $0x248] sm:$0xff] %vm202, 0.0
          %405 = vst.msk [vmem:[#allocation3 + $0x250] sm:$0xff] %vm202, 0.0
          %406 = vst.msk [vmem:[#allocation3 + $0x258] sm:$0xff] %vm202, 0.0
          %407 = vst.msk [vmem:[#allocation3 + $0x260] sm:$0xff] %vm202, 0.0
          %408 = vst.msk [vmem:[#allocation3 + $0x268] sm:$0xff] %vm202, 0.0
          %409 = vst.msk [vmem:[#allocation3 + $0x270] sm:$0xff] %vm202, 0.0
          %410 = vst.msk [vmem:[#allocation3 + $0x278] sm:$0xff] %vm202, 0.0
          %411 = vst.msk [vmem:[#allocation3 + $0x280] sm:$0xff] %vm202, 0.0
          %412 = vst.msk [vmem:[#allocation3 + $0x288] sm:$0xff] %vm202, 0.0
          %413 = vst.msk [vmem:[#allocation3 + $0x290] sm:$0xff] %vm202, 0.0
          %414 = vst.msk [vmem:[#allocation3 + $0x298] sm:$0xff] %vm202, 0.0
          %415 = vst.msk [vmem:[#allocation3 + $0x2a0] sm:$0xff] %vm202, 0.0
          %416 = vst.msk [vmem:[#allocation3 + $0x2a8] sm:$0xff] %vm202, 0.0
          %417 = vst.msk [vmem:[#allocation3 + $0x2b0] sm:$0xff] %vm202, 0.0
          %418 = vst.msk [vmem:[#allocation3 + $0x2b8] sm:$0xff] %vm202, 0.0
          %419 = vst.msk [vmem:[#allocation3 + $0x2c0] sm:$0xff] %vm202, 0.0
          %420 = vst.msk [vmem:[#allocation3 + $0x2c8] sm:$0xff] %vm202, 0.0
          %421 = vst.msk [vmem:[#allocation3 + $0x2d0] sm:$0xff] %vm202, 0.0
          %422 = vst.msk [vmem:[#allocation3 + $0x2d8] sm:$0xff] %vm202, 0.0
          %423 = vst.msk [vmem:[#allocation3 + $0x2e0] sm:$0xff] %vm202, 0.0
          %424 = vst.msk [vmem:[#allocation3 + $0x2e8] sm:$0xff] %vm202, 0.0
          %425 = vst.msk [vmem:[#allocation3 + $0x2f0] sm:$0xff] %vm202, 0.0
          %426 = vst.msk [vmem:[#allocation3 + $0x2f8] sm:$0xff] %vm202, 0.0
          %427 = vst.msk [vmem:[#allocation3 + $0x300] sm:$0xff] %vm202, 0.0
          %428 = vst.msk [vmem:[#allocation3 + $0x308] sm:$0xff] %vm202, 0.0
          %429 = vst.msk [vmem:[#allocation3 + $0x310] sm:$0xff] %vm202, 0.0
          %430 = vst.msk [vmem:[#allocation3 + $0x318] sm:$0xff] %vm202, 0.0
          %431 = vst.msk [vmem:[#allocation3 + $0x320] sm:$0xff] %vm202, 0.0
          %432 = vst.msk [vmem:[#allocation3 + $0x328] sm:$0xff] %vm202, 0.0
          %433 = vst.msk [vmem:[#allocation3 + $0x330] sm:$0xff] %vm202, 0.0
          %434 = vst.msk [vmem:[#allocation3 + $0x338] sm:$0xff] %vm202, 0.0
          %435 = vst.msk [vmem:[#allocation3 + $0x340] sm:$0xff] %vm202, 0.0
          %436 = vst.msk [vmem:[#allocation3 + $0x348] sm:$0xff] %vm202, 0.0
          %437 = vst.msk [vmem:[#allocation3 + $0x350] sm:$0xff] %vm202, 0.0
          %438 = vst.msk [vmem:[#allocation3 + $0x358] sm:$0xff] %vm202, 0.0
          %439 = vst.msk [vmem:[#allocation3 + $0x360] sm:$0xff] %vm202, 0.0
          %440 = vst.msk [vmem:[#allocation3 + $0x368] sm:$0xff] %vm202, 0.0
          %441 = vst.msk [vmem:[#allocation3 + $0x370] sm:$0xff] %vm202, 0.0
          %442 = vst.msk [vmem:[#allocation3 + $0x378] sm:$0xff] %vm202, 0.0
          %443 = vst.msk [vmem:[#allocation3 + $0x380] sm:$0xff] %vm202, 0.0
          %444 = vst.msk [vmem:[#allocation3 + $0x388] sm:$0xff] %vm202, 0.0
          %445 = vst.msk [vmem:[#allocation3 + $0x390] sm:$0xff] %vm202, 0.0
          %446 = vst.msk [vmem:[#allocation3 + $0x398] sm:$0xff] %vm202, 0.0
          %447 = vst.msk [vmem:[#allocation3 + $0x3a0] sm:$0xff] %vm202, 0.0
          %448 = vst.msk [vmem:[#allocation3 + $0x3a8] sm:$0xff] %vm202, 0.0
          %449 = vst.msk [vmem:[#allocation3 + $0x3b0] sm:$0xff] %vm202, 0.0
          %450 = vst.msk [vmem:[#allocation3 + $0x3b8] sm:$0xff] %vm202, 0.0
          %451 = vst.msk [vmem:[#allocation3 + $0x3c0] sm:$0xff] %vm202, 0.0
          %452 = vst.msk [vmem:[#allocation3 + $0x3c8] sm:$0xff] %vm202, 0.0
          %453 = vst.msk [vmem:[#allocation3 + $0x3d0] sm:$0xff] %vm202, 0.0
          %454 = vst.msk [vmem:[#allocation3 + $0x3d8] sm:$0xff] %vm202, 0.0
          %455 = vst.msk [vmem:[#allocation3 + $0x3e0] sm:$0xff] %vm202, 0.0
          %456 = vst.msk [vmem:[#allocation3 + $0x3e8] sm:$0xff] %vm202, 0.0
          %457 = vst.msk [vmem:[#allocation3 + $0x3f0] sm:$0xff] %vm202, 0.0
          %458 = vst.msk [vmem:[#allocation3 + $0x3f8] sm:$0xff] %vm202, 0.0
          %vm459 = vcmask 64512
          %460 = vst.msk [vmem:[#allocation4] sm:$0xff] %vm459, 0.0
          %461 = vst.msk [vmem:[#allocation4 + $0x8] sm:$0xff] %vm459, 0.0
          %462 = vst.msk [vmem:[#allocation4 + $0x10] sm:$0xff] %vm459, 0.0
          %463 = vst.msk [vmem:[#allocation4 + $0x18] sm:$0xff] %vm459, 0.0
          %464 = vst.msk [vmem:[#allocation4 + $0x20] sm:$0xff] %vm459, 0.0
          %465 = vst.msk [vmem:[#allocation4 + $0x28] sm:$0xff] %vm459, 0.0
          %466 = vst.msk [vmem:[#allocation4 + $0x30] sm:$0xff] %vm459, 0.0
          %467 = vst.msk [vmem:[#allocation4 + $0x38] sm:$0xff] %vm459, 0.0
          %468 = vst.msk [vmem:[#allocation4 + $0x40] sm:$0xff] %vm459, 0.0
          %469 = vst.msk [vmem:[#allocation4 + $0x48] sm:$0xff] %vm459, 0.0
          %470 = vst.msk [vmem:[#allocation4 + $0x50] sm:$0xff] %vm459, 0.0
          %471 = vst.msk [vmem:[#allocation4 + $0x58] sm:$0xff] %vm459, 0.0
          %472 = vst.msk [vmem:[#allocation4 + $0x60] sm:$0xff] %vm459, 0.0
          %473 = vst.msk [vmem:[#allocation4 + $0x68] sm:$0xff] %vm459, 0.0
          %474 = vst.msk [vmem:[#allocation4 + $0x70] sm:$0xff] %vm459, 0.0
          %475 = vst.msk [vmem:[#allocation4 + $0x78] sm:$0xff] %vm459, 0.0
          %476 = vst.msk [vmem:[#allocation4 + $0x80] sm:$0xff] %vm459, 0.0
          %477 = vst.msk [vmem:[#allocation4 + $0x88] sm:$0xff] %vm459, 0.0
          %478 = vst.msk [vmem:[#allocation4 + $0x90] sm:$0xff] %vm459, 0.0
          %479 = vst.msk [vmem:[#allocation4 + $0x98] sm:$0xff] %vm459, 0.0
          %480 = vst.msk [vmem:[#allocation4 + $0xa0] sm:$0xff] %vm459, 0.0
          %481 = vst.msk [vmem:[#allocation4 + $0xa8] sm:$0xff] %vm459, 0.0
          %482 = vst.msk [vmem:[#allocation4 + $0xb0] sm:$0xff] %vm459, 0.0
          %483 = vst.msk [vmem:[#allocation4 + $0xb8] sm:$0xff] %vm459, 0.0
          %484 = vst.msk [vmem:[#allocation4 + $0xc0] sm:$0xff] %vm459, 0.0
          %485 = vst.msk [vmem:[#allocation4 + $0xc8] sm:$0xff] %vm459, 0.0
          %486 = vst.msk [vmem:[#allocation4 + $0xd0] sm:$0xff] %vm459, 0.0
          %487 = vst.msk [vmem:[#allocation4 + $0xd8] sm:$0xff] %vm459, 0.0
          %488 = vst.msk [vmem:[#allocation4 + $0xe0] sm:$0xff] %vm459, 0.0
          %489 = vst.msk [vmem:[#allocation4 + $0xe8] sm:$0xff] %vm459, 0.0
          %490 = vst.msk [vmem:[#allocation4 + $0xf0] sm:$0xff] %vm459, 0.0
          %491 = vst.msk [vmem:[#allocation4 + $0xf8] sm:$0xff] %vm459, 0.0
          %492 = vst.msk [vmem:[#allocation4 + $0x100] sm:$0xff] %vm459, 0.0
          %493 = vst.msk [vmem:[#allocation4 + $0x108] sm:$0xff] %vm459, 0.0
          %494 = vst.msk [vmem:[#allocation4 + $0x110] sm:$0xff] %vm459, 0.0
          %495 = vst.msk [vmem:[#allocation4 + $0x118] sm:$0xff] %vm459, 0.0
          %496 = vst.msk [vmem:[#allocation4 + $0x120] sm:$0xff] %vm459, 0.0
          %497 = vst.msk [vmem:[#allocation4 + $0x128] sm:$0xff] %vm459, 0.0
          %498 = vst.msk [vmem:[#allocation4 + $0x130] sm:$0xff] %vm459, 0.0
          %499 = vst.msk [vmem:[#allocation4 + $0x138] sm:$0xff] %vm459, 0.0
          %500 = vst.msk [vmem:[#allocation4 + $0x140] sm:$0xff] %vm459, 0.0
          %501 = vst.msk [vmem:[#allocation4 + $0x148] sm:$0xff] %vm459, 0.0
          %502 = vst.msk [vmem:[#allocation4 + $0x150] sm:$0xff] %vm459, 0.0
          %503 = vst.msk [vmem:[#allocation4 + $0x158] sm:$0xff] %vm459, 0.0
          %504 = vst.msk [vmem:[#allocation4 + $0x160] sm:$0xff] %vm459, 0.0
          %505 = vst.msk [vmem:[#allocation4 + $0x168] sm:$0xff] %vm459, 0.0
          %506 = vst.msk [vmem:[#allocation4 + $0x170] sm:$0xff] %vm459, 0.0
          %507 = vst.msk [vmem:[#allocation4 + $0x178] sm:$0xff] %vm459, 0.0
          %508 = vst.msk [vmem:[#allocation4 + $0x180] sm:$0xff] %vm459, 0.0
          %509 = vst.msk [vmem:[#allocation4 + $0x188] sm:$0xff] %vm459, 0.0
          %510 = vst.msk [vmem:[#allocation4 + $0x190] sm:$0xff] %vm459, 0.0
          %511 = vst.msk [vmem:[#allocation4 + $0x198] sm:$0xff] %vm459, 0.0
          %512 = vst.msk [vmem:[#allocation4 + $0x1a0] sm:$0xff] %vm459, 0.0
          %513 = vst.msk [vmem:[#allocation4 + $0x1a8] sm:$0xff] %vm459, 0.0
          %514 = vst.msk [vmem:[#allocation4 + $0x1b0] sm:$0xff] %vm459, 0.0
          %515 = vst.msk [vmem:[#allocation4 + $0x1b8] sm:$0xff] %vm459, 0.0
          %516 = vst.msk [vmem:[#allocation4 + $0x1c0] sm:$0xff] %vm459, 0.0
          %517 = vst.msk [vmem:[#allocation4 + $0x1c8] sm:$0xff] %vm459, 0.0
          %518 = vst.msk [vmem:[#allocation4 + $0x1d0] sm:$0xff] %vm459, 0.0
          %519 = vst.msk [vmem:[#allocation4 + $0x1d8] sm:$0xff] %vm459, 0.0
          %520 = vst.msk [vmem:[#allocation4 + $0x1e0] sm:$0xff] %vm459, 0.0
          %521 = vst.msk [vmem:[#allocation4 + $0x1e8] sm:$0xff] %vm459, 0.0
          %522 = vst.msk [vmem:[#allocation4 + $0x1f0] sm:$0xff] %vm459, 0.0
          %523 = vst.msk [vmem:[#allocation4 + $0x1f8] sm:$0xff] %vm459, 0.0
          %524 = vst.msk [vmem:[#allocation4 + $0x200] sm:$0xff] %vm459, 0.0
          %525 = vst.msk [vmem:[#allocation4 + $0x208] sm:$0xff] %vm459, 0.0
          %526 = vst.msk [vmem:[#allocation4 + $0x210] sm:$0xff] %vm459, 0.0
          %527 = vst.msk [vmem:[#allocation4 + $0x218] sm:$0xff] %vm459, 0.0
          %528 = vst.msk [vmem:[#allocation4 + $0x220] sm:$0xff] %vm459, 0.0
          %529 = vst.msk [vmem:[#allocation4 + $0x228] sm:$0xff] %vm459, 0.0
          %530 = vst.msk [vmem:[#allocation4 + $0x230] sm:$0xff] %vm459, 0.0
          %531 = vst.msk [vmem:[#allocation4 + $0x238] sm:$0xff] %vm459, 0.0
          %532 = vst.msk [vmem:[#allocation4 + $0x240] sm:$0xff] %vm459, 0.0
          %533 = vst.msk [vmem:[#allocation4 + $0x248] sm:$0xff] %vm459, 0.0
          %534 = vst.msk [vmem:[#allocation4 + $0x250] sm:$0xff] %vm459, 0.0
          %535 = vst.msk [vmem:[#allocation4 + $0x258] sm:$0xff] %vm459, 0.0
          %536 = vst.msk [vmem:[#allocation4 + $0x260] sm:$0xff] %vm459, 0.0
          %537 = vst.msk [vmem:[#allocation4 + $0x268] sm:$0xff] %vm459, 0.0
          %538 = vst.msk [vmem:[#allocation4 + $0x270] sm:$0xff] %vm459, 0.0
          %539 = vst.msk [vmem:[#allocation4 + $0x278] sm:$0xff] %vm459, 0.0
          %540 = vst.msk [vmem:[#allocation4 + $0x280] sm:$0xff] %vm459, 0.0
          %541 = vst.msk [vmem:[#allocation4 + $0x288] sm:$0xff] %vm459, 0.0
          %542 = vst.msk [vmem:[#allocation4 + $0x290] sm:$0xff] %vm459, 0.0
          %543 = vst.msk [vmem:[#allocation4 + $0x298] sm:$0xff] %vm459, 0.0
          %544 = vst.msk [vmem:[#allocation4 + $0x2a0] sm:$0xff] %vm459, 0.0
          %545 = vst.msk [vmem:[#allocation4 + $0x2a8] sm:$0xff] %vm459, 0.0
          %546 = vst.msk [vmem:[#allocation4 + $0x2b0] sm:$0xff] %vm459, 0.0
          %547 = vst.msk [vmem:[#allocation4 + $0x2b8] sm:$0xff] %vm459, 0.0
          %548 = vst.msk [vmem:[#allocation4 + $0x2c0] sm:$0xff] %vm459, 0.0
          %549 = vst.msk [vmem:[#allocation4 + $0x2c8] sm:$0xff] %vm459, 0.0
          %550 = vst.msk [vmem:[#allocation4 + $0x2d0] sm:$0xff] %vm459, 0.0
          %551 = vst.msk [vmem:[#allocation4 + $0x2d8] sm:$0xff] %vm459, 0.0
          %552 = vst.msk [vmem:[#allocation4 + $0x2e0] sm:$0xff] %vm459, 0.0
          %553 = vst.msk [vmem:[#allocation4 + $0x2e8] sm:$0xff] %vm459, 0.0
          %554 = vst.msk [vmem:[#allocation4 + $0x2f0] sm:$0xff] %vm459, 0.0
          %555 = vst.msk [vmem:[#allocation4 + $0x2f8] sm:$0xff] %vm459, 0.0
          %556 = vst.msk [vmem:[#allocation4 + $0x300] sm:$0xff] %vm459, 0.0
          %557 = vst.msk [vmem:[#allocation4 + $0x308] sm:$0xff] %vm459, 0.0
          %558 = vst.msk [vmem:[#allocation4 + $0x310] sm:$0xff] %vm459, 0.0
          %559 = vst.msk [vmem:[#allocation4 + $0x318] sm:$0xff] %vm459, 0.0
          %560 = vst.msk [vmem:[#allocation4 + $0x320] sm:$0xff] %vm459, 0.0
          %561 = vst.msk [vmem:[#allocation4 + $0x328] sm:$0xff] %vm459, 0.0
          %562 = vst.msk [vmem:[#allocation4 + $0x330] sm:$0xff] %vm459, 0.0
          %563 = vst.msk [vmem:[#allocation4 + $0x338] sm:$0xff] %vm459, 0.0
          %564 = vst.msk [vmem:[#allocation4 + $0x340] sm:$0xff] %vm459, 0.0
          %565 = vst.msk [vmem:[#allocation4 + $0x348] sm:$0xff] %vm459, 0.0
          %566 = vst.msk [vmem:[#allocation4 + $0x350] sm:$0xff] %vm459, 0.0
          %567 = vst.msk [vmem:[#allocation4 + $0x358] sm:$0xff] %vm459, 0.0
          %568 = vst.msk [vmem:[#allocation4 + $0x360] sm:$0xff] %vm459, 0.0
          %569 = vst.msk [vmem:[#allocation4 + $0x368] sm:$0xff] %vm459, 0.0
          %570 = vst.msk [vmem:[#allocation4 + $0x370] sm:$0xff] %vm459, 0.0
          %571 = vst.msk [vmem:[#allocation4 + $0x378] sm:$0xff] %vm459, 0.0
          %572 = vst.msk [vmem:[#allocation4 + $0x380] sm:$0xff] %vm459, 0.0
          %573 = vst.msk [vmem:[#allocation4 + $0x388] sm:$0xff] %vm459, 0.0
          %574 = vst.msk [vmem:[#allocation4 + $0x390] sm:$0xff] %vm459, 0.0
          %575 = vst.msk [vmem:[#allocation4 + $0x398] sm:$0xff] %vm459, 0.0
          %576 = vst.msk [vmem:[#allocation4 + $0x3a0] sm:$0xff] %vm459, 0.0
          %577 = vst.msk [vmem:[#allocation4 + $0x3a8] sm:$0xff] %vm459, 0.0
          %578 = vst.msk [vmem:[#allocation4 + $0x3b0] sm:$0xff] %vm459, 0.0
          %579 = vst.msk [vmem:[#allocation4 + $0x3b8] sm:$0xff] %vm459, 0.0
          %580 = vst.msk [vmem:[#allocation4 + $0x3c0] sm:$0xff] %vm459, 0.0
          %581 = vst.msk [vmem:[#allocation4 + $0x3c8] sm:$0xff] %vm459, 0.0
          %582 = vst.msk [vmem:[#allocation4 + $0x3d0] sm:$0xff] %vm459, 0.0
          %583 = vst.msk [vmem:[#allocation4 + $0x3d8] sm:$0xff] %vm459, 0.0
          %584 = vst.msk [vmem:[#allocation4 + $0x3e0] sm:$0xff] %vm459, 0.0
          %585 = vst.msk [vmem:[#allocation4 + $0x3e8] sm:$0xff] %vm459, 0.0
          %586 = vst.msk [vmem:[#allocation4 + $0x3f0] sm:$0xff] %vm459, 0.0
          %587 = vst.msk [vmem:[#allocation4 + $0x3f8] sm:$0xff] %vm459, 0.0
        $region36: #{tpu_custom_call.1} parent=31 // pred_fallthru
          _
        %v588 = vld [vmem:[%s195] sm:$0xf]
        %v589 = vld [vmem:[%s195 + $0x4] sm:$0xf]
        %v590 = vld [vmem:[%s195 + $0x8] sm:$0xf]
        %v591 = vld [vmem:[%s195 + $0xc] sm:$0xf]
        %v592 = vld [vmem:[%s195 + $0x10] sm:$0xf]
        %v593 = vld [vmem:[%s195 + $0x14] sm:$0xf]
        %v594 = vld [vmem:[%s195 + $0x18] sm:$0xf]
        %v595 = vld [vmem:[%s195 + $0x1c] sm:$0xf]
        %v596 = vld [vmem:[%s195 + $0x20] sm:$0xf]
        %v597 = vld [vmem:[%s195 + $0x24] sm:$0xf]
        %v598 = vld [vmem:[%s195 + $0x28] sm:$0xf]
        %v599 = vld [vmem:[%s195 + $0x2c] sm:$0xf]
        %v600 = vld [vmem:[%s195 + $0x30] sm:$0xf]
        %v601 = vld [vmem:[%s195 + $0x34] sm:$0xf]
        %v602 = vld [vmem:[%s195 + $0x38] sm:$0xf]
        %v603 = vld [vmem:[%s195 + $0x3c] sm:$0xf]
        %v604 = vld [vmem:[%s195 + $0x40] sm:$0xf]
        %v605 = vld [vmem:[%s195 + $0x44] sm:$0xf]
        %v606 = vld [vmem:[%s195 + $0x48] sm:$0xf]
        %v607 = vld [vmem:[%s195 + $0x4c] sm:$0xf]
        %v608 = vld [vmem:[%s195 + $0x50] sm:$0xf]
        %v609 = vld [vmem:[%s195 + $0x54] sm:$0xf]
        %v610 = vld [vmem:[%s195 + $0x58] sm:$0xf]
        %v611 = vld [vmem:[%s195 + $0x5c] sm:$0xf]
        %v612 = vld [vmem:[%s195 + $0x60] sm:$0xf]
        %v613 = vld [vmem:[%s195 + $0x64] sm:$0xf]
        %v614 = vld [vmem:[%s195 + $0x68] sm:$0xf]
        %v615 = vld [vmem:[%s195 + $0x6c] sm:$0xf]
        %v616 = vld [vmem:[%s195 + $0x70] sm:$0xf]
        %v617 = vld [vmem:[%s195 + $0x74] sm:$0xf]
        %v618 = vld [vmem:[%s195 + $0x78] sm:$0xf]
        %v619 = vld [vmem:[%s195 + $0x7c] sm:$0xf]
        %v620 = vld [vmem:[%s195 + $0x80] sm:$0xf]
        %v621 = vld [vmem:[%s195 + $0x84] sm:$0xf]
        %v622 = vld [vmem:[%s195 + $0x88] sm:$0xf]
        %v623 = vld [vmem:[%s195 + $0x8c] sm:$0xf]
        %v624 = vld [vmem:[%s195 + $0x90] sm:$0xf]
        %v625 = vld [vmem:[%s195 + $0x94] sm:$0xf]
        %v626 = vld [vmem:[%s195 + $0x98] sm:$0xf]
        %v627 = vld [vmem:[%s195 + $0x9c] sm:$0xf]
        %v628 = vld [vmem:[%s195 + $0xa0] sm:$0xf]
        %v629 = vld [vmem:[%s195 + $0xa4] sm:$0xf]
        %v630 = vld [vmem:[%s195 + $0xa8] sm:$0xf]
        %v631 = vld [vmem:[%s195 + $0xac] sm:$0xf]
        %v632 = vld [vmem:[%s195 + $0xb0] sm:$0xf]
        %v633 = vld [vmem:[%s195 + $0xb4] sm:$0xf]
        %v634 = vld [vmem:[%s195 + $0xb8] sm:$0xf]
        %v635 = vld [vmem:[%s195 + $0xbc] sm:$0xf]
        %v636 = vld [vmem:[%s195 + $0xc0] sm:$0xf]
        %v637 = vld [vmem:[%s195 + $0xc4] sm:$0xf]
        %v638 = vld [vmem:[%s195 + $0xc8] sm:$0xf]
        %v639 = vld [vmem:[%s195 + $0xcc] sm:$0xf]
        %v640 = vld [vmem:[%s195 + $0xd0] sm:$0xf]
        %v641 = vld [vmem:[%s195 + $0xd4] sm:$0xf]
        %v642 = vld [vmem:[%s195 + $0xd8] sm:$0xf]
        %v643 = vld [vmem:[%s195 + $0xdc] sm:$0xf]
        %v644 = vld [vmem:[%s195 + $0xe0] sm:$0xf]
        %v645 = vld [vmem:[%s195 + $0xe4] sm:$0xf]
        %v646 = vld [vmem:[%s195 + $0xe8] sm:$0xf]
        %v647 = vld [vmem:[%s195 + $0xec] sm:$0xf]
        %v648 = vld [vmem:[%s195 + $0xf0] sm:$0xf]
        %v649 = vld [vmem:[%s195 + $0xf4] sm:$0xf]
        %v650 = vld [vmem:[%s195 + $0xf8] sm:$0xf]
        %v651 = vld [vmem:[%s195 + $0xfc] sm:$0xf]
        %v652 = vld [vmem:[%s195 + $0x100] sm:$0xf]
        %v653 = vld [vmem:[%s195 + $0x104] sm:$0xf]
        %v654 = vld [vmem:[%s195 + $0x108] sm:$0xf]
        %v655 = vld [vmem:[%s195 + $0x10c] sm:$0xf]
        %v656 = vld [vmem:[%s195 + $0x110] sm:$0xf]
        %v657 = vld [vmem:[%s195 + $0x114] sm:$0xf]
        %v658 = vld [vmem:[%s195 + $0x118] sm:$0xf]
        %v659 = vld [vmem:[%s195 + $0x11c] sm:$0xf]
        %v660 = vld [vmem:[%s195 + $0x120] sm:$0xf]
        %v661 = vld [vmem:[%s195 + $0x124] sm:$0xf]
        %v662 = vld [vmem:[%s195 + $0x128] sm:$0xf]
        %v663 = vld [vmem:[%s195 + $0x12c] sm:$0xf]
        %v664 = vld [vmem:[%s195 + $0x130] sm:$0xf]
        %v665 = vld [vmem:[%s195 + $0x134] sm:$0xf]
        %v666 = vld [vmem:[%s195 + $0x138] sm:$0xf]
        %v667 = vld [vmem:[%s195 + $0x13c] sm:$0xf]
        %v668 = vld [vmem:[%s195 + $0x140] sm:$0xf]
        %v669 = vld [vmem:[%s195 + $0x144] sm:$0xf]
        %v670 = vld [vmem:[%s195 + $0x148] sm:$0xf]
        %v671 = vld [vmem:[%s195 + $0x14c] sm:$0xf]
        %v672 = vld [vmem:[%s195 + $0x150] sm:$0xf]
        %v673 = vld [vmem:[%s195 + $0x154] sm:$0xf]
        %v674 = vld [vmem:[%s195 + $0x158] sm:$0xf]
        %v675 = vld [vmem:[%s195 + $0x15c] sm:$0xf]
        %v676 = vld [vmem:[%s195 + $0x160] sm:$0xf]
        %v677 = vld [vmem:[%s195 + $0x164] sm:$0xf]
        %v678 = vld [vmem:[%s195 + $0x168] sm:$0xf]
        %v679 = vld [vmem:[%s195 + $0x16c] sm:$0xf]
        %v680 = vld [vmem:[%s195 + $0x170] sm:$0xf]
        %v681 = vld [vmem:[%s195 + $0x174] sm:$0xf]
        %v682 = vld [vmem:[%s195 + $0x178] sm:$0xf]
        %v683 = vld [vmem:[%s195 + $0x17c] sm:$0xf]
        %v684 = vld [vmem:[%s195 + $0x180] sm:$0xf]
        %v685 = vld [vmem:[%s195 + $0x184] sm:$0xf]
        %v686 = vld [vmem:[%s195 + $0x188] sm:$0xf]
        %v687 = vld [vmem:[%s195 + $0x18c] sm:$0xf]
        %v688 = vld [vmem:[%s195 + $0x190] sm:$0xf]
        %v689 = vld [vmem:[%s195 + $0x194] sm:$0xf]
        %v690 = vld [vmem:[%s195 + $0x198] sm:$0xf]
        %v691 = vld [vmem:[%s195 + $0x19c] sm:$0xf]
        %v692 = vld [vmem:[%s195 + $0x1a0] sm:$0xf]
        %v693 = vld [vmem:[%s195 + $0x1a4] sm:$0xf]
        %v694 = vld [vmem:[%s195 + $0x1a8] sm:$0xf]
        %v695 = vld [vmem:[%s195 + $0x1ac] sm:$0xf]
        %v696 = vld [vmem:[%s195 + $0x1b0] sm:$0xf]
        %v697 = vld [vmem:[%s195 + $0x1b4] sm:$0xf]
        %v698 = vld [vmem:[%s195 + $0x1b8] sm:$0xf]
        %v699 = vld [vmem:[%s195 + $0x1bc] sm:$0xf]
        %v700 = vld [vmem:[%s195 + $0x1c0] sm:$0xf]
        %v701 = vld [vmem:[%s195 + $0x1c4] sm:$0xf]
        %v702 = vld [vmem:[%s195 + $0x1c8] sm:$0xf]
        %v703 = vld [vmem:[%s195 + $0x1cc] sm:$0xf]
        %v704 = vld [vmem:[%s195 + $0x1d0] sm:$0xf]
        %v705 = vld [vmem:[%s195 + $0x1d4] sm:$0xf]
        %v706 = vld [vmem:[%s195 + $0x1d8] sm:$0xf]
        %v707 = vld [vmem:[%s195 + $0x1dc] sm:$0xf]
        %v708 = vld [vmem:[%s195 + $0x1e0] sm:$0xf]
        %v709 = vld [vmem:[%s195 + $0x1e4] sm:$0xf]
        %v710 = vld [vmem:[%s195 + $0x1e8] sm:$0xf]
        %v711 = vld [vmem:[%s195 + $0x1ec] sm:$0xf]
        %v712 = vld [vmem:[%s195 + $0x1f0] sm:$0xf]
        %v713 = vld [vmem:[%s195 + $0x1f4] sm:$0xf]
        %v714 = vld [vmem:[%s195 + $0x1f8] sm:$0xf]
        %v715 = vld [vmem:[%s195 + $0x1fc] sm:$0xf]
        %v716 = vld [vmem:[%s1] sm:$0xf]
        %v717 = vld [vmem:[%s1 + $0x4] sm:$0xf]
        %v718 = vld [vmem:[%s1 + $0x8] sm:$0xf]
        %v719 = vld [vmem:[%s1 + $0xc] sm:$0xf]
        %v848 = vunpack.c.l.b16 %v588
        %v849 = vunpack.c.l.b16 %v589
        %v850 = vunpack.c.l.b16 %v590
        %v851 = vunpack.c.l.b16 %v591
        %v852 = vunpack.c.l.b16 %v592
        %v853 = vunpack.c.l.b16 %v593
        %v854 = vunpack.c.l.b16 %v594
        %v855 = vunpack.c.l.b16 %v595
        %v856 = vunpack.c.l.b16 %v596
        %v857 = vunpack.c.l.b16 %v597
        %v858 = vunpack.c.l.b16 %v598
        %v859 = vunpack.c.l.b16 %v599
        %v860 = vunpack.c.l.b16 %v600
        %v861 = vunpack.c.l.b16 %v601
        %v862 = vunpack.c.l.b16 %v602
        %v863 = vunpack.c.l.b16 %v603
        %v864 = vunpack.c.l.b16 %v604
        %v865 = vunpack.c.l.b16 %v605
        %v866 = vunpack.c.l.b16 %v606
        %v867 = vunpack.c.l.b16 %v607
        %v868 = vunpack.c.l.b16 %v608
        %v869 = vunpack.c.l.b16 %v609
        %v870 = vunpack.c.l.b16 %v610
        %v871 = vunpack.c.l.b16 %v611
        %v872 = vunpack.c.l.b16 %v612
        %v873 = vunpack.c.l.b16 %v613
        %v874 = vunpack.c.l.b16 %v614
        %v875 = vunpack.c.l.b16 %v615
        %v876 = vunpack.c.l.b16 %v616
        %v877 = vunpack.c.l.b16 %v617
        %v878 = vunpack.c.l.b16 %v618
        %v879 = vunpack.c.l.b16 %v619
        %v880 = vunpack.c.l.b16 %v620
        %v881 = vunpack.c.l.b16 %v621
        %v882 = vunpack.c.l.b16 %v622
        %v883 = vunpack.c.l.b16 %v623
        %v884 = vunpack.c.l.b16 %v624
        %v885 = vunpack.c.l.b16 %v625
        %v886 = vunpack.c.l.b16 %v626
        %v887 = vunpack.c.l.b16 %v627
        %v888 = vunpack.c.l.b16 %v628
        %v889 = vunpack.c.l.b16 %v629
        %v890 = vunpack.c.l.b16 %v630
        %v891 = vunpack.c.l.b16 %v631
        %v892 = vunpack.c.l.b16 %v632
        %v893 = vunpack.c.l.b16 %v633
        %v894 = vunpack.c.l.b16 %v634
        %v895 = vunpack.c.l.b16 %v635
        %v896 = vunpack.c.l.b16 %v636
        %v897 = vunpack.c.l.b16 %v637
        %v898 = vunpack.c.l.b16 %v638
        %v899 = vunpack.c.l.b16 %v639
        %v900 = vunpack.c.l.b16 %v640
        %v901 = vunpack.c.l.b16 %v641
        %v902 = vunpack.c.l.b16 %v642
        %v903 = vunpack.c.l.b16 %v643
        %v904 = vunpack.c.l.b16 %v644
        %v905 = vunpack.c.l.b16 %v645
        %v906 = vunpack.c.l.b16 %v646
        %v907 = vunpack.c.l.b16 %v647
        %v908 = vunpack.c.l.b16 %v648
        %v909 = vunpack.c.l.b16 %v649
        %v910 = vunpack.c.l.b16 %v650
        %v911 = vunpack.c.l.b16 %v651
        %v912 = vunpack.c.l.b16 %v652
        %v913 = vunpack.c.l.b16 %v653
        %v914 = vunpack.c.l.b16 %v654
        %v915 = vunpack.c.l.b16 %v655
        %v916 = vunpack.c.l.b16 %v656
        %v917 = vunpack.c.l.b16 %v657
        %v918 = vunpack.c.l.b16 %v658
        %v919 = vunpack.c.l.b16 %v659
        %v920 = vunpack.c.l.b16 %v660
        %v921 = vunpack.c.l.b16 %v661
        %v922 = vunpack.c.l.b16 %v662
        %v923 = vunpack.c.l.b16 %v663
        %v924 = vunpack.c.l.b16 %v664
        %v925 = vunpack.c.l.b16 %v665
        %v926 = vunpack.c.l.b16 %v666
        %v927 = vunpack.c.l.b16 %v667
        %v928 = vunpack.c.l.b16 %v668
        %v929 = vunpack.c.l.b16 %v669
        %v930 = vunpack.c.l.b16 %v670
        %v931 = vunpack.c.l.b16 %v671
        %v932 = vunpack.c.l.b16 %v672
        %v933 = vunpack.c.l.b16 %v673
        %v934 = vunpack.c.l.b16 %v674
        %v935 = vunpack.c.l.b16 %v675
        %v936 = vunpack.c.l.b16 %v676
        %v937 = vunpack.c.l.b16 %v677
        %v938 = vunpack.c.l.b16 %v678
        %v939 = vunpack.c.l.b16 %v679
        %v940 = vunpack.c.l.b16 %v680
        %v941 = vunpack.c.l.b16 %v681
        %v942 = vunpack.c.l.b16 %v682
        %v943 = vunpack.c.l.b16 %v683
        %v944 = vunpack.c.l.b16 %v684
        %v945 = vunpack.c.l.b16 %v685
        %v946 = vunpack.c.l.b16 %v686
        %v947 = vunpack.c.l.b16 %v687
        %v948 = vunpack.c.l.b16 %v688
        %v949 = vunpack.c.l.b16 %v689
        %v950 = vunpack.c.l.b16 %v690
        %v951 = vunpack.c.l.b16 %v691
        %v952 = vunpack.c.l.b16 %v692
        %v953 = vunpack.c.l.b16 %v693
        %v954 = vunpack.c.l.b16 %v694
        %v955 = vunpack.c.l.b16 %v695
        %v956 = vunpack.c.l.b16 %v696
        %v957 = vunpack.c.l.b16 %v697
        %v958 = vunpack.c.l.b16 %v698
        %v959 = vunpack.c.l.b16 %v699
        %v960 = vunpack.c.l.b16 %v700
        %v961 = vunpack.c.l.b16 %v701
        %v962 = vunpack.c.l.b16 %v702
        %v963 = vunpack.c.l.b16 %v703
        %v964 = vunpack.c.l.b16 %v704
        %v965 = vunpack.c.l.b16 %v705
        %v966 = vunpack.c.l.b16 %v706
        %v967 = vunpack.c.l.b16 %v707
        %v968 = vunpack.c.l.b16 %v708
        %v969 = vunpack.c.l.b16 %v709
        %v970 = vunpack.c.l.b16 %v710
        %v971 = vunpack.c.l.b16 %v711
        %v972 = vunpack.c.l.b16 %v712
        %v973 = vunpack.c.l.b16 %v713
        %v974 = vunpack.c.l.b16 %v714
        %v975 = vunpack.c.l.b16 %v715
        %v976 = vpack.c.b16 %v849, %v848
        %v977 = vpack.c.b16 %v851, %v850
        %v978 = vpack.c.b16 %v853, %v852
        %v979 = vpack.c.b16 %v855, %v854
        %v980 = vpack.c.b16 %v857, %v856
        %v981 = vpack.c.b16 %v859, %v858
        %v982 = vpack.c.b16 %v861, %v860
        %v983 = vpack.c.b16 %v863, %v862
        %v984 = vpack.c.b16 %v865, %v864
        %v985 = vpack.c.b16 %v867, %v866
        %v986 = vpack.c.b16 %v869, %v868
        %v987 = vpack.c.b16 %v871, %v870
        %v988 = vpack.c.b16 %v873, %v872
        %v989 = vpack.c.b16 %v875, %v874
        %v990 = vpack.c.b16 %v877, %v876
        %v991 = vpack.c.b16 %v879, %v878
        %v992 = vpack.c.b16 %v881, %v880
        %v993 = vpack.c.b16 %v883, %v882
        %v994 = vpack.c.b16 %v885, %v884
        %v995 = vpack.c.b16 %v887, %v886
        %v996 = vpack.c.b16 %v889, %v888
        %v997 = vpack.c.b16 %v891, %v890
        %v998 = vpack.c.b16 %v893, %v892
        %v999 = vpack.c.b16 %v895, %v894
        %v1000 = vpack.c.b16 %v897, %v896
        %v1001 = vpack.c.b16 %v899, %v898
        %v1002 = vpack.c.b16 %v901, %v900
        %v1003 = vpack.c.b16 %v903, %v902
        %v1004 = vpack.c.b16 %v905, %v904
        %v1005 = vpack.c.b16 %v907, %v906
        %v1006 = vpack.c.b16 %v909, %v908
        %v1007 = vpack.c.b16 %v911, %v910
        %v1008 = vpack.c.b16 %v913, %v912
        %v1009 = vpack.c.b16 %v915, %v914
        %v1010 = vpack.c.b16 %v917, %v916
        %v1011 = vpack.c.b16 %v919, %v918
        %v1012 = vpack.c.b16 %v921, %v920
        %v1013 = vpack.c.b16 %v923, %v922
        %v1014 = vpack.c.b16 %v925, %v924
        %v1015 = vpack.c.b16 %v927, %v926
        %v1016 = vpack.c.b16 %v929, %v928
        %v1017 = vpack.c.b16 %v931, %v930
        %v1018 = vpack.c.b16 %v933, %v932
        %v1019 = vpack.c.b16 %v935, %v934
        %v1020 = vpack.c.b16 %v937, %v936
        %v1021 = vpack.c.b16 %v939, %v938
        %v1022 = vpack.c.b16 %v941, %v940
        %v1023 = vpack.c.b16 %v943, %v942
        %v1024 = vpack.c.b16 %v945, %v944
        %v1025 = vpack.c.b16 %v947, %v946
        %v1026 = vpack.c.b16 %v949, %v948
        %v1027 = vpack.c.b16 %v951, %v950
        %v1028 = vpack.c.b16 %v953, %v952
        %v1029 = vpack.c.b16 %v955, %v954
        %v1030 = vpack.c.b16 %v957, %v956
        %v1031 = vpack.c.b16 %v959, %v958
        %v1032 = vpack.c.b16 %v961, %v960
        %v1033 = vpack.c.b16 %v963, %v962
        %v1034 = vpack.c.b16 %v965, %v964
        %v1035 = vpack.c.b16 %v967, %v966
        %v1036 = vpack.c.b16 %v969, %v968
        %v1037 = vpack.c.b16 %v971, %v970
        %v1038 = vpack.c.b16 %v973, %v972
        %v1039 = vpack.c.b16 %v975, %v974
        %v1044 = vunpack.c.l.b16 %v716
        %v1045 = vunpack.c.l.b16 %v717
        %v1046 = vunpack.c.l.b16 %v718
        %v1047 = vunpack.c.l.b16 %v719
        %v1048 = vpack.c.b16 %v1045, %v1044
        %v1049 = vpack.c.b16 %v1047, %v1046
        %vm1052 = vcmask 261120
        %v1054 = vsel %vm1052, %v976, 0
        %v1057 = vsel %vm1052, %v977, 0
        %v1060 = vsel %vm1052, %v978, 0
        %v1063 = vsel %vm1052, %v979, 0
        %v1066 = vsel %vm1052, %v980, 0
        %v1069 = vsel %vm1052, %v981, 0
        %v1072 = vsel %vm1052, %v982, 0
        %v1075 = vsel %vm1052, %v983, 0
        %v1078 = vsel %vm1052, %v984, 0
        %v1081 = vsel %vm1052, %v985, 0
        %v1084 = vsel %vm1052, %v986, 0
        %v1087 = vsel %vm1052, %v987, 0
        %v1090 = vsel %vm1052, %v988, 0
        %v1093 = vsel %vm1052, %v989, 0
        %v1096 = vsel %vm1052, %v990, 0
        %v1099 = vsel %vm1052, %v991, 0
        %v1102 = vsel %vm1052, %v992, 0
        %v1105 = vsel %vm1052, %v993, 0
        %v1108 = vsel %vm1052, %v994, 0
        %v1111 = vsel %vm1052, %v995, 0
        %v1114 = vsel %vm1052, %v996, 0
        %v1117 = vsel %vm1052, %v997, 0
        %v1120 = vsel %vm1052, %v998, 0
        %v1123 = vsel %vm1052, %v999, 0
        %v1126 = vsel %vm1052, %v1000, 0
        %v1129 = vsel %vm1052, %v1001, 0
        %v1132 = vsel %vm1052, %v1002, 0
        %v1135 = vsel %vm1052, %v1003, 0
        %v1138 = vsel %vm1052, %v1004, 0
        %v1141 = vsel %vm1052, %v1005, 0
        %v1144 = vsel %vm1052, %v1006, 0
        %v1147 = vsel %vm1052, %v1007, 0
        %v1150 = vsel %vm1052, %v1008, 0
        %v1153 = vsel %vm1052, %v1009, 0
        %v1156 = vsel %vm1052, %v1010, 0
        %v1159 = vsel %vm1052, %v1011, 0
        %v1162 = vsel %vm1052, %v1012, 0
        %v1165 = vsel %vm1052, %v1013, 0
        %v1168 = vsel %vm1052, %v1014, 0
        %v1171 = vsel %vm1052, %v1015, 0
        %v1174 = vsel %vm1052, %v1016, 0
        %v1177 = vsel %vm1052, %v1017, 0
        %v1180 = vsel %vm1052, %v1018, 0
        %v1183 = vsel %vm1052, %v1019, 0
        %v1186 = vsel %vm1052, %v1020, 0
        %v1189 = vsel %vm1052, %v1021, 0
        %v1192 = vsel %vm1052, %v1022, 0
        %v1195 = vsel %vm1052, %v1023, 0
        %v1198 = vsel %vm1052, %v1024, 0
        %v1201 = vsel %vm1052, %v1025, 0
        %v1204 = vsel %vm1052, %v1026, 0
        %v1207 = vsel %vm1052, %v1027, 0
        %v1210 = vsel %vm1052, %v1028, 0
        %v1213 = vsel %vm1052, %v1029, 0
        %v1216 = vsel %vm1052, %v1030, 0
        %v1219 = vsel %vm1052, %v1031, 0
        %v1222 = vsel %vm1052, %v1032, 0
        %v1225 = vsel %vm1052, %v1033, 0
        %v1228 = vsel %vm1052, %v1034, 0
        %v1231 = vsel %vm1052, %v1035, 0
        %v1234 = vsel %vm1052, %v1036, 0
        %v1237 = vsel %vm1052, %v1037, 0
        %v1240 = vsel %vm1052, %v1038, 0
        %v1243 = vsel %vm1052, %v1039, 0
        %1245 = vmatprep.subr.bf16.mxu0 0
        %1246 = vmatpush1.bf16.msra.mxu0 %v1048
        %1247 = vmatprep.subr.bf16.mxu0 0
        %1248 = vmatpush1.bf16.msra.mxu0 %v1049
        %1249 = vmatprep.subr.bf16.mxu0 0
        %1250 = vmatpush1.bf16.msra.mxu0 0
        %1251 = vmatprep.subr.bf16.mxu0 0
        %1252 = vmatpush1.bf16.msra.mxu0 0
        %1253 = vmatprep.subr.bf16.mxu0 0
        %1254 = vmatpush1.bf16.msra.mxu0 0
        %1255 = vmatprep.subr.bf16.mxu0 0
        %1256 = vmatpush1.bf16.msra.mxu0 0
        %1257 = vmatprep.subr.bf16.mxu0 0
        %1258 = vmatpush1.bf16.msra.mxu0 0
        %1259 = vmatprep.subr.bf16.mxu0 0
        %1260 = vmatpush1.bf16.msra.mxu0 0
        %1261 = vmatprep.subr.bf16.mxu0 0
        %1262 = vmatpush1.bf16.msra.mxu0 0
        %1263 = vmatprep.subr.bf16.mxu0 0
        %1264 = vmatpush1.bf16.msra.mxu0 0
        %1265 = vmatprep.subr.bf16.mxu0 0
        %1266 = vmatpush1.bf16.msra.mxu0 0
        %1267 = vmatprep.subr.bf16.mxu0 0
        %1268 = vmatpush1.bf16.msra.mxu0 0
        %1269 = vmatprep.subr.bf16.mxu0 0
        %1270 = vmatpush1.bf16.msra.mxu0 0
        %1271 = vmatprep.subr.bf16.mxu0 0
        %1272 = vmatpush1.bf16.msra.mxu0 0
        %1273 = vmatprep.subr.bf16.mxu0 0
        %1274 = vmatpush1.bf16.msra.mxu0 0
        %1275 = vmatprep.subr.bf16.mxu0 0
        %1276 = vmatpush1.bf16.msra.mxu0 0
        %1277 = vmatprep.mubr.bf16.mxu0 0
        %1278 = vmatmul.mubr.bf16.gmra.mrb[0].mxu0 %v1054
        %v1279 = vpop.f32.mrb[0].mxu0
        %v1280 = vadd.f32 0.0, %v1279
        %v1281 = vpop.f32.mrb[0].mxu0
        %v1282 = vpop.f32.mrb[0].mxu0
        %v1283 = vadd.f32 0.0, %v1282
        %v1284 = vpop.f32.mrb[0].mxu0
        %1285 = vmatprep.mubr.bf16.mxu0 0
        %1286 = vmatmul.mubr.bf16.gmra.mrb[0].mxu0 %v1057
        %v1287 = vpop.f32.mrb[0].mxu0
        %v1288 = vadd.f32 0.0, %v1287
        %v1289 = vpop.f32.mrb[0].mxu0
        %v1290 = vpop.f32.mrb[0].mxu0
        %v1291 = vadd.f32 0.0, %v1290
        %v1292 = vpop.f32.mrb[0].mxu0
        %1293 = vmatprep.mubr.bf16.mxu0 0
        %1294 = vmatmul.mubr.bf16.gmra.mrb[0].mxu0 %v1060
        %v1295 = vpop.f32.mrb[0].mxu0
        %v1296 = vadd.f32 0.0, %v1295
        %v1297 = vpop.f32.mrb[0].mxu0
        %v1298 = vpop.f32.mrb[0].mxu0
        %v1299 = vadd.f32 0.0, %v1298
        %v1300 = vpop.f32.mrb[0].mxu0
        %1301 = vmatprep.mubr.bf16.mxu0 0
        %1302 = vmatmul.mubr.bf16.gmra.mrb[0].mxu0 %v1063
        %v1303 = vpop.f32.mrb[0].mxu0
        %v1304 = vadd.f32 0.0, %v1303
        %v1305 = vpop.f32.mrb[0].mxu0
        %v1306 = vpop.f32.mrb[0].mxu0
        %v1307 = vadd.f32 0.0, %v1306
        %v1308 = vpop.f32.mrb[0].mxu0
        %1309 = vmatprep.mubr.bf16.mxu0 0
        %1310 = vmatmul.mubr.bf16.gmra.mrb[0].mxu0 %v1066
        %v1311 = vpop.f32.mrb[0].mxu0
        %v1312 = vadd.f32 0.0, %v1311
        %v1313 = vpop.f32.mrb[0].mxu0
        %v1314 = vpop.f32.mrb[0].mxu0
        %v1315 = vadd.f32 0.0, %v1314
        %v1316 = vpop.f32.mrb[0].mxu0
        %1317 = vmatprep.mubr.bf16.mxu0 0
        %1318 = vmatmul.mubr.bf16.gmra.mrb[0].mxu0 %v1069
        %v1319 = vpop.f32.mrb[0].mxu0
        %v1320 = vadd.f32 0.0, %v1319
        %v1321 = vpop.f32.mrb[0].mxu0
        %v1322 = vpop.f32.mrb[0].mxu0
        %v1323 = vadd.f32 0.0, %v1322
        %v1324 = vpop.f32.mrb[0].mxu0
        %1325 = vmatprep.mubr.bf16.mxu0 0
        %1326 = vmatmul.mubr.bf16.gmra.mrb[0].mxu0 %v1072
        %v1327 = vpop.f32.mrb[0].mxu0
        %v1328 = vadd.f32 0.0, %v1327
        %v1329 = vpop.f32.mrb[0].mxu0
        %v1330 = vpop.f32.mrb[0].mxu0
        %v1331 = vadd.f32 0.0, %v1330
        %v1332 = vpop.f32.mrb[0].mxu0
        %1333 = vmatprep.mubr.bf16.mxu0 0
        %1334 = vmatmul.mubr.bf16.gmra.mrb[0].mxu0 %v1075
        %v1335 = vpop.f32.mrb[0].mxu0
        %v1336 = vadd.f32 0.0, %v1335
        %v1337 = vpop.f32.mrb[0].mxu0
        %v1338 = vpop.f32.mrb[0].mxu0
        %v1339 = vadd.f32 0.0, %v1338
        %v1340 = vpop.f32.mrb[0].mxu0
        %1341 = vmatprep.mubr.bf16.mxu0 0
        %1342 = vmatmul.mubr.bf16.gmra.mrb[0].mxu0 %v1078
        %v1343 = vpop.f32.mrb[0].mxu0
        %v1344 = vadd.f32 0.0, %v1343
        %v1345 = vpop.f32.mrb[0].mxu0
        %v1346 = vpop.f32.mrb[0].mxu0
        %v1347 = vadd.f32 0.0, %v1346
        %v1348 = vpop.f32.mrb[0].mxu0
        %1349 = vmatprep.mubr.bf16.mxu0 0
        %1350 = vmatmul.mubr.bf16.gmra.mrb[0].mxu0 %v1081
        %v1351 = vpop.f32.mrb[0].mxu0
        %v1352 = vadd.f32 0.0, %v1351
        %v1353 = vpop.f32.mrb[0].mxu0
        %v1354 = vpop.f32.mrb[0].mxu0
        %v1355 = vadd.f32 0.0, %v1354
        %v1356 = vpop.f32.mrb[0].mxu0
        %1357 = vmatprep.mubr.bf16.mxu0 0
        %1358 = vmatmul.mubr.bf16.gmra.mrb[0].mxu0 %v1084
        %v1359 = vpop.f32.mrb[0].mxu0
        %v1360 = vadd.f32 0.0, %v1359
        %v1361 = vpop.f32.mrb[0].mxu0
        %v1362 = vpop.f32.mrb[0].mxu0
        %v1363 = vadd.f32 0.0, %v1362
        %v1364 = vpop.f32.mrb[0].mxu0
        %1365 = vmatprep.mubr.bf16.mxu0 0
        %1366 = vmatmul.mubr.bf16.gmra.mrb[0].mxu0 %v1087
        %v1367 = vpop.f32.mrb[0].mxu0
        %v1368 = vadd.f32 0.0, %v1367
        %v1369 = vpop.f32.mrb[0].mxu0
        %v1370 = vpop.f32.mrb[0].mxu0
        %v1371 = vadd.f32 0.0, %v1370
        %v1372 = vpop.f32.mrb[0].mxu0
        %1373 = vmatprep.mubr.bf16.mxu0 0
        %1374 = vmatmul.mubr.bf16.gmra.mrb[0].mxu0 %v1090
        %v1375 = vpop.f32.mrb[0].mxu0
        %v1376 = vadd.f32 0.0, %v1375
        %v1377 = vpop.f32.mrb[0].mxu0
        %v1378 = vpop.f32.mrb[0].mxu0
        %v1379 = vadd.f32 0.0, %v1378
        %v1380 = vpop.f32.mrb[0].mxu0
        %1381 = vmatprep.mubr.bf16.mxu0 0
        %1382 = vmatmul.mubr.bf16.gmra.mrb[0].mxu0 %v1093
        %v1383 = vpop.f32.mrb[0].mxu0
        %v1384 = vadd.f32 0.0, %v1383
        %v1385 = vpop.f32.mrb[0].mxu0
        %v1386 = vpop.f32.mrb[0].mxu0
        %v1387 = vadd.f32 0.0, %v1386
        %v1388 = vpop.f32.mrb[0].mxu0
        %1389 = vmatprep.mubr.bf16.mxu0 0
        %1390 = vmatmul.mubr.bf16.gmra.mrb[0].mxu0 %v1096
        %v1391 = vpop.f32.mrb[0].mxu0
        %v1392 = vadd.f32 0.0, %v1391
        %v1393 = vpop.f32.mrb[0].mxu0
        %v1394 = vpop.f32.mrb[0].mxu0
        %v1395 = vadd.f32 0.0, %v1394
        %v1396 = vpop.f32.mrb[0].mxu0
        %1397 = vmatprep.mubr.bf16.mxu0 0
        %1398 = vmatmul.mubr.bf16.gmra.mrb[0].mxu0 %v1099
        %v1399 = vpop.f32.mrb[0].mxu0
        %v1400 = vadd.f32 0.0, %v1399
        %v1401 = vpop.f32.mrb[0].mxu0
        %v1402 = vpop.f32.mrb[0].mxu0
        %v1403 = vadd.f32 0.0, %v1402
        %v1404 = vpop.f32.mrb[0].mxu0
        %1405 = vmatprep.mubr.bf16.mxu0 0
        %1406 = vmatmul.mubr.bf16.gmra.mrb[0].mxu0 %v1102
        %v1407 = vpop.f32.mrb[0].mxu0
        %v1408 = vadd.f32 0.0, %v1407
        %v1409 = vpop.f32.mrb[0].mxu0
        %v1410 = vpop.f32.mrb[0].mxu0
        %v1411 = vadd.f32 0.0, %v1410
        %v1412 = vpop.f32.mrb[0].mxu0
        %1413 = vmatprep.mubr.bf16.mxu0 0
        %1414 = vmatmul.mubr.bf16.gmra.mrb[0].mxu0 %v1105
        %v1415 = vpop.f32.mrb[0].mxu0
        %v1416 = vadd.f32 0.0, %v1415
        %v1417 = vpop.f32.mrb[0].mxu0
        %v1418 = vpop.f32.mrb[0].mxu0
        %v1419 = vadd.f32 0.0, %v1418
        %v1420 = vpop.f32.mrb[0].mxu0
        %1421 = vmatprep.mubr.bf16.mxu0 0
        %1422 = vmatmul.mubr.bf16.gmra.mrb[0].mxu0 %v1108
        %v1423 = vpop.f32.mrb[0].mxu0
        %v1424 = vadd.f32 0.0, %v1423
        %v1425 = vpop.f32.mrb[0].mxu0
        %v1426 = vpop.f32.mrb[0].mxu0
        %v1427 = vadd.f32 0.0, %v1426
        %v1428 = vpop.f32.mrb[0].mxu0
        %1429 = vmatprep.mubr.bf16.mxu0 0
        %1430 = vmatmul.mubr.bf16.gmra.mrb[0].mxu0 %v1111
        %v1431 = vpop.f32.mrb[0].mxu0
        %v1432 = vadd.f32 0.0, %v1431
        %v1433 = vpop.f32.mrb[0].mxu0
        %v1434 = vpop.f32.mrb[0].mxu0
        %v1435 = vadd.f32 0.0, %v1434
        %v1436 = vpop.f32.mrb[0].mxu0
        %1437 = vmatprep.mubr.bf16.mxu0 0
        %1438 = vmatmul.mubr.bf16.gmra.mrb[0].mxu0 %v1114
        %v1439 = vpop.f32.mrb[0].mxu0
        %v1440 = vadd.f32 0.0, %v1439
        %v1441 = vpop.f32.mrb[0].mxu0
        %v1442 = vpop.f32.mrb[0].mxu0
        %v1443 = vadd.f32 0.0, %v1442
        %v1444 = vpop.f32.mrb[0].mxu0
        %1445 = vmatprep.mubr.bf16.mxu0 0
        %1446 = vmatmul.mubr.bf16.gmra.mrb[0].mxu0 %v1117
        %v1447 = vpop.f32.mrb[0].mxu0
        %v1448 = vadd.f32 0.0, %v1447
        %v1449 = vpop.f32.mrb[0].mxu0
        %v1450 = vpop.f32.mrb[0].mxu0
        %v1451 = vadd.f32 0.0, %v1450
        %v1452 = vpop.f32.mrb[0].mxu0
        %1453 = vmatprep.mubr.bf16.mxu0 0
        %1454 = vmatmul.mubr.bf16.gmra.mrb[0].mxu0 %v1120
        %v1455 = vpop.f32.mrb[0].mxu0
        %v1456 = vadd.f32 0.0, %v1455
        %v1457 = vpop.f32.mrb[0].mxu0
        %v1458 = vpop.f32.mrb[0].mxu0
        %v1459 = vadd.f32 0.0, %v1458
        %v1460 = vpop.f32.mrb[0].mxu0
        %1461 = vmatprep.mubr.bf16.mxu0 0
        %1462 = vmatmul.mubr.bf16.gmra.mrb[0].mxu0 %v1123
        %v1463 = vpop.f32.mrb[0].mxu0
        %v1464 = vadd.f32 0.0, %v1463
        %v1465 = vpop.f32.mrb[0].mxu0
        %v1466 = vpop.f32.mrb[0].mxu0
        %v1467 = vadd.f32 0.0, %v1466
        %v1468 = vpop.f32.mrb[0].mxu0
        %1469 = vmatprep.mubr.bf16.mxu0 0
        %1470 = vmatmul.mubr.bf16.gmra.mrb[0].mxu0 %v1126
        %v1471 = vpop.f32.mrb[0].mxu0
        %v1472 = vadd.f32 0.0, %v1471
        %v1473 = vpop.f32.mrb[0].mxu0
        %v1474 = vpop.f32.mrb[0].mxu0
        %v1475 = vadd.f32 0.0, %v1474
        %v1476 = vpop.f32.mrb[0].mxu0
        %1477 = vmatprep.mubr.bf16.mxu0 0
        %1478 = vmatmul.mubr.bf16.gmra.mrb[0].mxu0 %v1129
        %v1479 = vpop.f32.mrb[0].mxu0
        %v1480 = vadd.f32 0.0, %v1479
        %v1481 = vpop.f32.mrb[0].mxu0
        %v1482 = vpop.f32.mrb[0].mxu0
        %v1483 = vadd.f32 0.0, %v1482
        %v1484 = vpop.f32.mrb[0].mxu0
        %1485 = vmatprep.mubr.bf16.mxu0 0
        %1486 = vmatmul.mubr.bf16.gmra.mrb[0].mxu0 %v1132
        %v1487 = vpop.f32.mrb[0].mxu0
        %v1488 = vadd.f32 0.0, %v1487
        %v1489 = vpop.f32.mrb[0].mxu0
        %v1490 = vpop.f32.mrb[0].mxu0
        %v1491 = vadd.f32 0.0, %v1490
        %v1492 = vpop.f32.mrb[0].mxu0
        %1493 = vmatprep.mubr.bf16.mxu0 0
        %1494 = vmatmul.mubr.bf16.gmra.mrb[0].mxu0 %v1135
        %v1495 = vpop.f32.mrb[0].mxu0
        %v1496 = vadd.f32 0.0, %v1495
        %v1497 = vpop.f32.mrb[0].mxu0
        %v1498 = vpop.f32.mrb[0].mxu0
        %v1499 = vadd.f32 0.0, %v1498
        %v1500 = vpop.f32.mrb[0].mxu0
        %1501 = vmatprep.mubr.bf16.mxu0 0
        %1502 = vmatmul.mubr.bf16.gmra.mrb[0].mxu0 %v1138
        %v1503 = vpop.f32.mrb[0].mxu0
        %v1504 = vadd.f32 0.0, %v1503
        %v1505 = vpop.f32.mrb[0].mxu0
        %v1506 = vpop.f32.mrb[0].mxu0
        %v1507 = vadd.f32 0.0, %v1506
        %v1508 = vpop.f32.mrb[0].mxu0
        %1509 = vmatprep.mubr.bf16.mxu0 0
        %1510 = vmatmul.mubr.bf16.gmra.mrb[0].mxu0 %v1141
        %v1511 = vpop.f32.mrb[0].mxu0
        %v1512 = vadd.f32 0.0, %v1511
        %v1513 = vpop.f32.mrb[0].mxu0
        %v1514 = vpop.f32.mrb[0].mxu0
        %v1515 = vadd.f32 0.0, %v1514
        %v1516 = vpop.f32.mrb[0].mxu0
        %1517 = vmatprep.mubr.bf16.mxu0 0
        %1518 = vmatmul.mubr.bf16.gmra.mrb[0].mxu0 %v1144
        %v1519 = vpop.f32.mrb[0].mxu0
        %v1520 = vadd.f32 0.0, %v1519
        %v1521 = vpop.f32.mrb[0].mxu0
        %v1522 = vpop.f32.mrb[0].mxu0
        %v1523 = vadd.f32 0.0, %v1522
        %v1524 = vpop.f32.mrb[0].mxu0
        %1525 = vmatprep.mubr.bf16.mxu0 0
        %1526 = vmatmul.mubr.bf16.gmra.mrb[0].mxu0 %v1147
        %v1527 = vpop.f32.mrb[0].mxu0
        %v1528 = vadd.f32 0.0, %v1527
        %v1529 = vpop.f32.mrb[0].mxu0
        %v1530 = vpop.f32.mrb[0].mxu0
        %v1531 = vadd.f32 0.0, %v1530
        %v1532 = vpop.f32.mrb[0].mxu0
        %1533 = vmatprep.mubr.bf16.mxu0 0
        %1534 = vmatmul.mubr.bf16.gmra.mrb[0].mxu0 %v1150
        %v1535 = vpop.f32.mrb[0].mxu0
        %v1536 = vadd.f32 0.0, %v1535
        %v1537 = vpop.f32.mrb[0].mxu0
        %v1538 = vpop.f32.mrb[0].mxu0
        %v1539 = vadd.f32 0.0, %v1538
        %v1540 = vpop.f32.mrb[0].mxu0
        %1541 = vmatprep.mubr.bf16.mxu0 0
        %1542 = vmatmul.mubr.bf16.gmra.mrb[0].mxu0 %v1153
        %v1543 = vpop.f32.mrb[0].mxu0
        %v1544 = vadd.f32 0.0, %v1543
        %v1545 = vpop.f32.mrb[0].mxu0
        %v1546 = vpop.f32.mrb[0].mxu0
        %v1547 = vadd.f32 0.0, %v1546
        %v1548 = vpop.f32.mrb[0].mxu0
        %1549 = vmatprep.mubr.bf16.mxu0 0
        %1550 = vmatmul.mubr.bf16.gmra.mrb[0].mxu0 %v1156
        %v1551 = vpop.f32.mrb[0].mxu0
        %v1552 = vadd.f32 0.0, %v1551
        %v1553 = vpop.f32.mrb[0].mxu0
        %v1554 = vpop.f32.mrb[0].mxu0
        %v1555 = vadd.f32 0.0, %v1554
        %v1556 = vpop.f32.mrb[0].mxu0
        %1557 = vmatprep.mubr.bf16.mxu0 0
        %1558 = vmatmul.mubr.bf16.gmra.mrb[0].mxu0 %v1159
        %v1559 = vpop.f32.mrb[0].mxu0
        %v1560 = vadd.f32 0.0, %v1559
        %v1561 = vpop.f32.mrb[0].mxu0
        %v1562 = vpop.f32.mrb[0].mxu0
        %v1563 = vadd.f32 0.0, %v1562
        %v1564 = vpop.f32.mrb[0].mxu0
        %1565 = vmatprep.mubr.bf16.mxu0 0
        %1566 = vmatmul.mubr.bf16.gmra.mrb[0].mxu0 %v1162
        %v1567 = vpop.f32.mrb[0].mxu0
        %v1568 = vadd.f32 0.0, %v1567
        %v1569 = vpop.f32.mrb[0].mxu0
        %v1570 = vpop.f32.mrb[0].mxu0
        %v1571 = vadd.f32 0.0, %v1570
        %v1572 = vpop.f32.mrb[0].mxu0
        %1573 = vmatprep.mubr.bf16.mxu0 0
        %1574 = vmatmul.mubr.bf16.gmra.mrb[0].mxu0 %v1165
        %v1575 = vpop.f32.mrb[0].mxu0
        %v1576 = vadd.f32 0.0, %v1575
        %v1577 = vpop.f32.mrb[0].mxu0
        %v1578 = vpop.f32.mrb[0].mxu0
        %v1579 = vadd.f32 0.0, %v1578
        %v1580 = vpop.f32.mrb[0].mxu0
        %1581 = vmatprep.mubr.bf16.mxu0 0
        %1582 = vmatmul.mubr.bf16.gmra.mrb[0].mxu0 %v1168
        %v1583 = vpop.f32.mrb[0].mxu0
        %v1584 = vadd.f32 0.0, %v1583
        %v1585 = vpop.f32.mrb[0].mxu0
        %v1586 = vpop.f32.mrb[0].mxu0
        %v1587 = vadd.f32 0.0, %v1586
        %v1588 = vpop.f32.mrb[0].mxu0
        %1589 = vmatprep.mubr.bf16.mxu0 0
        %1590 = vmatmul.mubr.bf16.gmra.mrb[0].mxu0 %v1171
        %v1591 = vpop.f32.mrb[0].mxu0
        %v1592 = vadd.f32 0.0, %v1591
        %v1593 = vpop.f32.mrb[0].mxu0
        %v1594 = vpop.f32.mrb[0].mxu0
        %v1595 = vadd.f32 0.0, %v1594
        %v1596 = vpop.f32.mrb[0].mxu0
        %1597 = vmatprep.mubr.bf16.mxu0 0
        %1598 = vmatmul.mubr.bf16.gmra.mrb[0].mxu0 %v1174
        %v1599 = vpop.f32.mrb[0].mxu0
        %v1600 = vadd.f32 0.0, %v1599
        %v1601 = vpop.f32.mrb[0].mxu0
        %v1602 = vpop.f32.mrb[0].mxu0
        %v1603 = vadd.f32 0.0, %v1602
        %v1604 = vpop.f32.mrb[0].mxu0
        %1605 = vmatprep.mubr.bf16.mxu0 0
        %1606 = vmatmul.mubr.bf16.gmra.mrb[0].mxu0 %v1177
        %v1607 = vpop.f32.mrb[0].mxu0
        %v1608 = vadd.f32 0.0, %v1607
        %v1609 = vpop.f32.mrb[0].mxu0
        %v1610 = vpop.f32.mrb[0].mxu0
        %v1611 = vadd.f32 0.0, %v1610
        %v1612 = vpop.f32.mrb[0].mxu0
        %1613 = vmatprep.mubr.bf16.mxu0 0
        %1614 = vmatmul.mubr.bf16.gmra.mrb[0].mxu0 %v1180
        %v1615 = vpop.f32.mrb[0].mxu0
        %v1616 = vadd.f32 0.0, %v1615
        %v1617 = vpop.f32.mrb[0].mxu0
        %v1618 = vpop.f32.mrb[0].mxu0
        %v1619 = vadd.f32 0.0, %v1618
        %v1620 = vpop.f32.mrb[0].mxu0
        %1621 = vmatprep.mubr.bf16.mxu0 0
        %1622 = vmatmul.mubr.bf16.gmra.mrb[0].mxu0 %v1183
        %v1623 = vpop.f32.mrb[0].mxu0
        %v1624 = vadd.f32 0.0, %v1623
        %v1625 = vpop.f32.mrb[0].mxu0
        %v1626 = vpop.f32.mrb[0].mxu0
        %v1627 = vadd.f32 0.0, %v1626
        %v1628 = vpop.f32.mrb[0].mxu0
        %1629 = vmatprep.mubr.bf16.mxu0 0
        %1630 = vmatmul.mubr.bf16.gmra.mrb[0].mxu0 %v1186
        %v1631 = vpop.f32.mrb[0].mxu0
        %v1632 = vadd.f32 0.0, %v1631
        %v1633 = vpop.f32.mrb[0].mxu0
        %v1634 = vpop.f32.mrb[0].mxu0
        %v1635 = vadd.f32 0.0, %v1634
        %v1636 = vpop.f32.mrb[0].mxu0
        %1637 = vmatprep.mubr.bf16.mxu0 0
        %1638 = vmatmul.mubr.bf16.gmra.mrb[0].mxu0 %v1189
        %v1639 = vpop.f32.mrb[0].mxu0
        %v1640 = vadd.f32 0.0, %v1639
        %v1641 = vpop.f32.mrb[0].mxu0
        %v1642 = vpop.f32.mrb[0].mxu0
        %v1643 = vadd.f32 0.0, %v1642
        %v1644 = vpop.f32.mrb[0].mxu0
        %1645 = vmatprep.mubr.bf16.mxu0 0
        %1646 = vmatmul.mubr.bf16.gmra.mrb[0].mxu0 %v1192
        %v1647 = vpop.f32.mrb[0].mxu0
        %v1648 = vadd.f32 0.0, %v1647
        %v1649 = vpop.f32.mrb[0].mxu0
        %v1650 = vpop.f32.mrb[0].mxu0
        %v1651 = vadd.f32 0.0, %v1650
        %v1652 = vpop.f32.mrb[0].mxu0
        %1653 = vmatprep.mubr.bf16.mxu0 0
        %1654 = vmatmul.mubr.bf16.gmra.mrb[0].mxu0 %v1195
        %v1655 = vpop.f32.mrb[0].mxu0
        %v1656 = vadd.f32 0.0, %v1655
        %v1657 = vpop.f32.mrb[0].mxu0
        %v1658 = vpop.f32.mrb[0].mxu0
        %v1659 = vadd.f32 0.0, %v1658
        %v1660 = vpop.f32.mrb[0].mxu0
        %1661 = vmatprep.mubr.bf16.mxu0 0
        %1662 = vmatmul.mubr.bf16.gmra.mrb[0].mxu0 %v1198
        %v1663 = vpop.f32.mrb[0].mxu0
        %v1664 = vadd.f32 0.0, %v1663
        %v1665 = vpop.f32.mrb[0].mxu0
        %v1666 = vpop.f32.mrb[0].mxu0
        %v1667 = vadd.f32 0.0, %v1666
        %v1668 = vpop.f32.mrb[0].mxu0
        %1669 = vmatprep.mubr.bf16.mxu0 0
        %1670 = vmatmul.mubr.bf16.gmra.mrb[0].mxu0 %v1201
        %v1671 = vpop.f32.mrb[0].mxu0
        %v1672 = vadd.f32 0.0, %v1671
        %v1673 = vpop.f32.mrb[0].mxu0
        %v1674 = vpop.f32.mrb[0].mxu0
        %v1675 = vadd.f32 0.0, %v1674
        %v1676 = vpop.f32.mrb[0].mxu0
        %1677 = vmatprep.mubr.bf16.mxu0 0
        %1678 = vmatmul.mubr.bf16.gmra.mrb[0].mxu0 %v1204
        %v1679 = vpop.f32.mrb[0].mxu0
        %v1680 = vadd.f32 0.0, %v1679
        %v1681 = vpop.f32.mrb[0].mxu0
        %v1682 = vpop.f32.mrb[0].mxu0
        %v1683 = vadd.f32 0.0, %v1682
        %v1684 = vpop.f32.mrb[0].mxu0
        %1685 = vmatprep.mubr.bf16.mxu0 0
        %1686 = vmatmul.mubr.bf16.gmra.mrb[0].mxu0 %v1207
        %v1687 = vpop.f32.mrb[0].mxu0
        %v1688 = vadd.f32 0.0, %v1687
        %v1689 = vpop.f32.mrb[0].mxu0
        %v1690 = vpop.f32.mrb[0].mxu0
        %v1691 = vadd.f32 0.0, %v1690
        %v1692 = vpop.f32.mrb[0].mxu0
        %1693 = vmatprep.mubr.bf16.mxu0 0
        %1694 = vmatmul.mubr.bf16.gmra.mrb[0].mxu0 %v1210
        %v1695 = vpop.f32.mrb[0].mxu0
        %v1696 = vadd.f32 0.0, %v1695
        %v1697 = vpop.f32.mrb[0].mxu0
        %v1698 = vpop.f32.mrb[0].mxu0
        %v1699 = vadd.f32 0.0, %v1698
        %v1700 = vpop.f32.mrb[0].mxu0
        %1701 = vmatprep.mubr.bf16.mxu0 0
        %1702 = vmatmul.mubr.bf16.gmra.mrb[0].mxu0 %v1213
        %v1703 = vpop.f32.mrb[0].mxu0
        %v1704 = vadd.f32 0.0, %v1703
        %v1705 = vpop.f32.mrb[0].mxu0
        %v1706 = vpop.f32.mrb[0].mxu0
        %v1707 = vadd.f32 0.0, %v1706
        %v1708 = vpop.f32.mrb[0].mxu0
        %1709 = vmatprep.mubr.bf16.mxu0 0
        %1710 = vmatmul.mubr.bf16.gmra.mrb[0].mxu0 %v1216
        %v1711 = vpop.f32.mrb[0].mxu0
        %v1712 = vadd.f32 0.0, %v1711
        %v1713 = vpop.f32.mrb[0].mxu0
        %v1714 = vpop.f32.mrb[0].mxu0
        %v1715 = vadd.f32 0.0, %v1714
        %v1716 = vpop.f32.mrb[0].mxu0
        %1717 = vmatprep.mubr.bf16.mxu0 0
        %1718 = vmatmul.mubr.bf16.gmra.mrb[0].mxu0 %v1219
        %v1719 = vpop.f32.mrb[0].mxu0
        %v1720 = vadd.f32 0.0, %v1719
        %v1721 = vpop.f32.mrb[0].mxu0
        %v1722 = vpop.f32.mrb[0].mxu0
        %v1723 = vadd.f32 0.0, %v1722
        %v1724 = vpop.f32.mrb[0].mxu0
        %1725 = vmatprep.mubr.bf16.mxu0 0
        %1726 = vmatmul.mubr.bf16.gmra.mrb[0].mxu0 %v1222
        %v1727 = vpop.f32.mrb[0].mxu0
        %v1728 = vadd.f32 0.0, %v1727
        %v1729 = vpop.f32.mrb[0].mxu0
        %v1730 = vpop.f32.mrb[0].mxu0
        %v1731 = vadd.f32 0.0, %v1730
        %v1732 = vpop.f32.mrb[0].mxu0
        %1733 = vmatprep.mubr.bf16.mxu0 0
        %1734 = vmatmul.mubr.bf16.gmra.mrb[0].mxu0 %v1225
        %v1735 = vpop.f32.mrb[0].mxu0
        %v1736 = vadd.f32 0.0, %v1735
        %v1737 = vpop.f32.mrb[0].mxu0
        %v1738 = vpop.f32.mrb[0].mxu0
        %v1739 = vadd.f32 0.0, %v1738
        %v1740 = vpop.f32.mrb[0].mxu0
        %1741 = vmatprep.mubr.bf16.mxu0 0
        %1742 = vmatmul.mubr.bf16.gmra.mrb[0].mxu0 %v1228
        %v1743 = vpop.f32.mrb[0].mxu0
        %v1744 = vadd.f32 0.0, %v1743
        %v1745 = vpop.f32.mrb[0].mxu0
        %v1746 = vpop.f32.mrb[0].mxu0
        %v1747 = vadd.f32 0.0, %v1746
        %v1748 = vpop.f32.mrb[0].mxu0
        %1749 = vmatprep.mubr.bf16.mxu0 0
        %1750 = vmatmul.mubr.bf16.gmra.mrb[0].mxu0 %v1231
        %v1751 = vpop.f32.mrb[0].mxu0
        %v1752 = vadd.f32 0.0, %v1751
        %v1753 = vpop.f32.mrb[0].mxu0
        %v1754 = vpop.f32.mrb[0].mxu0
        %v1755 = vadd.f32 0.0, %v1754
        %v1756 = vpop.f32.mrb[0].mxu0
        %1757 = vmatprep.mubr.bf16.mxu0 0
        %1758 = vmatmul.mubr.bf16.gmra.mrb[0].mxu0 %v1234
        %v1759 = vpop.f32.mrb[0].mxu0
        %v1760 = vadd.f32 0.0, %v1759
        %v1761 = vpop.f32.mrb[0].mxu0
        %v1762 = vpop.f32.mrb[0].mxu0
        %v1763 = vadd.f32 0.0, %v1762
        %v1764 = vpop.f32.mrb[0].mxu0
        %1765 = vmatprep.mubr.bf16.mxu0 0
        %1766 = vmatmul.mubr.bf16.gmra.mrb[0].mxu0 %v1237
        %v1767 = vpop.f32.mrb[0].mxu0
        %v1768 = vadd.f32 0.0, %v1767
        %v1769 = vpop.f32.mrb[0].mxu0
        %v1770 = vpop.f32.mrb[0].mxu0
        %v1771 = vadd.f32 0.0, %v1770
        %v1772 = vpop.f32.mrb[0].mxu0
        %1773 = vmatprep.mubr.bf16.mxu0 0
        %1774 = vmatmul.mubr.bf16.gmra.mrb[0].mxu0 %v1240
        %v1775 = vpop.f32.mrb[0].mxu0
        %v1776 = vadd.f32 0.0, %v1775
        %v1777 = vpop.f32.mrb[0].mxu0
        %v1778 = vpop.f32.mrb[0].mxu0
        %v1779 = vadd.f32 0.0, %v1778
        %v1780 = vpop.f32.mrb[0].mxu0
        %1781 = vmatprep.mubr.bf16.mxu0 0
        %1782 = vmatmul.mubr.bf16.gmra.mrb[0].mxu0 %v1243
        %v1783 = vpop.f32.mrb[0].mxu0
        %v1784 = vadd.f32 0.0, %v1783
        %v1785 = vpop.f32.mrb[0].mxu0
        %v1786 = vpop.f32.mrb[0].mxu0
        %v1787 = vadd.f32 0.0, %v1786
        %v1788 = vpop.f32.mrb[0].mxu0
        %1789 = vdwg.mxu0
        %v1790 = vld [vmem:[#allocation2] sm:$0xff]
        %v1791 = vld [vmem:[#allocation2 + $0x8] sm:$0xff]
        %v1792 = vld [vmem:[#allocation2 + $0x10] sm:$0xff]
        %v1793 = vld [vmem:[#allocation2 + $0x18] sm:$0xff]
        %v1794 = vld [vmem:[#allocation2 + $0x20] sm:$0xff]
        %v1795 = vld [vmem:[#allocation2 + $0x28] sm:$0xff]
        %v1796 = vld [vmem:[#allocation2 + $0x30] sm:$0xff]
        %v1797 = vld [vmem:[#allocation2 + $0x38] sm:$0xff]
        %v1798 = vld [vmem:[#allocation2 + $0x40] sm:$0xff]
        %v1799 = vld [vmem:[#allocation2 + $0x48] sm:$0xff]
        %v1800 = vld [vmem:[#allocation2 + $0x50] sm:$0xff]
        %v1801 = vld [vmem:[#allocation2 + $0x58] sm:$0xff]
        %v1802 = vld [vmem:[#allocation2 + $0x60] sm:$0xff]
        %v1803 = vld [vmem:[#allocation2 + $0x68] sm:$0xff]
        %v1804 = vld [vmem:[#allocation2 + $0x70] sm:$0xff]
        %v1805 = vld [vmem:[#allocation2 + $0x78] sm:$0xff]
        %v1806 = vld [vmem:[#allocation2 + $0x80] sm:$0xff]
        %v1807 = vld [vmem:[#allocation2 + $0x88] sm:$0xff]
        %v1808 = vld [vmem:[#allocation2 + $0x90] sm:$0xff]
        %v1809 = vld [vmem:[#allocation2 + $0x98] sm:$0xff]
        %v1810 = vld [vmem:[#allocation2 + $0xa0] sm:$0xff]
        %v1811 = vld [vmem:[#allocation2 + $0xa8] sm:$0xff]
        %v1812 = vld [vmem:[#allocation2 + $0xb0] sm:$0xff]
        %v1813 = vld [vmem:[#allocation2 + $0xb8] sm:$0xff]
        %v1814 = vld [vmem:[#allocation2 + $0xc0] sm:$0xff]
        %v1815 = vld [vmem:[#allocation2 + $0xc8] sm:$0xff]
        %v1816 = vld [vmem:[#allocation2 + $0xd0] sm:$0xff]
        %v1817 = vld [vmem:[#allocation2 + $0xd8] sm:$0xff]
        %v1818 = vld [vmem:[#allocation2 + $0xe0] sm:$0xff]
        %v1819 = vld [vmem:[#allocation2 + $0xe8] sm:$0xff]
        %v1820 = vld [vmem:[#allocation2 + $0xf0] sm:$0xff]
        %v1821 = vld [vmem:[#allocation2 + $0xf8] sm:$0xff]
        %v1822 = vld [vmem:[#allocation2 + $0x100] sm:$0xff]
        %v1823 = vld [vmem:[#allocation2 + $0x108] sm:$0xff]
        %v1824 = vld [vmem:[#allocation2 + $0x110] sm:$0xff]
        %v1825 = vld [vmem:[#allocation2 + $0x118] sm:$0xff]
        %v1826 = vld [vmem:[#allocation2 + $0x120] sm:$0xff]
        %v1827 = vld [vmem:[#allocation2 + $0x128] sm:$0xff]
        %v1828 = vld [vmem:[#allocation2 + $0x130] sm:$0xff]
        %v1829 = vld [vmem:[#allocation2 + $0x138] sm:$0xff]
        %v1830 = vld [vmem:[#allocation2 + $0x140] sm:$0xff]
        %v1831 = vld [vmem:[#allocation2 + $0x148] sm:$0xff]
        %v1832 = vld [vmem:[#allocation2 + $0x150] sm:$0xff]
        %v1833 = vld [vmem:[#allocation2 + $0x158] sm:$0xff]
        %v1834 = vld [vmem:[#allocation2 + $0x160] sm:$0xff]
        %v1835 = vld [vmem:[#allocation2 + $0x168] sm:$0xff]
        %v1836 = vld [vmem:[#allocation2 + $0x170] sm:$0xff]
        %v1837 = vld [vmem:[#allocation2 + $0x178] sm:$0xff]
        %v1838 = vld [vmem:[#allocation2 + $0x180] sm:$0xff]
        %v1839 = vld [vmem:[#allocation2 + $0x188] sm:$0xff]
        %v1840 = vld [vmem:[#allocation2 + $0x190] sm:$0xff]
        %v1841 = vld [vmem:[#allocation2 + $0x198] sm:$0xff]
        %v1842 = vld [vmem:[#allocation2 + $0x1a0] sm:$0xff]
        %v1843 = vld [vmem:[#allocation2 + $0x1a8] sm:$0xff]
        %v1844 = vld [vmem:[#allocation2 + $0x1b0] sm:$0xff]
        %v1845 = vld [vmem:[#allocation2 + $0x1b8] sm:$0xff]
        %v1846 = vld [vmem:[#allocation2 + $0x1c0] sm:$0xff]
        %v1847 = vld [vmem:[#allocation2 + $0x1c8] sm:$0xff]
        %v1848 = vld [vmem:[#allocation2 + $0x1d0] sm:$0xff]
        %v1849 = vld [vmem:[#allocation2 + $0x1d8] sm:$0xff]
        %v1850 = vld [vmem:[#allocation2 + $0x1e0] sm:$0xff]
        %v1851 = vld [vmem:[#allocation2 + $0x1e8] sm:$0xff]
        %v1852 = vld [vmem:[#allocation2 + $0x1f0] sm:$0xff]
        %v1853 = vld [vmem:[#allocation2 + $0x1f8] sm:$0xff]
        %v1854 = vld [vmem:[#allocation2 + $0x200] sm:$0xff]
        %v1855 = vld [vmem:[#allocation2 + $0x208] sm:$0xff]
        %v1856 = vld [vmem:[#allocation2 + $0x210] sm:$0xff]
        %v1857 = vld [vmem:[#allocation2 + $0x218] sm:$0xff]
        %v1858 = vld [vmem:[#allocation2 + $0x220] sm:$0xff]
        %v1859 = vld [vmem:[#allocation2 + $0x228] sm:$0xff]
        %v1860 = vld [vmem:[#allocation2 + $0x230] sm:$0xff]
        %v1861 = vld [vmem:[#allocation2 + $0x238] sm:$0xff]
        %v1862 = vld [vmem:[#allocation2 + $0x240] sm:$0xff]
        %v1863 = vld [vmem:[#allocation2 + $0x248] sm:$0xff]
        %v1864 = vld [vmem:[#allocation2 + $0x250] sm:$0xff]
        %v1865 = vld [vmem:[#allocation2 + $0x258] sm:$0xff]
        %v1866 = vld [vmem:[#allocation2 + $0x260] sm:$0xff]
        %v1867 = vld [vmem:[#allocation2 + $0x268] sm:$0xff]
        %v1868 = vld [vmem:[#allocation2 + $0x270] sm:$0xff]
        %v1869 = vld [vmem:[#allocation2 + $0x278] sm:$0xff]
        %v1870 = vld [vmem:[#allocation2 + $0x280] sm:$0xff]
        %v1871 = vld [vmem:[#allocation2 + $0x288] sm:$0xff]
        %v1872 = vld [vmem:[#allocation2 + $0x290] sm:$0xff]
        %v1873 = vld [vmem:[#allocation2 + $0x298] sm:$0xff]
        %v1874 = vld [vmem:[#allocation2 + $0x2a0] sm:$0xff]
        %v1875 = vld [vmem:[#allocation2 + $0x2a8] sm:$0xff]
        %v1876 = vld [vmem:[#allocation2 + $0x2b0] sm:$0xff]
        %v1877 = vld [vmem:[#allocation2 + $0x2b8] sm:$0xff]
        %v1878 = vld [vmem:[#allocation2 + $0x2c0] sm:$0xff]
        %v1879 = vld [vmem:[#allocation2 + $0x2c8] sm:$0xff]
        %v1880 = vld [vmem:[#allocation2 + $0x2d0] sm:$0xff]
        %v1881 = vld [vmem:[#allocation2 + $0x2d8] sm:$0xff]
        %v1882 = vld [vmem:[#allocation2 + $0x2e0] sm:$0xff]
        %v1883 = vld [vmem:[#allocation2 + $0x2e8] sm:$0xff]
        %v1884 = vld [vmem:[#allocation2 + $0x2f0] sm:$0xff]
        %v1885 = vld [vmem:[#allocation2 + $0x2f8] sm:$0xff]
        %v1886 = vld [vmem:[#allocation2 + $0x300] sm:$0xff]
        %v1887 = vld [vmem:[#allocation2 + $0x308] sm:$0xff]
        %v1888 = vld [vmem:[#allocation2 + $0x310] sm:$0xff]
        %v1889 = vld [vmem:[#allocation2 + $0x318] sm:$0xff]
        %v1890 = vld [vmem:[#allocation2 + $0x320] sm:$0xff]
        %v1891 = vld [vmem:[#allocation2 + $0x328] sm:$0xff]
        %v1892 = vld [vmem:[#allocation2 + $0x330] sm:$0xff]
        %v1893 = vld [vmem:[#allocation2 + $0x338] sm:$0xff]
        %v1894 = vld [vmem:[#allocation2 + $0x340] sm:$0xff]
        %v1895 = vld [vmem:[#allocation2 + $0x348] sm:$0xff]
        %v1896 = vld [vmem:[#allocation2 + $0x350] sm:$0xff]
        %v1897 = vld [vmem:[#allocation2 + $0x358] sm:$0xff]
        %v1898 = vld [vmem:[#allocation2 + $0x360] sm:$0xff]
        %v1899 = vld [vmem:[#allocation2 + $0x368] sm:$0xff]
        %v1900 = vld [vmem:[#allocation2 + $0x370] sm:$0xff]
        %v1901 = vld [vmem:[#allocation2 + $0x378] sm:$0xff]
        %v1902 = vld [vmem:[#allocation2 + $0x380] sm:$0xff]
        %v1903 = vld [vmem:[#allocation2 + $0x388] sm:$0xff]
        %v1904 = vld [vmem:[#allocation2 + $0x390] sm:$0xff]
        %v1905 = vld [vmem:[#allocation2 + $0x398] sm:$0xff]
        %v1906 = vld [vmem:[#allocation2 + $0x3a0] sm:$0xff]
        %v1907 = vld [vmem:[#allocation2 + $0x3a8] sm:$0xff]
        %v1908 = vld [vmem:[#allocation2 + $0x3b0] sm:$0xff]
        %v1909 = vld [vmem:[#allocation2 + $0x3b8] sm:$0xff]
        %v1910 = vld [vmem:[#allocation2 + $0x3c0] sm:$0xff]
        %v1911 = vld [vmem:[#allocation2 + $0x3c8] sm:$0xff]
        %v1912 = vld [vmem:[#allocation2 + $0x3d0] sm:$0xff]
        %v1913 = vld [vmem:[#allocation2 + $0x3d8] sm:$0xff]
        %v1914 = vld [vmem:[#allocation2 + $0x3e0] sm:$0xff]
        %v1915 = vld [vmem:[#allocation2 + $0x3e8] sm:$0xff]
        %v1916 = vld [vmem:[#allocation2 + $0x3f0] sm:$0xff]
        %v1917 = vld [vmem:[#allocation2 + $0x3f8] sm:$0xff]
        %2046 = vrot.lane.b32.xlu0 %v1280, 120
        %v2047 = vpop.permute.xlu0 %2046
        %2048 = vrot.lane.b32.xlu0 %v1283, 120
        %v2049 = vpop.permute.xlu0 %2048
        %2050 = vrot.lane.b32.xlu0 %v1288, 120
        %v2051 = vpop.permute.xlu0 %2050
        %2052 = vrot.lane.b32.xlu0 %v1291, 120
        %v2053 = vpop.permute.xlu0 %2052
        %2054 = vrot.lane.b32.xlu0 %v1296, 120
        %v2055 = vpop.permute.xlu0 %2054
        %2056 = vrot.lane.b32.xlu0 %v1299, 120
        %v2057 = vpop.permute.xlu0 %2056
        %2058 = vrot.lane.b32.xlu0 %v1304, 120
        %v2059 = vpop.permute.xlu0 %2058
        %2060 = vrot.lane.b32.xlu0 %v1307, 120
        %v2061 = vpop.permute.xlu0 %2060
        %2062 = vrot.lane.b32.xlu0 %v1312, 120
        %v2063 = vpop.permute.xlu0 %2062
        %2064 = vrot.lane.b32.xlu0 %v1315, 120
        %v2065 = vpop.permute.xlu0 %2064
        %2066 = vrot.lane.b32.xlu0 %v1320, 120
        %v2067 = vpop.permute.xlu0 %2066
        %2068 = vrot.lane.b32.xlu0 %v1323, 120
        %v2069 = vpop.permute.xlu0 %2068
        %2070 = vrot.lane.b32.xlu0 %v1328, 120
        %v2071 = vpop.permute.xlu0 %2070
        %2072 = vrot.lane.b32.xlu0 %v1331, 120
        %v2073 = vpop.permute.xlu0 %2072
        %2074 = vrot.lane.b32.xlu0 %v1336, 120
        %v2075 = vpop.permute.xlu0 %2074
        %2076 = vrot.lane.b32.xlu0 %v1339, 120
        %v2077 = vpop.permute.xlu0 %2076
        %2078 = vrot.lane.b32.xlu0 %v1344, 120
        %v2079 = vpop.permute.xlu0 %2078
        %2080 = vrot.lane.b32.xlu0 %v1347, 120
        %v2081 = vpop.permute.xlu0 %2080
        %2082 = vrot.lane.b32.xlu0 %v1352, 120
        %v2083 = vpop.permute.xlu0 %2082
        %2084 = vrot.lane.b32.xlu0 %v1355, 120
        %v2085 = vpop.permute.xlu0 %2084
        %2086 = vrot.lane.b32.xlu0 %v1360, 120
        %v2087 = vpop.permute.xlu0 %2086
        %2088 = vrot.lane.b32.xlu0 %v1363, 120
        %v2089 = vpop.permute.xlu0 %2088
        %2090 = vrot.lane.b32.xlu0 %v1368, 120
        %v2091 = vpop.permute.xlu0 %2090
        %2092 = vrot.lane.b32.xlu0 %v1371, 120
        %v2093 = vpop.permute.xlu0 %2092
        %2094 = vrot.lane.b32.xlu0 %v1376, 120
        %v2095 = vpop.permute.xlu0 %2094
        %2096 = vrot.lane.b32.xlu0 %v1379, 120
        %v2097 = vpop.permute.xlu0 %2096
        %2098 = vrot.lane.b32.xlu0 %v1384, 120
        %v2099 = vpop.permute.xlu0 %2098
        %2100 = vrot.lane.b32.xlu0 %v1387, 120
        %v2101 = vpop.permute.xlu0 %2100
        %2102 = vrot.lane.b32.xlu0 %v1392, 120
        %v2103 = vpop.permute.xlu0 %2102
        %2104 = vrot.lane.b32.xlu0 %v1395, 120
        %v2105 = vpop.permute.xlu0 %2104
        %2106 = vrot.lane.b32.xlu0 %v1400, 120
        %v2107 = vpop.permute.xlu0 %2106
        %2108 = vrot.lane.b32.xlu0 %v1403, 120
        %v2109 = vpop.permute.xlu0 %2108
        %2110 = vrot.lane.b32.xlu0 %v1408, 120
        %v2111 = vpop.permute.xlu0 %2110
        %2112 = vrot.lane.b32.xlu0 %v1411, 120
        %v2113 = vpop.permute.xlu0 %2112
        %2114 = vrot.lane.b32.xlu0 %v1416, 120
        %v2115 = vpop.permute.xlu0 %2114
        %2116 = vrot.lane.b32.xlu0 %v1419, 120
        %v2117 = vpop.permute.xlu0 %2116
        %2118 = vrot.lane.b32.xlu0 %v1424, 120
        %v2119 = vpop.permute.xlu0 %2118
        %2120 = vrot.lane.b32.xlu0 %v1427, 120
        %v2121 = vpop.permute.xlu0 %2120
        %2122 = vrot.lane.b32.xlu0 %v1432, 120
        %v2123 = vpop.permute.xlu0 %2122
        %2124 = vrot.lane.b32.xlu0 %v1435, 120
        %v2125 = vpop.permute.xlu0 %2124
        %2126 = vrot.lane.b32.xlu0 %v1440, 120
        %v2127 = vpop.permute.xlu0 %2126
        %2128 = vrot.lane.b32.xlu0 %v1443, 120
        %v2129 = vpop.permute.xlu0 %2128
        %2130 = vrot.lane.b32.xlu0 %v1448, 120
        %v2131 = vpop.permute.xlu0 %2130
        %2132 = vrot.lane.b32.xlu0 %v1451, 120
        %v2133 = vpop.permute.xlu0 %2132
        %2134 = vrot.lane.b32.xlu0 %v1456, 120
        %v2135 = vpop.permute.xlu0 %2134
        %2136 = vrot.lane.b32.xlu0 %v1459, 120
        %v2137 = vpop.permute.xlu0 %2136
        %2138 = vrot.lane.b32.xlu0 %v1464, 120
        %v2139 = vpop.permute.xlu0 %2138
        %2140 = vrot.lane.b32.xlu0 %v1467, 120
        %v2141 = vpop.permute.xlu0 %2140
        %2142 = vrot.lane.b32.xlu0 %v1472, 120
        %v2143 = vpop.permute.xlu0 %2142
        %2144 = vrot.lane.b32.xlu0 %v1475, 120
        %v2145 = vpop.permute.xlu0 %2144
        %2146 = vrot.lane.b32.xlu0 %v1480, 120
        %v2147 = vpop.permute.xlu0 %2146
        %2148 = vrot.lane.b32.xlu0 %v1483, 120
        %v2149 = vpop.permute.xlu0 %2148
        %2150 = vrot.lane.b32.xlu0 %v1488, 120
        %v2151 = vpop.permute.xlu0 %2150
        %2152 = vrot.lane.b32.xlu0 %v1491, 120
        %v2153 = vpop.permute.xlu0 %2152
        %2154 = vrot.lane.b32.xlu0 %v1496, 120
        %v2155 = vpop.permute.xlu0 %2154
        %2156 = vrot.lane.b32.xlu0 %v1499, 120
        %v2157 = vpop.permute.xlu0 %2156
        %2158 = vrot.lane.b32.xlu0 %v1504, 120
        %v2159 = vpop.permute.xlu0 %2158
        %2160 = vrot.lane.b32.xlu0 %v1507, 120
        %v2161 = vpop.permute.xlu0 %2160
        %2162 = vrot.lane.b32.xlu0 %v1512, 120
        %v2163 = vpop.permute.xlu0 %2162
        %2164 = vrot.lane.b32.xlu0 %v1515, 120
        %v2165 = vpop.permute.xlu0 %2164
        %2166 = vrot.lane.b32.xlu0 %v1520, 120
        %v2167 = vpop.permute.xlu0 %2166
        %2168 = vrot.lane.b32.xlu0 %v1523, 120
        %v2169 = vpop.permute.xlu0 %2168
        %2170 = vrot.lane.b32.xlu0 %v1528, 120
        %v2171 = vpop.permute.xlu0 %2170
        %2172 = vrot.lane.b32.xlu0 %v1531, 120
        %v2173 = vpop.permute.xlu0 %2172
        %2174 = vrot.lane.b32.xlu0 %v1536, 120
        %v2175 = vpop.permute.xlu0 %2174
        %2176 = vrot.lane.b32.xlu0 %v1539, 120
        %v2177 = vpop.permute.xlu0 %2176
        %2178 = vrot.lane.b32.xlu0 %v1544, 120
        %v2179 = vpop.permute.xlu0 %2178
        %2180 = vrot.lane.b32.xlu0 %v1547, 120
        %v2181 = vpop.permute.xlu0 %2180
        %2182 = vrot.lane.b32.xlu0 %v1552, 120
        %v2183 = vpop.permute.xlu0 %2182
        %2184 = vrot.lane.b32.xlu0 %v1555, 120
        %v2185 = vpop.permute.xlu0 %2184
        %2186 = vrot.lane.b32.xlu0 %v1560, 120
        %v2187 = vpop.permute.xlu0 %2186
        %2188 = vrot.lane.b32.xlu0 %v1563, 120
        %v2189 = vpop.permute.xlu0 %2188
        %2190 = vrot.lane.b32.xlu0 %v1568, 120
        %v2191 = vpop.permute.xlu0 %2190
        %2192 = vrot.lane.b32.xlu0 %v1571, 120
        %v2193 = vpop.permute.xlu0 %2192
        %2194 = vrot.lane.b32.xlu0 %v1576, 120
        %v2195 = vpop.permute.xlu0 %2194
        %2196 = vrot.lane.b32.xlu0 %v1579, 120
        %v2197 = vpop.permute.xlu0 %2196
        %2198 = vrot.lane.b32.xlu0 %v1584, 120
        %v2199 = vpop.permute.xlu0 %2198
        %2200 = vrot.lane.b32.xlu0 %v1587, 120
        %v2201 = vpop.permute.xlu0 %2200
        %2202 = vrot.lane.b32.xlu0 %v1592, 120
        %v2203 = vpop.permute.xlu0 %2202
        %2204 = vrot.lane.b32.xlu0 %v1595, 120
        %v2205 = vpop.permute.xlu0 %2204
        %2206 = vrot.lane.b32.xlu0 %v1600, 120
        %v2207 = vpop.permute.xlu0 %2206
        %2208 = vrot.lane.b32.xlu0 %v1603, 120
        %v2209 = vpop.permute.xlu0 %2208
        %2210 = vrot.lane.b32.xlu0 %v1608, 120
        %v2211 = vpop.permute.xlu0 %2210
        %2212 = vrot.lane.b32.xlu0 %v1611, 120
        %v2213 = vpop.permute.xlu0 %2212
        %2214 = vrot.lane.b32.xlu0 %v1616, 120
        %v2215 = vpop.permute.xlu0 %2214
        %2216 = vrot.lane.b32.xlu0 %v1619, 120
        %v2217 = vpop.permute.xlu0 %2216
        %2218 = vrot.lane.b32.xlu0 %v1624, 120
        %v2219 = vpop.permute.xlu0 %2218
        %2220 = vrot.lane.b32.xlu0 %v1627, 120
        %v2221 = vpop.permute.xlu0 %2220
        %2222 = vrot.lane.b32.xlu0 %v1632, 120
        %v2223 = vpop.permute.xlu0 %2222
        %2224 = vrot.lane.b32.xlu0 %v1635, 120
        %v2225 = vpop.permute.xlu0 %2224
        %2226 = vrot.lane.b32.xlu0 %v1640, 120
        %v2227 = vpop.permute.xlu0 %2226
        %2228 = vrot.lane.b32.xlu0 %v1643, 120
        %v2229 = vpop.permute.xlu0 %2228
        %2230 = vrot.lane.b32.xlu0 %v1648, 120
        %v2231 = vpop.permute.xlu0 %2230
        %2232 = vrot.lane.b32.xlu0 %v1651, 120
        %v2233 = vpop.permute.xlu0 %2232
        %2234 = vrot.lane.b32.xlu0 %v1656, 120
        %v2235 = vpop.permute.xlu0 %2234
        %2236 = vrot.lane.b32.xlu0 %v1659, 120
        %v2237 = vpop.permute.xlu0 %2236
        %2238 = vrot.lane.b32.xlu0 %v1664, 120
        %v2239 = vpop.permute.xlu0 %2238
        %2240 = vrot.lane.b32.xlu0 %v1667, 120
        %v2241 = vpop.permute.xlu0 %2240
        %2242 = vrot.lane.b32.xlu0 %v1672, 120
        %v2243 = vpop.permute.xlu0 %2242
        %2244 = vrot.lane.b32.xlu0 %v1675, 120
        %v2245 = vpop.permute.xlu0 %2244
        %2246 = vrot.lane.b32.xlu0 %v1680, 120
        %v2247 = vpop.permute.xlu0 %2246
        %2248 = vrot.lane.b32.xlu0 %v1683, 120
        %v2249 = vpop.permute.xlu0 %2248
        %2250 = vrot.lane.b32.xlu0 %v1688, 120
        %v2251 = vpop.permute.xlu0 %2250
        %2252 = vrot.lane.b32.xlu0 %v1691, 120
        %v2253 = vpop.permute.xlu0 %2252
        %2254 = vrot.lane.b32.xlu0 %v1696, 120
        %v2255 = vpop.permute.xlu0 %2254
        %2256 = vrot.lane.b32.xlu0 %v1699, 120
        %v2257 = vpop.permute.xlu0 %2256
        %2258 = vrot.lane.b32.xlu0 %v1704, 120
        %v2259 = vpop.permute.xlu0 %2258
        %2260 = vrot.lane.b32.xlu0 %v1707, 120
        %v2261 = vpop.permute.xlu0 %2260
        %2262 = vrot.lane.b32.xlu0 %v1712, 120
        %v2263 = vpop.permute.xlu0 %2262
        %2264 = vrot.lane.b32.xlu0 %v1715, 120
        %v2265 = vpop.permute.xlu0 %2264
        %2266 = vrot.lane.b32.xlu0 %v1720, 120
        %v2267 = vpop.permute.xlu0 %2266
        %2268 = vrot.lane.b32.xlu0 %v1723, 120
        %v2269 = vpop.permute.xlu0 %2268
        %2270 = vrot.lane.b32.xlu0 %v1728, 120
        %v2271 = vpop.permute.xlu0 %2270
        %2272 = vrot.lane.b32.xlu0 %v1731, 120
        %v2273 = vpop.permute.xlu0 %2272
        %2274 = vrot.lane.b32.xlu0 %v1736, 120
        %v2275 = vpop.permute.xlu0 %2274
        %2276 = vrot.lane.b32.xlu0 %v1739, 120
        %v2277 = vpop.permute.xlu0 %2276
        %2278 = vrot.lane.b32.xlu0 %v1744, 120
        %v2279 = vpop.permute.xlu0 %2278
        %2280 = vrot.lane.b32.xlu0 %v1747, 120
        %v2281 = vpop.permute.xlu0 %2280
        %2282 = vrot.lane.b32.xlu0 %v1752, 120
        %v2283 = vpop.permute.xlu0 %2282
        %2284 = vrot.lane.b32.xlu0 %v1755, 120
        %v2285 = vpop.permute.xlu0 %2284
        %2286 = vrot.lane.b32.xlu0 %v1760, 120
        %v2287 = vpop.permute.xlu0 %2286
        %2288 = vrot.lane.b32.xlu0 %v1763, 120
        %v2289 = vpop.permute.xlu0 %2288
        %2290 = vrot.lane.b32.xlu0 %v1768, 120
        %v2291 = vpop.permute.xlu0 %2290
        %2292 = vrot.lane.b32.xlu0 %v1771, 120
        %v2293 = vpop.permute.xlu0 %2292
        %2294 = vrot.lane.b32.xlu0 %v1776, 120
        %v2295 = vpop.permute.xlu0 %2294
        %2296 = vrot.lane.b32.xlu0 %v1779, 120
        %v2297 = vpop.permute.xlu0 %2296
        %2298 = vrot.lane.b32.xlu0 %v1784, 120
        %v2299 = vpop.permute.xlu0 %2298
        %2300 = vrot.lane.b32.xlu0 %v1787, 120
        %v2301 = vpop.permute.xlu0 %2300
        %v2430 = vmax.f32 %v1790, %v2047
        %v2431 = vmax.f32 %v1791, %v2049
        %v2432 = vmax.f32 %v1792, %v2051
        %v2433 = vmax.f32 %v1793, %v2053
        %v2434 = vmax.f32 %v1794, %v2055
        %v2435 = vmax.f32 %v1795, %v2057
        %v2436 = vmax.f32 %v1796, %v2059
        %v2437 = vmax.f32 %v1797, %v2061
        %v2438 = vmax.f32 %v1798, %v2063
        %v2439 = vmax.f32 %v1799, %v2065
        %v2440 = vmax.f32 %v1800, %v2067
        %v2441 = vmax.f32 %v1801, %v2069
        %v2442 = vmax.f32 %v1802, %v2071
        %v2443 = vmax.f32 %v1803, %v2073
        %v2444 = vmax.f32 %v1804, %v2075
        %v2445 = vmax.f32 %v1805, %v2077
        %v2446 = vmax.f32 %v1806, %v2079
        %v2447 = vmax.f32 %v1807, %v2081
        %v2448 = vmax.f32 %v1808, %v2083
        %v2449 = vmax.f32 %v1809, %v2085
        %v2450 = vmax.f32 %v1810, %v2087
        %v2451 = vmax.f32 %v1811, %v2089
        %v2452 = vmax.f32 %v1812, %v2091
        %v2453 = vmax.f32 %v1813, %v2093
        %v2454 = vmax.f32 %v1814, %v2095
        %v2455 = vmax.f32 %v1815, %v2097
        %v2456 = vmax.f32 %v1816, %v2099
        %v2457 = vmax.f32 %v1817, %v2101
        %v2458 = vmax.f32 %v1818, %v2103
        %v2459 = vmax.f32 %v1819, %v2105
        %v2460 = vmax.f32 %v1820, %v2107
        %v2461 = vmax.f32 %v1821, %v2109
        %v2462 = vmax.f32 %v1822, %v2111
        %v2463 = vmax.f32 %v1823, %v2113
        %v2464 = vmax.f32 %v1824, %v2115
        %v2465 = vmax.f32 %v1825, %v2117
        %v2466 = vmax.f32 %v1826, %v2119
        %v2467 = vmax.f32 %v1827, %v2121
        %v2468 = vmax.f32 %v1828, %v2123
        %v2469 = vmax.f32 %v1829, %v2125
        %v2470 = vmax.f32 %v1830, %v2127
        %v2471 = vmax.f32 %v1831, %v2129
        %v2472 = vmax.f32 %v1832, %v2131
        %v2473 = vmax.f32 %v1833, %v2133
        %v2474 = vmax.f32 %v1834, %v2135
        %v2475 = vmax.f32 %v1835, %v2137
        %v2476 = vmax.f32 %v1836, %v2139
        %v2477 = vmax.f32 %v1837, %v2141
        %v2478 = vmax.f32 %v1838, %v2143
        %v2479 = vmax.f32 %v1839, %v2145
        %v2480 = vmax.f32 %v1840, %v2147
        %v2481 = vmax.f32 %v1841, %v2149
        %v2482 = vmax.f32 %v1842, %v2151
        %v2483 = vmax.f32 %v1843, %v2153
        %v2484 = vmax.f32 %v1844, %v2155
        %v2485 = vmax.f32 %v1845, %v2157
        %v2486 = vmax.f32 %v1846, %v2159
        %v2487 = vmax.f32 %v1847, %v2161
        %v2488 = vmax.f32 %v1848, %v2163
        %v2489 = vmax.f32 %v1849, %v2165
        %v2490 = vmax.f32 %v1850, %v2167
        %v2491 = vmax.f32 %v1851, %v2169
        %v2492 = vmax.f32 %v1852, %v2171
        %v2493 = vmax.f32 %v1853, %v2173
        %v2494 = vmax.f32 %v1854, %v2175
        %v2495 = vmax.f32 %v1855, %v2177
        %v2496 = vmax.f32 %v1856, %v2179
        %v2497 = vmax.f32 %v1857, %v2181
        %v2498 = vmax.f32 %v1858, %v2183
        %v2499 = vmax.f32 %v1859, %v2185
        %v2500 = vmax.f32 %v1860, %v2187
        %v2501 = vmax.f32 %v1861, %v2189
        %v2502 = vmax.f32 %v1862, %v2191
        %v2503 = vmax.f32 %v1863, %v2193
        %v2504 = vmax.f32 %v1864, %v2195
        %v2505 = vmax.f32 %v1865, %v2197
        %v2506 = vmax.f32 %v1866, %v2199
        %v2507 = vmax.f32 %v1867, %v2201
        %v2508 = vmax.f32 %v1868, %v2203
        %v2509 = vmax.f32 %v1869, %v2205
        %v2510 = vmax.f32 %v1870, %v2207
        %v2511 = vmax.f32 %v1871, %v2209
        %v2512 = vmax.f32 %v1872, %v2211
        %v2513 = vmax.f32 %v1873, %v2213
        %v2514 = vmax.f32 %v1874, %v2215
        %v2515 = vmax.f32 %v1875, %v2217
        %v2516 = vmax.f32 %v1876, %v2219
        %v2517 = vmax.f32 %v1877, %v2221
        %v2518 = vmax.f32 %v1878, %v2223
        %v2519 = vmax.f32 %v1879, %v2225
        %v2520 = vmax.f32 %v1880, %v2227
        %v2521 = vmax.f32 %v1881, %v2229
        %v2522 = vmax.f32 %v1882, %v2231
        %v2523 = vmax.f32 %v1883, %v2233
        %v2524 = vmax.f32 %v1884, %v2235
        %v2525 = vmax.f32 %v1885, %v2237
        %v2526 = vmax.f32 %v1886, %v2239
        %v2527 = vmax.f32 %v1887, %v2241
        %v2528 = vmax.f32 %v1888, %v2243
        %v2529 = vmax.f32 %v1889, %v2245
        %v2530 = vmax.f32 %v1890, %v2247
        %v2531 = vmax.f32 %v1891, %v2249
        %v2532 = vmax.f32 %v1892, %v2251
        %v2533 = vmax.f32 %v1893, %v2253
        %v2534 = vmax.f32 %v1894, %v2255
        %v2535 = vmax.f32 %v1895, %v2257
        %v2536 = vmax.f32 %v1896, %v2259
        %v2537 = vmax.f32 %v1897, %v2261
        %v2538 = vmax.f32 %v1898, %v2263
        %v2539 = vmax.f32 %v1899, %v2265
        %v2540 = vmax.f32 %v1900, %v2267
        %v2541 = vmax.f32 %v1901, %v2269
        %v2542 = vmax.f32 %v1902, %v2271
        %v2543 = vmax.f32 %v1903, %v2273
        %v2544 = vmax.f32 %v1904, %v2275
        %v2545 = vmax.f32 %v1905, %v2277
        %v2546 = vmax.f32 %v1906, %v2279
        %v2547 = vmax.f32 %v1907, %v2281
        %v2548 = vmax.f32 %v1908, %v2283
        %v2549 = vmax.f32 %v1909, %v2285
        %v2550 = vmax.f32 %v1910, %v2287
        %v2551 = vmax.f32 %v1911, %v2289
        %v2552 = vmax.f32 %v1912, %v2291
        %v2553 = vmax.f32 %v1913, %v2293
        %v2554 = vmax.f32 %v1914, %v2295
        %v2555 = vmax.f32 %v1915, %v2297
        %v2556 = vmax.f32 %v1916, %v2299
        %v2557 = vmax.f32 %v1917, %v2301
        %v2558 = vsub.f32 %v1790, %v2430
        %v2559 = vsub.f32 %v1791, %v2431
        %v2560 = vsub.f32 %v1792, %v2432
        %v2561 = vsub.f32 %v1793, %v2433
        %v2562 = vsub.f32 %v1794, %v2434
        %v2563 = vsub.f32 %v1795, %v2435
        %v2564 = vsub.f32 %v1796, %v2436
        %v2565 = vsub.f32 %v1797, %v2437
        %v2566 = vsub.f32 %v1798, %v2438
        %v2567 = vsub.f32 %v1799, %v2439
        %v2568 = vsub.f32 %v1800, %v2440
        %v2569 = vsub.f32 %v1801, %v2441
        %v2570 = vsub.f32 %v1802, %v2442
        %v2571 = vsub.f32 %v1803, %v2443
        %v2572 = vsub.f32 %v1804, %v2444
        %v2573 = vsub.f32 %v1805, %v2445
        %v2574 = vsub.f32 %v1806, %v2446
        %v2575 = vsub.f32 %v1807, %v2447
        %v2576 = vsub.f32 %v1808, %v2448
        %v2577 = vsub.f32 %v1809, %v2449
        %v2578 = vsub.f32 %v1810, %v2450
        %v2579 = vsub.f32 %v1811, %v2451
        %v2580 = vsub.f32 %v1812, %v2452
        %v2581 = vsub.f32 %v1813, %v2453
        %v2582 = vsub.f32 %v1814, %v2454
        %v2583 = vsub.f32 %v1815, %v2455
        %v2584 = vsub.f32 %v1816, %v2456
        %v2585 = vsub.f32 %v1817, %v2457
        %v2586 = vsub.f32 %v1818, %v2458
        %v2587 = vsub.f32 %v1819, %v2459
        %v2588 = vsub.f32 %v1820, %v2460
        %v2589 = vsub.f32 %v1821, %v2461
        %v2590 = vsub.f32 %v1822, %v2462
        %v2591 = vsub.f32 %v1823, %v2463
        %v2592 = vsub.f32 %v1824, %v2464
        %v2593 = vsub.f32 %v1825, %v2465
        %v2594 = vsub.f32 %v1826, %v2466
        %v2595 = vsub.f32 %v1827, %v2467
        %v2596 = vsub.f32 %v1828, %v2468
        %v2597 = vsub.f32 %v1829, %v2469
        %v2598 = vsub.f32 %v1830, %v2470
        %v2599 = vsub.f32 %v1831, %v2471
        %v2600 = vsub.f32 %v1832, %v2472
        %v2601 = vsub.f32 %v1833, %v2473
        %v2602 = vsub.f32 %v1834, %v2474
        %v2603 = vsub.f32 %v1835, %v2475
        %v2604 = vsub.f32 %v1836, %v2476
        %v2605 = vsub.f32 %v1837, %v2477
        %v2606 = vsub.f32 %v1838, %v2478
        %v2607 = vsub.f32 %v1839, %v2479
        %v2608 = vsub.f32 %v1840, %v2480
        %v2609 = vsub.f32 %v1841, %v2481
        %v2610 = vsub.f32 %v1842, %v2482
        %v2611 = vsub.f32 %v1843, %v2483
        %v2612 = vsub.f32 %v1844, %v2484
        %v2613 = vsub.f32 %v1845, %v2485
        %v2614 = vsub.f32 %v1846, %v2486
        %v2615 = vsub.f32 %v1847, %v2487
        %v2616 = vsub.f32 %v1848, %v2488
        %v2617 = vsub.f32 %v1849, %v2489
        %v2618 = vsub.f32 %v1850, %v2490
        %v2619 = vsub.f32 %v1851, %v2491
        %v2620 = vsub.f32 %v1852, %v2492
        %v2621 = vsub.f32 %v1853, %v2493
        %v2622 = vsub.f32 %v1854, %v2494
        %v2623 = vsub.f32 %v1855, %v2495
        %v2624 = vsub.f32 %v1856, %v2496
        %v2625 = vsub.f32 %v1857, %v2497
        %v2626 = vsub.f32 %v1858, %v2498
        %v2627 = vsub.f32 %v1859, %v2499
        %v2628 = vsub.f32 %v1860, %v2500
        %v2629 = vsub.f32 %v1861, %v2501
        %v2630 = vsub.f32 %v1862, %v2502
        %v2631 = vsub.f32 %v1863, %v2503
        %v2632 = vsub.f32 %v1864, %v2504
        %v2633 = vsub.f32 %v1865, %v2505
        %v2634 = vsub.f32 %v1866, %v2506
        %v2635 = vsub.f32 %v1867, %v2507
        %v2636 = vsub.f32 %v1868, %v2508
        %v2637 = vsub.f32 %v1869, %v2509
        %v2638 = vsub.f32 %v1870, %v2510
        %v2639 = vsub.f32 %v1871, %v2511
        %v2640 = vsub.f32 %v1872, %v2512
        %v2641 = vsub.f32 %v1873, %v2513
        %v2642 = vsub.f32 %v1874, %v2514
        %v2643 = vsub.f32 %v1875, %v2515
        %v2644 = vsub.f32 %v1876, %v2516
        %v2645 = vsub.f32 %v1877, %v2517
        %v2646 = vsub.f32 %v1878, %v2518
        %v2647 = vsub.f32 %v1879, %v2519
        %v2648 = vsub.f32 %v1880, %v2520
        %v2649 = vsub.f32 %v1881, %v2521
        %v2650 = vsub.f32 %v1882, %v2522
        %v2651 = vsub.f32 %v1883, %v2523
        %v2652 = vsub.f32 %v1884, %v2524
        %v2653 = vsub.f32 %v1885, %v2525
        %v2654 = vsub.f32 %v1886, %v2526
        %v2655 = vsub.f32 %v1887, %v2527
        %v2656 = vsub.f32 %v1888, %v2528
        %v2657 = vsub.f32 %v1889, %v2529
        %v2658 = vsub.f32 %v1890, %v2530
        %v2659 = vsub.f32 %v1891, %v2531
        %v2660 = vsub.f32 %v1892, %v2532
        %v2661 = vsub.f32 %v1893, %v2533
        %v2662 = vsub.f32 %v1894, %v2534
        %v2663 = vsub.f32 %v1895, %v2535
        %v2664 = vsub.f32 %v1896, %v2536
        %v2665 = vsub.f32 %v1897, %v2537
        %v2666 = vsub.f32 %v1898, %v2538
        %v2667 = vsub.f32 %v1899, %v2539
        %v2668 = vsub.f32 %v1900, %v2540
        %v2669 = vsub.f32 %v1901, %v2541
        %v2670 = vsub.f32 %v1902, %v2542
        %v2671 = vsub.f32 %v1903, %v2543
        %v2672 = vsub.f32 %v1904, %v2544
        %v2673 = vsub.f32 %v1905, %v2545
        %v2674 = vsub.f32 %v1906, %v2546
        %v2675 = vsub.f32 %v1907, %v2547
        %v2676 = vsub.f32 %v1908, %v2548
        %v2677 = vsub.f32 %v1909, %v2549
        %v2678 = vsub.f32 %v1910, %v2550
        %v2679 = vsub.f32 %v1911, %v2551
        %v2680 = vsub.f32 %v1912, %v2552
        %v2681 = vsub.f32 %v1913, %v2553
        %v2682 = vsub.f32 %v1914, %v2554
        %v2683 = vsub.f32 %v1915, %v2555
        %v2684 = vsub.f32 %v1916, %v2556
        %v2685 = vsub.f32 %v1917, %v2557
        %v2686 = vmul.f32 %v2558, 1.442695
        %v2687 = vpow.pop %v2686
        %v2688 = vmul.f32 %v2559, 1.442695
        %v2689 = vpow.pop %v2688
        %v2690 = vmul.f32 %v2560, 1.442695
        %v2691 = vpow.pop %v2690
        %v2692 = vmul.f32 %v2561, 1.442695
        %v2693 = vpow.pop %v2692
        %v2694 = vmul.f32 %v2562, 1.442695
        %v2695 = vpow.pop %v2694
        %v2696 = vmul.f32 %v2563, 1.442695
        %v2697 = vpow.pop %v2696
        %v2698 = vmul.f32 %v2564, 1.442695
        %v2699 = vpow.pop %v2698
        %v2700 = vmul.f32 %v2565, 1.442695
        %v2701 = vpow.pop %v2700
        %v2702 = vmul.f32 %v2566, 1.442695
        %v2703 = vpow.pop %v2702
        %v2704 = vmul.f32 %v2567, 1.442695
        %v2705 = vpow.pop %v2704
        %v2706 = vmul.f32 %v2568, 1.442695
        %v2707 = vpow.pop %v2706
        %v2708 = vmul.f32 %v2569, 1.442695
        %v2709 = vpow.pop %v2708
        %v2710 = vmul.f32 %v2570, 1.442695
        %v2711 = vpow.pop %v2710
        %v2712 = vmul.f32 %v2571, 1.442695
        %v2713 = vpow.pop %v2712
        %v2714 = vmul.f32 %v2572, 1.442695
        %v2715 = vpow.pop %v2714
        %v2716 = vmul.f32 %v2573, 1.442695
        %v2717 = vpow.pop %v2716
        %v2718 = vmul.f32 %v2574, 1.442695
        %v2719 = vpow.pop %v2718
        %v2720 = vmul.f32 %v2575, 1.442695
        %v2721 = vpow.pop %v2720
        %v2722 = vmul.f32 %v2576, 1.442695
        %v2723 = vpow.pop %v2722
        %v2724 = vmul.f32 %v2577, 1.442695
        %v2725 = vpow.pop %v2724
        %v2726 = vmul.f32 %v2578, 1.442695
        %v2727 = vpow.pop %v2726
        %v2728 = vmul.f32 %v2579, 1.442695
        %v2729 = vpow.pop %v2728
        %v2730 = vmul.f32 %v2580, 1.442695
        %v2731 = vpow.pop %v2730
        %v2732 = vmul.f32 %v2581, 1.442695
        %v2733 = vpow.pop %v2732
        %v2734 = vmul.f32 %v2582, 1.442695
        %v2735 = vpow.pop %v2734
        %v2736 = vmul.f32 %v2583, 1.442695
        %v2737 = vpow.pop %v2736
        %v2738 = vmul.f32 %v2584, 1.442695
        %v2739 = vpow.pop %v2738
        %v2740 = vmul.f32 %v2585, 1.442695
        %v2741 = vpow.pop %v2740
        %v2742 = vmul.f32 %v2586, 1.442695
        %v2743 = vpow.pop %v2742
        %v2744 = vmul.f32 %v2587, 1.442695
        %v2745 = vpow.pop %v2744
        %v2746 = vmul.f32 %v2588, 1.442695
        %v2747 = vpow.pop %v2746
        %v2748 = vmul.f32 %v2589, 1.442695
        %v2749 = vpow.pop %v2748
        %v2750 = vmul.f32 %v2590, 1.442695
        %v2751 = vpow.pop %v2750
        %v2752 = vmul.f32 %v2591, 1.442695
        %v2753 = vpow.pop %v2752
        %v2754 = vmul.f32 %v2592, 1.442695
        %v2755 = vpow.pop %v2754
        %v2756 = vmul.f32 %v2593, 1.442695
        %v2757 = vpow.pop %v2756
        %v2758 = vmul.f32 %v2594, 1.442695
        %v2759 = vpow.pop %v2758
        %v2760 = vmul.f32 %v2595, 1.442695
        %v2761 = vpow.pop %v2760
        %v2762 = vmul.f32 %v2596, 1.442695
        %v2763 = vpow.pop %v2762
        %v2764 = vmul.f32 %v2597, 1.442695
        %v2765 = vpow.pop %v2764
        %v2766 = vmul.f32 %v2598, 1.442695
        %v2767 = vpow.pop %v2766
        %v2768 = vmul.f32 %v2599, 1.442695
        %v2769 = vpow.pop %v2768
        %v2770 = vmul.f32 %v2600, 1.442695
        %v2771 = vpow.pop %v2770
        %v2772 = vmul.f32 %v2601, 1.442695
        %v2773 = vpow.pop %v2772
        %v2774 = vmul.f32 %v2602, 1.442695
        %v2775 = vpow.pop %v2774
        %v2776 = vmul.f32 %v2603, 1.442695
        %v2777 = vpow.pop %v2776
        %v2778 = vmul.f32 %v2604, 1.442695
        %v2779 = vpow.pop %v2778
        %v2780 = vmul.f32 %v2605, 1.442695
        %v2781 = vpow.pop %v2780
        %v2782 = vmul.f32 %v2606, 1.442695
        %v2783 = vpow.pop %v2782
        %v2784 = vmul.f32 %v2607, 1.442695
        %v2785 = vpow.pop %v2784
        %v2786 = vmul.f32 %v2608, 1.442695
        %v2787 = vpow.pop %v2786
        %v2788 = vmul.f32 %v2609, 1.442695
        %v2789 = vpow.pop %v2788
        %v2790 = vmul.f32 %v2610, 1.442695
        %v2791 = vpow.pop %v2790
        %v2792 = vmul.f32 %v2611, 1.442695
        %v2793 = vpow.pop %v2792
        %v2794 = vmul.f32 %v2612, 1.442695
        %v2795 = vpow.pop %v2794
        %v2796 = vmul.f32 %v2613, 1.442695
        %v2797 = vpow.pop %v2796
        %v2798 = vmul.f32 %v2614, 1.442695
        %v2799 = vpow.pop %v2798
        %v2800 = vmul.f32 %v2615, 1.442695
        %v2801 = vpow.pop %v2800
        %v2802 = vmul.f32 %v2616, 1.442695
        %v2803 = vpow.pop %v2802
        %v2804 = vmul.f32 %v2617, 1.442695
        %v2805 = vpow.pop %v2804
        %v2806 = vmul.f32 %v2618, 1.442695
        %v2807 = vpow.pop %v2806
        %v2808 = vmul.f32 %v2619, 1.442695
        %v2809 = vpow.pop %v2808
        %v2810 = vmul.f32 %v2620, 1.442695
        %v2811 = vpow.pop %v2810
        %v2812 = vmul.f32 %v2621, 1.442695
        %v2813 = vpow.pop %v2812
        %v2814 = vmul.f32 %v2622, 1.442695
        %v2815 = vpow.pop %v2814
        %v2816 = vmul.f32 %v2623, 1.442695
        %v2817 = vpow.pop %v2816
        %v2818 = vmul.f32 %v2624, 1.442695
        %v2819 = vpow.pop %v2818
        %v2820 = vmul.f32 %v2625, 1.442695
        %v2821 = vpow.pop %v2820
        %v2822 = vmul.f32 %v2626, 1.442695
        %v2823 = vpow.pop %v2822
        %v2824 = vmul.f32 %v2627, 1.442695
        %v2825 = vpow.pop %v2824
        %v2826 = vmul.f32 %v2628, 1.442695
        %v2827 = vpow.pop %v2826
        %v2828 = vmul.f32 %v2629, 1.442695
        %v2829 = vpow.pop %v2828
        %v2830 = vmul.f32 %v2630, 1.442695
        %v2831 = vpow.pop %v2830
        %v2832 = vmul.f32 %v2631, 1.442695
        %v2833 = vpow.pop %v2832
        %v2834 = vmul.f32 %v2632, 1.442695
        %v2835 = vpow.pop %v2834
        %v2836 = vmul.f32 %v2633, 1.442695
        %v2837 = vpow.pop %v2836
        %v2838 = vmul.f32 %v2634, 1.442695
        %v2839 = vpow.pop %v2838
        %v2840 = vmul.f32 %v2635, 1.442695
        %v2841 = vpow.pop %v2840
        %v2842 = vmul.f32 %v2636, 1.442695
        %v2843 = vpow.pop %v2842
        %v2844 = vmul.f32 %v2637, 1.442695
        %v2845 = vpow.pop %v2844
        %v2846 = vmul.f32 %v2638, 1.442695
        %v2847 = vpow.pop %v2846
        %v2848 = vmul.f32 %v2639, 1.442695
        %v2849 = vpow.pop %v2848
        %v2850 = vmul.f32 %v2640, 1.442695
        %v2851 = vpow.pop %v2850
        %v2852 = vmul.f32 %v2641, 1.442695
        %v2853 = vpow.pop %v2852
        %v2854 = vmul.f32 %v2642, 1.442695
        %v2855 = vpow.pop %v2854
        %v2856 = vmul.f32 %v2643, 1.442695
        %v2857 = vpow.pop %v2856
        %v2858 = vmul.f32 %v2644, 1.442695
        %v2859 = vpow.pop %v2858
        %v2860 = vmul.f32 %v2645, 1.442695
        %v2861 = vpow.pop %v2860
        %v2862 = vmul.f32 %v2646, 1.442695
        %v2863 = vpow.pop %v2862
        %v2864 = vmul.f32 %v2647, 1.442695
        %v2865 = vpow.pop %v2864
        %v2866 = vmul.f32 %v2648, 1.442695
        %v2867 = vpow.pop %v2866
        %v2868 = vmul.f32 %v2649, 1.442695
        %v2869 = vpow.pop %v2868
        %v2870 = vmul.f32 %v2650, 1.442695
        %v2871 = vpow.pop %v2870
        %v2872 = vmul.f32 %v2651, 1.442695
        %v2873 = vpow.pop %v2872
        %v2874 = vmul.f32 %v2652, 1.442695
        %v2875 = vpow.pop %v2874
        %v2876 = vmul.f32 %v2653, 1.442695
        %v2877 = vpow.pop %v2876
        %v2878 = vmul.f32 %v2654, 1.442695
        %v2879 = vpow.pop %v2878
        %v2880 = vmul.f32 %v2655, 1.442695
        %v2881 = vpow.pop %v2880
        %v2882 = vmul.f32 %v2656, 1.442695
        %v2883 = vpow.pop %v2882
        %v2884 = vmul.f32 %v2657, 1.442695
        %v2885 = vpow.pop %v2884
        %v2886 = vmul.f32 %v2658, 1.442695
        %v2887 = vpow.pop %v2886
        %v2888 = vmul.f32 %v2659, 1.442695
        %v2889 = vpow.pop %v2888
        %v2890 = vmul.f32 %v2660, 1.442695
        %v2891 = vpow.pop %v2890
        %v2892 = vmul.f32 %v2661, 1.442695
        %v2893 = vpow.pop %v2892
        %v2894 = vmul.f32 %v2662, 1.442695
        %v2895 = vpow.pop %v2894
        %v2896 = vmul.f32 %v2663, 1.442695
        %v2897 = vpow.pop %v2896
        %v2898 = vmul.f32 %v2664, 1.442695
        %v2899 = vpow.pop %v2898
        %v2900 = vmul.f32 %v2665, 1.442695
        %v2901 = vpow.pop %v2900
        %v2902 = vmul.f32 %v2666, 1.442695
        %v2903 = vpow.pop %v2902
        %v2904 = vmul.f32 %v2667, 1.442695
        %v2905 = vpow.pop %v2904
        %v2906 = vmul.f32 %v2668, 1.442695
        %v2907 = vpow.pop %v2906
        %v2908 = vmul.f32 %v2669, 1.442695
        %v2909 = vpow.pop %v2908
        %v2910 = vmul.f32 %v2670, 1.442695
        %v2911 = vpow.pop %v2910
        %v2912 = vmul.f32 %v2671, 1.442695
        %v2913 = vpow.pop %v2912
        %v2914 = vmul.f32 %v2672, 1.442695
        %v2915 = vpow.pop %v2914
        %v2916 = vmul.f32 %v2673, 1.442695
        %v2917 = vpow.pop %v2916
        %v2918 = vmul.f32 %v2674, 1.442695
        %v2919 = vpow.pop %v2918
        %v2920 = vmul.f32 %v2675, 1.442695
        %v2921 = vpow.pop %v2920
        %v2922 = vmul.f32 %v2676, 1.442695
        %v2923 = vpow.pop %v2922
        %v2924 = vmul.f32 %v2677, 1.442695
        %v2925 = vpow.pop %v2924
        %v2926 = vmul.f32 %v2678, 1.442695
        %v2927 = vpow.pop %v2926
        %v2928 = vmul.f32 %v2679, 1.442695
        %v2929 = vpow.pop %v2928
        %v2930 = vmul.f32 %v2680, 1.442695
        %v2931 = vpow.pop %v2930
        %v2932 = vmul.f32 %v2681, 1.442695
        %v2933 = vpow.pop %v2932
        %v2934 = vmul.f32 %v2682, 1.442695
        %v2935 = vpow.pop %v2934
        %v2936 = vmul.f32 %v2683, 1.442695
        %v2937 = vpow.pop %v2936
        %v2938 = vmul.f32 %v2684, 1.442695
        %v2939 = vpow.pop %v2938
        %v2940 = vmul.f32 %v2685, 1.442695
        %v2941 = vpow.pop %v2940
        %3070 = vrot.lane.b32.xlu0 %v2430, 8
        %v3071 = vpop.permute.xlu0 %3070
        %3072 = vrot.lane.b32.xlu0 %v2431, 8
        %v3073 = vpop.permute.xlu0 %3072
        %3074 = vrot.lane.b32.xlu0 %v2432, 8
        %v3075 = vpop.permute.xlu0 %3074
        %3076 = vrot.lane.b32.xlu0 %v2433, 8
        %v3077 = vpop.permute.xlu0 %3076
        %3078 = vrot.lane.b32.xlu0 %v2434, 8
        %v3079 = vpop.permute.xlu0 %3078
        %3080 = vrot.lane.b32.xlu0 %v2435, 8
        %v3081 = vpop.permute.xlu0 %3080
        %3082 = vrot.lane.b32.xlu0 %v2436, 8
        %v3083 = vpop.permute.xlu0 %3082
        %3084 = vrot.lane.b32.xlu0 %v2437, 8
        %v3085 = vpop.permute.xlu0 %3084
        %3086 = vrot.lane.b32.xlu0 %v2438, 8
        %v3087 = vpop.permute.xlu0 %3086
        %3088 = vrot.lane.b32.xlu0 %v2439, 8
        %v3089 = vpop.permute.xlu0 %3088
        %3090 = vrot.lane.b32.xlu0 %v2440, 8
        %v3091 = vpop.permute.xlu0 %3090
        %3092 = vrot.lane.b32.xlu0 %v2441, 8
        %v3093 = vpop.permute.xlu0 %3092
        %3094 = vrot.lane.b32.xlu0 %v2442, 8
        %v3095 = vpop.permute.xlu0 %3094
        %3096 = vrot.lane.b32.xlu0 %v2443, 8
        %v3097 = vpop.permute.xlu0 %3096
        %3098 = vrot.lane.b32.xlu0 %v2444, 8
        %v3099 = vpop.permute.xlu0 %3098
        %3100 = vrot.lane.b32.xlu0 %v2445, 8
        %v3101 = vpop.permute.xlu0 %3100
        %3102 = vrot.lane.b32.xlu0 %v2446, 8
        %v3103 = vpop.permute.xlu0 %3102
        %3104 = vrot.lane.b32.xlu0 %v2447, 8
        %v3105 = vpop.permute.xlu0 %3104
        %3106 = vrot.lane.b32.xlu0 %v2448, 8
        %v3107 = vpop.permute.xlu0 %3106
        %3108 = vrot.lane.b32.xlu0 %v2449, 8
        %v3109 = vpop.permute.xlu0 %3108
        %3110 = vrot.lane.b32.xlu0 %v2450, 8
        %v3111 = vpop.permute.xlu0 %3110
        %3112 = vrot.lane.b32.xlu0 %v2451, 8
        %v3113 = vpop.permute.xlu0 %3112
        %3114 = vrot.lane.b32.xlu0 %v2452, 8
        %v3115 = vpop.permute.xlu0 %3114
        %3116 = vrot.lane.b32.xlu0 %v2453, 8
        %v3117 = vpop.permute.xlu0 %3116
        %3118 = vrot.lane.b32.xlu0 %v2454, 8
        %v3119 = vpop.permute.xlu0 %3118
        %3120 = vrot.lane.b32.xlu0 %v2455, 8
        %v3121 = vpop.permute.xlu0 %3120
        %3122 = vrot.lane.b32.xlu0 %v2456, 8
        %v3123 = vpop.permute.xlu0 %3122
        %3124 = vrot.lane.b32.xlu0 %v2457, 8
        %v3125 = vpop.permute.xlu0 %3124
        %3126 = vrot.lane.b32.xlu0 %v2458, 8
        %v3127 = vpop.permute.xlu0 %3126
        %3128 = vrot.lane.b32.xlu0 %v2459, 8
        %v3129 = vpop.permute.xlu0 %3128
        %3130 = vrot.lane.b32.xlu0 %v2460, 8
        %v3131 = vpop.permute.xlu0 %3130
        %3132 = vrot.lane.b32.xlu0 %v2461, 8
        %v3133 = vpop.permute.xlu0 %3132
        %3134 = vrot.lane.b32.xlu0 %v2462, 8
        %v3135 = vpop.permute.xlu0 %3134
        %3136 = vrot.lane.b32.xlu0 %v2463, 8
        %v3137 = vpop.permute.xlu0 %3136
        %3138 = vrot.lane.b32.xlu0 %v2464, 8
        %v3139 = vpop.permute.xlu0 %3138
        %3140 = vrot.lane.b32.xlu0 %v2465, 8
        %v3141 = vpop.permute.xlu0 %3140
        %3142 = vrot.lane.b32.xlu0 %v2466, 8
        %v3143 = vpop.permute.xlu0 %3142
        %3144 = vrot.lane.b32.xlu0 %v2467, 8
        %v3145 = vpop.permute.xlu0 %3144
        %3146 = vrot.lane.b32.xlu0 %v2468, 8
        %v3147 = vpop.permute.xlu0 %3146
        %3148 = vrot.lane.b32.xlu0 %v2469, 8
        %v3149 = vpop.permute.xlu0 %3148
        %3150 = vrot.lane.b32.xlu0 %v2470, 8
        %v3151 = vpop.permute.xlu0 %3150
        %3152 = vrot.lane.b32.xlu0 %v2471, 8
        %v3153 = vpop.permute.xlu0 %3152
        %3154 = vrot.lane.b32.xlu0 %v2472, 8
        %v3155 = vpop.permute.xlu0 %3154
        %3156 = vrot.lane.b32.xlu0 %v2473, 8
        %v3157 = vpop.permute.xlu0 %3156
        %3158 = vrot.lane.b32.xlu0 %v2474, 8
        %v3159 = vpop.permute.xlu0 %3158
        %3160 = vrot.lane.b32.xlu0 %v2475, 8
        %v3161 = vpop.permute.xlu0 %3160
        %3162 = vrot.lane.b32.xlu0 %v2476, 8
        %v3163 = vpop.permute.xlu0 %3162
        %3164 = vrot.lane.b32.xlu0 %v2477, 8
        %v3165 = vpop.permute.xlu0 %3164
        %3166 = vrot.lane.b32.xlu0 %v2478, 8
        %v3167 = vpop.permute.xlu0 %3166
        %3168 = vrot.lane.b32.xlu0 %v2479, 8
        %v3169 = vpop.permute.xlu0 %3168
        %3170 = vrot.lane.b32.xlu0 %v2480, 8
        %v3171 = vpop.permute.xlu0 %3170
        %3172 = vrot.lane.b32.xlu0 %v2481, 8
        %v3173 = vpop.permute.xlu0 %3172
        %3174 = vrot.lane.b32.xlu0 %v2482, 8
        %v3175 = vpop.permute.xlu0 %3174
        %3176 = vrot.lane.b32.xlu0 %v2483, 8
        %v3177 = vpop.permute.xlu0 %3176
        %3178 = vrot.lane.b32.xlu0 %v2484, 8
        %v3179 = vpop.permute.xlu0 %3178
        %3180 = vrot.lane.b32.xlu0 %v2485, 8
        %v3181 = vpop.permute.xlu0 %3180
        %3182 = vrot.lane.b32.xlu0 %v2486, 8
        %v3183 = vpop.permute.xlu0 %3182
        %3184 = vrot.lane.b32.xlu0 %v2487, 8
        %v3185 = vpop.permute.xlu0 %3184
        %3186 = vrot.lane.b32.xlu0 %v2488, 8
        %v3187 = vpop.permute.xlu0 %3186
        %3188 = vrot.lane.b32.xlu0 %v2489, 8
        %v3189 = vpop.permute.xlu0 %3188
        %3190 = vrot.lane.b32.xlu0 %v2490, 8
        %v3191 = vpop.permute.xlu0 %3190
        %3192 = vrot.lane.b32.xlu0 %v2491, 8
        %v3193 = vpop.permute.xlu0 %3192
        %3194 = vrot.lane.b32.xlu0 %v2492, 8
        %v3195 = vpop.permute.xlu0 %3194
        %3196 = vrot.lane.b32.xlu0 %v2493, 8
        %v3197 = vpop.permute.xlu0 %3196
        %3198 = vrot.lane.b32.xlu0 %v2494, 8
        %v3199 = vpop.permute.xlu0 %3198
        %3200 = vrot.lane.b32.xlu0 %v2495, 8
        %v3201 = vpop.permute.xlu0 %3200
        %3202 = vrot.lane.b32.xlu0 %v2496, 8
        %v3203 = vpop.permute.xlu0 %3202
        %3204 = vrot.lane.b32.xlu0 %v2497, 8
        %v3205 = vpop.permute.xlu0 %3204
        %3206 = vrot.lane.b32.xlu0 %v2498, 8
        %v3207 = vpop.permute.xlu0 %3206
        %3208 = vrot.lane.b32.xlu0 %v2499, 8
        %v3209 = vpop.permute.xlu0 %3208
        %3210 = vrot.lane.b32.xlu0 %v2500, 8
        %v3211 = vpop.permute.xlu0 %3210
        %3212 = vrot.lane.b32.xlu0 %v2501, 8
        %v3213 = vpop.permute.xlu0 %3212
        %3214 = vrot.lane.b32.xlu0 %v2502, 8
        %v3215 = vpop.permute.xlu0 %3214
        %3216 = vrot.lane.b32.xlu0 %v2503, 8
        %v3217 = vpop.permute.xlu0 %3216
        %3218 = vrot.lane.b32.xlu0 %v2504, 8
        %v3219 = vpop.permute.xlu0 %3218
        %3220 = vrot.lane.b32.xlu0 %v2505, 8
        %v3221 = vpop.permute.xlu0 %3220
        %3222 = vrot.lane.b32.xlu0 %v2506, 8
        %v3223 = vpop.permute.xlu0 %3222
        %3224 = vrot.lane.b32.xlu0 %v2507, 8
        %v3225 = vpop.permute.xlu0 %3224
        %3226 = vrot.lane.b32.xlu0 %v2508, 8
        %v3227 = vpop.permute.xlu0 %3226
        %3228 = vrot.lane.b32.xlu0 %v2509, 8
        %v3229 = vpop.permute.xlu0 %3228
        %3230 = vrot.lane.b32.xlu0 %v2510, 8
        %v3231 = vpop.permute.xlu0 %3230
        %3232 = vrot.lane.b32.xlu0 %v2511, 8
        %v3233 = vpop.permute.xlu0 %3232
        %3234 = vrot.lane.b32.xlu0 %v2512, 8
        %v3235 = vpop.permute.xlu0 %3234
        %3236 = vrot.lane.b32.xlu0 %v2513, 8
        %v3237 = vpop.permute.xlu0 %3236
        %3238 = vrot.lane.b32.xlu0 %v2514, 8
        %v3239 = vpop.permute.xlu0 %3238
        %3240 = vrot.lane.b32.xlu0 %v2515, 8
        %v3241 = vpop.permute.xlu0 %3240
        %3242 = vrot.lane.b32.xlu0 %v2516, 8
        %v3243 = vpop.permute.xlu0 %3242
        %3244 = vrot.lane.b32.xlu0 %v2517, 8
        %v3245 = vpop.permute.xlu0 %3244
        %3246 = vrot.lane.b32.xlu0 %v2518, 8
        %v3247 = vpop.permute.xlu0 %3246
        %3248 = vrot.lane.b32.xlu0 %v2519, 8
        %v3249 = vpop.permute.xlu0 %3248
        %3250 = vrot.lane.b32.xlu0 %v2520, 8
        %v3251 = vpop.permute.xlu0 %3250
        %3252 = vrot.lane.b32.xlu0 %v2521, 8
        %v3253 = vpop.permute.xlu0 %3252
        %3254 = vrot.lane.b32.xlu0 %v2522, 8
        %v3255 = vpop.permute.xlu0 %3254
        %3256 = vrot.lane.b32.xlu0 %v2523, 8
        %v3257 = vpop.permute.xlu0 %3256
        %3258 = vrot.lane.b32.xlu0 %v2524, 8
        %v3259 = vpop.permute.xlu0 %3258
        %3260 = vrot.lane.b32.xlu0 %v2525, 8
        %v3261 = vpop.permute.xlu0 %3260
        %3262 = vrot.lane.b32.xlu0 %v2526, 8
        %v3263 = vpop.permute.xlu0 %3262
        %3264 = vrot.lane.b32.xlu0 %v2527, 8
        %v3265 = vpop.permute.xlu0 %3264
        %3266 = vrot.lane.b32.xlu0 %v2528, 8
        %v3267 = vpop.permute.xlu0 %3266
        %3268 = vrot.lane.b32.xlu0 %v2529, 8
        %v3269 = vpop.permute.xlu0 %3268
        %3270 = vrot.lane.b32.xlu0 %v2530, 8
        %v3271 = vpop.permute.xlu0 %3270
        %3272 = vrot.lane.b32.xlu0 %v2531, 8
        %v3273 = vpop.permute.xlu0 %3272
        %3274 = vrot.lane.b32.xlu0 %v2532, 8
        %v3275 = vpop.permute.xlu0 %3274
        %3276 = vrot.lane.b32.xlu0 %v2533, 8
        %v3277 = vpop.permute.xlu0 %3276
        %3278 = vrot.lane.b32.xlu0 %v2534, 8
        %v3279 = vpop.permute.xlu0 %3278
        %3280 = vrot.lane.b32.xlu0 %v2535, 8
        %v3281 = vpop.permute.xlu0 %3280
        %3282 = vrot.lane.b32.xlu0 %v2536, 8
        %v3283 = vpop.permute.xlu0 %3282
        %3284 = vrot.lane.b32.xlu0 %v2537, 8
        %v3285 = vpop.permute.xlu0 %3284
        %3286 = vrot.lane.b32.xlu0 %v2538, 8
        %v3287 = vpop.permute.xlu0 %3286
        %3288 = vrot.lane.b32.xlu0 %v2539, 8
        %v3289 = vpop.permute.xlu0 %3288
        %3290 = vrot.lane.b32.xlu0 %v2540, 8
        %v3291 = vpop.permute.xlu0 %3290
        %3292 = vrot.lane.b32.xlu0 %v2541, 8
        %v3293 = vpop.permute.xlu0 %3292
        %3294 = vrot.lane.b32.xlu0 %v2542, 8
        %v3295 = vpop.permute.xlu0 %3294
        %3296 = vrot.lane.b32.xlu0 %v2543, 8
        %v3297 = vpop.permute.xlu0 %3296
        %3298 = vrot.lane.b32.xlu0 %v2544, 8
        %v3299 = vpop.permute.xlu0 %3298
        %3300 = vrot.lane.b32.xlu0 %v2545, 8
        %v3301 = vpop.permute.xlu0 %3300
        %3302 = vrot.lane.b32.xlu0 %v2546, 8
        %v3303 = vpop.permute.xlu0 %3302
        %3304 = vrot.lane.b32.xlu0 %v2547, 8
        %v3305 = vpop.permute.xlu0 %3304
        %3306 = vrot.lane.b32.xlu0 %v2548, 8
        %v3307 = vpop.permute.xlu0 %3306
        %3308 = vrot.lane.b32.xlu0 %v2549, 8
        %v3309 = vpop.permute.xlu0 %3308
        %3310 = vrot.lane.b32.xlu0 %v2550, 8
        %v3311 = vpop.permute.xlu0 %3310
        %3312 = vrot.lane.b32.xlu0 %v2551, 8
        %v3313 = vpop.permute.xlu0 %3312
        %3314 = vrot.lane.b32.xlu0 %v2552, 8
        %v3315 = vpop.permute.xlu0 %3314
        %3316 = vrot.lane.b32.xlu0 %v2553, 8
        %v3317 = vpop.permute.xlu0 %3316
        %3318 = vrot.lane.b32.xlu0 %v2554, 8
        %v3319 = vpop.permute.xlu0 %3318
        %3320 = vrot.lane.b32.xlu0 %v2555, 8
        %v3321 = vpop.permute.xlu0 %3320
        %3322 = vrot.lane.b32.xlu0 %v2556, 8
        %v3323 = vpop.permute.xlu0 %3322
        %3324 = vrot.lane.b32.xlu0 %v2557, 8
        %v3325 = vpop.permute.xlu0 %3324
        %v3454 = vsub.f32 %v1280, %v3071
        %v3455 = vsub.f32 %v1283, %v3073
        %v3456 = vsub.f32 %v1288, %v3075
        %v3457 = vsub.f32 %v1291, %v3077
        %v3458 = vsub.f32 %v1296, %v3079
        %v3459 = vsub.f32 %v1299, %v3081
        %v3460 = vsub.f32 %v1304, %v3083
        %v3461 = vsub.f32 %v1307, %v3085
        %v3462 = vsub.f32 %v1312, %v3087
        %v3463 = vsub.f32 %v1315, %v3089
        %v3464 = vsub.f32 %v1320, %v3091
        %v3465 = vsub.f32 %v1323, %v3093
        %v3466 = vsub.f32 %v1328, %v3095
        %v3467 = vsub.f32 %v1331, %v3097
        %v3468 = vsub.f32 %v1336, %v3099
        %v3469 = vsub.f32 %v1339, %v3101
        %v3470 = vsub.f32 %v1344, %v3103
        %v3471 = vsub.f32 %v1347, %v3105
        %v3472 = vsub.f32 %v1352, %v3107
        %v3473 = vsub.f32 %v1355, %v3109
        %v3474 = vsub.f32 %v1360, %v3111
        %v3475 = vsub.f32 %v1363, %v3113
        %v3476 = vsub.f32 %v1368, %v3115
        %v3477 = vsub.f32 %v1371, %v3117
        %v3478 = vsub.f32 %v1376, %v3119
        %v3479 = vsub.f32 %v1379, %v3121
        %v3480 = vsub.f32 %v1384, %v3123
        %v3481 = vsub.f32 %v1387, %v3125
        %v3482 = vsub.f32 %v1392, %v3127
        %v3483 = vsub.f32 %v1395, %v3129
        %v3484 = vsub.f32 %v1400, %v3131
        %v3485 = vsub.f32 %v1403, %v3133
        %v3486 = vsub.f32 %v1408, %v3135
        %v3487 = vsub.f32 %v1411, %v3137
        %v3488 = vsub.f32 %v1416, %v3139
        %v3489 = vsub.f32 %v1419, %v3141
        %v3490 = vsub.f32 %v1424, %v3143
        %v3491 = vsub.f32 %v1427, %v3145
        %v3492 = vsub.f32 %v1432, %v3147
        %v3493 = vsub.f32 %v1435, %v3149
        %v3494 = vsub.f32 %v1440, %v3151
        %v3495 = vsub.f32 %v1443, %v3153
        %v3496 = vsub.f32 %v1448, %v3155
        %v3497 = vsub.f32 %v1451, %v3157
        %v3498 = vsub.f32 %v1456, %v3159
        %v3499 = vsub.f32 %v1459, %v3161
        %v3500 = vsub.f32 %v1464, %v3163
        %v3501 = vsub.f32 %v1467, %v3165
        %v3502 = vsub.f32 %v1472, %v3167
        %v3503 = vsub.f32 %v1475, %v3169
        %v3504 = vsub.f32 %v1480, %v3171
        %v3505 = vsub.f32 %v1483, %v3173
        %v3506 = vsub.f32 %v1488, %v3175
        %v3507 = vsub.f32 %v1491, %v3177
        %v3508 = vsub.f32 %v1496, %v3179
        %v3509 = vsub.f32 %v1499, %v3181
        %v3510 = vsub.f32 %v1504, %v3183
        %v3511 = vsub.f32 %v1507, %v3185
        %v3512 = vsub.f32 %v1512, %v3187
        %v3513 = vsub.f32 %v1515, %v3189
        %v3514 = vsub.f32 %v1520, %v3191
        %v3515 = vsub.f32 %v1523, %v3193
        %v3516 = vsub.f32 %v1528, %v3195
        %v3517 = vsub.f32 %v1531, %v3197
        %v3518 = vsub.f32 %v1536, %v3199
        %v3519 = vsub.f32 %v1539, %v3201
        %v3520 = vsub.f32 %v1544, %v3203
        %v3521 = vsub.f32 %v1547, %v3205
        %v3522 = vsub.f32 %v1552, %v3207
        %v3523 = vsub.f32 %v1555, %v3209
        %v3524 = vsub.f32 %v1560, %v3211
        %v3525 = vsub.f32 %v1563, %v3213
        %v3526 = vsub.f32 %v1568, %v3215
        %v3527 = vsub.f32 %v1571, %v3217
        %v3528 = vsub.f32 %v1576, %v3219
        %v3529 = vsub.f32 %v1579, %v3221
        %v3530 = vsub.f32 %v1584, %v3223
        %v3531 = vsub.f32 %v1587, %v3225
        %v3532 = vsub.f32 %v1592, %v3227
        %v3533 = vsub.f32 %v1595, %v3229
        %v3534 = vsub.f32 %v1600, %v3231
        %v3535 = vsub.f32 %v1603, %v3233
        %v3536 = vsub.f32 %v1608, %v3235
        %v3537 = vsub.f32 %v1611, %v3237
        %v3538 = vsub.f32 %v1616, %v3239
        %v3539 = vsub.f32 %v1619, %v3241
        %v3540 = vsub.f32 %v1624, %v3243
        %v3541 = vsub.f32 %v1627, %v3245
        %v3542 = vsub.f32 %v1632, %v3247
        %v3543 = vsub.f32 %v1635, %v3249
        %v3544 = vsub.f32 %v1640, %v3251
        %v3545 = vsub.f32 %v1643, %v3253
        %v3546 = vsub.f32 %v1648, %v3255
        %v3547 = vsub.f32 %v1651, %v3257
        %v3548 = vsub.f32 %v1656, %v3259
        %v3549 = vsub.f32 %v1659, %v3261
        %v3550 = vsub.f32 %v1664, %v3263
        %v3551 = vsub.f32 %v1667, %v3265
        %v3552 = vsub.f32 %v1672, %v3267
        %v3553 = vsub.f32 %v1675, %v3269
        %v3554 = vsub.f32 %v1680, %v3271
        %v3555 = vsub.f32 %v1683, %v3273
        %v3556 = vsub.f32 %v1688, %v3275
        %v3557 = vsub.f32 %v1691, %v3277
        %v3558 = vsub.f32 %v1696, %v3279
        %v3559 = vsub.f32 %v1699, %v3281
        %v3560 = vsub.f32 %v1704, %v3283
        %v3561 = vsub.f32 %v1707, %v3285
        %v3562 = vsub.f32 %v1712, %v3287
        %v3563 = vsub.f32 %v1715, %v3289
        %v3564 = vsub.f32 %v1720, %v3291
        %v3565 = vsub.f32 %v1723, %v3293
        %v3566 = vsub.f32 %v1728, %v3295
        %v3567 = vsub.f32 %v1731, %v3297
        %v3568 = vsub.f32 %v1736, %v3299
        %v3569 = vsub.f32 %v1739, %v3301
        %v3570 = vsub.f32 %v1744, %v3303
        %v3571 = vsub.f32 %v1747, %v3305
        %v3572 = vsub.f32 %v1752, %v3307
        %v3573 = vsub.f32 %v1755, %v3309
        %v3574 = vsub.f32 %v1760, %v3311
        %v3575 = vsub.f32 %v1763, %v3313
        %v3576 = vsub.f32 %v1768, %v3315
        %v3577 = vsub.f32 %v1771, %v3317
        %v3578 = vsub.f32 %v1776, %v3319
        %v3579 = vsub.f32 %v1779, %v3321
        %v3580 = vsub.f32 %v1784, %v3323
        %v3581 = vsub.f32 %v1787, %v3325
        %v3582 = vmul.f32 %v3454, 1.442695
        %v3583 = vpow.pop %v3582
        %v3584 = vmul.f32 %v3455, 1.442695
        %v3585 = vpow.pop %v3584
        %v3586 = vmul.f32 %v3456, 1.442695
        %v3587 = vpow.pop %v3586
        %v3588 = vmul.f32 %v3457, 1.442695
        %v3589 = vpow.pop %v3588
        %v3590 = vmul.f32 %v3458, 1.442695
        %v3591 = vpow.pop %v3590
        %v3592 = vmul.f32 %v3459, 1.442695
        %v3593 = vpow.pop %v3592
        %v3594 = vmul.f32 %v3460, 1.442695
        %v3595 = vpow.pop %v3594
        %v3596 = vmul.f32 %v3461, 1.442695
        %v3597 = vpow.pop %v3596
        %v3598 = vmul.f32 %v3462, 1.442695
        %v3599 = vpow.pop %v3598
        %v3600 = vmul.f32 %v3463, 1.442695
        %v3601 = vpow.pop %v3600
        %v3602 = vmul.f32 %v3464, 1.442695
        %v3603 = vpow.pop %v3602
        %v3604 = vmul.f32 %v3465, 1.442695
        %v3605 = vpow.pop %v3604
        %v3606 = vmul.f32 %v3466, 1.442695
        %v3607 = vpow.pop %v3606
        %v3608 = vmul.f32 %v3467, 1.442695
        %v3609 = vpow.pop %v3608
        %v3610 = vmul.f32 %v3468, 1.442695
        %v3611 = vpow.pop %v3610
        %v3612 = vmul.f32 %v3469, 1.442695
        %v3613 = vpow.pop %v3612
        %v3614 = vmul.f32 %v3470, 1.442695
        %v3615 = vpow.pop %v3614
        %v3616 = vmul.f32 %v3471, 1.442695
        %v3617 = vpow.pop %v3616
        %v3618 = vmul.f32 %v3472, 1.442695
        %v3619 = vpow.pop %v3618
        %v3620 = vmul.f32 %v3473, 1.442695
        %v3621 = vpow.pop %v3620
        %v3622 = vmul.f32 %v3474, 1.442695
        %v3623 = vpow.pop %v3622
        %v3624 = vmul.f32 %v3475, 1.442695
        %v3625 = vpow.pop %v3624
        %v3626 = vmul.f32 %v3476, 1.442695
        %v3627 = vpow.pop %v3626
        %v3628 = vmul.f32 %v3477, 1.442695
        %v3629 = vpow.pop %v3628
        %v3630 = vmul.f32 %v3478, 1.442695
        %v3631 = vpow.pop %v3630
        %v3632 = vmul.f32 %v3479, 1.442695
        %v3633 = vpow.pop %v3632
        %v3634 = vmul.f32 %v3480, 1.442695
        %v3635 = vpow.pop %v3634
        %v3636 = vmul.f32 %v3481, 1.442695
        %v3637 = vpow.pop %v3636
        %v3638 = vmul.f32 %v3482, 1.442695
        %v3639 = vpow.pop %v3638
        %v3640 = vmul.f32 %v3483, 1.442695
        %v3641 = vpow.pop %v3640
        %v3642 = vmul.f32 %v3484, 1.442695
        %v3643 = vpow.pop %v3642
        %v3644 = vmul.f32 %v3485, 1.442695
        %v3645 = vpow.pop %v3644
        %v3646 = vmul.f32 %v3486, 1.442695
        %v3647 = vpow.pop %v3646
        %v3648 = vmul.f32 %v3487, 1.442695
        %v3649 = vpow.pop %v3648
        %v3650 = vmul.f32 %v3488, 1.442695
        %v3651 = vpow.pop %v3650
        %v3652 = vmul.f32 %v3489, 1.442695
        %v3653 = vpow.pop %v3652
        %v3654 = vmul.f32 %v3490, 1.442695
        %v3655 = vpow.pop %v3654
        %v3656 = vmul.f32 %v3491, 1.442695
        %v3657 = vpow.pop %v3656
        %v3658 = vmul.f32 %v3492, 1.442695
        %v3659 = vpow.pop %v3658
        %v3660 = vmul.f32 %v3493, 1.442695
        %v3661 = vpow.pop %v3660
        %v3662 = vmul.f32 %v3494, 1.442695
        %v3663 = vpow.pop %v3662
        %v3664 = vmul.f32 %v3495, 1.442695
        %v3665 = vpow.pop %v3664
        %v3666 = vmul.f32 %v3496, 1.442695
        %v3667 = vpow.pop %v3666
        %v3668 = vmul.f32 %v3497, 1.442695
        %v3669 = vpow.pop %v3668
        %v3670 = vmul.f32 %v3498, 1.442695
        %v3671 = vpow.pop %v3670
        %v3672 = vmul.f32 %v3499, 1.442695
        %v3673 = vpow.pop %v3672
        %v3674 = vmul.f32 %v3500, 1.442695
        %v3675 = vpow.pop %v3674
        %v3676 = vmul.f32 %v3501, 1.442695
        %v3677 = vpow.pop %v3676
        %v3678 = vmul.f32 %v3502, 1.442695
        %v3679 = vpow.pop %v3678
        %v3680 = vmul.f32 %v3503, 1.442695
        %v3681 = vpow.pop %v3680
        %v3682 = vmul.f32 %v3504, 1.442695
        %v3683 = vpow.pop %v3682
        %v3684 = vmul.f32 %v3505, 1.442695
        %v3685 = vpow.pop %v3684
        %v3686 = vmul.f32 %v3506, 1.442695
        %v3687 = vpow.pop %v3686
        %v3688 = vmul.f32 %v3507, 1.442695
        %v3689 = vpow.pop %v3688
        %v3690 = vmul.f32 %v3508, 1.442695
        %v3691 = vpow.pop %v3690
        %v3692 = vmul.f32 %v3509, 1.442695
        %v3693 = vpow.pop %v3692
        %v3694 = vmul.f32 %v3510, 1.442695
        %v3695 = vpow.pop %v3694
        %v3696 = vmul.f32 %v3511, 1.442695
        %v3697 = vpow.pop %v3696
        %v3698 = vmul.f32 %v3512, 1.442695
        %v3699 = vpow.pop %v3698
        %v3700 = vmul.f32 %v3513, 1.442695
        %v3701 = vpow.pop %v3700
        %v3702 = vmul.f32 %v3514, 1.442695
        %v3703 = vpow.pop %v3702
        %v3704 = vmul.f32 %v3515, 1.442695
        %v3705 = vpow.pop %v3704
        %v3706 = vmul.f32 %v3516, 1.442695
        %v3707 = vpow.pop %v3706
        %v3708 = vmul.f32 %v3517, 1.442695
        %v3709 = vpow.pop %v3708
        %v3710 = vmul.f32 %v3518, 1.442695
        %v3711 = vpow.pop %v3710
        %v3712 = vmul.f32 %v3519, 1.442695
        %v3713 = vpow.pop %v3712
        %v3714 = vmul.f32 %v3520, 1.442695
        %v3715 = vpow.pop %v3714
        %v3716 = vmul.f32 %v3521, 1.442695
        %v3717 = vpow.pop %v3716
        %v3718 = vmul.f32 %v3522, 1.442695
        %v3719 = vpow.pop %v3718
        %v3720 = vmul.f32 %v3523, 1.442695
        %v3721 = vpow.pop %v3720
        %v3722 = vmul.f32 %v3524, 1.442695
        %v3723 = vpow.pop %v3722
        %v3724 = vmul.f32 %v3525, 1.442695
        %v3725 = vpow.pop %v3724
        %v3726 = vmul.f32 %v3526, 1.442695
        %v3727 = vpow.pop %v3726
        %v3728 = vmul.f32 %v3527, 1.442695
        %v3729 = vpow.pop %v3728
        %v3730 = vmul.f32 %v3528, 1.442695
        %v3731 = vpow.pop %v3730
        %v3732 = vmul.f32 %v3529, 1.442695
        %v3733 = vpow.pop %v3732
        %v3734 = vmul.f32 %v3530, 1.442695
        %v3735 = vpow.pop %v3734
        %v3736 = vmul.f32 %v3531, 1.442695
        %v3737 = vpow.pop %v3736
        %v3738 = vmul.f32 %v3532, 1.442695
        %v3739 = vpow.pop %v3738
        %v3740 = vmul.f32 %v3533, 1.442695
        %v3741 = vpow.pop %v3740
        %v3742 = vmul.f32 %v3534, 1.442695
        %v3743 = vpow.pop %v3742
        %v3744 = vmul.f32 %v3535, 1.442695
        %v3745 = vpow.pop %v3744
        %v3746 = vmul.f32 %v3536, 1.442695
        %v3747 = vpow.pop %v3746
        %v3748 = vmul.f32 %v3537, 1.442695
        %v3749 = vpow.pop %v3748
        %v3750 = vmul.f32 %v3538, 1.442695
        %v3751 = vpow.pop %v3750
        %v3752 = vmul.f32 %v3539, 1.442695
        %v3753 = vpow.pop %v3752
        %v3754 = vmul.f32 %v3540, 1.442695
        %v3755 = vpow.pop %v3754
        %v3756 = vmul.f32 %v3541, 1.442695
        %v3757 = vpow.pop %v3756
        %v3758 = vmul.f32 %v3542, 1.442695
        %v3759 = vpow.pop %v3758
        %v3760 = vmul.f32 %v3543, 1.442695
        %v3761 = vpow.pop %v3760
        %v3762 = vmul.f32 %v3544, 1.442695
        %v3763 = vpow.pop %v3762
        %v3764 = vmul.f32 %v3545, 1.442695
        %v3765 = vpow.pop %v3764
        %v3766 = vmul.f32 %v3546, 1.442695
        %v3767 = vpow.pop %v3766
        %v3768 = vmul.f32 %v3547, 1.442695
        %v3769 = vpow.pop %v3768
        %v3770 = vmul.f32 %v3548, 1.442695
        %v3771 = vpow.pop %v3770
        %v3772 = vmul.f32 %v3549, 1.442695
        %v3773 = vpow.pop %v3772
        %v3774 = vmul.f32 %v3550, 1.442695
        %v3775 = vpow.pop %v3774
        %v3776 = vmul.f32 %v3551, 1.442695
        %v3777 = vpow.pop %v3776
        %v3778 = vmul.f32 %v3552, 1.442695
        %v3779 = vpow.pop %v3778
        %v3780 = vmul.f32 %v3553, 1.442695
        %v3781 = vpow.pop %v3780
        %v3782 = vmul.f32 %v3554, 1.442695
        %v3783 = vpow.pop %v3782
        %v3784 = vmul.f32 %v3555, 1.442695
        %v3785 = vpow.pop %v3784
        %v3786 = vmul.f32 %v3556, 1.442695
        %v3787 = vpow.pop %v3786
        %v3788 = vmul.f32 %v3557, 1.442695
        %v3789 = vpow.pop %v3788
        %v3790 = vmul.f32 %v3558, 1.442695
        %v3791 = vpow.pop %v3790
        %v3792 = vmul.f32 %v3559, 1.442695
        %v3793 = vpow.pop %v3792
        %v3794 = vmul.f32 %v3560, 1.442695
        %v3795 = vpow.pop %v3794
        %v3796 = vmul.f32 %v3561, 1.442695
        %v3797 = vpow.pop %v3796
        %v3798 = vmul.f32 %v3562, 1.442695
        %v3799 = vpow.pop %v3798
        %v3800 = vmul.f32 %v3563, 1.442695
        %v3801 = vpow.pop %v3800
        %v3802 = vmul.f32 %v3564, 1.442695
        %v3803 = vpow.pop %v3802
        %v3804 = vmul.f32 %v3565, 1.442695
        %v3805 = vpow.pop %v3804
        %v3806 = vmul.f32 %v3566, 1.442695
        %v3807 = vpow.pop %v3806
        %v3808 = vmul.f32 %v3567, 1.442695
        %v3809 = vpow.pop %v3808
        %v3810 = vmul.f32 %v3568, 1.442695
        %v3811 = vpow.pop %v3810
        %v3812 = vmul.f32 %v3569, 1.442695
        %v3813 = vpow.pop %v3812
        %v3814 = vmul.f32 %v3570, 1.442695
        %v3815 = vpow.pop %v3814
        %v3816 = vmul.f32 %v3571, 1.442695
        %v3817 = vpow.pop %v3816
        %v3818 = vmul.f32 %v3572, 1.442695
        %v3819 = vpow.pop %v3818
        %v3820 = vmul.f32 %v3573, 1.442695
        %v3821 = vpow.pop %v3820
        %v3822 = vmul.f32 %v3574, 1.442695
        %v3823 = vpow.pop %v3822
        %v3824 = vmul.f32 %v3575, 1.442695
        %v3825 = vpow.pop %v3824
        %v3826 = vmul.f32 %v3576, 1.442695
        %v3827 = vpow.pop %v3826
        %v3828 = vmul.f32 %v3577, 1.442695
        %v3829 = vpow.pop %v3828
        %v3830 = vmul.f32 %v3578, 1.442695
        %v3831 = vpow.pop %v3830
        %v3832 = vmul.f32 %v3579, 1.442695
        %v3833 = vpow.pop %v3832
        %v3834 = vmul.f32 %v3580, 1.442695
        %v3835 = vpow.pop %v3834
        %v3836 = vmul.f32 %v3581, 1.442695
        %v3837 = vpow.pop %v3836
        %v3838 = vld [vmem:[#allocation3] sm:$0xff]
        %v3839 = vld [vmem:[#allocation3 + $0x8] sm:$0xff]
        %v3840 = vld [vmem:[#allocation3 + $0x10] sm:$0xff]
        %v3841 = vld [vmem:[#allocation3 + $0x18] sm:$0xff]
        %v3842 = vld [vmem:[#allocation3 + $0x20] sm:$0xff]
        %v3843 = vld [vmem:[#allocation3 + $0x28] sm:$0xff]
        %v3844 = vld [vmem:[#allocation3 + $0x30] sm:$0xff]
        %v3845 = vld [vmem:[#allocation3 + $0x38] sm:$0xff]
        %v3846 = vld [vmem:[#allocation3 + $0x40] sm:$0xff]
        %v3847 = vld [vmem:[#allocation3 + $0x48] sm:$0xff]
        %v3848 = vld [vmem:[#allocation3 + $0x50] sm:$0xff]
        %v3849 = vld [vmem:[#allocation3 + $0x58] sm:$0xff]
        %v3850 = vld [vmem:[#allocation3 + $0x60] sm:$0xff]
        %v3851 = vld [vmem:[#allocation3 + $0x68] sm:$0xff]
        %v3852 = vld [vmem:[#allocation3 + $0x70] sm:$0xff]
        %v3853 = vld [vmem:[#allocation3 + $0x78] sm:$0xff]
        %v3854 = vld [vmem:[#allocation3 + $0x80] sm:$0xff]
        %v3855 = vld [vmem:[#allocation3 + $0x88] sm:$0xff]
        %v3856 = vld [vmem:[#allocation3 + $0x90] sm:$0xff]
        %v3857 = vld [vmem:[#allocation3 + $0x98] sm:$0xff]
        %v3858 = vld [vmem:[#allocation3 + $0xa0] sm:$0xff]
        %v3859 = vld [vmem:[#allocation3 + $0xa8] sm:$0xff]
        %v3860 = vld [vmem:[#allocation3 + $0xb0] sm:$0xff]
        %v3861 = vld [vmem:[#allocation3 + $0xb8] sm:$0xff]
        %v3862 = vld [vmem:[#allocation3 + $0xc0] sm:$0xff]
        %v3863 = vld [vmem:[#allocation3 + $0xc8] sm:$0xff]
        %v3864 = vld [vmem:[#allocation3 + $0xd0] sm:$0xff]
        %v3865 = vld [vmem:[#allocation3 + $0xd8] sm:$0xff]
        %v3866 = vld [vmem:[#allocation3 + $0xe0] sm:$0xff]
        %v3867 = vld [vmem:[#allocation3 + $0xe8] sm:$0xff]
        %v3868 = vld [vmem:[#allocation3 + $0xf0] sm:$0xff]
        %v3869 = vld [vmem:[#allocation3 + $0xf8] sm:$0xff]
        %v3870 = vld [vmem:[#allocation3 + $0x100] sm:$0xff]
        %v3871 = vld [vmem:[#allocation3 + $0x108] sm:$0xff]
        %v3872 = vld [vmem:[#allocation3 + $0x110] sm:$0xff]
        %v3873 = vld [vmem:[#allocation3 + $0x118] sm:$0xff]
        %v3874 = vld [vmem:[#allocation3 + $0x120] sm:$0xff]
        %v3875 = vld [vmem:[#allocation3 + $0x128] sm:$0xff]
        %v3876 = vld [vmem:[#allocation3 + $0x130] sm:$0xff]
        %v3877 = vld [vmem:[#allocation3 + $0x138] sm:$0xff]
        %v3878 = vld [vmem:[#allocation3 + $0x140] sm:$0xff]
        %v3879 = vld [vmem:[#allocation3 + $0x148] sm:$0xff]
        %v3880 = vld [vmem:[#allocation3 + $0x150] sm:$0xff]
        %v3881 = vld [vmem:[#allocation3 + $0x158] sm:$0xff]
        %v3882 = vld [vmem:[#allocation3 + $0x160] sm:$0xff]
        %v3883 = vld [vmem:[#allocation3 + $0x168] sm:$0xff]
        %v3884 = vld [vmem:[#allocation3 + $0x170] sm:$0xff]
        %v3885 = vld [vmem:[#allocation3 + $0x178] sm:$0xff]
        %v3886 = vld [vmem:[#allocation3 + $0x180] sm:$0xff]
        %v3887 = vld [vmem:[#allocation3 + $0x188] sm:$0xff]
        %v3888 = vld [vmem:[#allocation3 + $0x190] sm:$0xff]
        %v3889 = vld [vmem:[#allocation3 + $0x198] sm:$0xff]
        %v3890 = vld [vmem:[#allocation3 + $0x1a0] sm:$0xff]
        %v3891 = vld [vmem:[#allocation3 + $0x1a8] sm:$0xff]
        %v3892 = vld [vmem:[#allocation3 + $0x1b0] sm:$0xff]
        %v3893 = vld [vmem:[#allocation3 + $0x1b8] sm:$0xff]
        %v3894 = vld [vmem:[#allocation3 + $0x1c0] sm:$0xff]
        %v3895 = vld [vmem:[#allocation3 + $0x1c8] sm:$0xff]
        %v3896 = vld [vmem:[#allocation3 + $0x1d0] sm:$0xff]
        %v3897 = vld [vmem:[#allocation3 + $0x1d8] sm:$0xff]
        %v3898 = vld [vmem:[#allocation3 + $0x1e0] sm:$0xff]
        %v3899 = vld [vmem:[#allocation3 + $0x1e8] sm:$0xff]
        %v3900 = vld [vmem:[#allocation3 + $0x1f0] sm:$0xff]
        %v3901 = vld [vmem:[#allocation3 + $0x1f8] sm:$0xff]
        %v3902 = vld [vmem:[#allocation3 + $0x200] sm:$0xff]
        %v3903 = vld [vmem:[#allocation3 + $0x208] sm:$0xff]
        %v3904 = vld [vmem:[#allocation3 + $0x210] sm:$0xff]
        %v3905 = vld [vmem:[#allocation3 + $0x218] sm:$0xff]
        %v3906 = vld [vmem:[#allocation3 + $0x220] sm:$0xff]
        %v3907 = vld [vmem:[#allocation3 + $0x228] sm:$0xff]
        %v3908 = vld [vmem:[#allocation3 + $0x230] sm:$0xff]
        %v3909 = vld [vmem:[#allocation3 + $0x238] sm:$0xff]
        %v3910 = vld [vmem:[#allocation3 + $0x240] sm:$0xff]
        %v3911 = vld [vmem:[#allocation3 + $0x248] sm:$0xff]
        %v3912 = vld [vmem:[#allocation3 + $0x250] sm:$0xff]
        %v3913 = vld [vmem:[#allocation3 + $0x258] sm:$0xff]
        %v3914 = vld [vmem:[#allocation3 + $0x260] sm:$0xff]
        %v3915 = vld [vmem:[#allocation3 + $0x268] sm:$0xff]
        %v3916 = vld [vmem:[#allocation3 + $0x270] sm:$0xff]
        %v3917 = vld [vmem:[#allocation3 + $0x278] sm:$0xff]
        %v3918 = vld [vmem:[#allocation3 + $0x280] sm:$0xff]
        %v3919 = vld [vmem:[#allocation3 + $0x288] sm:$0xff]
        %v3920 = vld [vmem:[#allocation3 + $0x290] sm:$0xff]
        %v3921 = vld [vmem:[#allocation3 + $0x298] sm:$0xff]
        %v3922 = vld [vmem:[#allocation3 + $0x2a0] sm:$0xff]
        %v3923 = vld [vmem:[#allocation3 + $0x2a8] sm:$0xff]
        %v3924 = vld [vmem:[#allocation3 + $0x2b0] sm:$0xff]
        %v3925 = vld [vmem:[#allocation3 + $0x2b8] sm:$0xff]
        %v3926 = vld [vmem:[#allocation3 + $0x2c0] sm:$0xff]
        %v3927 = vld [vmem:[#allocation3 + $0x2c8] sm:$0xff]
        %v3928 = vld [vmem:[#allocation3 + $0x2d0] sm:$0xff]
        %v3929 = vld [vmem:[#allocation3 + $0x2d8] sm:$0xff]
        %v3930 = vld [vmem:[#allocation3 + $0x2e0] sm:$0xff]
        %v3931 = vld [vmem:[#allocation3 + $0x2e8] sm:$0xff]
        %v3932 = vld [vmem:[#allocation3 + $0x2f0] sm:$0xff]
        %v3933 = vld [vmem:[#allocation3 + $0x2f8] sm:$0xff]
        %v3934 = vld [vmem:[#allocation3 + $0x300] sm:$0xff]
        %v3935 = vld [vmem:[#allocation3 + $0x308] sm:$0xff]
        %v3936 = vld [vmem:[#allocation3 + $0x310] sm:$0xff]
        %v3937 = vld [vmem:[#allocation3 + $0x318] sm:$0xff]
        %v3938 = vld [vmem:[#allocation3 + $0x320] sm:$0xff]
        %v3939 = vld [vmem:[#allocation3 + $0x328] sm:$0xff]
        %v3940 = vld [vmem:[#allocation3 + $0x330] sm:$0xff]
        %v3941 = vld [vmem:[#allocation3 + $0x338] sm:$0xff]
        %v3942 = vld [vmem:[#allocation3 + $0x340] sm:$0xff]
        %v3943 = vld [vmem:[#allocation3 + $0x348] sm:$0xff]
        %v3944 = vld [vmem:[#allocation3 + $0x350] sm:$0xff]
        %v3945 = vld [vmem:[#allocation3 + $0x358] sm:$0xff]
        %v3946 = vld [vmem:[#allocation3 + $0x360] sm:$0xff]
        %v3947 = vld [vmem:[#allocation3 + $0x368] sm:$0xff]
        %v3948 = vld [vmem:[#allocation3 + $0x370] sm:$0xff]
        %v3949 = vld [vmem:[#allocation3 + $0x378] sm:$0xff]
        %v3950 = vld [vmem:[#allocation3 + $0x380] sm:$0xff]
        %v3951 = vld [vmem:[#allocation3 + $0x388] sm:$0xff]
        %v3952 = vld [vmem:[#allocation3 + $0x390] sm:$0xff]
        %v3953 = vld [vmem:[#allocation3 + $0x398] sm:$0xff]
        %v3954 = vld [vmem:[#allocation3 + $0x3a0] sm:$0xff]
        %v3955 = vld [vmem:[#allocation3 + $0x3a8] sm:$0xff]
        %v3956 = vld [vmem:[#allocation3 + $0x3b0] sm:$0xff]
        %v3957 = vld [vmem:[#allocation3 + $0x3b8] sm:$0xff]
        %v3958 = vld [vmem:[#allocation3 + $0x3c0] sm:$0xff]
        %v3959 = vld [vmem:[#allocation3 + $0x3c8] sm:$0xff]
        %v3960 = vld [vmem:[#allocation3 + $0x3d0] sm:$0xff]
        %v3961 = vld [vmem:[#allocation3 + $0x3d8] sm:$0xff]
        %v3962 = vld [vmem:[#allocation3 + $0x3e0] sm:$0xff]
        %v3963 = vld [vmem:[#allocation3 + $0x3e8] sm:$0xff]
        %v3964 = vld [vmem:[#allocation3 + $0x3f0] sm:$0xff]
        %v3965 = vld [vmem:[#allocation3 + $0x3f8] sm:$0xff]
        %v3966 = vmul.f32 %v2687, %v3838
        %v3967 = vmul.f32 %v2689, %v3839
        %v3968 = vmul.f32 %v2691, %v3840
        %v3969 = vmul.f32 %v2693, %v3841
        %v3970 = vmul.f32 %v2695, %v3842
        %v3971 = vmul.f32 %v2697, %v3843
        %v3972 = vmul.f32 %v2699, %v3844
        %v3973 = vmul.f32 %v2701, %v3845
        %v3974 = vmul.f32 %v2703, %v3846
        %v3975 = vmul.f32 %v2705, %v3847
        %v3976 = vmul.f32 %v2707, %v3848
        %v3977 = vmul.f32 %v2709, %v3849
        %v3978 = vmul.f32 %v2711, %v3850
        %v3979 = vmul.f32 %v2713, %v3851
        %v3980 = vmul.f32 %v2715, %v3852
        %v3981 = vmul.f32 %v2717, %v3853
        %v3982 = vmul.f32 %v2719, %v3854
        %v3983 = vmul.f32 %v2721, %v3855
        %v3984 = vmul.f32 %v2723, %v3856
        %v3985 = vmul.f32 %v2725, %v3857
        %v3986 = vmul.f32 %v2727, %v3858
        %v3987 = vmul.f32 %v2729, %v3859
        %v3988 = vmul.f32 %v2731, %v3860
        %v3989 = vmul.f32 %v2733, %v3861
        %v3990 = vmul.f32 %v2735, %v3862
        %v3991 = vmul.f32 %v2737, %v3863
        %v3992 = vmul.f32 %v2739, %v3864
        %v3993 = vmul.f32 %v2741, %v3865
        %v3994 = vmul.f32 %v2743, %v3866
        %v3995 = vmul.f32 %v2745, %v3867
        %v3996 = vmul.f32 %v2747, %v3868
        %v3997 = vmul.f32 %v2749, %v3869
        %v3998 = vmul.f32 %v2751, %v3870
        %v3999 = vmul.f32 %v2753, %v3871
        %v4000 = vmul.f32 %v2755, %v3872
        %v4001 = vmul.f32 %v2757, %v3873
        %v4002 = vmul.f32 %v2759, %v3874
        %v4003 = vmul.f32 %v2761, %v3875
        %v4004 = vmul.f32 %v2763, %v3876
        %v4005 = vmul.f32 %v2765, %v3877
        %v4006 = vmul.f32 %v2767, %v3878
        %v4007 = vmul.f32 %v2769, %v3879
        %v4008 = vmul.f32 %v2771, %v3880
        %v4009 = vmul.f32 %v2773, %v3881
        %v4010 = vmul.f32 %v2775, %v3882
        %v4011 = vmul.f32 %v2777, %v3883
        %v4012 = vmul.f32 %v2779, %v3884
        %v4013 = vmul.f32 %v2781, %v3885
        %v4014 = vmul.f32 %v2783, %v3886
        %v4015 = vmul.f32 %v2785, %v3887
        %v4016 = vmul.f32 %v2787, %v3888
        %v4017 = vmul.f32 %v2789, %v3889
        %v4018 = vmul.f32 %v2791, %v3890
        %v4019 = vmul.f32 %v2793, %v3891
        %v4020 = vmul.f32 %v2795, %v3892
        %v4021 = vmul.f32 %v2797, %v3893
        %v4022 = vmul.f32 %v2799, %v3894
        %v4023 = vmul.f32 %v2801, %v3895
        %v4024 = vmul.f32 %v2803, %v3896
        %v4025 = vmul.f32 %v2805, %v3897
        %v4026 = vmul.f32 %v2807, %v3898
        %v4027 = vmul.f32 %v2809, %v3899
        %v4028 = vmul.f32 %v2811, %v3900
        %v4029 = vmul.f32 %v2813, %v3901
        %v4030 = vmul.f32 %v2815, %v3902
        %v4031 = vmul.f32 %v2817, %v3903
        %v4032 = vmul.f32 %v2819, %v3904
        %v4033 = vmul.f32 %v2821, %v3905
        %v4034 = vmul.f32 %v2823, %v3906
        %v4035 = vmul.f32 %v2825, %v3907
        %v4036 = vmul.f32 %v2827, %v3908
        %v4037 = vmul.f32 %v2829, %v3909
        %v4038 = vmul.f32 %v2831, %v3910
        %v4039 = vmul.f32 %v2833, %v3911
        %v4040 = vmul.f32 %v2835, %v3912
        %v4041 = vmul.f32 %v2837, %v3913
        %v4042 = vmul.f32 %v2839, %v3914
        %v4043 = vmul.f32 %v2841, %v3915
        %v4044 = vmul.f32 %v2843, %v3916
        %v4045 = vmul.f32 %v2845, %v3917
        %v4046 = vmul.f32 %v2847, %v3918
        %v4047 = vmul.f32 %v2849, %v3919
        %v4048 = vmul.f32 %v2851, %v3920
        %v4049 = vmul.f32 %v2853, %v3921
        %v4050 = vmul.f32 %v2855, %v3922
        %v4051 = vmul.f32 %v2857, %v3923
        %v4052 = vmul.f32 %v2859, %v3924
        %v4053 = vmul.f32 %v2861, %v3925
        %v4054 = vmul.f32 %v2863, %v3926
        %v4055 = vmul.f32 %v2865, %v3927
        %v4056 = vmul.f32 %v2867, %v3928
        %v4057 = vmul.f32 %v2869, %v3929
        %v4058 = vmul.f32 %v2871, %v3930
        %v4059 = vmul.f32 %v2873, %v3931
        %v4060 = vmul.f32 %v2875, %v3932
        %v4061 = vmul.f32 %v2877, %v3933
        %v4062 = vmul.f32 %v2879, %v3934
        %v4063 = vmul.f32 %v2881, %v3935
        %v4064 = vmul.f32 %v2883, %v3936
        %v4065 = vmul.f32 %v2885, %v3937
        %v4066 = vmul.f32 %v2887, %v3938
        %v4067 = vmul.f32 %v2889, %v3939
        %v4068 = vmul.f32 %v2891, %v3940
        %v4069 = vmul.f32 %v2893, %v3941
        %v4070 = vmul.f32 %v2895, %v3942
        %v4071 = vmul.f32 %v2897, %v3943
        %v4072 = vmul.f32 %v2899, %v3944
        %v4073 = vmul.f32 %v2901, %v3945
        %v4074 = vmul.f32 %v2903, %v3946
        %v4075 = vmul.f32 %v2905, %v3947
        %v4076 = vmul.f32 %v2907, %v3948
        %v4077 = vmul.f32 %v2909, %v3949
        %v4078 = vmul.f32 %v2911, %v3950
        %v4079 = vmul.f32 %v2913, %v3951
        %v4080 = vmul.f32 %v2915, %v3952
        %v4081 = vmul.f32 %v2917, %v3953
        %v4082 = vmul.f32 %v2919, %v3954
        %v4083 = vmul.f32 %v2921, %v3955
        %v4084 = vmul.f32 %v2923, %v3956
        %v4085 = vmul.f32 %v2925, %v3957
        %v4086 = vmul.f32 %v2927, %v3958
        %v4087 = vmul.f32 %v2929, %v3959
        %v4088 = vmul.f32 %v2931, %v3960
        %v4089 = vmul.f32 %v2933, %v3961
        %v4090 = vmul.f32 %v2935, %v3962
        %v4091 = vmul.f32 %v2937, %v3963
        %v4092 = vmul.f32 %v2939, %v3964
        %v4093 = vmul.f32 %v2941, %v3965
        %4222 = vrot.lane.b32.xlu0 %v3583, 120
        %v4223 = vpop.permute.xlu0 %4222
        %4224 = vrot.lane.b32.xlu0 %v3585, 120
        %v4225 = vpop.permute.xlu0 %4224
        %4226 = vrot.lane.b32.xlu0 %v3587, 120
        %v4227 = vpop.permute.xlu0 %4226
        %4228 = vrot.lane.b32.xlu0 %v3589, 120
        %v4229 = vpop.permute.xlu0 %4228
        %4230 = vrot.lane.b32.xlu0 %v3591, 120
        %v4231 = vpop.permute.xlu0 %4230
        %4232 = vrot.lane.b32.xlu0 %v3593, 120
        %v4233 = vpop.permute.xlu0 %4232
        %4234 = vrot.lane.b32.xlu0 %v3595, 120
        %v4235 = vpop.permute.xlu0 %4234
        %4236 = vrot.lane.b32.xlu0 %v3597, 120
        %v4237 = vpop.permute.xlu0 %4236
        %4238 = vrot.lane.b32.xlu0 %v3599, 120
        %v4239 = vpop.permute.xlu0 %4238
        %4240 = vrot.lane.b32.xlu0 %v3601, 120
        %v4241 = vpop.permute.xlu0 %4240
        %4242 = vrot.lane.b32.xlu0 %v3603, 120
        %v4243 = vpop.permute.xlu0 %4242
        %4244 = vrot.lane.b32.xlu0 %v3605, 120
        %v4245 = vpop.permute.xlu0 %4244
        %4246 = vrot.lane.b32.xlu0 %v3607, 120
        %v4247 = vpop.permute.xlu0 %4246
        %4248 = vrot.lane.b32.xlu0 %v3609, 120
        %v4249 = vpop.permute.xlu0 %4248
        %4250 = vrot.lane.b32.xlu0 %v3611, 120
        %v4251 = vpop.permute.xlu0 %4250
        %4252 = vrot.lane.b32.xlu0 %v3613, 120
        %v4253 = vpop.permute.xlu0 %4252
        %4254 = vrot.lane.b32.xlu0 %v3615, 120
        %v4255 = vpop.permute.xlu0 %4254
        %4256 = vrot.lane.b32.xlu0 %v3617, 120
        %v4257 = vpop.permute.xlu0 %4256
        %4258 = vrot.lane.b32.xlu0 %v3619, 120
        %v4259 = vpop.permute.xlu0 %4258
        %4260 = vrot.lane.b32.xlu0 %v3621, 120
        %v4261 = vpop.permute.xlu0 %4260
        %4262 = vrot.lane.b32.xlu0 %v3623, 120
        %v4263 = vpop.permute.xlu0 %4262
        %4264 = vrot.lane.b32.xlu0 %v3625, 120
        %v4265 = vpop.permute.xlu0 %4264
        %4266 = vrot.lane.b32.xlu0 %v3627, 120
        %v4267 = vpop.permute.xlu0 %4266
        %4268 = vrot.lane.b32.xlu0 %v3629, 120
        %v4269 = vpop.permute.xlu0 %4268
        %4270 = vrot.lane.b32.xlu0 %v3631, 120
        %v4271 = vpop.permute.xlu0 %4270
        %4272 = vrot.lane.b32.xlu0 %v3633, 120
        %v4273 = vpop.permute.xlu0 %4272
        %4274 = vrot.lane.b32.xlu0 %v3635, 120
        %v4275 = vpop.permute.xlu0 %4274
        %4276 = vrot.lane.b32.xlu0 %v3637, 120
        %v4277 = vpop.permute.xlu0 %4276
        %4278 = vrot.lane.b32.xlu0 %v3639, 120
        %v4279 = vpop.permute.xlu0 %4278
        %4280 = vrot.lane.b32.xlu0 %v3641, 120
        %v4281 = vpop.permute.xlu0 %4280
        %4282 = vrot.lane.b32.xlu0 %v3643, 120
        %v4283 = vpop.permute.xlu0 %4282
        %4284 = vrot.lane.b32.xlu0 %v3645, 120
        %v4285 = vpop.permute.xlu0 %4284
        %4286 = vrot.lane.b32.xlu0 %v3647, 120
        %v4287 = vpop.permute.xlu0 %4286
        %4288 = vrot.lane.b32.xlu0 %v3649, 120
        %v4289 = vpop.permute.xlu0 %4288
        %4290 = vrot.lane.b32.xlu0 %v3651, 120
        %v4291 = vpop.permute.xlu0 %4290
        %4292 = vrot.lane.b32.xlu0 %v3653, 120
        %v4293 = vpop.permute.xlu0 %4292
        %4294 = vrot.lane.b32.xlu0 %v3655, 120
        %v4295 = vpop.permute.xlu0 %4294
        %4296 = vrot.lane.b32.xlu0 %v3657, 120
        %v4297 = vpop.permute.xlu0 %4296
        %4298 = vrot.lane.b32.xlu0 %v3659, 120
        %v4299 = vpop.permute.xlu0 %4298
        %4300 = vrot.lane.b32.xlu0 %v3661, 120
        %v4301 = vpop.permute.xlu0 %4300
        %4302 = vrot.lane.b32.xlu0 %v3663, 120
        %v4303 = vpop.permute.xlu0 %4302
        %4304 = vrot.lane.b32.xlu0 %v3665, 120
        %v4305 = vpop.permute.xlu0 %4304
        %4306 = vrot.lane.b32.xlu0 %v3667, 120
        %v4307 = vpop.permute.xlu0 %4306
        %4308 = vrot.lane.b32.xlu0 %v3669, 120
        %v4309 = vpop.permute.xlu0 %4308
        %4310 = vrot.lane.b32.xlu0 %v3671, 120
        %v4311 = vpop.permute.xlu0 %4310
        %4312 = vrot.lane.b32.xlu0 %v3673, 120
        %v4313 = vpop.permute.xlu0 %4312
        %4314 = vrot.lane.b32.xlu0 %v3675, 120
        %v4315 = vpop.permute.xlu0 %4314
        %4316 = vrot.lane.b32.xlu0 %v3677, 120
        %v4317 = vpop.permute.xlu0 %4316
        %4318 = vrot.lane.b32.xlu0 %v3679, 120
        %v4319 = vpop.permute.xlu0 %4318
        %4320 = vrot.lane.b32.xlu0 %v3681, 120
        %v4321 = vpop.permute.xlu0 %4320
        %4322 = vrot.lane.b32.xlu0 %v3683, 120
        %v4323 = vpop.permute.xlu0 %4322
        %4324 = vrot.lane.b32.xlu0 %v3685, 120
        %v4325 = vpop.permute.xlu0 %4324
        %4326 = vrot.lane.b32.xlu0 %v3687, 120
        %v4327 = vpop.permute.xlu0 %4326
        %4328 = vrot.lane.b32.xlu0 %v3689, 120
        %v4329 = vpop.permute.xlu0 %4328
        %4330 = vrot.lane.b32.xlu0 %v3691, 120
        %v4331 = vpop.permute.xlu0 %4330
        %4332 = vrot.lane.b32.xlu0 %v3693, 120
        %v4333 = vpop.permute.xlu0 %4332
        %4334 = vrot.lane.b32.xlu0 %v3695, 120
        %v4335 = vpop.permute.xlu0 %4334
        %4336 = vrot.lane.b32.xlu0 %v3697, 120
        %v4337 = vpop.permute.xlu0 %4336
        %4338 = vrot.lane.b32.xlu0 %v3699, 120
        %v4339 = vpop.permute.xlu0 %4338
        %4340 = vrot.lane.b32.xlu0 %v3701, 120
        %v4341 = vpop.permute.xlu0 %4340
        %4342 = vrot.lane.b32.xlu0 %v3703, 120
        %v4343 = vpop.permute.xlu0 %4342
        %4344 = vrot.lane.b32.xlu0 %v3705, 120
        %v4345 = vpop.permute.xlu0 %4344
        %4346 = vrot.lane.b32.xlu0 %v3707, 120
        %v4347 = vpop.permute.xlu0 %4346
        %4348 = vrot.lane.b32.xlu0 %v3709, 120
        %v4349 = vpop.permute.xlu0 %4348
        %4350 = vrot.lane.b32.xlu0 %v3711, 120
        %v4351 = vpop.permute.xlu0 %4350
        %4352 = vrot.lane.b32.xlu0 %v3713, 120
        %v4353 = vpop.permute.xlu0 %4352
        %4354 = vrot.lane.b32.xlu0 %v3715, 120
        %v4355 = vpop.permute.xlu0 %4354
        %4356 = vrot.lane.b32.xlu0 %v3717, 120
        %v4357 = vpop.permute.xlu0 %4356
        %4358 = vrot.lane.b32.xlu0 %v3719, 120
        %v4359 = vpop.permute.xlu0 %4358
        %4360 = vrot.lane.b32.xlu0 %v3721, 120
        %v4361 = vpop.permute.xlu0 %4360
        %4362 = vrot.lane.b32.xlu0 %v3723, 120
        %v4363 = vpop.permute.xlu0 %4362
        %4364 = vrot.lane.b32.xlu0 %v3725, 120
        %v4365 = vpop.permute.xlu0 %4364
        %4366 = vrot.lane.b32.xlu0 %v3727, 120
        %v4367 = vpop.permute.xlu0 %4366
        %4368 = vrot.lane.b32.xlu0 %v3729, 120
        %v4369 = vpop.permute.xlu0 %4368
        %4370 = vrot.lane.b32.xlu0 %v3731, 120
        %v4371 = vpop.permute.xlu0 %4370
        %4372 = vrot.lane.b32.xlu0 %v3733, 120
        %v4373 = vpop.permute.xlu0 %4372
        %4374 = vrot.lane.b32.xlu0 %v3735, 120
        %v4375 = vpop.permute.xlu0 %4374
        %4376 = vrot.lane.b32.xlu0 %v3737, 120
        %v4377 = vpop.permute.xlu0 %4376
        %4378 = vrot.lane.b32.xlu0 %v3739, 120
        %v4379 = vpop.permute.xlu0 %4378
        %4380 = vrot.lane.b32.xlu0 %v3741, 120
        %v4381 = vpop.permute.xlu0 %4380
        %4382 = vrot.lane.b32.xlu0 %v3743, 120
        %v4383 = vpop.permute.xlu0 %4382
        %4384 = vrot.lane.b32.xlu0 %v3745, 120
        %v4385 = vpop.permute.xlu0 %4384
        %4386 = vrot.lane.b32.xlu0 %v3747, 120
        %v4387 = vpop.permute.xlu0 %4386
        %4388 = vrot.lane.b32.xlu0 %v3749, 120
        %v4389 = vpop.permute.xlu0 %4388
        %4390 = vrot.lane.b32.xlu0 %v3751, 120
        %v4391 = vpop.permute.xlu0 %4390
        %4392 = vrot.lane.b32.xlu0 %v3753, 120
        %v4393 = vpop.permute.xlu0 %4392
        %4394 = vrot.lane.b32.xlu0 %v3755, 120
        %v4395 = vpop.permute.xlu0 %4394
        %4396 = vrot.lane.b32.xlu0 %v3757, 120
        %v4397 = vpop.permute.xlu0 %4396
        %4398 = vrot.lane.b32.xlu0 %v3759, 120
        %v4399 = vpop.permute.xlu0 %4398
        %4400 = vrot.lane.b32.xlu0 %v3761, 120
        %v4401 = vpop.permute.xlu0 %4400
        %4402 = vrot.lane.b32.xlu0 %v3763, 120
        %v4403 = vpop.permute.xlu0 %4402
        %4404 = vrot.lane.b32.xlu0 %v3765, 120
        %v4405 = vpop.permute.xlu0 %4404
        %4406 = vrot.lane.b32.xlu0 %v3767, 120
        %v4407 = vpop.permute.xlu0 %4406
        %4408 = vrot.lane.b32.xlu0 %v3769, 120
        %v4409 = vpop.permute.xlu0 %4408
        %4410 = vrot.lane.b32.xlu0 %v3771, 120
        %v4411 = vpop.permute.xlu0 %4410
        %4412 = vrot.lane.b32.xlu0 %v3773, 120
        %v4413 = vpop.permute.xlu0 %4412
        %4414 = vrot.lane.b32.xlu0 %v3775, 120
        %v4415 = vpop.permute.xlu0 %4414
        %4416 = vrot.lane.b32.xlu0 %v3777, 120
        %v4417 = vpop.permute.xlu0 %4416
        %4418 = vrot.lane.b32.xlu0 %v3779, 120
        %v4419 = vpop.permute.xlu0 %4418
        %4420 = vrot.lane.b32.xlu0 %v3781, 120
        %v4421 = vpop.permute.xlu0 %4420
        %4422 = vrot.lane.b32.xlu0 %v3783, 120
        %v4423 = vpop.permute.xlu0 %4422
        %4424 = vrot.lane.b32.xlu0 %v3785, 120
        %v4425 = vpop.permute.xlu0 %4424
        %4426 = vrot.lane.b32.xlu0 %v3787, 120
        %v4427 = vpop.permute.xlu0 %4426
        %4428 = vrot.lane.b32.xlu0 %v3789, 120
        %v4429 = vpop.permute.xlu0 %4428
        %4430 = vrot.lane.b32.xlu0 %v3791, 120
        %v4431 = vpop.permute.xlu0 %4430
        %4432 = vrot.lane.b32.xlu0 %v3793, 120
        %v4433 = vpop.permute.xlu0 %4432
        %4434 = vrot.lane.b32.xlu0 %v3795, 120
        %v4435 = vpop.permute.xlu0 %4434
        %4436 = vrot.lane.b32.xlu0 %v3797, 120
        %v4437 = vpop.permute.xlu0 %4436
        %4438 = vrot.lane.b32.xlu0 %v3799, 120
        %v4439 = vpop.permute.xlu0 %4438
        %4440 = vrot.lane.b32.xlu0 %v3801, 120
        %v4441 = vpop.permute.xlu0 %4440
        %4442 = vrot.lane.b32.xlu0 %v3803, 120
        %v4443 = vpop.permute.xlu0 %4442
        %4444 = vrot.lane.b32.xlu0 %v3805, 120
        %v4445 = vpop.permute.xlu0 %4444
        %4446 = vrot.lane.b32.xlu0 %v3807, 120
        %v4447 = vpop.permute.xlu0 %4446
        %4448 = vrot.lane.b32.xlu0 %v3809, 120
        %v4449 = vpop.permute.xlu0 %4448
        %4450 = vrot.lane.b32.xlu0 %v3811, 120
        %v4451 = vpop.permute.xlu0 %4450
        %4452 = vrot.lane.b32.xlu0 %v3813, 120
        %v4453 = vpop.permute.xlu0 %4452
        %4454 = vrot.lane.b32.xlu0 %v3815, 120
        %v4455 = vpop.permute.xlu0 %4454
        %4456 = vrot.lane.b32.xlu0 %v3817, 120
        %v4457 = vpop.permute.xlu0 %4456
        %4458 = vrot.lane.b32.xlu0 %v3819, 120
        %v4459 = vpop.permute.xlu0 %4458
        %4460 = vrot.lane.b32.xlu0 %v3821, 120
        %v4461 = vpop.permute.xlu0 %4460
        %4462 = vrot.lane.b32.xlu0 %v3823, 120
        %v4463 = vpop.permute.xlu0 %4462
        %4464 = vrot.lane.b32.xlu0 %v3825, 120
        %v4465 = vpop.permute.xlu0 %4464
        %4466 = vrot.lane.b32.xlu0 %v3827, 120
        %v4467 = vpop.permute.xlu0 %4466
        %4468 = vrot.lane.b32.xlu0 %v3829, 120
        %v4469 = vpop.permute.xlu0 %4468
        %4470 = vrot.lane.b32.xlu0 %v3831, 120
        %v4471 = vpop.permute.xlu0 %4470
        %4472 = vrot.lane.b32.xlu0 %v3833, 120
        %v4473 = vpop.permute.xlu0 %4472
        %4474 = vrot.lane.b32.xlu0 %v3835, 120
        %v4475 = vpop.permute.xlu0 %4474
        %4476 = vrot.lane.b32.xlu0 %v3837, 120
        %v4477 = vpop.permute.xlu0 %4476
        %v4606 = vadd.f32 %v3966, %v4223
        %v4607 = vadd.f32 %v3967, %v4225
        %v4608 = vadd.f32 %v3968, %v4227
        %v4609 = vadd.f32 %v3969, %v4229
        %v4610 = vadd.f32 %v3970, %v4231
        %v4611 = vadd.f32 %v3971, %v4233
        %v4612 = vadd.f32 %v3972, %v4235
        %v4613 = vadd.f32 %v3973, %v4237
        %v4614 = vadd.f32 %v3974, %v4239
        %v4615 = vadd.f32 %v3975, %v4241
        %v4616 = vadd.f32 %v3976, %v4243
        %v4617 = vadd.f32 %v3977, %v4245
        %v4618 = vadd.f32 %v3978, %v4247
        %v4619 = vadd.f32 %v3979, %v4249
        %v4620 = vadd.f32 %v3980, %v4251
        %v4621 = vadd.f32 %v3981, %v4253
        %v4622 = vadd.f32 %v3982, %v4255
        %v4623 = vadd.f32 %v3983, %v4257
        %v4624 = vadd.f32 %v3984, %v4259
        %v4625 = vadd.f32 %v3985, %v4261
        %v4626 = vadd.f32 %v3986, %v4263
        %v4627 = vadd.f32 %v3987, %v4265
        %v4628 = vadd.f32 %v3988, %v4267
        %v4629 = vadd.f32 %v3989, %v4269
        %v4630 = vadd.f32 %v3990, %v4271
        %v4631 = vadd.f32 %v3991, %v4273
        %v4632 = vadd.f32 %v3992, %v4275
        %v4633 = vadd.f32 %v3993, %v4277
        %v4634 = vadd.f32 %v3994, %v4279
        %v4635 = vadd.f32 %v3995, %v4281
        %v4636 = vadd.f32 %v3996, %v4283
        %v4637 = vadd.f32 %v3997, %v4285
        %v4638 = vadd.f32 %v3998, %v4287
        %v4639 = vadd.f32 %v3999, %v4289
        %v4640 = vadd.f32 %v4000, %v4291
        %v4641 = vadd.f32 %v4001, %v4293
        %v4642 = vadd.f32 %v4002, %v4295
        %v4643 = vadd.f32 %v4003, %v4297
        %v4644 = vadd.f32 %v4004, %v4299
        %v4645 = vadd.f32 %v4005, %v4301
        %v4646 = vadd.f32 %v4006, %v4303
        %v4647 = vadd.f32 %v4007, %v4305
        %v4648 = vadd.f32 %v4008, %v4307
        %v4649 = vadd.f32 %v4009, %v4309
        %v4650 = vadd.f32 %v4010, %v4311
        %v4651 = vadd.f32 %v4011, %v4313
        %v4652 = vadd.f32 %v4012, %v4315
        %v4653 = vadd.f32 %v4013, %v4317
        %v4654 = vadd.f32 %v4014, %v4319
        %v4655 = vadd.f32 %v4015, %v4321
        %v4656 = vadd.f32 %v4016, %v4323
        %v4657 = vadd.f32 %v4017, %v4325
        %v4658 = vadd.f32 %v4018, %v4327
        %v4659 = vadd.f32 %v4019, %v4329
        %v4660 = vadd.f32 %v4020, %v4331
        %v4661 = vadd.f32 %v4021, %v4333
        %v4662 = vadd.f32 %v4022, %v4335
        %v4663 = vadd.f32 %v4023, %v4337
        %v4664 = vadd.f32 %v4024, %v4339
        %v4665 = vadd.f32 %v4025, %v4341
        %v4666 = vadd.f32 %v4026, %v4343
        %v4667 = vadd.f32 %v4027, %v4345
        %v4668 = vadd.f32 %v4028, %v4347
        %v4669 = vadd.f32 %v4029, %v4349
        %v4670 = vadd.f32 %v4030, %v4351
        %v4671 = vadd.f32 %v4031, %v4353
        %v4672 = vadd.f32 %v4032, %v4355
        %v4673 = vadd.f32 %v4033, %v4357
        %v4674 = vadd.f32 %v4034, %v4359
        %v4675 = vadd.f32 %v4035, %v4361
        %v4676 = vadd.f32 %v4036, %v4363
        %v4677 = vadd.f32 %v4037, %v4365
        %v4678 = vadd.f32 %v4038, %v4367
        %v4679 = vadd.f32 %v4039, %v4369
        %v4680 = vadd.f32 %v4040, %v4371
        %v4681 = vadd.f32 %v4041, %v4373
        %v4682 = vadd.f32 %v4042, %v4375
        %v4683 = vadd.f32 %v4043, %v4377
        %v4684 = vadd.f32 %v4044, %v4379
        %v4685 = vadd.f32 %v4045, %v4381
        %v4686 = vadd.f32 %v4046, %v4383
        %v4687 = vadd.f32 %v4047, %v4385
        %v4688 = vadd.f32 %v4048, %v4387
        %v4689 = vadd.f32 %v4049, %v4389
        %v4690 = vadd.f32 %v4050, %v4391
        %v4691 = vadd.f32 %v4051, %v4393
        %v4692 = vadd.f32 %v4052, %v4395
        %v4693 = vadd.f32 %v4053, %v4397
        %v4694 = vadd.f32 %v4054, %v4399
        %v4695 = vadd.f32 %v4055, %v4401
        %v4696 = vadd.f32 %v4056, %v4403
        %v4697 = vadd.f32 %v4057, %v4405
        %v4698 = vadd.f32 %v4058, %v4407
        %v4699 = vadd.f32 %v4059, %v4409
        %v4700 = vadd.f32 %v4060, %v4411
        %v4701 = vadd.f32 %v4061, %v4413
        %v4702 = vadd.f32 %v4062, %v4415
        %v4703 = vadd.f32 %v4063, %v4417
        %v4704 = vadd.f32 %v4064, %v4419
        %v4705 = vadd.f32 %v4065, %v4421
        %v4706 = vadd.f32 %v4066, %v4423
        %v4707 = vadd.f32 %v4067, %v4425
        %v4708 = vadd.f32 %v4068, %v4427
        %v4709 = vadd.f32 %v4069, %v4429
        %v4710 = vadd.f32 %v4070, %v4431
        %v4711 = vadd.f32 %v4071, %v4433
        %v4712 = vadd.f32 %v4072, %v4435
        %v4713 = vadd.f32 %v4073, %v4437
        %v4714 = vadd.f32 %v4074, %v4439
        %v4715 = vadd.f32 %v4075, %v4441
        %v4716 = vadd.f32 %v4076, %v4443
        %v4717 = vadd.f32 %v4077, %v4445
        %v4718 = vadd.f32 %v4078, %v4447
        %v4719 = vadd.f32 %v4079, %v4449
        %v4720 = vadd.f32 %v4080, %v4451
        %v4721 = vadd.f32 %v4081, %v4453
        %v4722 = vadd.f32 %v4082, %v4455
        %v4723 = vadd.f32 %v4083, %v4457
        %v4724 = vadd.f32 %v4084, %v4459
        %v4725 = vadd.f32 %v4085, %v4461
        %v4726 = vadd.f32 %v4086, %v4463
        %v4727 = vadd.f32 %v4087, %v4465
        %v4728 = vadd.f32 %v4088, %v4467
        %v4729 = vadd.f32 %v4089, %v4469
        %v4730 = vadd.f32 %v4090, %v4471
        %v4731 = vadd.f32 %v4091, %v4473
        %v4732 = vadd.f32 %v4092, %v4475
        %v4733 = vadd.f32 %v4093, %v4477
        %vm4734 = vcmask 7168
        %4735 = vst.msk [vmem:[#allocation3] sm:$0xff] %vm4734, %v4606
        %4736 = vst.msk [vmem:[#allocation3 + $0x8] sm:$0xff] %vm4734, %v4607
        %4737 = vst.msk [vmem:[#allocation3 + $0x10] sm:$0xff] %vm4734, %v4608
        %4738 = vst.msk [vmem:[#allocation3 + $0x18] sm:$0xff] %vm4734, %v4609
        %4739 = vst.msk [vmem:[#allocation3 + $0x20] sm:$0xff] %vm4734, %v4610
        %4740 = vst.msk [vmem:[#allocation3 + $0x28] sm:$0xff] %vm4734, %v4611
        %4741 = vst.msk [vmem:[#allocation3 + $0x30] sm:$0xff] %vm4734, %v4612
        %4742 = vst.msk [vmem:[#allocation3 + $0x38] sm:$0xff] %vm4734, %v4613
        %4743 = vst.msk [vmem:[#allocation3 + $0x40] sm:$0xff] %vm4734, %v4614
        %4744 = vst.msk [vmem:[#allocation3 + $0x48] sm:$0xff] %vm4734, %v4615
        %4745 = vst.msk [vmem:[#allocation3 + $0x50] sm:$0xff] %vm4734, %v4616
        %4746 = vst.msk [vmem:[#allocation3 + $0x58] sm:$0xff] %vm4734, %v4617
        %4747 = vst.msk [vmem:[#allocation3 + $0x60] sm:$0xff] %vm4734, %v4618
        %4748 = vst.msk [vmem:[#allocation3 + $0x68] sm:$0xff] %vm4734, %v4619
        %4749 = vst.msk [vmem:[#allocation3 + $0x70] sm:$0xff] %vm4734, %v4620
        %4750 = vst.msk [vmem:[#allocation3 + $0x78] sm:$0xff] %vm4734, %v4621
        %4751 = vst.msk [vmem:[#allocation3 + $0x80] sm:$0xff] %vm4734, %v4622
        %4752 = vst.msk [vmem:[#allocation3 + $0x88] sm:$0xff] %vm4734, %v4623
        %4753 = vst.msk [vmem:[#allocation3 + $0x90] sm:$0xff] %vm4734, %v4624
        %4754 = vst.msk [vmem:[#allocation3 + $0x98] sm:$0xff] %vm4734, %v4625
        %4755 = vst.msk [vmem:[#allocation3 + $0xa0] sm:$0xff] %vm4734, %v4626
        %4756 = vst.msk [vmem:[#allocation3 + $0xa8] sm:$0xff] %vm4734, %v4627
        %4757 = vst.msk [vmem:[#allocation3 + $0xb0] sm:$0xff] %vm4734, %v4628
        %4758 = vst.msk [vmem:[#allocation3 + $0xb8] sm:$0xff] %vm4734, %v4629
        %4759 = vst.msk [vmem:[#allocation3 + $0xc0] sm:$0xff] %vm4734, %v4630
        %4760 = vst.msk [vmem:[#allocation3 + $0xc8] sm:$0xff] %vm4734, %v4631
        %4761 = vst.msk [vmem:[#allocation3 + $0xd0] sm:$0xff] %vm4734, %v4632
        %4762 = vst.msk [vmem:[#allocation3 + $0xd8] sm:$0xff] %vm4734, %v4633
        %4763 = vst.msk [vmem:[#allocation3 + $0xe0] sm:$0xff] %vm4734, %v4634
        %4764 = vst.msk [vmem:[#allocation3 + $0xe8] sm:$0xff] %vm4734, %v4635
        %4765 = vst.msk [vmem:[#allocation3 + $0xf0] sm:$0xff] %vm4734, %v4636
        %4766 = vst.msk [vmem:[#allocation3 + $0xf8] sm:$0xff] %vm4734, %v4637
        %4767 = vst.msk [vmem:[#allocation3 + $0x100] sm:$0xff] %vm4734, %v4638
        %4768 = vst.msk [vmem:[#allocation3 + $0x108] sm:$0xff] %vm4734, %v4639
        %4769 = vst.msk [vmem:[#allocation3 + $0x110] sm:$0xff] %vm4734, %v4640
        %4770 = vst.msk [vmem:[#allocation3 + $0x118] sm:$0xff] %vm4734, %v4641
        %4771 = vst.msk [vmem:[#allocation3 + $0x120] sm:$0xff] %vm4734, %v4642
        %4772 = vst.msk [vmem:[#allocation3 + $0x128] sm:$0xff] %vm4734, %v4643
        %4773 = vst.msk [vmem:[#allocation3 + $0x130] sm:$0xff] %vm4734, %v4644
        %4774 = vst.msk [vmem:[#allocation3 + $0x138] sm:$0xff] %vm4734, %v4645
        %4775 = vst.msk [vmem:[#allocation3 + $0x140] sm:$0xff] %vm4734, %v4646
        %4776 = vst.msk [vmem:[#allocation3 + $0x148] sm:$0xff] %vm4734, %v4647
        %4777 = vst.msk [vmem:[#allocation3 + $0x150] sm:$0xff] %vm4734, %v4648
        %4778 = vst.msk [vmem:[#allocation3 + $0x158] sm:$0xff] %vm4734, %v4649
        %4779 = vst.msk [vmem:[#allocation3 + $0x160] sm:$0xff] %vm4734, %v4650
        %4780 = vst.msk [vmem:[#allocation3 + $0x168] sm:$0xff] %vm4734, %v4651
        %4781 = vst.msk [vmem:[#allocation3 + $0x170] sm:$0xff] %vm4734, %v4652
        %4782 = vst.msk [vmem:[#allocation3 + $0x178] sm:$0xff] %vm4734, %v4653
        %4783 = vst.msk [vmem:[#allocation3 + $0x180] sm:$0xff] %vm4734, %v4654
        %4784 = vst.msk [vmem:[#allocation3 + $0x188] sm:$0xff] %vm4734, %v4655
        %4785 = vst.msk [vmem:[#allocation3 + $0x190] sm:$0xff] %vm4734, %v4656
        %4786 = vst.msk [vmem:[#allocation3 + $0x198] sm:$0xff] %vm4734, %v4657
        %4787 = vst.msk [vmem:[#allocation3 + $0x1a0] sm:$0xff] %vm4734, %v4658
        %4788 = vst.msk [vmem:[#allocation3 + $0x1a8] sm:$0xff] %vm4734, %v4659
        %4789 = vst.msk [vmem:[#allocation3 + $0x1b0] sm:$0xff] %vm4734, %v4660
        %4790 = vst.msk [vmem:[#allocation3 + $0x1b8] sm:$0xff] %vm4734, %v4661
        %4791 = vst.msk [vmem:[#allocation3 + $0x1c0] sm:$0xff] %vm4734, %v4662
        %4792 = vst.msk [vmem:[#allocation3 + $0x1c8] sm:$0xff] %vm4734, %v4663
        %4793 = vst.msk [vmem:[#allocation3 + $0x1d0] sm:$0xff] %vm4734, %v4664
        %4794 = vst.msk [vmem:[#allocation3 + $0x1d8] sm:$0xff] %vm4734, %v4665
        %4795 = vst.msk [vmem:[#allocation3 + $0x1e0] sm:$0xff] %vm4734, %v4666
        %4796 = vst.msk [vmem:[#allocation3 + $0x1e8] sm:$0xff] %vm4734, %v4667
        %4797 = vst.msk [vmem:[#allocation3 + $0x1f0] sm:$0xff] %vm4734, %v4668
        %4798 = vst.msk [vmem:[#allocation3 + $0x1f8] sm:$0xff] %vm4734, %v4669
        %4799 = vst.msk [vmem:[#allocation3 + $0x200] sm:$0xff] %vm4734, %v4670
        %4800 = vst.msk [vmem:[#allocation3 + $0x208] sm:$0xff] %vm4734, %v4671
        %4801 = vst.msk [vmem:[#allocation3 + $0x210] sm:$0xff] %vm4734, %v4672
        %4802 = vst.msk [vmem:[#allocation3 + $0x218] sm:$0xff] %vm4734, %v4673
        %4803 = vst.msk [vmem:[#allocation3 + $0x220] sm:$0xff] %vm4734, %v4674
        %4804 = vst.msk [vmem:[#allocation3 + $0x228] sm:$0xff] %vm4734, %v4675
        %4805 = vst.msk [vmem:[#allocation3 + $0x230] sm:$0xff] %vm4734, %v4676
        %4806 = vst.msk [vmem:[#allocation3 + $0x238] sm:$0xff] %vm4734, %v4677
        %4807 = vst.msk [vmem:[#allocation3 + $0x240] sm:$0xff] %vm4734, %v4678
        %4808 = vst.msk [vmem:[#allocation3 + $0x248] sm:$0xff] %vm4734, %v4679
        %4809 = vst.msk [vmem:[#allocation3 + $0x250] sm:$0xff] %vm4734, %v4680
        %4810 = vst.msk [vmem:[#allocation3 + $0x258] sm:$0xff] %vm4734, %v4681
        %4811 = vst.msk [vmem:[#allocation3 + $0x260] sm:$0xff] %vm4734, %v4682
        %4812 = vst.msk [vmem:[#allocation3 + $0x268] sm:$0xff] %vm4734, %v4683
        %4813 = vst.msk [vmem:[#allocation3 + $0x270] sm:$0xff] %vm4734, %v4684
        %4814 = vst.msk [vmem:[#allocation3 + $0x278] sm:$0xff] %vm4734, %v4685
        %4815 = vst.msk [vmem:[#allocation3 + $0x280] sm:$0xff] %vm4734, %v4686
        %4816 = vst.msk [vmem:[#allocation3 + $0x288] sm:$0xff] %vm4734, %v4687
        %4817 = vst.msk [vmem:[#allocation3 + $0x290] sm:$0xff] %vm4734, %v4688
        %4818 = vst.msk [vmem:[#allocation3 + $0x298] sm:$0xff] %vm4734, %v4689
        %4819 = vst.msk [vmem:[#allocation3 + $0x2a0] sm:$0xff] %vm4734, %v4690
        %4820 = vst.msk [vmem:[#allocation3 + $0x2a8] sm:$0xff] %vm4734, %v4691
        %4821 = vst.msk [vmem:[#allocation3 + $0x2b0] sm:$0xff] %vm4734, %v4692
        %4822 = vst.msk [vmem:[#allocation3 + $0x2b8] sm:$0xff] %vm4734, %v4693
        %4823 = vst.msk [vmem:[#allocation3 + $0x2c0] sm:$0xff] %vm4734, %v4694
        %4824 = vst.msk [vmem:[#allocation3 + $0x2c8] sm:$0xff] %vm4734, %v4695
        %4825 = vst.msk [vmem:[#allocation3 + $0x2d0] sm:$0xff] %vm4734, %v4696
        %4826 = vst.msk [vmem:[#allocation3 + $0x2d8] sm:$0xff] %vm4734, %v4697
        %4827 = vst.msk [vmem:[#allocation3 + $0x2e0] sm:$0xff] %vm4734, %v4698
        %4828 = vst.msk [vmem:[#allocation3 + $0x2e8] sm:$0xff] %vm4734, %v4699
        %4829 = vst.msk [vmem:[#allocation3 + $0x2f0] sm:$0xff] %vm4734, %v4700
        %4830 = vst.msk [vmem:[#allocation3 + $0x2f8] sm:$0xff] %vm4734, %v4701
        %4831 = vst.msk [vmem:[#allocation3 + $0x300] sm:$0xff] %vm4734, %v4702
        %4832 = vst.msk [vmem:[#allocation3 + $0x308] sm:$0xff] %vm4734, %v4703
        %4833 = vst.msk [vmem:[#allocation3 + $0x310] sm:$0xff] %vm4734, %v4704
        %4834 = vst.msk [vmem:[#allocation3 + $0x318] sm:$0xff] %vm4734, %v4705
        %4835 = vst.msk [vmem:[#allocation3 + $0x320] sm:$0xff] %vm4734, %v4706
        %4836 = vst.msk [vmem:[#allocation3 + $0x328] sm:$0xff] %vm4734, %v4707
        %4837 = vst.msk [vmem:[#allocation3 + $0x330] sm:$0xff] %vm4734, %v4708
        %4838 = vst.msk [vmem:[#allocation3 + $0x338] sm:$0xff] %vm4734, %v4709
        %4839 = vst.msk [vmem:[#allocation3 + $0x340] sm:$0xff] %vm4734, %v4710
        %4840 = vst.msk [vmem:[#allocation3 + $0x348] sm:$0xff] %vm4734, %v4711
        %4841 = vst.msk [vmem:[#allocation3 + $0x350] sm:$0xff] %vm4734, %v4712
        %4842 = vst.msk [vmem:[#allocation3 + $0x358] sm:$0xff] %vm4734, %v4713
        %4843 = vst.msk [vmem:[#allocation3 + $0x360] sm:$0xff] %vm4734, %v4714
        %4844 = vst.msk [vmem:[#allocation3 + $0x368] sm:$0xff] %vm4734, %v4715
        %4845 = vst.msk [vmem:[#allocation3 + $0x370] sm:$0xff] %vm4734, %v4716
        %4846 = vst.msk [vmem:[#allocation3 + $0x378] sm:$0xff] %vm4734, %v4717
        %4847 = vst.msk [vmem:[#allocation3 + $0x380] sm:$0xff] %vm4734, %v4718
        %4848 = vst.msk [vmem:[#allocation3 + $0x388] sm:$0xff] %vm4734, %v4719
        %4849 = vst.msk [vmem:[#allocation3 + $0x390] sm:$0xff] %vm4734, %v4720
        %4850 = vst.msk [vmem:[#allocation3 + $0x398] sm:$0xff] %vm4734, %v4721
        %4851 = vst.msk [vmem:[#allocation3 + $0x3a0] sm:$0xff] %vm4734, %v4722
        %4852 = vst.msk [vmem:[#allocation3 + $0x3a8] sm:$0xff] %vm4734, %v4723
        %4853 = vst.msk [vmem:[#allocation3 + $0x3b0] sm:$0xff] %vm4734, %v4724
        %4854 = vst.msk [vmem:[#allocation3 + $0x3b8] sm:$0xff] %vm4734, %v4725
        %4855 = vst.msk [vmem:[#allocation3 + $0x3c0] sm:$0xff] %vm4734, %v4726
        %4856 = vst.msk [vmem:[#allocation3 + $0x3c8] sm:$0xff] %vm4734, %v4727
        %4857 = vst.msk [vmem:[#allocation3 + $0x3d0] sm:$0xff] %vm4734, %v4728
        %4858 = vst.msk [vmem:[#allocation3 + $0x3d8] sm:$0xff] %vm4734, %v4729
        %4859 = vst.msk [vmem:[#allocation3 + $0x3e0] sm:$0xff] %vm4734, %v4730
        %4860 = vst.msk [vmem:[#allocation3 + $0x3e8] sm:$0xff] %vm4734, %v4731
        %4861 = vst.msk [vmem:[#allocation3 + $0x3f0] sm:$0xff] %vm4734, %v4732
        %4862 = vst.msk [vmem:[#allocation3 + $0x3f8] sm:$0xff] %vm4734, %v4733
        %v4863 = vld [vmem:[#allocation4] sm:$0xff]
        %v4864 = vld [vmem:[#allocation4 + $0x8] sm:$0xff]
        %v4865 = vld [vmem:[#allocation4 + $0x10] sm:$0xff]
        %v4866 = vld [vmem:[#allocation4 + $0x18] sm:$0xff]
        %v4867 = vld [vmem:[#allocation4 + $0x20] sm:$0xff]
        %v4868 = vld [vmem:[#allocation4 + $0x28] sm:$0xff]
        %v4869 = vld [vmem:[#allocation4 + $0x30] sm:$0xff]
        %v4870 = vld [vmem:[#allocation4 + $0x38] sm:$0xff]
        %v4871 = vld [vmem:[#allocation4 + $0x40] sm:$0xff]
        %v4872 = vld [vmem:[#allocation4 + $0x48] sm:$0xff]
        %v4873 = vld [vmem:[#allocation4 + $0x50] sm:$0xff]
        %v4874 = vld [vmem:[#allocation4 + $0x58] sm:$0xff]
        %v4875 = vld [vmem:[#allocation4 + $0x60] sm:$0xff]
        %v4876 = vld [vmem:[#allocation4 + $0x68] sm:$0xff]
        %v4877 = vld [vmem:[#allocation4 + $0x70] sm:$0xff]
        %v4878 = vld [vmem:[#allocation4 + $0x78] sm:$0xff]
        %v4879 = vld [vmem:[#allocation4 + $0x80] sm:$0xff]
        %v4880 = vld [vmem:[#allocation4 + $0x88] sm:$0xff]
        %v4881 = vld [vmem:[#allocation4 + $0x90] sm:$0xff]
        %v4882 = vld [vmem:[#allocation4 + $0x98] sm:$0xff]
        %v4883 = vld [vmem:[#allocation4 + $0xa0] sm:$0xff]
        %v4884 = vld [vmem:[#allocation4 + $0xa8] sm:$0xff]
        %v4885 = vld [vmem:[#allocation4 + $0xb0] sm:$0xff]
        %v4886 = vld [vmem:[#allocation4 + $0xb8] sm:$0xff]
        %v4887 = vld [vmem:[#allocation4 + $0xc0] sm:$0xff]
        %v4888 = vld [vmem:[#allocation4 + $0xc8] sm:$0xff]
        %v4889 = vld [vmem:[#allocation4 + $0xd0] sm:$0xff]
        %v4890 = vld [vmem:[#allocation4 + $0xd8] sm:$0xff]
        %v4891 = vld [vmem:[#allocation4 + $0xe0] sm:$0xff]
        %v4892 = vld [vmem:[#allocation4 + $0xe8] sm:$0xff]
        %v4893 = vld [vmem:[#allocation4 + $0xf0] sm:$0xff]
        %v4894 = vld [vmem:[#allocation4 + $0xf8] sm:$0xff]
        %v4895 = vld [vmem:[#allocation4 + $0x100] sm:$0xff]
        %v4896 = vld [vmem:[#allocation4 + $0x108] sm:$0xff]
        %v4897 = vld [vmem:[#allocation4 + $0x110] sm:$0xff]
        %v4898 = vld [vmem:[#allocation4 + $0x118] sm:$0xff]
        %v4899 = vld [vmem:[#allocation4 + $0x120] sm:$0xff]
        %v4900 = vld [vmem:[#allocation4 + $0x128] sm:$0xff]
        %v4901 = vld [vmem:[#allocation4 + $0x130] sm:$0xff]
        %v4902 = vld [vmem:[#allocation4 + $0x138] sm:$0xff]
        %v4903 = vld [vmem:[#allocation4 + $0x140] sm:$0xff]
        %v4904 = vld [vmem:[#allocation4 + $0x148] sm:$0xff]
        %v4905 = vld [vmem:[#allocation4 + $0x150] sm:$0xff]
        %v4906 = vld [vmem:[#allocation4 + $0x158] sm:$0xff]
        %v4907 = vld [vmem:[#allocation4 + $0x160] sm:$0xff]
        %v4908 = vld [vmem:[#allocation4 + $0x168] sm:$0xff]
        %v4909 = vld [vmem:[#allocation4 + $0x170] sm:$0xff]
        %v4910 = vld [vmem:[#allocation4 + $0x178] sm:$0xff]
        %v4911 = vld [vmem:[#allocation4 + $0x180] sm:$0xff]
        %v4912 = vld [vmem:[#allocation4 + $0x188] sm:$0xff]
        %v4913 = vld [vmem:[#allocation4 + $0x190] sm:$0xff]
        %v4914 = vld [vmem:[#allocation4 + $0x198] sm:$0xff]
        %v4915 = vld [vmem:[#allocation4 + $0x1a0] sm:$0xff]
        %v4916 = vld [vmem:[#allocation4 + $0x1a8] sm:$0xff]
        %v4917 = vld [vmem:[#allocation4 + $0x1b0] sm:$0xff]
        %v4918 = vld [vmem:[#allocation4 + $0x1b8] sm:$0xff]
        %v4919 = vld [vmem:[#allocation4 + $0x1c0] sm:$0xff]
        %v4920 = vld [vmem:[#allocation4 + $0x1c8] sm:$0xff]
        %v4921 = vld [vmem:[#allocation4 + $0x1d0] sm:$0xff]
        %v4922 = vld [vmem:[#allocation4 + $0x1d8] sm:$0xff]
        %v4923 = vld [vmem:[#allocation4 + $0x1e0] sm:$0xff]
        %v4924 = vld [vmem:[#allocation4 + $0x1e8] sm:$0xff]
        %v4925 = vld [vmem:[#allocation4 + $0x1f0] sm:$0xff]
        %v4926 = vld [vmem:[#allocation4 + $0x1f8] sm:$0xff]
        %v4927 = vld [vmem:[#allocation4 + $0x200] sm:$0xff]
        %v4928 = vld [vmem:[#allocation4 + $0x208] sm:$0xff]
        %v4929 = vld [vmem:[#allocation4 + $0x210] sm:$0xff]
        %v4930 = vld [vmem:[#allocation4 + $0x218] sm:$0xff]
        %v4931 = vld [vmem:[#allocation4 + $0x220] sm:$0xff]
        %v4932 = vld [vmem:[#allocation4 + $0x228] sm:$0xff]
        %v4933 = vld [vmem:[#allocation4 + $0x230] sm:$0xff]
        %v4934 = vld [vmem:[#allocation4 + $0x238] sm:$0xff]
        %v4935 = vld [vmem:[#allocation4 + $0x240] sm:$0xff]
        %v4936 = vld [vmem:[#allocation4 + $0x248] sm:$0xff]
        %v4937 = vld [vmem:[#allocation4 + $0x250] sm:$0xff]
        %v4938 = vld [vmem:[#allocation4 + $0x258] sm:$0xff]
        %v4939 = vld [vmem:[#allocation4 + $0x260] sm:$0xff]
        %v4940 = vld [vmem:[#allocation4 + $0x268] sm:$0xff]
        %v4941 = vld [vmem:[#allocation4 + $0x270] sm:$0xff]
        %v4942 = vld [vmem:[#allocation4 + $0x278] sm:$0xff]
        %v4943 = vld [vmem:[#allocation4 + $0x280] sm:$0xff]
        %v4944 = vld [vmem:[#allocation4 + $0x288] sm:$0xff]
        %v4945 = vld [vmem:[#allocation4 + $0x290] sm:$0xff]
        %v4946 = vld [vmem:[#allocation4 + $0x298] sm:$0xff]
        %v4947 = vld [vmem:[#allocation4 + $0x2a0] sm:$0xff]
        %v4948 = vld [vmem:[#allocation4 + $0x2a8] sm:$0xff]
        %v4949 = vld [vmem:[#allocation4 + $0x2b0] sm:$0xff]
        %v4950 = vld [vmem:[#allocation4 + $0x2b8] sm:$0xff]
        %v4951 = vld [vmem:[#allocation4 + $0x2c0] sm:$0xff]
        %v4952 = vld [vmem:[#allocation4 + $0x2c8] sm:$0xff]
        %v4953 = vld [vmem:[#allocation4 + $0x2d0] sm:$0xff]
        %v4954 = vld [vmem:[#allocation4 + $0x2d8] sm:$0xff]
        %v4955 = vld [vmem:[#allocation4 + $0x2e0] sm:$0xff]
        %v4956 = vld [vmem:[#allocation4 + $0x2e8] sm:$0xff]
        %v4957 = vld [vmem:[#allocation4 + $0x2f0] sm:$0xff]
        %v4958 = vld [vmem:[#allocation4 + $0x2f8] sm:$0xff]
        %v4959 = vld [vmem:[#allocation4 + $0x300] sm:$0xff]
        %v4960 = vld [vmem:[#allocation4 + $0x308] sm:$0xff]
        %v4961 = vld [vmem:[#allocation4 + $0x310] sm:$0xff]
        %v4962 = vld [vmem:[#allocation4 + $0x318] sm:$0xff]
        %v4963 = vld [vmem:[#allocation4 + $0x320] sm:$0xff]
        %v4964 = vld [vmem:[#allocation4 + $0x328] sm:$0xff]
        %v4965 = vld [vmem:[#allocation4 + $0x330] sm:$0xff]
        %v4966 = vld [vmem:[#allocation4 + $0x338] sm:$0xff]
        %v4967 = vld [vmem:[#allocation4 + $0x340] sm:$0xff]
        %v4968 = vld [vmem:[#allocation4 + $0x348] sm:$0xff]
        %v4969 = vld [vmem:[#allocation4 + $0x350] sm:$0xff]
        %v4970 = vld [vmem:[#allocation4 + $0x358] sm:$0xff]
        %v4971 = vld [vmem:[#allocation4 + $0x360] sm:$0xff]
        %v4972 = vld [vmem:[#allocation4 + $0x368] sm:$0xff]
        %v4973 = vld [vmem:[#allocation4 + $0x370] sm:$0xff]
        %v4974 = vld [vmem:[#allocation4 + $0x378] sm:$0xff]
        %v4975 = vld [vmem:[#allocation4 + $0x380] sm:$0xff]
        %v4976 = vld [vmem:[#allocation4 + $0x388] sm:$0xff]
        %v4977 = vld [vmem:[#allocation4 + $0x390] sm:$0xff]
        %v4978 = vld [vmem:[#allocation4 + $0x398] sm:$0xff]
        %v4979 = vld [vmem:[#allocation4 + $0x3a0] sm:$0xff]
        %v4980 = vld [vmem:[#allocation4 + $0x3a8] sm:$0xff]
        %v4981 = vld [vmem:[#allocation4 + $0x3b0] sm:$0xff]
        %v4982 = vld [vmem:[#allocation4 + $0x3b8] sm:$0xff]
        %v4983 = vld [vmem:[#allocation4 + $0x3c0] sm:$0xff]
        %v4984 = vld [vmem:[#allocation4 + $0x3c8] sm:$0xff]
        %v4985 = vld [vmem:[#allocation4 + $0x3d0] sm:$0xff]
        %v4986 = vld [vmem:[#allocation4 + $0x3d8] sm:$0xff]
        %v4987 = vld [vmem:[#allocation4 + $0x3e0] sm:$0xff]
        %v4988 = vld [vmem:[#allocation4 + $0x3e8] sm:$0xff]
        %v4989 = vld [vmem:[#allocation4 + $0x3f0] sm:$0xff]
        %v4990 = vld [vmem:[#allocation4 + $0x3f8] sm:$0xff]
        %4992 = vset.pattern.permute.xlu0 0
        %4993 = vperm.xlu0 %4992, %v2687
        %v4994 = vpop.permute.xlu0 %4993
        %4997 = vset.pattern.permute.xlu0 0
        %4998 = vperm.xlu0 %4997, %v2689
        %v4999 = vpop.permute.xlu0 %4998
        %5002 = vset.pattern.permute.xlu0 0
        %5003 = vperm.xlu0 %5002, %v2691
        %v5004 = vpop.permute.xlu0 %5003
        %5007 = vset.pattern.permute.xlu0 0
        %5008 = vperm.xlu0 %5007, %v2693
        %v5009 = vpop.permute.xlu0 %5008
        %5012 = vset.pattern.permute.xlu0 0
        %5013 = vperm.xlu0 %5012, %v2695
        %v5014 = vpop.permute.xlu0 %5013
        %5017 = vset.pattern.permute.xlu0 0
        %5018 = vperm.xlu0 %5017, %v2697
        %v5019 = vpop.permute.xlu0 %5018
        %5022 = vset.pattern.permute.xlu0 0
        %5023 = vperm.xlu0 %5022, %v2699
        %v5024 = vpop.permute.xlu0 %5023
        %5027 = vset.pattern.permute.xlu0 0
        %5028 = vperm.xlu0 %5027, %v2701
        %v5029 = vpop.permute.xlu0 %5028
        %5032 = vset.pattern.permute.xlu0 0
        %5033 = vperm.xlu0 %5032, %v2703
        %v5034 = vpop.permute.xlu0 %5033
        %5037 = vset.pattern.permute.xlu0 0
        %5038 = vperm.xlu0 %5037, %v2705
        %v5039 = vpop.permute.xlu0 %5038
        %5042 = vset.pattern.permute.xlu0 0
        %5043 = vperm.xlu0 %5042, %v2707
        %v5044 = vpop.permute.xlu0 %5043
        %5047 = vset.pattern.permute.xlu0 0
        %5048 = vperm.xlu0 %5047, %v2709
        %v5049 = vpop.permute.xlu0 %5048
        %5052 = vset.pattern.permute.xlu0 0
        %5053 = vperm.xlu0 %5052, %v2711
        %v5054 = vpop.permute.xlu0 %5053
        %5057 = vset.pattern.permute.xlu0 0
        %5058 = vperm.xlu0 %5057, %v2713
        %v5059 = vpop.permute.xlu0 %5058
        %5062 = vset.pattern.permute.xlu0 0
        %5063 = vperm.xlu0 %5062, %v2715
        %v5064 = vpop.permute.xlu0 %5063
        %5067 = vset.pattern.permute.xlu0 0
        %5068 = vperm.xlu0 %5067, %v2717
        %v5069 = vpop.permute.xlu0 %5068
        %5072 = vset.pattern.permute.xlu0 0
        %5073 = vperm.xlu0 %5072, %v2719
        %v5074 = vpop.permute.xlu0 %5073
        %5077 = vset.pattern.permute.xlu0 0
        %5078 = vperm.xlu0 %5077, %v2721
        %v5079 = vpop.permute.xlu0 %5078
        %5082 = vset.pattern.permute.xlu0 0
        %5083 = vperm.xlu0 %5082, %v2723
        %v5084 = vpop.permute.xlu0 %5083
        %5087 = vset.pattern.permute.xlu0 0
        %5088 = vperm.xlu0 %5087, %v2725
        %v5089 = vpop.permute.xlu0 %5088
        %5092 = vset.pattern.permute.xlu0 0
        %5093 = vperm.xlu0 %5092, %v2727
        %v5094 = vpop.permute.xlu0 %5093
        %5097 = vset.pattern.permute.xlu0 0
        %5098 = vperm.xlu0 %5097, %v2729
        %v5099 = vpop.permute.xlu0 %5098
        %5102 = vset.pattern.permute.xlu0 0
        %5103 = vperm.xlu0 %5102, %v2731
        %v5104 = vpop.permute.xlu0 %5103
        %5107 = vset.pattern.permute.xlu0 0
        %5108 = vperm.xlu0 %5107, %v2733
        %v5109 = vpop.permute.xlu0 %5108
        %5112 = vset.pattern.permute.xlu0 0
        %5113 = vperm.xlu0 %5112, %v2735
        %v5114 = vpop.permute.xlu0 %5113
        %5117 = vset.pattern.permute.xlu0 0
        %5118 = vperm.xlu0 %5117, %v2737
        %v5119 = vpop.permute.xlu0 %5118
        %5122 = vset.pattern.permute.xlu0 0
        %5123 = vperm.xlu0 %5122, %v2739
        %v5124 = vpop.permute.xlu0 %5123
        %5127 = vset.pattern.permute.xlu0 0
        %5128 = vperm.xlu0 %5127, %v2741
        %v5129 = vpop.permute.xlu0 %5128
        %5132 = vset.pattern.permute.xlu0 0
        %5133 = vperm.xlu0 %5132, %v2743
        %v5134 = vpop.permute.xlu0 %5133
        %5137 = vset.pattern.permute.xlu0 0
        %5138 = vperm.xlu0 %5137, %v2745
        %v5139 = vpop.permute.xlu0 %5138
        %5142 = vset.pattern.permute.xlu0 0
        %5143 = vperm.xlu0 %5142, %v2747
        %v5144 = vpop.permute.xlu0 %5143
        %5147 = vset.pattern.permute.xlu0 0
        %5148 = vperm.xlu0 %5147, %v2749
        %v5149 = vpop.permute.xlu0 %5148
        %5152 = vset.pattern.permute.xlu0 0
        %5153 = vperm.xlu0 %5152, %v2751
        %v5154 = vpop.permute.xlu0 %5153
        %5157 = vset.pattern.permute.xlu0 0
        %5158 = vperm.xlu0 %5157, %v2753
        %v5159 = vpop.permute.xlu0 %5158
        %5162 = vset.pattern.permute.xlu0 0
        %5163 = vperm.xlu0 %5162, %v2755
        %v5164 = vpop.permute.xlu0 %5163
        %5167 = vset.pattern.permute.xlu0 0
        %5168 = vperm.xlu0 %5167, %v2757
        %v5169 = vpop.permute.xlu0 %5168
        %5172 = vset.pattern.permute.xlu0 0
        %5173 = vperm.xlu0 %5172, %v2759
        %v5174 = vpop.permute.xlu0 %5173
        %5177 = vset.pattern.permute.xlu0 0
        %5178 = vperm.xlu0 %5177, %v2761
        %v5179 = vpop.permute.xlu0 %5178
        %5182 = vset.pattern.permute.xlu0 0
        %5183 = vperm.xlu0 %5182, %v2763
        %v5184 = vpop.permute.xlu0 %5183
        %5187 = vset.pattern.permute.xlu0 0
        %5188 = vperm.xlu0 %5187, %v2765
        %v5189 = vpop.permute.xlu0 %5188
        %5192 = vset.pattern.permute.xlu0 0
        %5193 = vperm.xlu0 %5192, %v2767
        %v5194 = vpop.permute.xlu0 %5193
        %5197 = vset.pattern.permute.xlu0 0
        %5198 = vperm.xlu0 %5197, %v2769
        %v5199 = vpop.permute.xlu0 %5198
        %5202 = vset.pattern.permute.xlu0 0
        %5203 = vperm.xlu0 %5202, %v2771
        %v5204 = vpop.permute.xlu0 %5203
        %5207 = vset.pattern.permute.xlu0 0
        %5208 = vperm.xlu0 %5207, %v2773
        %v5209 = vpop.permute.xlu0 %5208
        %5212 = vset.pattern.permute.xlu0 0
        %5213 = vperm.xlu0 %5212, %v2775
        %v5214 = vpop.permute.xlu0 %5213
        %5217 = vset.pattern.permute.xlu0 0
        %5218 = vperm.xlu0 %5217, %v2777
        %v5219 = vpop.permute.xlu0 %5218
        %5222 = vset.pattern.permute.xlu0 0
        %5223 = vperm.xlu0 %5222, %v2779
        %v5224 = vpop.permute.xlu0 %5223
        %5227 = vset.pattern.permute.xlu0 0
        %5228 = vperm.xlu0 %5227, %v2781
        %v5229 = vpop.permute.xlu0 %5228
        %5232 = vset.pattern.permute.xlu0 0
        %5233 = vperm.xlu0 %5232, %v2783
        %v5234 = vpop.permute.xlu0 %5233
        %5237 = vset.pattern.permute.xlu0 0
        %5238 = vperm.xlu0 %5237, %v2785
        %v5239 = vpop.permute.xlu0 %5238
        %5242 = vset.pattern.permute.xlu0 0
        %5243 = vperm.xlu0 %5242, %v2787
        %v5244 = vpop.permute.xlu0 %5243
        %5247 = vset.pattern.permute.xlu0 0
        %5248 = vperm.xlu0 %5247, %v2789
        %v5249 = vpop.permute.xlu0 %5248
        %5252 = vset.pattern.permute.xlu0 0
        %5253 = vperm.xlu0 %5252, %v2791
        %v5254 = vpop.permute.xlu0 %5253
        %5257 = vset.pattern.permute.xlu0 0
        %5258 = vperm.xlu0 %5257, %v2793
        %v5259 = vpop.permute.xlu0 %5258
        %5262 = vset.pattern.permute.xlu0 0
        %5263 = vperm.xlu0 %5262, %v2795
        %v5264 = vpop.permute.xlu0 %5263
        %5267 = vset.pattern.permute.xlu0 0
        %5268 = vperm.xlu0 %5267, %v2797
        %v5269 = vpop.permute.xlu0 %5268
        %5272 = vset.pattern.permute.xlu0 0
        %5273 = vperm.xlu0 %5272, %v2799
        %v5274 = vpop.permute.xlu0 %5273
        %5277 = vset.pattern.permute.xlu0 0
        %5278 = vperm.xlu0 %5277, %v2801
        %v5279 = vpop.permute.xlu0 %5278
        %5282 = vset.pattern.permute.xlu0 0
        %5283 = vperm.xlu0 %5282, %v2803
        %v5284 = vpop.permute.xlu0 %5283
        %5287 = vset.pattern.permute.xlu0 0
        %5288 = vperm.xlu0 %5287, %v2805
        %v5289 = vpop.permute.xlu0 %5288
        %5292 = vset.pattern.permute.xlu0 0
        %5293 = vperm.xlu0 %5292, %v2807
        %v5294 = vpop.permute.xlu0 %5293
        %5297 = vset.pattern.permute.xlu0 0
        %5298 = vperm.xlu0 %5297, %v2809
        %v5299 = vpop.permute.xlu0 %5298
        %5302 = vset.pattern.permute.xlu0 0
        %5303 = vperm.xlu0 %5302, %v2811
        %v5304 = vpop.permute.xlu0 %5303
        %5307 = vset.pattern.permute.xlu0 0
        %5308 = vperm.xlu0 %5307, %v2813
        %v5309 = vpop.permute.xlu0 %5308
        %5312 = vset.pattern.permute.xlu0 0
        %5313 = vperm.xlu0 %5312, %v2815
        %v5314 = vpop.permute.xlu0 %5313
        %5317 = vset.pattern.permute.xlu0 0
        %5318 = vperm.xlu0 %5317, %v2817
        %v5319 = vpop.permute.xlu0 %5318
        %5322 = vset.pattern.permute.xlu0 0
        %5323 = vperm.xlu0 %5322, %v2819
        %v5324 = vpop.permute.xlu0 %5323
        %5327 = vset.pattern.permute.xlu0 0
        %5328 = vperm.xlu0 %5327, %v2821
        %v5329 = vpop.permute.xlu0 %5328
        %5332 = vset.pattern.permute.xlu0 0
        %5333 = vperm.xlu0 %5332, %v2823
        %v5334 = vpop.permute.xlu0 %5333
        %5337 = vset.pattern.permute.xlu0 0
        %5338 = vperm.xlu0 %5337, %v2825
        %v5339 = vpop.permute.xlu0 %5338
        %5342 = vset.pattern.permute.xlu0 0
        %5343 = vperm.xlu0 %5342, %v2827
        %v5344 = vpop.permute.xlu0 %5343
        %5347 = vset.pattern.permute.xlu0 0
        %5348 = vperm.xlu0 %5347, %v2829
        %v5349 = vpop.permute.xlu0 %5348
        %5352 = vset.pattern.permute.xlu0 0
        %5353 = vperm.xlu0 %5352, %v2831
        %v5354 = vpop.permute.xlu0 %5353
        %5357 = vset.pattern.permute.xlu0 0
        %5358 = vperm.xlu0 %5357, %v2833
        %v5359 = vpop.permute.xlu0 %5358
        %5362 = vset.pattern.permute.xlu0 0
        %5363 = vperm.xlu0 %5362, %v2835
        %v5364 = vpop.permute.xlu0 %5363
        %5367 = vset.pattern.permute.xlu0 0
        %5368 = vperm.xlu0 %5367, %v2837
        %v5369 = vpop.permute.xlu0 %5368
        %5372 = vset.pattern.permute.xlu0 0
        %5373 = vperm.xlu0 %5372, %v2839
        %v5374 = vpop.permute.xlu0 %5373
        %5377 = vset.pattern.permute.xlu0 0
        %5378 = vperm.xlu0 %5377, %v2841
        %v5379 = vpop.permute.xlu0 %5378
        %5382 = vset.pattern.permute.xlu0 0
        %5383 = vperm.xlu0 %5382, %v2843
        %v5384 = vpop.permute.xlu0 %5383
        %5387 = vset.pattern.permute.xlu0 0
        %5388 = vperm.xlu0 %5387, %v2845
        %v5389 = vpop.permute.xlu0 %5388
        %5392 = vset.pattern.permute.xlu0 0
        %5393 = vperm.xlu0 %5392, %v2847
        %v5394 = vpop.permute.xlu0 %5393
        %5397 = vset.pattern.permute.xlu0 0
        %5398 = vperm.xlu0 %5397, %v2849
        %v5399 = vpop.permute.xlu0 %5398
        %5402 = vset.pattern.permute.xlu0 0
        %5403 = vperm.xlu0 %5402, %v2851
        %v5404 = vpop.permute.xlu0 %5403
        %5407 = vset.pattern.permute.xlu0 0
        %5408 = vperm.xlu0 %5407, %v2853
        %v5409 = vpop.permute.xlu0 %5408
        %5412 = vset.pattern.permute.xlu0 0
        %5413 = vperm.xlu0 %5412, %v2855
        %v5414 = vpop.permute.xlu0 %5413
        %5417 = vset.pattern.permute.xlu0 0
        %5418 = vperm.xlu0 %5417, %v2857
        %v5419 = vpop.permute.xlu0 %5418
        %5422 = vset.pattern.permute.xlu0 0
        %5423 = vperm.xlu0 %5422, %v2859
        %v5424 = vpop.permute.xlu0 %5423
        %5427 = vset.pattern.permute.xlu0 0
        %5428 = vperm.xlu0 %5427, %v2861
        %v5429 = vpop.permute.xlu0 %5428
        %5432 = vset.pattern.permute.xlu0 0
        %5433 = vperm.xlu0 %5432, %v2863
        %v5434 = vpop.permute.xlu0 %5433
        %5437 = vset.pattern.permute.xlu0 0
        %5438 = vperm.xlu0 %5437, %v2865
        %v5439 = vpop.permute.xlu0 %5438
        %5442 = vset.pattern.permute.xlu0 0
        %5443 = vperm.xlu0 %5442, %v2867
        %v5444 = vpop.permute.xlu0 %5443
        %5447 = vset.pattern.permute.xlu0 0
        %5448 = vperm.xlu0 %5447, %v2869
        %v5449 = vpop.permute.xlu0 %5448
        %5452 = vset.pattern.permute.xlu0 0
        %5453 = vperm.xlu0 %5452, %v2871
        %v5454 = vpop.permute.xlu0 %5453
        %5457 = vset.pattern.permute.xlu0 0
        %5458 = vperm.xlu0 %5457, %v2873
        %v5459 = vpop.permute.xlu0 %5458
        %5462 = vset.pattern.permute.xlu0 0
        %5463 = vperm.xlu0 %5462, %v2875
        %v5464 = vpop.permute.xlu0 %5463
        %5467 = vset.pattern.permute.xlu0 0
        %5468 = vperm.xlu0 %5467, %v2877
        %v5469 = vpop.permute.xlu0 %5468
        %5472 = vset.pattern.permute.xlu0 0
        %5473 = vperm.xlu0 %5472, %v2879
        %v5474 = vpop.permute.xlu0 %5473
        %5477 = vset.pattern.permute.xlu0 0
        %5478 = vperm.xlu0 %5477, %v2881
        %v5479 = vpop.permute.xlu0 %5478
        %5482 = vset.pattern.permute.xlu0 0
        %5483 = vperm.xlu0 %5482, %v2883
        %v5484 = vpop.permute.xlu0 %5483
        %5487 = vset.pattern.permute.xlu0 0
        %5488 = vperm.xlu0 %5487, %v2885
        %v5489 = vpop.permute.xlu0 %5488
        %5492 = vset.pattern.permute.xlu0 0
        %5493 = vperm.xlu0 %5492, %v2887
        %v5494 = vpop.permute.xlu0 %5493
        %5497 = vset.pattern.permute.xlu0 0
        %5498 = vperm.xlu0 %5497, %v2889
        %v5499 = vpop.permute.xlu0 %5498
        %5502 = vset.pattern.permute.xlu0 0
        %5503 = vperm.xlu0 %5502, %v2891
        %v5504 = vpop.permute.xlu0 %5503
        %5507 = vset.pattern.permute.xlu0 0
        %5508 = vperm.xlu0 %5507, %v2893
        %v5509 = vpop.permute.xlu0 %5508
        %5512 = vset.pattern.permute.xlu0 0
        %5513 = vperm.xlu0 %5512, %v2895
        %v5514 = vpop.permute.xlu0 %5513
        %5517 = vset.pattern.permute.xlu0 0
        %5518 = vperm.xlu0 %5517, %v2897
        %v5519 = vpop.permute.xlu0 %5518
        %5522 = vset.pattern.permute.xlu0 0
        %5523 = vperm.xlu0 %5522, %v2899
        %v5524 = vpop.permute.xlu0 %5523
        %5527 = vset.pattern.permute.xlu0 0
        %5528 = vperm.xlu0 %5527, %v2901
        %v5529 = vpop.permute.xlu0 %5528
        %5532 = vset.pattern.permute.xlu0 0
        %5533 = vperm.xlu0 %5532, %v2903
        %v5534 = vpop.permute.xlu0 %5533
        %5537 = vset.pattern.permute.xlu0 0
        %5538 = vperm.xlu0 %5537, %v2905
        %v5539 = vpop.permute.xlu0 %5538
        %5542 = vset.pattern.permute.xlu0 0
        %5543 = vperm.xlu0 %5542, %v2907
        %v5544 = vpop.permute.xlu0 %5543
        %5547 = vset.pattern.permute.xlu0 0
        %5548 = vperm.xlu0 %5547, %v2909
        %v5549 = vpop.permute.xlu0 %5548
        %5552 = vset.pattern.permute.xlu0 0
        %5553 = vperm.xlu0 %5552, %v2911
        %v5554 = vpop.permute.xlu0 %5553
        %5557 = vset.pattern.permute.xlu0 0
        %5558 = vperm.xlu0 %5557, %v2913
        %v5559 = vpop.permute.xlu0 %5558
        %5562 = vset.pattern.permute.xlu0 0
        %5563 = vperm.xlu0 %5562, %v2915
        %v5564 = vpop.permute.xlu0 %5563
        %5567 = vset.pattern.permute.xlu0 0
        %5568 = vperm.xlu0 %5567, %v2917
        %v5569 = vpop.permute.xlu0 %5568
        %5572 = vset.pattern.permute.xlu0 0
        %5573 = vperm.xlu0 %5572, %v2919
        %v5574 = vpop.permute.xlu0 %5573
        %5577 = vset.pattern.permute.xlu0 0
        %5578 = vperm.xlu0 %5577, %v2921
        %v5579 = vpop.permute.xlu0 %5578
        %5582 = vset.pattern.permute.xlu0 0
        %5583 = vperm.xlu0 %5582, %v2923
        %v5584 = vpop.permute.xlu0 %5583
        %5587 = vset.pattern.permute.xlu0 0
        %5588 = vperm.xlu0 %5587, %v2925
        %v5589 = vpop.permute.xlu0 %5588
        %5592 = vset.pattern.permute.xlu0 0
        %5593 = vperm.xlu0 %5592, %v2927
        %v5594 = vpop.permute.xlu0 %5593
        %5597 = vset.pattern.permute.xlu0 0
        %5598 = vperm.xlu0 %5597, %v2929
        %v5599 = vpop.permute.xlu0 %5598
        %5602 = vset.pattern.permute.xlu0 0
        %5603 = vperm.xlu0 %5602, %v2931
        %v5604 = vpop.permute.xlu0 %5603
        %5607 = vset.pattern.permute.xlu0 0
        %5608 = vperm.xlu0 %5607, %v2933
        %v5609 = vpop.permute.xlu0 %5608
        %5612 = vset.pattern.permute.xlu0 0
        %5613 = vperm.xlu0 %5612, %v2935
        %v5614 = vpop.permute.xlu0 %5613
        %5617 = vset.pattern.permute.xlu0 0
        %5618 = vperm.xlu0 %5617, %v2937
        %v5619 = vpop.permute.xlu0 %5618
        %5622 = vset.pattern.permute.xlu0 0
        %5623 = vperm.xlu0 %5622, %v2939
        %v5624 = vpop.permute.xlu0 %5623
        %5627 = vset.pattern.permute.xlu0 0
        %5628 = vperm.xlu0 %5627, %v2941
        %v5629 = vpop.permute.xlu0 %5628
        %v5631 = vmul.f32 %v4994, %v4863
        %v5632 = vmul.f32 %v4999, %v4864
        %v5633 = vmul.f32 %v5004, %v4865
        %v5634 = vmul.f32 %v5009, %v4866
        %v5635 = vmul.f32 %v5014, %v4867
        %v5636 = vmul.f32 %v5019, %v4868
        %v5637 = vmul.f32 %v5024, %v4869
        %v5638 = vmul.f32 %v5029, %v4870
        %v5639 = vmul.f32 %v5034, %v4871
        %v5640 = vmul.f32 %v5039, %v4872
        %v5641 = vmul.f32 %v5044, %v4873
        %v5642 = vmul.f32 %v5049, %v4874
        %v5643 = vmul.f32 %v5054, %v4875
        %v5644 = vmul.f32 %v5059, %v4876
        %v5645 = vmul.f32 %v5064, %v4877
        %v5646 = vmul.f32 %v5069, %v4878
        %v5647 = vmul.f32 %v5074, %v4879
        %v5648 = vmul.f32 %v5079, %v4880
        %v5649 = vmul.f32 %v5084, %v4881
        %v5650 = vmul.f32 %v5089, %v4882
        %v5651 = vmul.f32 %v5094, %v4883
        %v5652 = vmul.f32 %v5099, %v4884
        %v5653 = vmul.f32 %v5104, %v4885
        %v5654 = vmul.f32 %v5109, %v4886
        %v5655 = vmul.f32 %v5114, %v4887
        %v5656 = vmul.f32 %v5119, %v4888
        %v5657 = vmul.f32 %v5124, %v4889
        %v5658 = vmul.f32 %v5129, %v4890
        %v5659 = vmul.f32 %v5134, %v4891
        %v5660 = vmul.f32 %v5139, %v4892
        %v5661 = vmul.f32 %v5144, %v4893
        %v5662 = vmul.f32 %v5149, %v4894
        %v5663 = vmul.f32 %v5154, %v4895
        %v5664 = vmul.f32 %v5159, %v4896
        %v5665 = vmul.f32 %v5164, %v4897
        %v5666 = vmul.f32 %v5169, %v4898
        %v5667 = vmul.f32 %v5174, %v4899
        %v5668 = vmul.f32 %v5179, %v4900
        %v5669 = vmul.f32 %v5184, %v4901
        %v5670 = vmul.f32 %v5189, %v4902
        %v5671 = vmul.f32 %v5194, %v4903
        %v5672 = vmul.f32 %v5199, %v4904
        %v5673 = vmul.f32 %v5204, %v4905
        %v5674 = vmul.f32 %v5209, %v4906
        %v5675 = vmul.f32 %v5214, %v4907
        %v5676 = vmul.f32 %v5219, %v4908
        %v5677 = vmul.f32 %v5224, %v4909
        %v5678 = vmul.f32 %v5229, %v4910
        %v5679 = vmul.f32 %v5234, %v4911
        %v5680 = vmul.f32 %v5239, %v4912
        %v5681 = vmul.f32 %v5244, %v4913
        %v5682 = vmul.f32 %v5249, %v4914
        %v5683 = vmul.f32 %v5254, %v4915
        %v5684 = vmul.f32 %v5259, %v4916
        %v5685 = vmul.f32 %v5264, %v4917
        %v5686 = vmul.f32 %v5269, %v4918
        %v5687 = vmul.f32 %v5274, %v4919
        %v5688 = vmul.f32 %v5279, %v4920
        %v5689 = vmul.f32 %v5284, %v4921
        %v5690 = vmul.f32 %v5289, %v4922
        %v5691 = vmul.f32 %v5294, %v4923
        %v5692 = vmul.f32 %v5299, %v4924
        %v5693 = vmul.f32 %v5304, %v4925
        %v5694 = vmul.f32 %v5309, %v4926
        %v5695 = vmul.f32 %v5314, %v4927
        %v5696 = vmul.f32 %v5319, %v4928
        %v5697 = vmul.f32 %v5324, %v4929
        %v5698 = vmul.f32 %v5329, %v4930
        %v5699 = vmul.f32 %v5334, %v4931
        %v5700 = vmul.f32 %v5339, %v4932
        %v5701 = vmul.f32 %v5344, %v4933
        %v5702 = vmul.f32 %v5349, %v4934
        %v5703 = vmul.f32 %v5354, %v4935
        %v5704 = vmul.f32 %v5359, %v4936
        %v5705 = vmul.f32 %v5364, %v4937
        %v5706 = vmul.f32 %v5369, %v4938
        %v5707 = vmul.f32 %v5374, %v4939
        %v5708 = vmul.f32 %v5379, %v4940
        %v5709 = vmul.f32 %v5384, %v4941
        %v5710 = vmul.f32 %v5389, %v4942
        %v5711 = vmul.f32 %v5394, %v4943
        %v5712 = vmul.f32 %v5399, %v4944
        %v5713 = vmul.f32 %v5404, %v4945
        %v5714 = vmul.f32 %v5409, %v4946
        %v5715 = vmul.f32 %v5414, %v4947
        %v5716 = vmul.f32 %v5419, %v4948
        %v5717 = vmul.f32 %v5424, %v4949
        %v5718 = vmul.f32 %v5429, %v4950
        %v5719 = vmul.f32 %v5434, %v4951
        %v5720 = vmul.f32 %v5439, %v4952
        %v5721 = vmul.f32 %v5444, %v4953
        %v5722 = vmul.f32 %v5449, %v4954
        %v5723 = vmul.f32 %v5454, %v4955
        %v5724 = vmul.f32 %v5459, %v4956
        %v5725 = vmul.f32 %v5464, %v4957
        %v5726 = vmul.f32 %v5469, %v4958
        %v5727 = vmul.f32 %v5474, %v4959
        %v5728 = vmul.f32 %v5479, %v4960
        %v5729 = vmul.f32 %v5484, %v4961
        %v5730 = vmul.f32 %v5489, %v4962
        %v5731 = vmul.f32 %v5494, %v4963
        %v5732 = vmul.f32 %v5499, %v4964
        %v5733 = vmul.f32 %v5504, %v4965
        %v5734 = vmul.f32 %v5509, %v4966
        %v5735 = vmul.f32 %v5514, %v4967
        %v5736 = vmul.f32 %v5519, %v4968
        %v5737 = vmul.f32 %v5524, %v4969
        %v5738 = vmul.f32 %v5529, %v4970
        %v5739 = vmul.f32 %v5534, %v4971
        %v5740 = vmul.f32 %v5539, %v4972
        %v5741 = vmul.f32 %v5544, %v4973
        %v5742 = vmul.f32 %v5549, %v4974
        %v5743 = vmul.f32 %v5554, %v4975
        %v5744 = vmul.f32 %v5559, %v4976
        %v5745 = vmul.f32 %v5564, %v4977
        %v5746 = vmul.f32 %v5569, %v4978
        %v5747 = vmul.f32 %v5574, %v4979
        %v5748 = vmul.f32 %v5579, %v4980
        %v5749 = vmul.f32 %v5584, %v4981
        %v5750 = vmul.f32 %v5589, %v4982
        %v5751 = vmul.f32 %v5594, %v4983
        %v5752 = vmul.f32 %v5599, %v4984
        %v5753 = vmul.f32 %v5604, %v4985
        %v5754 = vmul.f32 %v5609, %v4986
        %v5755 = vmul.f32 %v5614, %v4987
        %v5756 = vmul.f32 %v5619, %v4988
        %v5757 = vmul.f32 %v5624, %v4989
        %v5758 = vmul.f32 %v5629, %v4990
        %5759 = vset.pattern.permute.xlu0 8
        %5760 = vperm.xlu0 %5759, %v3583
        %v5761 = vpop.permute.xlu0 %5760
        %5763 = vset.pattern.permute.xlu0 8
        %5764 = vperm.xlu0 %5763, %v3585
        %v5765 = vpop.permute.xlu0 %5764
        %5767 = vset.pattern.permute.xlu0 8
        %5768 = vperm.xlu0 %5767, %v3587
        %v5769 = vpop.permute.xlu0 %5768
        %5771 = vset.pattern.permute.xlu0 8
        %5772 = vperm.xlu0 %5771, %v3589
        %v5773 = vpop.permute.xlu0 %5772
        %5775 = vset.pattern.permute.xlu0 8
        %5776 = vperm.xlu0 %5775, %v3591
        %v5777 = vpop.permute.xlu0 %5776
        %5779 = vset.pattern.permute.xlu0 8
        %5780 = vperm.xlu0 %5779, %v3593
        %v5781 = vpop.permute.xlu0 %5780
        %5783 = vset.pattern.permute.xlu0 8
        %5784 = vperm.xlu0 %5783, %v3595
        %v5785 = vpop.permute.xlu0 %5784
        %5787 = vset.pattern.permute.xlu0 8
        %5788 = vperm.xlu0 %5787, %v3597
        %v5789 = vpop.permute.xlu0 %5788
        %5791 = vset.pattern.permute.xlu0 8
        %5792 = vperm.xlu0 %5791, %v3599
        %v5793 = vpop.permute.xlu0 %5792
        %5795 = vset.pattern.permute.xlu0 8
        %5796 = vperm.xlu0 %5795, %v3601
        %v5797 = vpop.permute.xlu0 %5796
        %5799 = vset.pattern.permute.xlu0 8
        %5800 = vperm.xlu0 %5799, %v3603
        %v5801 = vpop.permute.xlu0 %5800
        %5803 = vset.pattern.permute.xlu0 8
        %5804 = vperm.xlu0 %5803, %v3605
        %v5805 = vpop.permute.xlu0 %5804
        %5807 = vset.pattern.permute.xlu0 8
        %5808 = vperm.xlu0 %5807, %v3607
        %v5809 = vpop.permute.xlu0 %5808
        %5811 = vset.pattern.permute.xlu0 8
        %5812 = vperm.xlu0 %5811, %v3609
        %v5813 = vpop.permute.xlu0 %5812
        %5815 = vset.pattern.permute.xlu0 8
        %5816 = vperm.xlu0 %5815, %v3611
        %v5817 = vpop.permute.xlu0 %5816
        %5819 = vset.pattern.permute.xlu0 8
        %5820 = vperm.xlu0 %5819, %v3613
        %v5821 = vpop.permute.xlu0 %5820
        %5823 = vset.pattern.permute.xlu0 8
        %5824 = vperm.xlu0 %5823, %v3615
        %v5825 = vpop.permute.xlu0 %5824
        %5827 = vset.pattern.permute.xlu0 8
        %5828 = vperm.xlu0 %5827, %v3617
        %v5829 = vpop.permute.xlu0 %5828
        %5831 = vset.pattern.permute.xlu0 8
        %5832 = vperm.xlu0 %5831, %v3619
        %v5833 = vpop.permute.xlu0 %5832
        %5835 = vset.pattern.permute.xlu0 8
        %5836 = vperm.xlu0 %5835, %v3621
        %v5837 = vpop.permute.xlu0 %5836
        %5839 = vset.pattern.permute.xlu0 8
        %5840 = vperm.xlu0 %5839, %v3623
        %v5841 = vpop.permute.xlu0 %5840
        %5843 = vset.pattern.permute.xlu0 8
        %5844 = vperm.xlu0 %5843, %v3625
        %v5845 = vpop.permute.xlu0 %5844
        %5847 = vset.pattern.permute.xlu0 8
        %5848 = vperm.xlu0 %5847, %v3627
        %v5849 = vpop.permute.xlu0 %5848
        %5851 = vset.pattern.permute.xlu0 8
        %5852 = vperm.xlu0 %5851, %v3629
        %v5853 = vpop.permute.xlu0 %5852
        %5855 = vset.pattern.permute.xlu0 8
        %5856 = vperm.xlu0 %5855, %v3631
        %v5857 = vpop.permute.xlu0 %5856
        %5859 = vset.pattern.permute.xlu0 8
        %5860 = vperm.xlu0 %5859, %v3633
        %v5861 = vpop.permute.xlu0 %5860
        %5863 = vset.pattern.permute.xlu0 8
        %5864 = vperm.xlu0 %5863, %v3635
        %v5865 = vpop.permute.xlu0 %5864
        %5867 = vset.pattern.permute.xlu0 8
        %5868 = vperm.xlu0 %5867, %v3637
        %v5869 = vpop.permute.xlu0 %5868
        %5871 = vset.pattern.permute.xlu0 8
        %5872 = vperm.xlu0 %5871, %v3639
        %v5873 = vpop.permute.xlu0 %5872
        %5875 = vset.pattern.permute.xlu0 8
        %5876 = vperm.xlu0 %5875, %v3641
        %v5877 = vpop.permute.xlu0 %5876
        %5879 = vset.pattern.permute.xlu0 8
        %5880 = vperm.xlu0 %5879, %v3643
        %v5881 = vpop.permute.xlu0 %5880
        %5883 = vset.pattern.permute.xlu0 8
        %5884 = vperm.xlu0 %5883, %v3645
        %v5885 = vpop.permute.xlu0 %5884
        %5887 = vset.pattern.permute.xlu0 8
        %5888 = vperm.xlu0 %5887, %v3647
        %v5889 = vpop.permute.xlu0 %5888
        %5891 = vset.pattern.permute.xlu0 8
        %5892 = vperm.xlu0 %5891, %v3649
        %v5893 = vpop.permute.xlu0 %5892
        %5895 = vset.pattern.permute.xlu0 8
        %5896 = vperm.xlu0 %5895, %v3651
        %v5897 = vpop.permute.xlu0 %5896
        %5899 = vset.pattern.permute.xlu0 8
        %5900 = vperm.xlu0 %5899, %v3653
        %v5901 = vpop.permute.xlu0 %5900
        %5903 = vset.pattern.permute.xlu0 8
        %5904 = vperm.xlu0 %5903, %v3655
        %v5905 = vpop.permute.xlu0 %5904
        %5907 = vset.pattern.permute.xlu0 8
        %5908 = vperm.xlu0 %5907, %v3657
        %v5909 = vpop.permute.xlu0 %5908
        %5911 = vset.pattern.permute.xlu0 8
        %5912 = vperm.xlu0 %5911, %v3659
        %v5913 = vpop.permute.xlu0 %5912
        %5915 = vset.pattern.permute.xlu0 8
        %5916 = vperm.xlu0 %5915, %v3661
        %v5917 = vpop.permute.xlu0 %5916
        %5919 = vset.pattern.permute.xlu0 8
        %5920 = vperm.xlu0 %5919, %v3663
        %v5921 = vpop.permute.xlu0 %5920
        %5923 = vset.pattern.permute.xlu0 8
        %5924 = vperm.xlu0 %5923, %v3665
        %v5925 = vpop.permute.xlu0 %5924
        %5927 = vset.pattern.permute.xlu0 8
        %5928 = vperm.xlu0 %5927, %v3667
        %v5929 = vpop.permute.xlu0 %5928
        %5931 = vset.pattern.permute.xlu0 8
        %5932 = vperm.xlu0 %5931, %v3669
        %v5933 = vpop.permute.xlu0 %5932
        %5935 = vset.pattern.permute.xlu0 8
        %5936 = vperm.xlu0 %5935, %v3671
        %v5937 = vpop.permute.xlu0 %5936
        %5939 = vset.pattern.permute.xlu0 8
        %5940 = vperm.xlu0 %5939, %v3673
        %v5941 = vpop.permute.xlu0 %5940
        %5943 = vset.pattern.permute.xlu0 8
        %5944 = vperm.xlu0 %5943, %v3675
        %v5945 = vpop.permute.xlu0 %5944
        %5947 = vset.pattern.permute.xlu0 8
        %5948 = vperm.xlu0 %5947, %v3677
        %v5949 = vpop.permute.xlu0 %5948
        %5951 = vset.pattern.permute.xlu0 8
        %5952 = vperm.xlu0 %5951, %v3679
        %v5953 = vpop.permute.xlu0 %5952
        %5955 = vset.pattern.permute.xlu0 8
        %5956 = vperm.xlu0 %5955, %v3681
        %v5957 = vpop.permute.xlu0 %5956
        %5959 = vset.pattern.permute.xlu0 8
        %5960 = vperm.xlu0 %5959, %v3683
        %v5961 = vpop.permute.xlu0 %5960
        %5963 = vset.pattern.permute.xlu0 8
        %5964 = vperm.xlu0 %5963, %v3685
        %v5965 = vpop.permute.xlu0 %5964
        %5967 = vset.pattern.permute.xlu0 8
        %5968 = vperm.xlu0 %5967, %v3687
        %v5969 = vpop.permute.xlu0 %5968
        %5971 = vset.pattern.permute.xlu0 8
        %5972 = vperm.xlu0 %5971, %v3689
        %v5973 = vpop.permute.xlu0 %5972
        %5975 = vset.pattern.permute.xlu0 8
        %5976 = vperm.xlu0 %5975, %v3691
        %v5977 = vpop.permute.xlu0 %5976
        %5979 = vset.pattern.permute.xlu0 8
        %5980 = vperm.xlu0 %5979, %v3693
        %v5981 = vpop.permute.xlu0 %5980
        %5983 = vset.pattern.permute.xlu0 8
        %5984 = vperm.xlu0 %5983, %v3695
        %v5985 = vpop.permute.xlu0 %5984
        %5987 = vset.pattern.permute.xlu0 8
        %5988 = vperm.xlu0 %5987, %v3697
        %v5989 = vpop.permute.xlu0 %5988
        %5991 = vset.pattern.permute.xlu0 8
        %5992 = vperm.xlu0 %5991, %v3699
        %v5993 = vpop.permute.xlu0 %5992
        %5995 = vset.pattern.permute.xlu0 8
        %5996 = vperm.xlu0 %5995, %v3701
        %v5997 = vpop.permute.xlu0 %5996
        %5999 = vset.pattern.permute.xlu0 8
        %6000 = vperm.xlu0 %5999, %v3703
        %v6001 = vpop.permute.xlu0 %6000
        %6003 = vset.pattern.permute.xlu0 8
        %6004 = vperm.xlu0 %6003, %v3705
        %v6005 = vpop.permute.xlu0 %6004
        %6007 = vset.pattern.permute.xlu0 8
        %6008 = vperm.xlu0 %6007, %v3707
        %v6009 = vpop.permute.xlu0 %6008
        %6011 = vset.pattern.permute.xlu0 8
        %6012 = vperm.xlu0 %6011, %v3709
        %v6013 = vpop.permute.xlu0 %6012
        %6015 = vset.pattern.permute.xlu0 8
        %6016 = vperm.xlu0 %6015, %v3711
        %v6017 = vpop.permute.xlu0 %6016
        %6019 = vset.pattern.permute.xlu0 8
        %6020 = vperm.xlu0 %6019, %v3713
        %v6021 = vpop.permute.xlu0 %6020
        %6023 = vset.pattern.permute.xlu0 8
        %6024 = vperm.xlu0 %6023, %v3715
        %v6025 = vpop.permute.xlu0 %6024
        %6027 = vset.pattern.permute.xlu0 8
        %6028 = vperm.xlu0 %6027, %v3717
        %v6029 = vpop.permute.xlu0 %6028
        %6031 = vset.pattern.permute.xlu0 8
        %6032 = vperm.xlu0 %6031, %v3719
        %v6033 = vpop.permute.xlu0 %6032
        %6035 = vset.pattern.permute.xlu0 8
        %6036 = vperm.xlu0 %6035, %v3721
        %v6037 = vpop.permute.xlu0 %6036
        %6039 = vset.pattern.permute.xlu0 8
        %6040 = vperm.xlu0 %6039, %v3723
        %v6041 = vpop.permute.xlu0 %6040
        %6043 = vset.pattern.permute.xlu0 8
        %6044 = vperm.xlu0 %6043, %v3725
        %v6045 = vpop.permute.xlu0 %6044
        %6047 = vset.pattern.permute.xlu0 8
        %6048 = vperm.xlu0 %6047, %v3727
        %v6049 = vpop.permute.xlu0 %6048
        %6051 = vset.pattern.permute.xlu0 8
        %6052 = vperm.xlu0 %6051, %v3729
        %v6053 = vpop.permute.xlu0 %6052
        %6055 = vset.pattern.permute.xlu0 8
        %6056 = vperm.xlu0 %6055, %v3731
        %v6057 = vpop.permute.xlu0 %6056
        %6059 = vset.pattern.permute.xlu0 8
        %6060 = vperm.xlu0 %6059, %v3733
        %v6061 = vpop.permute.xlu0 %6060
        %6063 = vset.pattern.permute.xlu0 8
        %6064 = vperm.xlu0 %6063, %v3735
        %v6065 = vpop.permute.xlu0 %6064
        %6067 = vset.pattern.permute.xlu0 8
        %6068 = vperm.xlu0 %6067, %v3737
        %v6069 = vpop.permute.xlu0 %6068
        %6071 = vset.pattern.permute.xlu0 8
        %6072 = vperm.xlu0 %6071, %v3739
        %v6073 = vpop.permute.xlu0 %6072
        %6075 = vset.pattern.permute.xlu0 8
        %6076 = vperm.xlu0 %6075, %v3741
        %v6077 = vpop.permute.xlu0 %6076
        %6079 = vset.pattern.permute.xlu0 8
        %6080 = vperm.xlu0 %6079, %v3743
        %v6081 = vpop.permute.xlu0 %6080
        %6083 = vset.pattern.permute.xlu0 8
        %6084 = vperm.xlu0 %6083, %v3745
        %v6085 = vpop.permute.xlu0 %6084
        %6087 = vset.pattern.permute.xlu0 8
        %6088 = vperm.xlu0 %6087, %v3747
        %v6089 = vpop.permute.xlu0 %6088
        %6091 = vset.pattern.permute.xlu0 8
        %6092 = vperm.xlu0 %6091, %v3749
        %v6093 = vpop.permute.xlu0 %6092
        %6095 = vset.pattern.permute.xlu0 8
        %6096 = vperm.xlu0 %6095, %v3751
        %v6097 = vpop.permute.xlu0 %6096
        %6099 = vset.pattern.permute.xlu0 8
        %6100 = vperm.xlu0 %6099, %v3753
        %v6101 = vpop.permute.xlu0 %6100
        %6103 = vset.pattern.permute.xlu0 8
        %6104 = vperm.xlu0 %6103, %v3755
        %v6105 = vpop.permute.xlu0 %6104
        %6107 = vset.pattern.permute.xlu0 8
        %6108 = vperm.xlu0 %6107, %v3757
        %v6109 = vpop.permute.xlu0 %6108
        %6111 = vset.pattern.permute.xlu0 8
        %6112 = vperm.xlu0 %6111, %v3759
        %v6113 = vpop.permute.xlu0 %6112
        %6115 = vset.pattern.permute.xlu0 8
        %6116 = vperm.xlu0 %6115, %v3761
        %v6117 = vpop.permute.xlu0 %6116
        %6119 = vset.pattern.permute.xlu0 8
        %6120 = vperm.xlu0 %6119, %v3763
        %v6121 = vpop.permute.xlu0 %6120
        %6123 = vset.pattern.permute.xlu0 8
        %6124 = vperm.xlu0 %6123, %v3765
        %v6125 = vpop.permute.xlu0 %6124
        %6127 = vset.pattern.permute.xlu0 8
        %6128 = vperm.xlu0 %6127, %v3767
        %v6129 = vpop.permute.xlu0 %6128
        %6131 = vset.pattern.permute.xlu0 8
        %6132 = vperm.xlu0 %6131, %v3769
        %v6133 = vpop.permute.xlu0 %6132
        %6135 = vset.pattern.permute.xlu0 8
        %6136 = vperm.xlu0 %6135, %v3771
        %v6137 = vpop.permute.xlu0 %6136
        %6139 = vset.pattern.permute.xlu0 8
        %6140 = vperm.xlu0 %6139, %v3773
        %v6141 = vpop.permute.xlu0 %6140
        %6143 = vset.pattern.permute.xlu0 8
        %6144 = vperm.xlu0 %6143, %v3775
        %v6145 = vpop.permute.xlu0 %6144
        %6147 = vset.pattern.permute.xlu0 8
        %6148 = vperm.xlu0 %6147, %v3777
        %v6149 = vpop.permute.xlu0 %6148
        %6151 = vset.pattern.permute.xlu0 8
        %6152 = vperm.xlu0 %6151, %v3779
        %v6153 = vpop.permute.xlu0 %6152
        %6155 = vset.pattern.permute.xlu0 8
        %6156 = vperm.xlu0 %6155, %v3781
        %v6157 = vpop.permute.xlu0 %6156
        %6159 = vset.pattern.permute.xlu0 8
        %6160 = vperm.xlu0 %6159, %v3783
        %v6161 = vpop.permute.xlu0 %6160
        %6163 = vset.pattern.permute.xlu0 8
        %6164 = vperm.xlu0 %6163, %v3785
        %v6165 = vpop.permute.xlu0 %6164
        %6167 = vset.pattern.permute.xlu0 8
        %6168 = vperm.xlu0 %6167, %v3787
        %v6169 = vpop.permute.xlu0 %6168
        %6171 = vset.pattern.permute.xlu0 8
        %6172 = vperm.xlu0 %6171, %v3789
        %v6173 = vpop.permute.xlu0 %6172
        %6175 = vset.pattern.permute.xlu0 8
        %6176 = vperm.xlu0 %6175, %v3791
        %v6177 = vpop.permute.xlu0 %6176
        %6179 = vset.pattern.permute.xlu0 8
        %6180 = vperm.xlu0 %6179, %v3793
        %v6181 = vpop.permute.xlu0 %6180
        %6183 = vset.pattern.permute.xlu0 8
        %6184 = vperm.xlu0 %6183, %v3795
        %v6185 = vpop.permute.xlu0 %6184
        %6187 = vset.pattern.permute.xlu0 8
        %6188 = vperm.xlu0 %6187, %v3797
        %v6189 = vpop.permute.xlu0 %6188
        %6191 = vset.pattern.permute.xlu0 8
        %6192 = vperm.xlu0 %6191, %v3799
        %v6193 = vpop.permute.xlu0 %6192
        %6195 = vset.pattern.permute.xlu0 8
        %6196 = vperm.xlu0 %6195, %v3801
        %v6197 = vpop.permute.xlu0 %6196
        %6199 = vset.pattern.permute.xlu0 8
        %6200 = vperm.xlu0 %6199, %v3803
        %v6201 = vpop.permute.xlu0 %6200
        %6203 = vset.pattern.permute.xlu0 8
        %6204 = vperm.xlu0 %6203, %v3805
        %v6205 = vpop.permute.xlu0 %6204
        %6207 = vset.pattern.permute.xlu0 8
        %6208 = vperm.xlu0 %6207, %v3807
        %v6209 = vpop.permute.xlu0 %6208
        %6211 = vset.pattern.permute.xlu0 8
        %6212 = vperm.xlu0 %6211, %v3809
        %v6213 = vpop.permute.xlu0 %6212
        %6215 = vset.pattern.permute.xlu0 8
        %6216 = vperm.xlu0 %6215, %v3811
        %v6217 = vpop.permute.xlu0 %6216
        %6219 = vset.pattern.permute.xlu0 8
        %6220 = vperm.xlu0 %6219, %v3813
        %v6221 = vpop.permute.xlu0 %6220
        %6223 = vset.pattern.permute.xlu0 8
        %6224 = vperm.xlu0 %6223, %v3815
        %v6225 = vpop.permute.xlu0 %6224
        %6227 = vset.pattern.permute.xlu0 8
        %6228 = vperm.xlu0 %6227, %v3817
        %v6229 = vpop.permute.xlu0 %6228
        %6231 = vset.pattern.permute.xlu0 8
        %6232 = vperm.xlu0 %6231, %v3819
        %v6233 = vpop.permute.xlu0 %6232
        %6235 = vset.pattern.permute.xlu0 8
        %6236 = vperm.xlu0 %6235, %v3821
        %v6237 = vpop.permute.xlu0 %6236
        %6239 = vset.pattern.permute.xlu0 8
        %6240 = vperm.xlu0 %6239, %v3823
        %v6241 = vpop.permute.xlu0 %6240
        %6243 = vset.pattern.permute.xlu0 8
        %6244 = vperm.xlu0 %6243, %v3825
        %v6245 = vpop.permute.xlu0 %6244
        %6247 = vset.pattern.permute.xlu0 8
        %6248 = vperm.xlu0 %6247, %v3827
        %v6249 = vpop.permute.xlu0 %6248
        %6251 = vset.pattern.permute.xlu0 8
        %6252 = vperm.xlu0 %6251, %v3829
        %v6253 = vpop.permute.xlu0 %6252
        %6255 = vset.pattern.permute.xlu0 8
        %6256 = vperm.xlu0 %6255, %v3831
        %v6257 = vpop.permute.xlu0 %6256
        %6259 = vset.pattern.permute.xlu0 8
        %6260 = vperm.xlu0 %6259, %v3833
        %v6261 = vpop.permute.xlu0 %6260
        %6263 = vset.pattern.permute.xlu0 8
        %6264 = vperm.xlu0 %6263, %v3835
        %v6265 = vpop.permute.xlu0 %6264
        %6267 = vset.pattern.permute.xlu0 8
        %6268 = vperm.xlu0 %6267, %v3837
        %v6269 = vpop.permute.xlu0 %6268
        %v6271 = vmul.f32 %v5761, %v1280
        %v6272 = vmul.f32 %v5765, %v1283
        %v6273 = vmul.f32 %v5769, %v1288
        %v6274 = vmul.f32 %v5773, %v1291
        %v6275 = vmul.f32 %v5777, %v1296
        %v6276 = vmul.f32 %v5781, %v1299
        %v6277 = vmul.f32 %v5785, %v1304
        %v6278 = vmul.f32 %v5789, %v1307
        %v6279 = vmul.f32 %v5793, %v1312
        %v6280 = vmul.f32 %v5797, %v1315
        %v6281 = vmul.f32 %v5801, %v1320
        %v6282 = vmul.f32 %v5805, %v1323
        %v6283 = vmul.f32 %v5809, %v1328
        %v6284 = vmul.f32 %v5813, %v1331
        %v6285 = vmul.f32 %v5817, %v1336
        %v6286 = vmul.f32 %v5821, %v1339
        %v6287 = vmul.f32 %v5825, %v1344
        %v6288 = vmul.f32 %v5829, %v1347
        %v6289 = vmul.f32 %v5833, %v1352
        %v6290 = vmul.f32 %v5837, %v1355
        %v6291 = vmul.f32 %v5841, %v1360
        %v6292 = vmul.f32 %v5845, %v1363
        %v6293 = vmul.f32 %v5849, %v1368
        %v6294 = vmul.f32 %v5853, %v1371
        %v6295 = vmul.f32 %v5857, %v1376
        %v6296 = vmul.f32 %v5861, %v1379
        %v6297 = vmul.f32 %v5865, %v1384
        %v6298 = vmul.f32 %v5869, %v1387
        %v6299 = vmul.f32 %v5873, %v1392
        %v6300 = vmul.f32 %v5877, %v1395
        %v6301 = vmul.f32 %v5881, %v1400
        %v6302 = vmul.f32 %v5885, %v1403
        %v6303 = vmul.f32 %v5889, %v1408
        %v6304 = vmul.f32 %v5893, %v1411
        %v6305 = vmul.f32 %v5897, %v1416
        %v6306 = vmul.f32 %v5901, %v1419
        %v6307 = vmul.f32 %v5905, %v1424
        %v6308 = vmul.f32 %v5909, %v1427
        %v6309 = vmul.f32 %v5913, %v1432
        %v6310 = vmul.f32 %v5917, %v1435
        %v6311 = vmul.f32 %v5921, %v1440
        %v6312 = vmul.f32 %v5925, %v1443
        %v6313 = vmul.f32 %v5929, %v1448
        %v6314 = vmul.f32 %v5933, %v1451
        %v6315 = vmul.f32 %v5937, %v1456
        %v6316 = vmul.f32 %v5941, %v1459
        %v6317 = vmul.f32 %v5945, %v1464
        %v6318 = vmul.f32 %v5949, %v1467
        %v6319 = vmul.f32 %v5953, %v1472
        %v6320 = vmul.f32 %v5957, %v1475
        %v6321 = vmul.f32 %v5961, %v1480
        %v6322 = vmul.f32 %v5965, %v1483
        %v6323 = vmul.f32 %v5969, %v1488
        %v6324 = vmul.f32 %v5973, %v1491
        %v6325 = vmul.f32 %v5977, %v1496
        %v6326 = vmul.f32 %v5981, %v1499
        %v6327 = vmul.f32 %v5985, %v1504
        %v6328 = vmul.f32 %v5989, %v1507
        %v6329 = vmul.f32 %v5993, %v1512
        %v6330 = vmul.f32 %v5997, %v1515
        %v6331 = vmul.f32 %v6001, %v1520
        %v6332 = vmul.f32 %v6005, %v1523
        %v6333 = vmul.f32 %v6009, %v1528
        %v6334 = vmul.f32 %v6013, %v1531
        %v6335 = vmul.f32 %v6017, %v1536
        %v6336 = vmul.f32 %v6021, %v1539
        %v6337 = vmul.f32 %v6025, %v1544
        %v6338 = vmul.f32 %v6029, %v1547
        %v6339 = vmul.f32 %v6033, %v1552
        %v6340 = vmul.f32 %v6037, %v1555
        %v6341 = vmul.f32 %v6041, %v1560
        %v6342 = vmul.f32 %v6045, %v1563
        %v6343 = vmul.f32 %v6049, %v1568
        %v6344 = vmul.f32 %v6053, %v1571
        %v6345 = vmul.f32 %v6057, %v1576
        %v6346 = vmul.f32 %v6061, %v1579
        %v6347 = vmul.f32 %v6065, %v1584
        %v6348 = vmul.f32 %v6069, %v1587
        %v6349 = vmul.f32 %v6073, %v1592
        %v6350 = vmul.f32 %v6077, %v1595
        %v6351 = vmul.f32 %v6081, %v1600
        %v6352 = vmul.f32 %v6085, %v1603
        %v6353 = vmul.f32 %v6089, %v1608
        %v6354 = vmul.f32 %v6093, %v1611
        %v6355 = vmul.f32 %v6097, %v1616
        %v6356 = vmul.f32 %v6101, %v1619
        %v6357 = vmul.f32 %v6105, %v1624
        %v6358 = vmul.f32 %v6109, %v1627
        %v6359 = vmul.f32 %v6113, %v1632
        %v6360 = vmul.f32 %v6117, %v1635
        %v6361 = vmul.f32 %v6121, %v1640
        %v6362 = vmul.f32 %v6125, %v1643
        %v6363 = vmul.f32 %v6129, %v1648
        %v6364 = vmul.f32 %v6133, %v1651
        %v6365 = vmul.f32 %v6137, %v1656
        %v6366 = vmul.f32 %v6141, %v1659
        %v6367 = vmul.f32 %v6145, %v1664
        %v6368 = vmul.f32 %v6149, %v1667
        %v6369 = vmul.f32 %v6153, %v1672
        %v6370 = vmul.f32 %v6157, %v1675
        %v6371 = vmul.f32 %v6161, %v1680
        %v6372 = vmul.f32 %v6165, %v1683
        %v6373 = vmul.f32 %v6169, %v1688
        %v6374 = vmul.f32 %v6173, %v1691
        %v6375 = vmul.f32 %v6177, %v1696
        %v6376 = vmul.f32 %v6181, %v1699
        %v6377 = vmul.f32 %v6185, %v1704
        %v6378 = vmul.f32 %v6189, %v1707
        %v6379 = vmul.f32 %v6193, %v1712
        %v6380 = vmul.f32 %v6197, %v1715
        %v6381 = vmul.f32 %v6201, %v1720
        %v6382 = vmul.f32 %v6205, %v1723
        %v6383 = vmul.f32 %v6209, %v1728
        %v6384 = vmul.f32 %v6213, %v1731
        %v6385 = vmul.f32 %v6217, %v1736
        %v6386 = vmul.f32 %v6221, %v1739
        %v6387 = vmul.f32 %v6225, %v1744
        %v6388 = vmul.f32 %v6229, %v1747
        %v6389 = vmul.f32 %v6233, %v1752
        %v6390 = vmul.f32 %v6237, %v1755
        %v6391 = vmul.f32 %v6241, %v1760
        %v6392 = vmul.f32 %v6245, %v1763
        %v6393 = vmul.f32 %v6249, %v1768
        %v6394 = vmul.f32 %v6253, %v1771
        %v6395 = vmul.f32 %v6257, %v1776
        %v6396 = vmul.f32 %v6261, %v1779
        %v6397 = vmul.f32 %v6265, %v1784
        %v6398 = vmul.f32 %v6269, %v1787
        %v6399 = vadd.f32 %v5631, %v6271
        %v6400 = vadd.f32 %v5632, %v6272
        %v6401 = vadd.f32 %v5633, %v6273
        %v6402 = vadd.f32 %v5634, %v6274
        %v6403 = vadd.f32 %v5635, %v6275
        %v6404 = vadd.f32 %v5636, %v6276
        %v6405 = vadd.f32 %v5637, %v6277
        %v6406 = vadd.f32 %v5638, %v6278
        %v6407 = vadd.f32 %v5639, %v6279
        %v6408 = vadd.f32 %v5640, %v6280
        %v6409 = vadd.f32 %v5641, %v6281
        %v6410 = vadd.f32 %v5642, %v6282
        %v6411 = vadd.f32 %v5643, %v6283
        %v6412 = vadd.f32 %v5644, %v6284
        %v6413 = vadd.f32 %v5645, %v6285
        %v6414 = vadd.f32 %v5646, %v6286
        %v6415 = vadd.f32 %v5647, %v6287
        %v6416 = vadd.f32 %v5648, %v6288
        %v6417 = vadd.f32 %v5649, %v6289
        %v6418 = vadd.f32 %v5650, %v6290
        %v6419 = vadd.f32 %v5651, %v6291
        %v6420 = vadd.f32 %v5652, %v6292
        %v6421 = vadd.f32 %v5653, %v6293
        %v6422 = vadd.f32 %v5654, %v6294
        %v6423 = vadd.f32 %v5655, %v6295
        %v6424 = vadd.f32 %v5656, %v6296
        %v6425 = vadd.f32 %v5657, %v6297
        %v6426 = vadd.f32 %v5658, %v6298
        %v6427 = vadd.f32 %v5659, %v6299
        %v6428 = vadd.f32 %v5660, %v6300
        %v6429 = vadd.f32 %v5661, %v6301
        %v6430 = vadd.f32 %v5662, %v6302
        %v6431 = vadd.f32 %v5663, %v6303
        %v6432 = vadd.f32 %v5664, %v6304
        %v6433 = vadd.f32 %v5665, %v6305
        %v6434 = vadd.f32 %v5666, %v6306
        %v6435 = vadd.f32 %v5667, %v6307
        %v6436 = vadd.f32 %v5668, %v6308
        %v6437 = vadd.f32 %v5669, %v6309
        %v6438 = vadd.f32 %v5670, %v6310
        %v6439 = vadd.f32 %v5671, %v6311
        %v6440 = vadd.f32 %v5672, %v6312
        %v6441 = vadd.f32 %v5673, %v6313
        %v6442 = vadd.f32 %v5674, %v6314
        %v6443 = vadd.f32 %v5675, %v6315
        %v6444 = vadd.f32 %v5676, %v6316
        %v6445 = vadd.f32 %v5677, %v6317
        %v6446 = vadd.f32 %v5678, %v6318
        %v6447 = vadd.f32 %v5679, %v6319
        %v6448 = vadd.f32 %v5680, %v6320
        %v6449 = vadd.f32 %v5681, %v6321
        %v6450 = vadd.f32 %v5682, %v6322
        %v6451 = vadd.f32 %v5683, %v6323
        %v6452 = vadd.f32 %v5684, %v6324
        %v6453 = vadd.f32 %v5685, %v6325
        %v6454 = vadd.f32 %v5686, %v6326
        %v6455 = vadd.f32 %v5687, %v6327
        %v6456 = vadd.f32 %v5688, %v6328
        %v6457 = vadd.f32 %v5689, %v6329
        %v6458 = vadd.f32 %v5690, %v6330
        %v6459 = vadd.f32 %v5691, %v6331
        %v6460 = vadd.f32 %v5692, %v6332
        %v6461 = vadd.f32 %v5693, %v6333
        %v6462 = vadd.f32 %v5694, %v6334
        %v6463 = vadd.f32 %v5695, %v6335
        %v6464 = vadd.f32 %v5696, %v6336
        %v6465 = vadd.f32 %v5697, %v6337
        %v6466 = vadd.f32 %v5698, %v6338
        %v6467 = vadd.f32 %v5699, %v6339
        %v6468 = vadd.f32 %v5700, %v6340
        %v6469 = vadd.f32 %v5701, %v6341
        %v6470 = vadd.f32 %v5702, %v6342
        %v6471 = vadd.f32 %v5703, %v6343
        %v6472 = vadd.f32 %v5704, %v6344
        %v6473 = vadd.f32 %v5705, %v6345
        %v6474 = vadd.f32 %v5706, %v6346
        %v6475 = vadd.f32 %v5707, %v6347
        %v6476 = vadd.f32 %v5708, %v6348
        %v6477 = vadd.f32 %v5709, %v6349
        %v6478 = vadd.f32 %v5710, %v6350
        %v6479 = vadd.f32 %v5711, %v6351
        %v6480 = vadd.f32 %v5712, %v6352
        %v6481 = vadd.f32 %v5713, %v6353
        %v6482 = vadd.f32 %v5714, %v6354
        %v6483 = vadd.f32 %v5715, %v6355
        %v6484 = vadd.f32 %v5716, %v6356
        %v6485 = vadd.f32 %v5717, %v6357
        %v6486 = vadd.f32 %v5718, %v6358
        %v6487 = vadd.f32 %v5719, %v6359
        %v6488 = vadd.f32 %v5720, %v6360
        %v6489 = vadd.f32 %v5721, %v6361
        %v6490 = vadd.f32 %v5722, %v6362
        %v6491 = vadd.f32 %v5723, %v6363
        %v6492 = vadd.f32 %v5724, %v6364
        %v6493 = vadd.f32 %v5725, %v6365
        %v6494 = vadd.f32 %v5726, %v6366
        %v6495 = vadd.f32 %v5727, %v6367
        %v6496 = vadd.f32 %v5728, %v6368
        %v6497 = vadd.f32 %v5729, %v6369
        %v6498 = vadd.f32 %v5730, %v6370
        %v6499 = vadd.f32 %v5731, %v6371
        %v6500 = vadd.f32 %v5732, %v6372
        %v6501 = vadd.f32 %v5733, %v6373
        %v6502 = vadd.f32 %v5734, %v6374
        %v6503 = vadd.f32 %v5735, %v6375
        %v6504 = vadd.f32 %v5736, %v6376
        %v6505 = vadd.f32 %v5737, %v6377
        %v6506 = vadd.f32 %v5738, %v6378
        %v6507 = vadd.f32 %v5739, %v6379
        %v6508 = vadd.f32 %v5740, %v6380
        %v6509 = vadd.f32 %v5741, %v6381
        %v6510 = vadd.f32 %v5742, %v6382
        %v6511 = vadd.f32 %v5743, %v6383
        %v6512 = vadd.f32 %v5744, %v6384
        %v6513 = vadd.f32 %v5745, %v6385
        %v6514 = vadd.f32 %v5746, %v6386
        %v6515 = vadd.f32 %v5747, %v6387
        %v6516 = vadd.f32 %v5748, %v6388
        %v6517 = vadd.f32 %v5749, %v6389
        %v6518 = vadd.f32 %v5750, %v6390
        %v6519 = vadd.f32 %v5751, %v6391
        %v6520 = vadd.f32 %v5752, %v6392
        %v6521 = vadd.f32 %v5753, %v6393
        %v6522 = vadd.f32 %v5754, %v6394
        %v6523 = vadd.f32 %v5755, %v6395
        %v6524 = vadd.f32 %v5756, %v6396
        %v6525 = vadd.f32 %v5757, %v6397
        %v6526 = vadd.f32 %v5758, %v6398
        %vm6527 = vcmask 64512
        %6528 = vst.msk [vmem:[#allocation4] sm:$0xff] %vm6527, %v6399
        %6529 = vst.msk [vmem:[#allocation4 + $0x8] sm:$0xff] %vm6527, %v6400
        %6530 = vst.msk [vmem:[#allocation4 + $0x10] sm:$0xff] %vm6527, %v6401
        %6531 = vst.msk [vmem:[#allocation4 + $0x18] sm:$0xff] %vm6527, %v6402
        %6532 = vst.msk [vmem:[#allocation4 + $0x20] sm:$0xff] %vm6527, %v6403
        %6533 = vst.msk [vmem:[#allocation4 + $0x28] sm:$0xff] %vm6527, %v6404
        %6534 = vst.msk [vmem:[#allocation4 + $0x30] sm:$0xff] %vm6527, %v6405
        %6535 = vst.msk [vmem:[#allocation4 + $0x38] sm:$0xff] %vm6527, %v6406
        %6536 = vst.msk [vmem:[#allocation4 + $0x40] sm:$0xff] %vm6527, %v6407
        %6537 = vst.msk [vmem:[#allocation4 + $0x48] sm:$0xff] %vm6527, %v6408
        %6538 = vst.msk [vmem:[#allocation4 + $0x50] sm:$0xff] %vm6527, %v6409
        %6539 = vst.msk [vmem:[#allocation4 + $0x58] sm:$0xff] %vm6527, %v6410
        %6540 = vst.msk [vmem:[#allocation4 + $0x60] sm:$0xff] %vm6527, %v6411
        %6541 = vst.msk [vmem:[#allocation4 + $0x68] sm:$0xff] %vm6527, %v6412
        %6542 = vst.msk [vmem:[#allocation4 + $0x70] sm:$0xff] %vm6527, %v6413
        %6543 = vst.msk [vmem:[#allocation4 + $0x78] sm:$0xff] %vm6527, %v6414
        %6544 = vst.msk [vmem:[#allocation4 + $0x80] sm:$0xff] %vm6527, %v6415
        %6545 = vst.msk [vmem:[#allocation4 + $0x88] sm:$0xff] %vm6527, %v6416
        %6546 = vst.msk [vmem:[#allocation4 + $0x90] sm:$0xff] %vm6527, %v6417
        %6547 = vst.msk [vmem:[#allocation4 + $0x98] sm:$0xff] %vm6527, %v6418
        %6548 = vst.msk [vmem:[#allocation4 + $0xa0] sm:$0xff] %vm6527, %v6419
        %6549 = vst.msk [vmem:[#allocation4 + $0xa8] sm:$0xff] %vm6527, %v6420
        %6550 = vst.msk [vmem:[#allocation4 + $0xb0] sm:$0xff] %vm6527, %v6421
        %6551 = vst.msk [vmem:[#allocation4 + $0xb8] sm:$0xff] %vm6527, %v6422
        %6552 = vst.msk [vmem:[#allocation4 + $0xc0] sm:$0xff] %vm6527, %v6423
        %6553 = vst.msk [vmem:[#allocation4 + $0xc8] sm:$0xff] %vm6527, %v6424
        %6554 = vst.msk [vmem:[#allocation4 + $0xd0] sm:$0xff] %vm6527, %v6425
        %6555 = vst.msk [vmem:[#allocation4 + $0xd8] sm:$0xff] %vm6527, %v6426
        %6556 = vst.msk [vmem:[#allocation4 + $0xe0] sm:$0xff] %vm6527, %v6427
        %6557 = vst.msk [vmem:[#allocation4 + $0xe8] sm:$0xff] %vm6527, %v6428
        %6558 = vst.msk [vmem:[#allocation4 + $0xf0] sm:$0xff] %vm6527, %v6429
        %6559 = vst.msk [vmem:[#allocation4 + $0xf8] sm:$0xff] %vm6527, %v6430
        %6560 = vst.msk [vmem:[#allocation4 + $0x100] sm:$0xff] %vm6527, %v6431
        %6561 = vst.msk [vmem:[#allocation4 + $0x108] sm:$0xff] %vm6527, %v6432
        %6562 = vst.msk [vmem:[#allocation4 + $0x110] sm:$0xff] %vm6527, %v6433
        %6563 = vst.msk [vmem:[#allocation4 + $0x118] sm:$0xff] %vm6527, %v6434
        %6564 = vst.msk [vmem:[#allocation4 + $0x120] sm:$0xff] %vm6527, %v6435
        %6565 = vst.msk [vmem:[#allocation4 + $0x128] sm:$0xff] %vm6527, %v6436
        %6566 = vst.msk [vmem:[#allocation4 + $0x130] sm:$0xff] %vm6527, %v6437
        %6567 = vst.msk [vmem:[#allocation4 + $0x138] sm:$0xff] %vm6527, %v6438
        %6568 = vst.msk [vmem:[#allocation4 + $0x140] sm:$0xff] %vm6527, %v6439
        %6569 = vst.msk [vmem:[#allocation4 + $0x148] sm:$0xff] %vm6527, %v6440
        %6570 = vst.msk [vmem:[#allocation4 + $0x150] sm:$0xff] %vm6527, %v6441
        %6571 = vst.msk [vmem:[#allocation4 + $0x158] sm:$0xff] %vm6527, %v6442
        %6572 = vst.msk [vmem:[#allocation4 + $0x160] sm:$0xff] %vm6527, %v6443
        %6573 = vst.msk [vmem:[#allocation4 + $0x168] sm:$0xff] %vm6527, %v6444
        %6574 = vst.msk [vmem:[#allocation4 + $0x170] sm:$0xff] %vm6527, %v6445
        %6575 = vst.msk [vmem:[#allocation4 + $0x178] sm:$0xff] %vm6527, %v6446
        %6576 = vst.msk [vmem:[#allocation4 + $0x180] sm:$0xff] %vm6527, %v6447
        %6577 = vst.msk [vmem:[#allocation4 + $0x188] sm:$0xff] %vm6527, %v6448
        %6578 = vst.msk [vmem:[#allocation4 + $0x190] sm:$0xff] %vm6527, %v6449
        %6579 = vst.msk [vmem:[#allocation4 + $0x198] sm:$0xff] %vm6527, %v6450
        %6580 = vst.msk [vmem:[#allocation4 + $0x1a0] sm:$0xff] %vm6527, %v6451
        %6581 = vst.msk [vmem:[#allocation4 + $0x1a8] sm:$0xff] %vm6527, %v6452
        %6582 = vst.msk [vmem:[#allocation4 + $0x1b0] sm:$0xff] %vm6527, %v6453
        %6583 = vst.msk [vmem:[#allocation4 + $0x1b8] sm:$0xff] %vm6527, %v6454
        %6584 = vst.msk [vmem:[#allocation4 + $0x1c0] sm:$0xff] %vm6527, %v6455
        %6585 = vst.msk [vmem:[#allocation4 + $0x1c8] sm:$0xff] %vm6527, %v6456
        %6586 = vst.msk [vmem:[#allocation4 + $0x1d0] sm:$0xff] %vm6527, %v6457
        %6587 = vst.msk [vmem:[#allocation4 + $0x1d8] sm:$0xff] %vm6527, %v6458
        %6588 = vst.msk [vmem:[#allocation4 + $0x1e0] sm:$0xff] %vm6527, %v6459
        %6589 = vst.msk [vmem:[#allocation4 + $0x1e8] sm:$0xff] %vm6527, %v6460
        %6590 = vst.msk [vmem:[#allocation4 + $0x1f0] sm:$0xff] %vm6527, %v6461
        %6591 = vst.msk [vmem:[#allocation4 + $0x1f8] sm:$0xff] %vm6527, %v6462
        %6592 = vst.msk [vmem:[#allocation4 + $0x200] sm:$0xff] %vm6527, %v6463
        %6593 = vst.msk [vmem:[#allocation4 + $0x208] sm:$0xff] %vm6527, %v6464
        %6594 = vst.msk [vmem:[#allocation4 + $0x210] sm:$0xff] %vm6527, %v6465
        %6595 = vst.msk [vmem:[#allocation4 + $0x218] sm:$0xff] %vm6527, %v6466
        %6596 = vst.msk [vmem:[#allocation4 + $0x220] sm:$0xff] %vm6527, %v6467
        %6597 = vst.msk [vmem:[#allocation4 + $0x228] sm:$0xff] %vm6527, %v6468
        %6598 = vst.msk [vmem:[#allocation4 + $0x230] sm:$0xff] %vm6527, %v6469
        %6599 = vst.msk [vmem:[#allocation4 + $0x238] sm:$0xff] %vm6527, %v6470
        %6600 = vst.msk [vmem:[#allocation4 + $0x240] sm:$0xff] %vm6527, %v6471
        %6601 = vst.msk [vmem:[#allocation4 + $0x248] sm:$0xff] %vm6527, %v6472
        %6602 = vst.msk [vmem:[#allocation4 + $0x250] sm:$0xff] %vm6527, %v6473
        %6603 = vst.msk [vmem:[#allocation4 + $0x258] sm:$0xff] %vm6527, %v6474
        %6604 = vst.msk [vmem:[#allocation4 + $0x260] sm:$0xff] %vm6527, %v6475
        %6605 = vst.msk [vmem:[#allocation4 + $0x268] sm:$0xff] %vm6527, %v6476
        %6606 = vst.msk [vmem:[#allocation4 + $0x270] sm:$0xff] %vm6527, %v6477
        %6607 = vst.msk [vmem:[#allocation4 + $0x278] sm:$0xff] %vm6527, %v6478
        %6608 = vst.msk [vmem:[#allocation4 + $0x280] sm:$0xff] %vm6527, %v6479
        %6609 = vst.msk [vmem:[#allocation4 + $0x288] sm:$0xff] %vm6527, %v6480
        %6610 = vst.msk [vmem:[#allocation4 + $0x290] sm:$0xff] %vm6527, %v6481
        %6611 = vst.msk [vmem:[#allocation4 + $0x298] sm:$0xff] %vm6527, %v6482
        %6612 = vst.msk [vmem:[#allocation4 + $0x2a0] sm:$0xff] %vm6527, %v6483
        %6613 = vst.msk [vmem:[#allocation4 + $0x2a8] sm:$0xff] %vm6527, %v6484
        %6614 = vst.msk [vmem:[#allocation4 + $0x2b0] sm:$0xff] %vm6527, %v6485
        %6615 = vst.msk [vmem:[#allocation4 + $0x2b8] sm:$0xff] %vm6527, %v6486
        %6616 = vst.msk [vmem:[#allocation4 + $0x2c0] sm:$0xff] %vm6527, %v6487
        %6617 = vst.msk [vmem:[#allocation4 + $0x2c8] sm:$0xff] %vm6527, %v6488
        %6618 = vst.msk [vmem:[#allocation4 + $0x2d0] sm:$0xff] %vm6527, %v6489
        %6619 = vst.msk [vmem:[#allocation4 + $0x2d8] sm:$0xff] %vm6527, %v6490
        %6620 = vst.msk [vmem:[#allocation4 + $0x2e0] sm:$0xff] %vm6527, %v6491
        %6621 = vst.msk [vmem:[#allocation4 + $0x2e8] sm:$0xff] %vm6527, %v6492
        %6622 = vst.msk [vmem:[#allocation4 + $0x2f0] sm:$0xff] %vm6527, %v6493
        %6623 = vst.msk [vmem:[#allocation4 + $0x2f8] sm:$0xff] %vm6527, %v6494
        %6624 = vst.msk [vmem:[#allocation4 + $0x300] sm:$0xff] %vm6527, %v6495
        %6625 = vst.msk [vmem:[#allocation4 + $0x308] sm:$0xff] %vm6527, %v6496
        %6626 = vst.msk [vmem:[#allocation4 + $0x310] sm:$0xff] %vm6527, %v6497
        %6627 = vst.msk [vmem:[#allocation4 + $0x318] sm:$0xff] %vm6527, %v6498
        %6628 = vst.msk [vmem:[#allocation4 + $0x320] sm:$0xff] %vm6527, %v6499
        %6629 = vst.msk [vmem:[#allocation4 + $0x328] sm:$0xff] %vm6527, %v6500
        %6630 = vst.msk [vmem:[#allocation4 + $0x330] sm:$0xff] %vm6527, %v6501
        %6631 = vst.msk [vmem:[#allocation4 + $0x338] sm:$0xff] %vm6527, %v6502
        %6632 = vst.msk [vmem:[#allocation4 + $0x340] sm:$0xff] %vm6527, %v6503
        %6633 = vst.msk [vmem:[#allocation4 + $0x348] sm:$0xff] %vm6527, %v6504
        %6634 = vst.msk [vmem:[#allocation4 + $0x350] sm:$0xff] %vm6527, %v6505
        %6635 = vst.msk [vmem:[#allocation4 + $0x358] sm:$0xff] %vm6527, %v6506
        %6636 = vst.msk [vmem:[#allocation4 + $0x360] sm:$0xff] %vm6527, %v6507
        %6637 = vst.msk [vmem:[#allocation4 + $0x368] sm:$0xff] %vm6527, %v6508
        %6638 = vst.msk [vmem:[#allocation4 + $0x370] sm:$0xff] %vm6527, %v6509
        %6639 = vst.msk [vmem:[#allocation4 + $0x378] sm:$0xff] %vm6527, %v6510
        %6640 = vst.msk [vmem:[#allocation4 + $0x380] sm:$0xff] %vm6527, %v6511
        %6641 = vst.msk [vmem:[#allocation4 + $0x388] sm:$0xff] %vm6527, %v6512
        %6642 = vst.msk [vmem:[#allocation4 + $0x390] sm:$0xff] %vm6527, %v6513
        %6643 = vst.msk [vmem:[#allocation4 + $0x398] sm:$0xff] %vm6527, %v6514
        %6644 = vst.msk [vmem:[#allocation4 + $0x3a0] sm:$0xff] %vm6527, %v6515
        %6645 = vst.msk [vmem:[#allocation4 + $0x3a8] sm:$0xff] %vm6527, %v6516
        %6646 = vst.msk [vmem:[#allocation4 + $0x3b0] sm:$0xff] %vm6527, %v6517
        %6647 = vst.msk [vmem:[#allocation4 + $0x3b8] sm:$0xff] %vm6527, %v6518
        %6648 = vst.msk [vmem:[#allocation4 + $0x3c0] sm:$0xff] %vm6527, %v6519
        %6649 = vst.msk [vmem:[#allocation4 + $0x3c8] sm:$0xff] %vm6527, %v6520
        %6650 = vst.msk [vmem:[#allocation4 + $0x3d0] sm:$0xff] %vm6527, %v6521
        %6651 = vst.msk [vmem:[#allocation4 + $0x3d8] sm:$0xff] %vm6527, %v6522
        %6652 = vst.msk [vmem:[#allocation4 + $0x3e0] sm:$0xff] %vm6527, %v6523
        %6653 = vst.msk [vmem:[#allocation4 + $0x3e8] sm:$0xff] %vm6527, %v6524
        %6654 = vst.msk [vmem:[#allocation4 + $0x3f0] sm:$0xff] %vm6527, %v6525
        %6655 = vst.msk [vmem:[#allocation4 + $0x3f8] sm:$0xff] %vm6527, %v6526
        %6656 = vst.msk [vmem:[#allocation2] sm:$0xff] %vm4734, %v2430
        %6657 = vst.msk [vmem:[#allocation2 + $0x8] sm:$0xff] %vm4734, %v2431
        %6658 = vst.msk [vmem:[#allocation2 + $0x10] sm:$0xff] %vm4734, %v2432
        %6659 = vst.msk [vmem:[#allocation2 + $0x18] sm:$0xff] %vm4734, %v2433
        %6660 = vst.msk [vmem:[#allocation2 + $0x20] sm:$0xff] %vm4734, %v2434
        %6661 = vst.msk [vmem:[#allocation2 + $0x28] sm:$0xff] %vm4734, %v2435
        %6662 = vst.msk [vmem:[#allocation2 + $0x30] sm:$0xff] %vm4734, %v2436
        %6663 = vst.msk [vmem:[#allocation2 + $0x38] sm:$0xff] %vm4734, %v2437
        %6664 = vst.msk [vmem:[#allocation2 + $0x40] sm:$0xff] %vm4734, %v2438
        %6665 = vst.msk [vmem:[#allocation2 + $0x48] sm:$0xff] %vm4734, %v2439
        %6666 = vst.msk [vmem:[#allocation2 + $0x50] sm:$0xff] %vm4734, %v2440
        %6667 = vst.msk [vmem:[#allocation2 + $0x58] sm:$0xff] %vm4734, %v2441
        %6668 = vst.msk [vmem:[#allocation2 + $0x60] sm:$0xff] %vm4734, %v2442
        %6669 = vst.msk [vmem:[#allocation2 + $0x68] sm:$0xff] %vm4734, %v2443
        %6670 = vst.msk [vmem:[#allocation2 + $0x70] sm:$0xff] %vm4734, %v2444
        %6671 = vst.msk [vmem:[#allocation2 + $0x78] sm:$0xff] %vm4734, %v2445
        %6672 = vst.msk [vmem:[#allocation2 + $0x80] sm:$0xff] %vm4734, %v2446
        %6673 = vst.msk [vmem:[#allocation2 + $0x88] sm:$0xff] %vm4734, %v2447
        %6674 = vst.msk [vmem:[#allocation2 + $0x90] sm:$0xff] %vm4734, %v2448
        %6675 = vst.msk [vmem:[#allocation2 + $0x98] sm:$0xff] %vm4734, %v2449
        %6676 = vst.msk [vmem:[#allocation2 + $0xa0] sm:$0xff] %vm4734, %v2450
        %6677 = vst.msk [vmem:[#allocation2 + $0xa8] sm:$0xff] %vm4734, %v2451
        %6678 = vst.msk [vmem:[#allocation2 + $0xb0] sm:$0xff] %vm4734, %v2452
        %6679 = vst.msk [vmem:[#allocation2 + $0xb8] sm:$0xff] %vm4734, %v2453
        %6680 = vst.msk [vmem:[#allocation2 + $0xc0] sm:$0xff] %vm4734, %v2454
        %6681 = vst.msk [vmem:[#allocation2 + $0xc8] sm:$0xff] %vm4734, %v2455
        %6682 = vst.msk [vmem:[#allocation2 + $0xd0] sm:$0xff] %vm4734, %v2456
        %6683 = vst.msk [vmem:[#allocation2 + $0xd8] sm:$0xff] %vm4734, %v2457
        %6684 = vst.msk [vmem:[#allocation2 + $0xe0] sm:$0xff] %vm4734, %v2458
        %6685 = vst.msk [vmem:[#allocation2 + $0xe8] sm:$0xff] %vm4734, %v2459
        %6686 = vst.msk [vmem:[#allocation2 + $0xf0] sm:$0xff] %vm4734, %v2460
        %6687 = vst.msk [vmem:[#allocation2 + $0xf8] sm:$0xff] %vm4734, %v2461
        %6688 = vst.msk [vmem:[#allocation2 + $0x100] sm:$0xff] %vm4734, %v2462
        %6689 = vst.msk [vmem:[#allocation2 + $0x108] sm:$0xff] %vm4734, %v2463
        %6690 = vst.msk [vmem:[#allocation2 + $0x110] sm:$0xff] %vm4734, %v2464
        %6691 = vst.msk [vmem:[#allocation2 + $0x118] sm:$0xff] %vm4734, %v2465
        %6692 = vst.msk [vmem:[#allocation2 + $0x120] sm:$0xff] %vm4734, %v2466
        %6693 = vst.msk [vmem:[#allocation2 + $0x128] sm:$0xff] %vm4734, %v2467
        %6694 = vst.msk [vmem:[#allocation2 + $0x130] sm:$0xff] %vm4734, %v2468
        %6695 = vst.msk [vmem:[#allocation2 + $0x138] sm:$0xff] %vm4734, %v2469
        %6696 = vst.msk [vmem:[#allocation2 + $0x140] sm:$0xff] %vm4734, %v2470
        %6697 = vst.msk [vmem:[#allocation2 + $0x148] sm:$0xff] %vm4734, %v2471
        %6698 = vst.msk [vmem:[#allocation2 + $0x150] sm:$0xff] %vm4734, %v2472
        %6699 = vst.msk [vmem:[#allocation2 + $0x158] sm:$0xff] %vm4734, %v2473
        %6700 = vst.msk [vmem:[#allocation2 + $0x160] sm:$0xff] %vm4734, %v2474
        %6701 = vst.msk [vmem:[#allocation2 + $0x168] sm:$0xff] %vm4734, %v2475
        %6702 = vst.msk [vmem:[#allocation2 + $0x170] sm:$0xff] %vm4734, %v2476
        %6703 = vst.msk [vmem:[#allocation2 + $0x178] sm:$0xff] %vm4734, %v2477
        %6704 = vst.msk [vmem:[#allocation2 + $0x180] sm:$0xff] %vm4734, %v2478
        %6705 = vst.msk [vmem:[#allocation2 + $0x188] sm:$0xff] %vm4734, %v2479
        %6706 = vst.msk [vmem:[#allocation2 + $0x190] sm:$0xff] %vm4734, %v2480
        %6707 = vst.msk [vmem:[#allocation2 + $0x198] sm:$0xff] %vm4734, %v2481
        %6708 = vst.msk [vmem:[#allocation2 + $0x1a0] sm:$0xff] %vm4734, %v2482
        %6709 = vst.msk [vmem:[#allocation2 + $0x1a8] sm:$0xff] %vm4734, %v2483
        %6710 = vst.msk [vmem:[#allocation2 + $0x1b0] sm:$0xff] %vm4734, %v2484
        %6711 = vst.msk [vmem:[#allocation2 + $0x1b8] sm:$0xff] %vm4734, %v2485
        %6712 = vst.msk [vmem:[#allocation2 + $0x1c0] sm:$0xff] %vm4734, %v2486
        %6713 = vst.msk [vmem:[#allocation2 + $0x1c8] sm:$0xff] %vm4734, %v2487
        %6714 = vst.msk [vmem:[#allocation2 + $0x1d0] sm:$0xff] %vm4734, %v2488
        %6715 = vst.msk [vmem:[#allocation2 + $0x1d8] sm:$0xff] %vm4734, %v2489
        %6716 = vst.msk [vmem:[#allocation2 + $0x1e0] sm:$0xff] %vm4734, %v2490
        %6717 = vst.msk [vmem:[#allocation2 + $0x1e8] sm:$0xff] %vm4734, %v2491
        %6718 = vst.msk [vmem:[#allocation2 + $0x1f0] sm:$0xff] %vm4734, %v2492
        %6719 = vst.msk [vmem:[#allocation2 + $0x1f8] sm:$0xff] %vm4734, %v2493
        %6720 = vst.msk [vmem:[#allocation2 + $0x200] sm:$0xff] %vm4734, %v2494
        %6721 = vst.msk [vmem:[#allocation2 + $0x208] sm:$0xff] %vm4734, %v2495
        %6722 = vst.msk [vmem:[#allocation2 + $0x210] sm:$0xff] %vm4734, %v2496
        %6723 = vst.msk [vmem:[#allocation2 + $0x218] sm:$0xff] %vm4734, %v2497
        %6724 = vst.msk [vmem:[#allocation2 + $0x220] sm:$0xff] %vm4734, %v2498
        %6725 = vst.msk [vmem:[#allocation2 + $0x228] sm:$0xff] %vm4734, %v2499
        %6726 = vst.msk [vmem:[#allocation2 + $0x230] sm:$0xff] %vm4734, %v2500
        %6727 = vst.msk [vmem:[#allocation2 + $0x238] sm:$0xff] %vm4734, %v2501
        %6728 = vst.msk [vmem:[#allocation2 + $0x240] sm:$0xff] %vm4734, %v2502
        %6729 = vst.msk [vmem:[#allocation2 + $0x248] sm:$0xff] %vm4734, %v2503
        %6730 = vst.msk [vmem:[#allocation2 + $0x250] sm:$0xff] %vm4734, %v2504
        %6731 = vst.msk [vmem:[#allocation2 + $0x258] sm:$0xff] %vm4734, %v2505
        %6732 = vst.msk [vmem:[#allocation2 + $0x260] sm:$0xff] %vm4734, %v2506
        %6733 = vst.msk [vmem:[#allocation2 + $0x268] sm:$0xff] %vm4734, %v2507
        %6734 = vst.msk [vmem:[#allocation2 + $0x270] sm:$0xff] %vm4734, %v2508
        %6735 = vst.msk [vmem:[#allocation2 + $0x278] sm:$0xff] %vm4734, %v2509
        %6736 = vst.msk [vmem:[#allocation2 + $0x280] sm:$0xff] %vm4734, %v2510
        %6737 = vst.msk [vmem:[#allocation2 + $0x288] sm:$0xff] %vm4734, %v2511
        %6738 = vst.msk [vmem:[#allocation2 + $0x290] sm:$0xff] %vm4734, %v2512
        %6739 = vst.msk [vmem:[#allocation2 + $0x298] sm:$0xff] %vm4734, %v2513
        %6740 = vst.msk [vmem:[#allocation2 + $0x2a0] sm:$0xff] %vm4734, %v2514
        %6741 = vst.msk [vmem:[#allocation2 + $0x2a8] sm:$0xff] %vm4734, %v2515
        %6742 = vst.msk [vmem:[#allocation2 + $0x2b0] sm:$0xff] %vm4734, %v2516
        %6743 = vst.msk [vmem:[#allocation2 + $0x2b8] sm:$0xff] %vm4734, %v2517
        %6744 = vst.msk [vmem:[#allocation2 + $0x2c0] sm:$0xff] %vm4734, %v2518
        %6745 = vst.msk [vmem:[#allocation2 + $0x2c8] sm:$0xff] %vm4734, %v2519
        %6746 = vst.msk [vmem:[#allocation2 + $0x2d0] sm:$0xff] %vm4734, %v2520
        %6747 = vst.msk [vmem:[#allocation2 + $0x2d8] sm:$0xff] %vm4734, %v2521
        %6748 = vst.msk [vmem:[#allocation2 + $0x2e0] sm:$0xff] %vm4734, %v2522
        %6749 = vst.msk [vmem:[#allocation2 + $0x2e8] sm:$0xff] %vm4734, %v2523
        %6750 = vst.msk [vmem:[#allocation2 + $0x2f0] sm:$0xff] %vm4734, %v2524
        %6751 = vst.msk [vmem:[#allocation2 + $0x2f8] sm:$0xff] %vm4734, %v2525
        %6752 = vst.msk [vmem:[#allocation2 + $0x300] sm:$0xff] %vm4734, %v2526
        %6753 = vst.msk [vmem:[#allocation2 + $0x308] sm:$0xff] %vm4734, %v2527
        %6754 = vst.msk [vmem:[#allocation2 + $0x310] sm:$0xff] %vm4734, %v2528
        %6755 = vst.msk [vmem:[#allocation2 + $0x318] sm:$0xff] %vm4734, %v2529
        %6756 = vst.msk [vmem:[#allocation2 + $0x320] sm:$0xff] %vm4734, %v2530
        %6757 = vst.msk [vmem:[#allocation2 + $0x328] sm:$0xff] %vm4734, %v2531
        %6758 = vst.msk [vmem:[#allocation2 + $0x330] sm:$0xff] %vm4734, %v2532
        %6759 = vst.msk [vmem:[#allocation2 + $0x338] sm:$0xff] %vm4734, %v2533
        %6760 = vst.msk [vmem:[#allocation2 + $0x340] sm:$0xff] %vm4734, %v2534
        %6761 = vst.msk [vmem:[#allocation2 + $0x348] sm:$0xff] %vm4734, %v2535
        %6762 = vst.msk [vmem:[#allocation2 + $0x350] sm:$0xff] %vm4734, %v2536
        %6763 = vst.msk [vmem:[#allocation2 + $0x358] sm:$0xff] %vm4734, %v2537
        %6764 = vst.msk [vmem:[#allocation2 + $0x360] sm:$0xff] %vm4734, %v2538
        %6765 = vst.msk [vmem:[#allocation2 + $0x368] sm:$0xff] %vm4734, %v2539
        %6766 = vst.msk [vmem:[#allocation2 + $0x370] sm:$0xff] %vm4734, %v2540
        %6767 = vst.msk [vmem:[#allocation2 + $0x378] sm:$0xff] %vm4734, %v2541
        %6768 = vst.msk [vmem:[#allocation2 + $0x380] sm:$0xff] %vm4734, %v2542
        %6769 = vst.msk [vmem:[#allocation2 + $0x388] sm:$0xff] %vm4734, %v2543
        %6770 = vst.msk [vmem:[#allocation2 + $0x390] sm:$0xff] %vm4734, %v2544
        %6771 = vst.msk [vmem:[#allocation2 + $0x398] sm:$0xff] %vm4734, %v2545
        %6772 = vst.msk [vmem:[#allocation2 + $0x3a0] sm:$0xff] %vm4734, %v2546
        %6773 = vst.msk [vmem:[#allocation2 + $0x3a8] sm:$0xff] %vm4734, %v2547
        %6774 = vst.msk [vmem:[#allocation2 + $0x3b0] sm:$0xff] %vm4734, %v2548
        %6775 = vst.msk [vmem:[#allocation2 + $0x3b8] sm:$0xff] %vm4734, %v2549
        %6776 = vst.msk [vmem:[#allocation2 + $0x3c0] sm:$0xff] %vm4734, %v2550
        %6777 = vst.msk [vmem:[#allocation2 + $0x3c8] sm:$0xff] %vm4734, %v2551
        %6778 = vst.msk [vmem:[#allocation2 + $0x3d0] sm:$0xff] %vm4734, %v2552
        %6779 = vst.msk [vmem:[#allocation2 + $0x3d8] sm:$0xff] %vm4734, %v2553
        %6780 = vst.msk [vmem:[#allocation2 + $0x3e0] sm:$0xff] %vm4734, %v2554
        %6781 = vst.msk [vmem:[#allocation2 + $0x3e8] sm:$0xff] %vm4734, %v2555
        %6782 = vst.msk [vmem:[#allocation2 + $0x3f0] sm:$0xff] %vm4734, %v2556
        %6783 = vst.msk [vmem:[#allocation2 + $0x3f8] sm:$0xff] %vm4734, %v2557
        %p6784 = scmp.eq.s32.totalorder %s22, 3
        // Predicated region
        $region37: #{tpu_custom_call.1} parent=31 // pred_check
          %p6785 = pneg %p6784
        $region38: #{tpu_custom_call.1} parent=31 // pred_check_branch
          %6787 = sbr.rel (%p6785) target = $region40
        $region39: #{tpu_custom_call.1} parent=31 // pred_region
          %v6788 = vld [vmem:[#allocation3] sm:$0xff]
          %v6789 = vld [vmem:[#allocation3 + $0x8] sm:$0xff]
          %v6790 = vld [vmem:[#allocation3 + $0x10] sm:$0xff]
          %v6791 = vld [vmem:[#allocation3 + $0x18] sm:$0xff]
          %v6792 = vld [vmem:[#allocation3 + $0x20] sm:$0xff]
          %v6793 = vld [vmem:[#allocation3 + $0x28] sm:$0xff]
          %v6794 = vld [vmem:[#allocation3 + $0x30] sm:$0xff]
          %v6795 = vld [vmem:[#allocation3 + $0x38] sm:$0xff]
          %v6796 = vld [vmem:[#allocation3 + $0x40] sm:$0xff]
          %v6797 = vld [vmem:[#allocation3 + $0x48] sm:$0xff]
          %v6798 = vld [vmem:[#allocation3 + $0x50] sm:$0xff]
          %v6799 = vld [vmem:[#allocation3 + $0x58] sm:$0xff]
          %v6800 = vld [vmem:[#allocation3 + $0x60] sm:$0xff]
          %v6801 = vld [vmem:[#allocation3 + $0x68] sm:$0xff]
          %v6802 = vld [vmem:[#allocation3 + $0x70] sm:$0xff]
          %v6803 = vld [vmem:[#allocation3 + $0x78] sm:$0xff]
          %v6804 = vld [vmem:[#allocation3 + $0x80] sm:$0xff]
          %v6805 = vld [vmem:[#allocation3 + $0x88] sm:$0xff]
          %v6806 = vld [vmem:[#allocation3 + $0x90] sm:$0xff]
          %v6807 = vld [vmem:[#allocation3 + $0x98] sm:$0xff]
          %v6808 = vld [vmem:[#allocation3 + $0xa0] sm:$0xff]
          %v6809 = vld [vmem:[#allocation3 + $0xa8] sm:$0xff]
          %v6810 = vld [vmem:[#allocation3 + $0xb0] sm:$0xff]
          %v6811 = vld [vmem:[#allocation3 + $0xb8] sm:$0xff]
          %v6812 = vld [vmem:[#allocation3 + $0xc0] sm:$0xff]
          %v6813 = vld [vmem:[#allocation3 + $0xc8] sm:$0xff]
          %v6814 = vld [vmem:[#allocation3 + $0xd0] sm:$0xff]
          %v6815 = vld [vmem:[#allocation3 + $0xd8] sm:$0xff]
          %v6816 = vld [vmem:[#allocation3 + $0xe0] sm:$0xff]
          %v6817 = vld [vmem:[#allocation3 + $0xe8] sm:$0xff]
          %v6818 = vld [vmem:[#allocation3 + $0xf0] sm:$0xff]
          %v6819 = vld [vmem:[#allocation3 + $0xf8] sm:$0xff]
          %v6820 = vld [vmem:[#allocation3 + $0x100] sm:$0xff]
          %v6821 = vld [vmem:[#allocation3 + $0x108] sm:$0xff]
          %v6822 = vld [vmem:[#allocation3 + $0x110] sm:$0xff]
          %v6823 = vld [vmem:[#allocation3 + $0x118] sm:$0xff]
          %v6824 = vld [vmem:[#allocation3 + $0x120] sm:$0xff]
          %v6825 = vld [vmem:[#allocation3 + $0x128] sm:$0xff]
          %v6826 = vld [vmem:[#allocation3 + $0x130] sm:$0xff]
          %v6827 = vld [vmem:[#allocation3 + $0x138] sm:$0xff]
          %v6828 = vld [vmem:[#allocation3 + $0x140] sm:$0xff]
          %v6829 = vld [vmem:[#allocation3 + $0x148] sm:$0xff]
          %v6830 = vld [vmem:[#allocation3 + $0x150] sm:$0xff]
          %v6831 = vld [vmem:[#allocation3 + $0x158] sm:$0xff]
          %v6832 = vld [vmem:[#allocation3 + $0x160] sm:$0xff]
          %v6833 = vld [vmem:[#allocation3 + $0x168] sm:$0xff]
          %v6834 = vld [vmem:[#allocation3 + $0x170] sm:$0xff]
          %v6835 = vld [vmem:[#allocation3 + $0x178] sm:$0xff]
          %v6836 = vld [vmem:[#allocation3 + $0x180] sm:$0xff]
          %v6837 = vld [vmem:[#allocation3 + $0x188] sm:$0xff]
          %v6838 = vld [vmem:[#allocation3 + $0x190] sm:$0xff]
          %v6839 = vld [vmem:[#allocation3 + $0x198] sm:$0xff]
          %v6840 = vld [vmem:[#allocation3 + $0x1a0] sm:$0xff]
          %v6841 = vld [vmem:[#allocation3 + $0x1a8] sm:$0xff]
          %v6842 = vld [vmem:[#allocation3 + $0x1b0] sm:$0xff]
          %v6843 = vld [vmem:[#allocation3 + $0x1b8] sm:$0xff]
          %v6844 = vld [vmem:[#allocation3 + $0x1c0] sm:$0xff]
          %v6845 = vld [vmem:[#allocation3 + $0x1c8] sm:$0xff]
          %v6846 = vld [vmem:[#allocation3 + $0x1d0] sm:$0xff]
          %v6847 = vld [vmem:[#allocation3 + $0x1d8] sm:$0xff]
          %v6848 = vld [vmem:[#allocation3 + $0x1e0] sm:$0xff]
          %v6849 = vld [vmem:[#allocation3 + $0x1e8] sm:$0xff]
          %v6850 = vld [vmem:[#allocation3 + $0x1f0] sm:$0xff]
          %v6851 = vld [vmem:[#allocation3 + $0x1f8] sm:$0xff]
          %v6852 = vld [vmem:[#allocation3 + $0x200] sm:$0xff]
          %v6853 = vld [vmem:[#allocation3 + $0x208] sm:$0xff]
          %v6854 = vld [vmem:[#allocation3 + $0x210] sm:$0xff]
          %v6855 = vld [vmem:[#allocation3 + $0x218] sm:$0xff]
          %v6856 = vld [vmem:[#allocation3 + $0x220] sm:$0xff]
          %v6857 = vld [vmem:[#allocation3 + $0x228] sm:$0xff]
          %v6858 = vld [vmem:[#allocation3 + $0x230] sm:$0xff]
          %v6859 = vld [vmem:[#allocation3 + $0x238] sm:$0xff]
          %v6860 = vld [vmem:[#allocation3 + $0x240] sm:$0xff]
          %v6861 = vld [vmem:[#allocation3 + $0x248] sm:$0xff]
          %v6862 = vld [vmem:[#allocation3 + $0x250] sm:$0xff]
          %v6863 = vld [vmem:[#allocation3 + $0x258] sm:$0xff]
          %v6864 = vld [vmem:[#allocation3 + $0x260] sm:$0xff]
          %v6865 = vld [vmem:[#allocation3 + $0x268] sm:$0xff]
          %v6866 = vld [vmem:[#allocation3 + $0x270] sm:$0xff]
          %v6867 = vld [vmem:[#allocation3 + $0x278] sm:$0xff]
          %v6868 = vld [vmem:[#allocation3 + $0x280] sm:$0xff]
          %v6869 = vld [vmem:[#allocation3 + $0x288] sm:$0xff]
          %v6870 = vld [vmem:[#allocation3 + $0x290] sm:$0xff]
          %v6871 = vld [vmem:[#allocation3 + $0x298] sm:$0xff]
          %v6872 = vld [vmem:[#allocation3 + $0x2a0] sm:$0xff]
          %v6873 = vld [vmem:[#allocation3 + $0x2a8] sm:$0xff]
          %v6874 = vld [vmem:[#allocation3 + $0x2b0] sm:$0xff]
          %v6875 = vld [vmem:[#allocation3 + $0x2b8] sm:$0xff]
          %v6876 = vld [vmem:[#allocation3 + $0x2c0] sm:$0xff]
          %v6877 = vld [vmem:[#allocation3 + $0x2c8] sm:$0xff]
          %v6878 = vld [vmem:[#allocation3 + $0x2d0] sm:$0xff]
          %v6879 = vld [vmem:[#allocation3 + $0x2d8] sm:$0xff]
          %v6880 = vld [vmem:[#allocation3 + $0x2e0] sm:$0xff]
          %v6881 = vld [vmem:[#allocation3 + $0x2e8] sm:$0xff]
          %v6882 = vld [vmem:[#allocation3 + $0x2f0] sm:$0xff]
          %v6883 = vld [vmem:[#allocation3 + $0x2f8] sm:$0xff]
          %v6884 = vld [vmem:[#allocation3 + $0x300] sm:$0xff]
          %v6885 = vld [vmem:[#allocation3 + $0x308] sm:$0xff]
          %v6886 = vld [vmem:[#allocation3 + $0x310] sm:$0xff]
          %v6887 = vld [vmem:[#allocation3 + $0x318] sm:$0xff]
          %v6888 = vld [vmem:[#allocation3 + $0x320] sm:$0xff]
          %v6889 = vld [vmem:[#allocation3 + $0x328] sm:$0xff]
          %v6890 = vld [vmem:[#allocation3 + $0x330] sm:$0xff]
          %v6891 = vld [vmem:[#allocation3 + $0x338] sm:$0xff]
          %v6892 = vld [vmem:[#allocation3 + $0x340] sm:$0xff]
          %v6893 = vld [vmem:[#allocation3 + $0x348] sm:$0xff]
          %v6894 = vld [vmem:[#allocation3 + $0x350] sm:$0xff]
          %v6895 = vld [vmem:[#allocation3 + $0x358] sm:$0xff]
          %v6896 = vld [vmem:[#allocation3 + $0x360] sm:$0xff]
          %v6897 = vld [vmem:[#allocation3 + $0x368] sm:$0xff]
          %v6898 = vld [vmem:[#allocation3 + $0x370] sm:$0xff]
          %v6899 = vld [vmem:[#allocation3 + $0x378] sm:$0xff]
          %v6900 = vld [vmem:[#allocation3 + $0x380] sm:$0xff]
          %v6901 = vld [vmem:[#allocation3 + $0x388] sm:$0xff]
          %v6902 = vld [vmem:[#allocation3 + $0x390] sm:$0xff]
          %v6903 = vld [vmem:[#allocation3 + $0x398] sm:$0xff]
          %v6904 = vld [vmem:[#allocation3 + $0x3a0] sm:$0xff]
          %v6905 = vld [vmem:[#allocation3 + $0x3a8] sm:$0xff]
          %v6906 = vld [vmem:[#allocation3 + $0x3b0] sm:$0xff]
          %v6907 = vld [vmem:[#allocation3 + $0x3b8] sm:$0xff]
          %v6908 = vld [vmem:[#allocation3 + $0x3c0] sm:$0xff]
          %v6909 = vld [vmem:[#allocation3 + $0x3c8] sm:$0xff]
          %v6910 = vld [vmem:[#allocation3 + $0x3d0] sm:$0xff]
          %v6911 = vld [vmem:[#allocation3 + $0x3d8] sm:$0xff]
          %v6912 = vld [vmem:[#allocation3 + $0x3e0] sm:$0xff]
          %v6913 = vld [vmem:[#allocation3 + $0x3e8] sm:$0xff]
          %v6914 = vld [vmem:[#allocation3 + $0x3f0] sm:$0xff]
          %v6915 = vld [vmem:[#allocation3 + $0x3f8] sm:$0xff]
          %v6916 = vld [vmem:[#allocation4] sm:$0xff]
          %v6917 = vld [vmem:[#allocation4 + $0x8] sm:$0xff]
          %v6918 = vld [vmem:[#allocation4 + $0x10] sm:$0xff]
          %v6919 = vld [vmem:[#allocation4 + $0x18] sm:$0xff]
          %v6920 = vld [vmem:[#allocation4 + $0x20] sm:$0xff]
          %v6921 = vld [vmem:[#allocation4 + $0x28] sm:$0xff]
          %v6922 = vld [vmem:[#allocation4 + $0x30] sm:$0xff]
          %v6923 = vld [vmem:[#allocation4 + $0x38] sm:$0xff]
          %v6924 = vld [vmem:[#allocation4 + $0x40] sm:$0xff]
          %v6925 = vld [vmem:[#allocation4 + $0x48] sm:$0xff]
          %v6926 = vld [vmem:[#allocation4 + $0x50] sm:$0xff]
          %v6927 = vld [vmem:[#allocation4 + $0x58] sm:$0xff]
          %v6928 = vld [vmem:[#allocation4 + $0x60] sm:$0xff]
          %v6929 = vld [vmem:[#allocation4 + $0x68] sm:$0xff]
          %v6930 = vld [vmem:[#allocation4 + $0x70] sm:$0xff]
          %v6931 = vld [vmem:[#allocation4 + $0x78] sm:$0xff]
          %v6932 = vld [vmem:[#allocation4 + $0x80] sm:$0xff]
          %v6933 = vld [vmem:[#allocation4 + $0x88] sm:$0xff]
          %v6934 = vld [vmem:[#allocation4 + $0x90] sm:$0xff]
          %v6935 = vld [vmem:[#allocation4 + $0x98] sm:$0xff]
          %v6936 = vld [vmem:[#allocation4 + $0xa0] sm:$0xff]
          %v6937 = vld [vmem:[#allocation4 + $0xa8] sm:$0xff]
          %v6938 = vld [vmem:[#allocation4 + $0xb0] sm:$0xff]
          %v6939 = vld [vmem:[#allocation4 + $0xb8] sm:$0xff]
          %v6940 = vld [vmem:[#allocation4 + $0xc0] sm:$0xff]
          %v6941 = vld [vmem:[#allocation4 + $0xc8] sm:$0xff]
          %v6942 = vld [vmem:[#allocation4 + $0xd0] sm:$0xff]
          %v6943 = vld [vmem:[#allocation4 + $0xd8] sm:$0xff]
          %v6944 = vld [vmem:[#allocation4 + $0xe0] sm:$0xff]
          %v6945 = vld [vmem:[#allocation4 + $0xe8] sm:$0xff]
          %v6946 = vld [vmem:[#allocation4 + $0xf0] sm:$0xff]
          %v6947 = vld [vmem:[#allocation4 + $0xf8] sm:$0xff]
          %v6948 = vld [vmem:[#allocation4 + $0x100] sm:$0xff]
          %v6949 = vld [vmem:[#allocation4 + $0x108] sm:$0xff]
          %v6950 = vld [vmem:[#allocation4 + $0x110] sm:$0xff]
          %v6951 = vld [vmem:[#allocation4 + $0x118] sm:$0xff]
          %v6952 = vld [vmem:[#allocation4 + $0x120] sm:$0xff]
          %v6953 = vld [vmem:[#allocation4 + $0x128] sm:$0xff]
          %v6954 = vld [vmem:[#allocation4 + $0x130] sm:$0xff]
          %v6955 = vld [vmem:[#allocation4 + $0x138] sm:$0xff]
          %v6956 = vld [vmem:[#allocation4 + $0x140] sm:$0xff]
          %v6957 = vld [vmem:[#allocation4 + $0x148] sm:$0xff]
          %v6958 = vld [vmem:[#allocation4 + $0x150] sm:$0xff]
          %v6959 = vld [vmem:[#allocation4 + $0x158] sm:$0xff]
          %v6960 = vld [vmem:[#allocation4 + $0x160] sm:$0xff]
          %v6961 = vld [vmem:[#allocation4 + $0x168] sm:$0xff]
          %v6962 = vld [vmem:[#allocation4 + $0x170] sm:$0xff]
          %v6963 = vld [vmem:[#allocation4 + $0x178] sm:$0xff]
          %v6964 = vld [vmem:[#allocation4 + $0x180] sm:$0xff]
          %v6965 = vld [vmem:[#allocation4 + $0x188] sm:$0xff]
          %v6966 = vld [vmem:[#allocation4 + $0x190] sm:$0xff]
          %v6967 = vld [vmem:[#allocation4 + $0x198] sm:$0xff]
          %v6968 = vld [vmem:[#allocation4 + $0x1a0] sm:$0xff]
          %v6969 = vld [vmem:[#allocation4 + $0x1a8] sm:$0xff]
          %v6970 = vld [vmem:[#allocation4 + $0x1b0] sm:$0xff]
          %v6971 = vld [vmem:[#allocation4 + $0x1b8] sm:$0xff]
          %v6972 = vld [vmem:[#allocation4 + $0x1c0] sm:$0xff]
          %v6973 = vld [vmem:[#allocation4 + $0x1c8] sm:$0xff]
          %v6974 = vld [vmem:[#allocation4 + $0x1d0] sm:$0xff]
          %v6975 = vld [vmem:[#allocation4 + $0x1d8] sm:$0xff]
          %v6976 = vld [vmem:[#allocation4 + $0x1e0] sm:$0xff]
          %v6977 = vld [vmem:[#allocation4 + $0x1e8] sm:$0xff]
          %v6978 = vld [vmem:[#allocation4 + $0x1f0] sm:$0xff]
          %v6979 = vld [vmem:[#allocation4 + $0x1f8] sm:$0xff]
          %v6980 = vld [vmem:[#allocation4 + $0x200] sm:$0xff]
          %v6981 = vld [vmem:[#allocation4 + $0x208] sm:$0xff]
          %v6982 = vld [vmem:[#allocation4 + $0x210] sm:$0xff]
          %v6983 = vld [vmem:[#allocation4 + $0x218] sm:$0xff]
          %v6984 = vld [vmem:[#allocation4 + $0x220] sm:$0xff]
          %v6985 = vld [vmem:[#allocation4 + $0x228] sm:$0xff]
          %v6986 = vld [vmem:[#allocation4 + $0x230] sm:$0xff]
          %v6987 = vld [vmem:[#allocation4 + $0x238] sm:$0xff]
          %v6988 = vld [vmem:[#allocation4 + $0x240] sm:$0xff]
          %v6989 = vld [vmem:[#allocation4 + $0x248] sm:$0xff]
          %v6990 = vld [vmem:[#allocation4 + $0x250] sm:$0xff]
          %v6991 = vld [vmem:[#allocation4 + $0x258] sm:$0xff]
          %v6992 = vld [vmem:[#allocation4 + $0x260] sm:$0xff]
          %v6993 = vld [vmem:[#allocation4 + $0x268] sm:$0xff]
          %v6994 = vld [vmem:[#allocation4 + $0x270] sm:$0xff]
          %v6995 = vld [vmem:[#allocation4 + $0x278] sm:$0xff]
          %v6996 = vld [vmem:[#allocation4 + $0x280] sm:$0xff]
          %v6997 = vld [vmem:[#allocation4 + $0x288] sm:$0xff]
          %v6998 = vld [vmem:[#allocation4 + $0x290] sm:$0xff]
          %v6999 = vld [vmem:[#allocation4 + $0x298] sm:$0xff]
          %v7000 = vld [vmem:[#allocation4 + $0x2a0] sm:$0xff]
          %v7001 = vld [vmem:[#allocation4 + $0x2a8] sm:$0xff]
          %v7002 = vld [vmem:[#allocation4 + $0x2b0] sm:$0xff]
          %v7003 = vld [vmem:[#allocation4 + $0x2b8] sm:$0xff]
          %v7004 = vld [vmem:[#allocation4 + $0x2c0] sm:$0xff]
          %v7005 = vld [vmem:[#allocation4 + $0x2c8] sm:$0xff]
          %v7006 = vld [vmem:[#allocation4 + $0x2d0] sm:$0xff]
          %v7007 = vld [vmem:[#allocation4 + $0x2d8] sm:$0xff]
          %v7008 = vld [vmem:[#allocation4 + $0x2e0] sm:$0xff]
          %v7009 = vld [vmem:[#allocation4 + $0x2e8] sm:$0xff]
          %v7010 = vld [vmem:[#allocation4 + $0x2f0] sm:$0xff]
          %v7011 = vld [vmem:[#allocation4 + $0x2f8] sm:$0xff]
          %v7012 = vld [vmem:[#allocation4 + $0x300] sm:$0xff]
          %v7013 = vld [vmem:[#allocation4 + $0x308] sm:$0xff]
          %v7014 = vld [vmem:[#allocation4 + $0x310] sm:$0xff]
          %v7015 = vld [vmem:[#allocation4 + $0x318] sm:$0xff]
          %v7016 = vld [vmem:[#allocation4 + $0x320] sm:$0xff]
          %v7017 = vld [vmem:[#allocation4 + $0x328] sm:$0xff]
          %v7018 = vld [vmem:[#allocation4 + $0x330] sm:$0xff]
          %v7019 = vld [vmem:[#allocation4 + $0x338] sm:$0xff]
          %v7020 = vld [vmem:[#allocation4 + $0x340] sm:$0xff]
          %v7021 = vld [vmem:[#allocation4 + $0x348] sm:$0xff]
          %v7022 = vld [vmem:[#allocation4 + $0x350] sm:$0xff]
          %v7023 = vld [vmem:[#allocation4 + $0x358] sm:$0xff]
          %v7024 = vld [vmem:[#allocation4 + $0x360] sm:$0xff]
          %v7025 = vld [vmem:[#allocation4 + $0x368] sm:$0xff]
          %v7026 = vld [vmem:[#allocation4 + $0x370] sm:$0xff]
          %v7027 = vld [vmem:[#allocation4 + $0x378] sm:$0xff]
          %v7028 = vld [vmem:[#allocation4 + $0x380] sm:$0xff]
          %v7029 = vld [vmem:[#allocation4 + $0x388] sm:$0xff]
          %v7030 = vld [vmem:[#allocation4 + $0x390] sm:$0xff]
          %v7031 = vld [vmem:[#allocation4 + $0x398] sm:$0xff]
          %v7032 = vld [vmem:[#allocation4 + $0x3a0] sm:$0xff]
          %v7033 = vld [vmem:[#allocation4 + $0x3a8] sm:$0xff]
          %v7034 = vld [vmem:[#allocation4 + $0x3b0] sm:$0xff]
          %v7035 = vld [vmem:[#allocation4 + $0x3b8] sm:$0xff]
          %v7036 = vld [vmem:[#allocation4 + $0x3c0] sm:$0xff]
          %v7037 = vld [vmem:[#allocation4 + $0x3c8] sm:$0xff]
          %v7038 = vld [vmem:[#allocation4 + $0x3d0] sm:$0xff]
          %v7039 = vld [vmem:[#allocation4 + $0x3d8] sm:$0xff]
          %v7040 = vld [vmem:[#allocation4 + $0x3e0] sm:$0xff]
          %v7041 = vld [vmem:[#allocation4 + $0x3e8] sm:$0xff]
          %v7042 = vld [vmem:[#allocation4 + $0x3f0] sm:$0xff]
          %v7043 = vld [vmem:[#allocation4 + $0x3f8] sm:$0xff]
          %v7044 = vld [vmem:[%s2] sm:$0x1]
          %7046 = vset.pattern.permute.xlu0 0
          %7047 = vperm.xlu0 %7046, %v6788
          %v7048 = vpop.permute.xlu0 %7047
          %7051 = vset.pattern.permute.xlu0 0
          %7052 = vperm.xlu0 %7051, %v6789
          %v7053 = vpop.permute.xlu0 %7052
          %7056 = vset.pattern.permute.xlu0 0
          %7057 = vperm.xlu0 %7056, %v6790
          %v7058 = vpop.permute.xlu0 %7057
          %7061 = vset.pattern.permute.xlu0 0
          %7062 = vperm.xlu0 %7061, %v6791
          %v7063 = vpop.permute.xlu0 %7062
          %7066 = vset.pattern.permute.xlu0 0
          %7067 = vperm.xlu0 %7066, %v6792
          %v7068 = vpop.permute.xlu0 %7067
          %7071 = vset.pattern.permute.xlu0 0
          %7072 = vperm.xlu0 %7071, %v6793
          %v7073 = vpop.permute.xlu0 %7072
          %7076 = vset.pattern.permute.xlu0 0
          %7077 = vperm.xlu0 %7076, %v6794
          %v7078 = vpop.permute.xlu0 %7077
          %7081 = vset.pattern.permute.xlu0 0
          %7082 = vperm.xlu0 %7081, %v6795
          %v7083 = vpop.permute.xlu0 %7082
          %7086 = vset.pattern.permute.xlu0 0
          %7087 = vperm.xlu0 %7086, %v6796
          %v7088 = vpop.permute.xlu0 %7087
          %7091 = vset.pattern.permute.xlu0 0
          %7092 = vperm.xlu0 %7091, %v6797
          %v7093 = vpop.permute.xlu0 %7092
          %7096 = vset.pattern.permute.xlu0 0
          %7097 = vperm.xlu0 %7096, %v6798
          %v7098 = vpop.permute.xlu0 %7097
          %7101 = vset.pattern.permute.xlu0 0
          %7102 = vperm.xlu0 %7101, %v6799
          %v7103 = vpop.permute.xlu0 %7102
          %7106 = vset.pattern.permute.xlu0 0
          %7107 = vperm.xlu0 %7106, %v6800
          %v7108 = vpop.permute.xlu0 %7107
          %7111 = vset.pattern.permute.xlu0 0
          %7112 = vperm.xlu0 %7111, %v6801
          %v7113 = vpop.permute.xlu0 %7112
          %7116 = vset.pattern.permute.xlu0 0
          %7117 = vperm.xlu0 %7116, %v6802
          %v7118 = vpop.permute.xlu0 %7117
          %7121 = vset.pattern.permute.xlu0 0
          %7122 = vperm.xlu0 %7121, %v6803
          %v7123 = vpop.permute.xlu0 %7122
          %7126 = vset.pattern.permute.xlu0 0
          %7127 = vperm.xlu0 %7126, %v6804
          %v7128 = vpop.permute.xlu0 %7127
          %7131 = vset.pattern.permute.xlu0 0
          %7132 = vperm.xlu0 %7131, %v6805
          %v7133 = vpop.permute.xlu0 %7132
          %7136 = vset.pattern.permute.xlu0 0
          %7137 = vperm.xlu0 %7136, %v6806
          %v7138 = vpop.permute.xlu0 %7137
          %7141 = vset.pattern.permute.xlu0 0
          %7142 = vperm.xlu0 %7141, %v6807
          %v7143 = vpop.permute.xlu0 %7142
          %7146 = vset.pattern.permute.xlu0 0
          %7147 = vperm.xlu0 %7146, %v6808
          %v7148 = vpop.permute.xlu0 %7147
          %7151 = vset.pattern.permute.xlu0 0
          %7152 = vperm.xlu0 %7151, %v6809
          %v7153 = vpop.permute.xlu0 %7152
          %7156 = vset.pattern.permute.xlu0 0
          %7157 = vperm.xlu0 %7156, %v6810
          %v7158 = vpop.permute.xlu0 %7157
          %7161 = vset.pattern.permute.xlu0 0
          %7162 = vperm.xlu0 %7161, %v6811
          %v7163 = vpop.permute.xlu0 %7162
          %7166 = vset.pattern.permute.xlu0 0
          %7167 = vperm.xlu0 %7166, %v6812
          %v7168 = vpop.permute.xlu0 %7167
          %7171 = vset.pattern.permute.xlu0 0
          %7172 = vperm.xlu0 %7171, %v6813
          %v7173 = vpop.permute.xlu0 %7172
          %7176 = vset.pattern.permute.xlu0 0
          %7177 = vperm.xlu0 %7176, %v6814
          %v7178 = vpop.permute.xlu0 %7177
          %7181 = vset.pattern.permute.xlu0 0
          %7182 = vperm.xlu0 %7181, %v6815
          %v7183 = vpop.permute.xlu0 %7182
          %7186 = vset.pattern.permute.xlu0 0
          %7187 = vperm.xlu0 %7186, %v6816
          %v7188 = vpop.permute.xlu0 %7187
          %7191 = vset.pattern.permute.xlu0 0
          %7192 = vperm.xlu0 %7191, %v6817
          %v7193 = vpop.permute.xlu0 %7192
          %7196 = vset.pattern.permute.xlu0 0
          %7197 = vperm.xlu0 %7196, %v6818
          %v7198 = vpop.permute.xlu0 %7197
          %7201 = vset.pattern.permute.xlu0 0
          %7202 = vperm.xlu0 %7201, %v6819
          %v7203 = vpop.permute.xlu0 %7202
          %7206 = vset.pattern.permute.xlu0 0
          %7207 = vperm.xlu0 %7206, %v6820
          %v7208 = vpop.permute.xlu0 %7207
          %7211 = vset.pattern.permute.xlu0 0
          %7212 = vperm.xlu0 %7211, %v6821
          %v7213 = vpop.permute.xlu0 %7212
          %7216 = vset.pattern.permute.xlu0 0
          %7217 = vperm.xlu0 %7216, %v6822
          %v7218 = vpop.permute.xlu0 %7217
          %7221 = vset.pattern.permute.xlu0 0
          %7222 = vperm.xlu0 %7221, %v6823
          %v7223 = vpop.permute.xlu0 %7222
          %7226 = vset.pattern.permute.xlu0 0
          %7227 = vperm.xlu0 %7226, %v6824
          %v7228 = vpop.permute.xlu0 %7227
          %7231 = vset.pattern.permute.xlu0 0
          %7232 = vperm.xlu0 %7231, %v6825
          %v7233 = vpop.permute.xlu0 %7232
          %7236 = vset.pattern.permute.xlu0 0
          %7237 = vperm.xlu0 %7236, %v6826
          %v7238 = vpop.permute.xlu0 %7237
          %7241 = vset.pattern.permute.xlu0 0
          %7242 = vperm.xlu0 %7241, %v6827
          %v7243 = vpop.permute.xlu0 %7242
          %7246 = vset.pattern.permute.xlu0 0
          %7247 = vperm.xlu0 %7246, %v6828
          %v7248 = vpop.permute.xlu0 %7247
          %7251 = vset.pattern.permute.xlu0 0
          %7252 = vperm.xlu0 %7251, %v6829
          %v7253 = vpop.permute.xlu0 %7252
          %7256 = vset.pattern.permute.xlu0 0
          %7257 = vperm.xlu0 %7256, %v6830
          %v7258 = vpop.permute.xlu0 %7257
          %7261 = vset.pattern.permute.xlu0 0
          %7262 = vperm.xlu0 %7261, %v6831
          %v7263 = vpop.permute.xlu0 %7262
          %7266 = vset.pattern.permute.xlu0 0
          %7267 = vperm.xlu0 %7266, %v6832
          %v7268 = vpop.permute.xlu0 %7267
          %7271 = vset.pattern.permute.xlu0 0
          %7272 = vperm.xlu0 %7271, %v6833
          %v7273 = vpop.permute.xlu0 %7272
          %7276 = vset.pattern.permute.xlu0 0
          %7277 = vperm.xlu0 %7276, %v6834
          %v7278 = vpop.permute.xlu0 %7277
          %7281 = vset.pattern.permute.xlu0 0
          %7282 = vperm.xlu0 %7281, %v6835
          %v7283 = vpop.permute.xlu0 %7282
          %7286 = vset.pattern.permute.xlu0 0
          %7287 = vperm.xlu0 %7286, %v6836
          %v7288 = vpop.permute.xlu0 %7287
          %7291 = vset.pattern.permute.xlu0 0
          %7292 = vperm.xlu0 %7291, %v6837
          %v7293 = vpop.permute.xlu0 %7292
          %7296 = vset.pattern.permute.xlu0 0
          %7297 = vperm.xlu0 %7296, %v6838
          %v7298 = vpop.permute.xlu0 %7297
          %7301 = vset.pattern.permute.xlu0 0
          %7302 = vperm.xlu0 %7301, %v6839
          %v7303 = vpop.permute.xlu0 %7302
          %7306 = vset.pattern.permute.xlu0 0
          %7307 = vperm.xlu0 %7306, %v6840
          %v7308 = vpop.permute.xlu0 %7307
          %7311 = vset.pattern.permute.xlu0 0
          %7312 = vperm.xlu0 %7311, %v6841
          %v7313 = vpop.permute.xlu0 %7312
          %7316 = vset.pattern.permute.xlu0 0
          %7317 = vperm.xlu0 %7316, %v6842
          %v7318 = vpop.permute.xlu0 %7317
          %7321 = vset.pattern.permute.xlu0 0
          %7322 = vperm.xlu0 %7321, %v6843
          %v7323 = vpop.permute.xlu0 %7322
          %7326 = vset.pattern.permute.xlu0 0
          %7327 = vperm.xlu0 %7326, %v6844
          %v7328 = vpop.permute.xlu0 %7327
          %7331 = vset.pattern.permute.xlu0 0
          %7332 = vperm.xlu0 %7331, %v6845
          %v7333 = vpop.permute.xlu0 %7332
          %7336 = vset.pattern.permute.xlu0 0
          %7337 = vperm.xlu0 %7336, %v6846
          %v7338 = vpop.permute.xlu0 %7337
          %7341 = vset.pattern.permute.xlu0 0
          %7342 = vperm.xlu0 %7341, %v6847
          %v7343 = vpop.permute.xlu0 %7342
          %7346 = vset.pattern.permute.xlu0 0
          %7347 = vperm.xlu0 %7346, %v6848
          %v7348 = vpop.permute.xlu0 %7347
          %7351 = vset.pattern.permute.xlu0 0
          %7352 = vperm.xlu0 %7351, %v6849
          %v7353 = vpop.permute.xlu0 %7352
          %7356 = vset.pattern.permute.xlu0 0
          %7357 = vperm.xlu0 %7356, %v6850
          %v7358 = vpop.permute.xlu0 %7357
          %7361 = vset.pattern.permute.xlu0 0
          %7362 = vperm.xlu0 %7361, %v6851
          %v7363 = vpop.permute.xlu0 %7362
          %7366 = vset.pattern.permute.xlu0 0
          %7367 = vperm.xlu0 %7366, %v6852
          %v7368 = vpop.permute.xlu0 %7367
          %7371 = vset.pattern.permute.xlu0 0
          %7372 = vperm.xlu0 %7371, %v6853
          %v7373 = vpop.permute.xlu0 %7372
          %7376 = vset.pattern.permute.xlu0 0
          %7377 = vperm.xlu0 %7376, %v6854
          %v7378 = vpop.permute.xlu0 %7377
          %7381 = vset.pattern.permute.xlu0 0
          %7382 = vperm.xlu0 %7381, %v6855
          %v7383 = vpop.permute.xlu0 %7382
          %7386 = vset.pattern.permute.xlu0 0
          %7387 = vperm.xlu0 %7386, %v6856
          %v7388 = vpop.permute.xlu0 %7387
          %7391 = vset.pattern.permute.xlu0 0
          %7392 = vperm.xlu0 %7391, %v6857
          %v7393 = vpop.permute.xlu0 %7392
          %7396 = vset.pattern.permute.xlu0 0
          %7397 = vperm.xlu0 %7396, %v6858
          %v7398 = vpop.permute.xlu0 %7397
          %7401 = vset.pattern.permute.xlu0 0
          %7402 = vperm.xlu0 %7401, %v6859
          %v7403 = vpop.permute.xlu0 %7402
          %7406 = vset.pattern.permute.xlu0 0
          %7407 = vperm.xlu0 %7406, %v6860
          %v7408 = vpop.permute.xlu0 %7407
          %7411 = vset.pattern.permute.xlu0 0
          %7412 = vperm.xlu0 %7411, %v6861
          %v7413 = vpop.permute.xlu0 %7412
          %7416 = vset.pattern.permute.xlu0 0
          %7417 = vperm.xlu0 %7416, %v6862
          %v7418 = vpop.permute.xlu0 %7417
          %7421 = vset.pattern.permute.xlu0 0
          %7422 = vperm.xlu0 %7421, %v6863
          %v7423 = vpop.permute.xlu0 %7422
          %7426 = vset.pattern.permute.xlu0 0
          %7427 = vperm.xlu0 %7426, %v6864
          %v7428 = vpop.permute.xlu0 %7427
          %7431 = vset.pattern.permute.xlu0 0
          %7432 = vperm.xlu0 %7431, %v6865
          %v7433 = vpop.permute.xlu0 %7432
          %7436 = vset.pattern.permute.xlu0 0
          %7437 = vperm.xlu0 %7436, %v6866
          %v7438 = vpop.permute.xlu0 %7437
          %7441 = vset.pattern.permute.xlu0 0
          %7442 = vperm.xlu0 %7441, %v6867
          %v7443 = vpop.permute.xlu0 %7442
          %7446 = vset.pattern.permute.xlu0 0
          %7447 = vperm.xlu0 %7446, %v6868
          %v7448 = vpop.permute.xlu0 %7447
          %7451 = vset.pattern.permute.xlu0 0
          %7452 = vperm.xlu0 %7451, %v6869
          %v7453 = vpop.permute.xlu0 %7452
          %7456 = vset.pattern.permute.xlu0 0
          %7457 = vperm.xlu0 %7456, %v6870
          %v7458 = vpop.permute.xlu0 %7457
          %7461 = vset.pattern.permute.xlu0 0
          %7462 = vperm.xlu0 %7461, %v6871
          %v7463 = vpop.permute.xlu0 %7462
          %7466 = vset.pattern.permute.xlu0 0
          %7467 = vperm.xlu0 %7466, %v6872
          %v7468 = vpop.permute.xlu0 %7467
          %7471 = vset.pattern.permute.xlu0 0
          %7472 = vperm.xlu0 %7471, %v6873
          %v7473 = vpop.permute.xlu0 %7472
          %7476 = vset.pattern.permute.xlu0 0
          %7477 = vperm.xlu0 %7476, %v6874
          %v7478 = vpop.permute.xlu0 %7477
          %7481 = vset.pattern.permute.xlu0 0
          %7482 = vperm.xlu0 %7481, %v6875
          %v7483 = vpop.permute.xlu0 %7482
          %7486 = vset.pattern.permute.xlu0 0
          %7487 = vperm.xlu0 %7486, %v6876
          %v7488 = vpop.permute.xlu0 %7487
          %7491 = vset.pattern.permute.xlu0 0
          %7492 = vperm.xlu0 %7491, %v6877
          %v7493 = vpop.permute.xlu0 %7492
          %7496 = vset.pattern.permute.xlu0 0
          %7497 = vperm.xlu0 %7496, %v6878
          %v7498 = vpop.permute.xlu0 %7497
          %7501 = vset.pattern.permute.xlu0 0
          %7502 = vperm.xlu0 %7501, %v6879
          %v7503 = vpop.permute.xlu0 %7502
          %7506 = vset.pattern.permute.xlu0 0
          %7507 = vperm.xlu0 %7506, %v6880
          %v7508 = vpop.permute.xlu0 %7507
          %7511 = vset.pattern.permute.xlu0 0
          %7512 = vperm.xlu0 %7511, %v6881
          %v7513 = vpop.permute.xlu0 %7512
          %7516 = vset.pattern.permute.xlu0 0
          %7517 = vperm.xlu0 %7516, %v6882
          %v7518 = vpop.permute.xlu0 %7517
          %7521 = vset.pattern.permute.xlu0 0
          %7522 = vperm.xlu0 %7521, %v6883
          %v7523 = vpop.permute.xlu0 %7522
          %7526 = vset.pattern.permute.xlu0 0
          %7527 = vperm.xlu0 %7526, %v6884
          %v7528 = vpop.permute.xlu0 %7527
          %7531 = vset.pattern.permute.xlu0 0
          %7532 = vperm.xlu0 %7531, %v6885
          %v7533 = vpop.permute.xlu0 %7532
          %7536 = vset.pattern.permute.xlu0 0
          %7537 = vperm.xlu0 %7536, %v6886
          %v7538 = vpop.permute.xlu0 %7537
          %7541 = vset.pattern.permute.xlu0 0
          %7542 = vperm.xlu0 %7541, %v6887
          %v7543 = vpop.permute.xlu0 %7542
          %7546 = vset.pattern.permute.xlu0 0
          %7547 = vperm.xlu0 %7546, %v6888
          %v7548 = vpop.permute.xlu0 %7547
          %7551 = vset.pattern.permute.xlu0 0
          %7552 = vperm.xlu0 %7551, %v6889
          %v7553 = vpop.permute.xlu0 %7552
          %7556 = vset.pattern.permute.xlu0 0
          %7557 = vperm.xlu0 %7556, %v6890
          %v7558 = vpop.permute.xlu0 %7557
          %7561 = vset.pattern.permute.xlu0 0
          %7562 = vperm.xlu0 %7561, %v6891
          %v7563 = vpop.permute.xlu0 %7562
          %7566 = vset.pattern.permute.xlu0 0
          %7567 = vperm.xlu0 %7566, %v6892
          %v7568 = vpop.permute.xlu0 %7567
          %7571 = vset.pattern.permute.xlu0 0
          %7572 = vperm.xlu0 %7571, %v6893
          %v7573 = vpop.permute.xlu0 %7572
          %7576 = vset.pattern.permute.xlu0 0
          %7577 = vperm.xlu0 %7576, %v6894
          %v7578 = vpop.permute.xlu0 %7577
          %7581 = vset.pattern.permute.xlu0 0
          %7582 = vperm.xlu0 %7581, %v6895
          %v7583 = vpop.permute.xlu0 %7582
          %7586 = vset.pattern.permute.xlu0 0
          %7587 = vperm.xlu0 %7586, %v6896
          %v7588 = vpop.permute.xlu0 %7587
          %7591 = vset.pattern.permute.xlu0 0
          %7592 = vperm.xlu0 %7591, %v6897
          %v7593 = vpop.permute.xlu0 %7592
          %7596 = vset.pattern.permute.xlu0 0
          %7597 = vperm.xlu0 %7596, %v6898
          %v7598 = vpop.permute.xlu0 %7597
          %7601 = vset.pattern.permute.xlu0 0
          %7602 = vperm.xlu0 %7601, %v6899
          %v7603 = vpop.permute.xlu0 %7602
          %7606 = vset.pattern.permute.xlu0 0
          %7607 = vperm.xlu0 %7606, %v6900
          %v7608 = vpop.permute.xlu0 %7607
          %7611 = vset.pattern.permute.xlu0 0
          %7612 = vperm.xlu0 %7611, %v6901
          %v7613 = vpop.permute.xlu0 %7612
          %7616 = vset.pattern.permute.xlu0 0
          %7617 = vperm.xlu0 %7616, %v6902
          %v7618 = vpop.permute.xlu0 %7617
          %7621 = vset.pattern.permute.xlu0 0
          %7622 = vperm.xlu0 %7621, %v6903
          %v7623 = vpop.permute.xlu0 %7622
          %7626 = vset.pattern.permute.xlu0 0
          %7627 = vperm.xlu0 %7626, %v6904
          %v7628 = vpop.permute.xlu0 %7627
          %7631 = vset.pattern.permute.xlu0 0
          %7632 = vperm.xlu0 %7631, %v6905
          %v7633 = vpop.permute.xlu0 %7632
          %7636 = vset.pattern.permute.xlu0 0
          %7637 = vperm.xlu0 %7636, %v6906
          %v7638 = vpop.permute.xlu0 %7637
          %7641 = vset.pattern.permute.xlu0 0
          %7642 = vperm.xlu0 %7641, %v6907
          %v7643 = vpop.permute.xlu0 %7642
          %7646 = vset.pattern.permute.xlu0 0
          %7647 = vperm.xlu0 %7646, %v6908
          %v7648 = vpop.permute.xlu0 %7647
          %7651 = vset.pattern.permute.xlu0 0
          %7652 = vperm.xlu0 %7651, %v6909
          %v7653 = vpop.permute.xlu0 %7652
          %7656 = vset.pattern.permute.xlu0 0
          %7657 = vperm.xlu0 %7656, %v6910
          %v7658 = vpop.permute.xlu0 %7657
          %7661 = vset.pattern.permute.xlu0 0
          %7662 = vperm.xlu0 %7661, %v6911
          %v7663 = vpop.permute.xlu0 %7662
          %7666 = vset.pattern.permute.xlu0 0
          %7667 = vperm.xlu0 %7666, %v6912
          %v7668 = vpop.permute.xlu0 %7667
          %7671 = vset.pattern.permute.xlu0 0
          %7672 = vperm.xlu0 %7671, %v6913
          %v7673 = vpop.permute.xlu0 %7672
          %7676 = vset.pattern.permute.xlu0 0
          %7677 = vperm.xlu0 %7676, %v6914
          %v7678 = vpop.permute.xlu0 %7677
          %7681 = vset.pattern.permute.xlu0 0
          %7682 = vperm.xlu0 %7681, %v6915
          %v7683 = vpop.permute.xlu0 %7682
          %v7686 = vlaneseq
          %v7687 = vshrl.u32 %v7686, 7
          %v7688 = vsub.s32 0, %v7687
          %v7689 = vrot.slane %v7044, %v7688
          %v7691 = vmul.f32 %v7048, %v7689
          %v7692 = vmul.f32 %v7053, %v7689
          %v7693 = vmul.f32 %v7058, %v7689
          %v7694 = vmul.f32 %v7063, %v7689
          %v7695 = vmul.f32 %v7068, %v7689
          %v7696 = vmul.f32 %v7073, %v7689
          %v7697 = vmul.f32 %v7078, %v7689
          %v7698 = vmul.f32 %v7083, %v7689
          %v7699 = vmul.f32 %v7088, %v7689
          %v7700 = vmul.f32 %v7093, %v7689
          %v7701 = vmul.f32 %v7098, %v7689
          %v7702 = vmul.f32 %v7103, %v7689
          %v7703 = vmul.f32 %v7108, %v7689
          %v7704 = vmul.f32 %v7113, %v7689
          %v7705 = vmul.f32 %v7118, %v7689
          %v7706 = vmul.f32 %v7123, %v7689
          %v7707 = vmul.f32 %v7128, %v7689
          %v7708 = vmul.f32 %v7133, %v7689
          %v7709 = vmul.f32 %v7138, %v7689
          %v7710 = vmul.f32 %v7143, %v7689
          %v7711 = vmul.f32 %v7148, %v7689
          %v7712 = vmul.f32 %v7153, %v7689
          %v7713 = vmul.f32 %v7158, %v7689
          %v7714 = vmul.f32 %v7163, %v7689
          %v7715 = vmul.f32 %v7168, %v7689
          %v7716 = vmul.f32 %v7173, %v7689
          %v7717 = vmul.f32 %v7178, %v7689
          %v7718 = vmul.f32 %v7183, %v7689
          %v7719 = vmul.f32 %v7188, %v7689
          %v7720 = vmul.f32 %v7193, %v7689
          %v7721 = vmul.f32 %v7198, %v7689
          %v7722 = vmul.f32 %v7203, %v7689
          %v7723 = vmul.f32 %v7208, %v7689
          %v7724 = vmul.f32 %v7213, %v7689
          %v7725 = vmul.f32 %v7218, %v7689
          %v7726 = vmul.f32 %v7223, %v7689
          %v7727 = vmul.f32 %v7228, %v7689
          %v7728 = vmul.f32 %v7233, %v7689
          %v7729 = vmul.f32 %v7238, %v7689
          %v7730 = vmul.f32 %v7243, %v7689
          %v7731 = vmul.f32 %v7248, %v7689
          %v7732 = vmul.f32 %v7253, %v7689
          %v7733 = vmul.f32 %v7258, %v7689
          %v7734 = vmul.f32 %v7263, %v7689
          %v7735 = vmul.f32 %v7268, %v7689
          %v7736 = vmul.f32 %v7273, %v7689
          %v7737 = vmul.f32 %v7278, %v7689
          %v7738 = vmul.f32 %v7283, %v7689
          %v7739 = vmul.f32 %v7288, %v7689
          %v7740 = vmul.f32 %v7293, %v7689
          %v7741 = vmul.f32 %v7298, %v7689
          %v7742 = vmul.f32 %v7303, %v7689
          %v7743 = vmul.f32 %v7308, %v7689
          %v7744 = vmul.f32 %v7313, %v7689
          %v7745 = vmul.f32 %v7318, %v7689
          %v7746 = vmul.f32 %v7323, %v7689
          %v7747 = vmul.f32 %v7328, %v7689
          %v7748 = vmul.f32 %v7333, %v7689
          %v7749 = vmul.f32 %v7338, %v7689
          %v7750 = vmul.f32 %v7343, %v7689
          %v7751 = vmul.f32 %v7348, %v7689
          %v7752 = vmul.f32 %v7353, %v7689
          %v7753 = vmul.f32 %v7358, %v7689
          %v7754 = vmul.f32 %v7363, %v7689
          %v7755 = vmul.f32 %v7368, %v7689
          %v7756 = vmul.f32 %v7373, %v7689
          %v7757 = vmul.f32 %v7378, %v7689
          %v7758 = vmul.f32 %v7383, %v7689
          %v7759 = vmul.f32 %v7388, %v7689
          %v7760 = vmul.f32 %v7393, %v7689
          %v7761 = vmul.f32 %v7398, %v7689
          %v7762 = vmul.f32 %v7403, %v7689
          %v7763 = vmul.f32 %v7408, %v7689
          %v7764 = vmul.f32 %v7413, %v7689
          %v7765 = vmul.f32 %v7418, %v7689
          %v7766 = vmul.f32 %v7423, %v7689
          %v7767 = vmul.f32 %v7428, %v7689
          %v7768 = vmul.f32 %v7433, %v7689
          %v7769 = vmul.f32 %v7438, %v7689
          %v7770 = vmul.f32 %v7443, %v7689
          %v7771 = vmul.f32 %v7448, %v7689
          %v7772 = vmul.f32 %v7453, %v7689
          %v7773 = vmul.f32 %v7458, %v7689
          %v7774 = vmul.f32 %v7463, %v7689
          %v7775 = vmul.f32 %v7468, %v7689
          %v7776 = vmul.f32 %v7473, %v7689
          %v7777 = vmul.f32 %v7478, %v7689
          %v7778 = vmul.f32 %v7483, %v7689
          %v7779 = vmul.f32 %v7488, %v7689
          %v7780 = vmul.f32 %v7493, %v7689
          %v7781 = vmul.f32 %v7498, %v7689
          %v7782 = vmul.f32 %v7503, %v7689
          %v7783 = vmul.f32 %v7508, %v7689
          %v7784 = vmul.f32 %v7513, %v7689
          %v7785 = vmul.f32 %v7518, %v7689
          %v7786 = vmul.f32 %v7523, %v7689
          %v7787 = vmul.f32 %v7528, %v7689
          %v7788 = vmul.f32 %v7533, %v7689
          %v7789 = vmul.f32 %v7538, %v7689
          %v7790 = vmul.f32 %v7543, %v7689
          %v7791 = vmul.f32 %v7548, %v7689
          %v7792 = vmul.f32 %v7553, %v7689
          %v7793 = vmul.f32 %v7558, %v7689
          %v7794 = vmul.f32 %v7563, %v7689
          %v7795 = vmul.f32 %v7568, %v7689
          %v7796 = vmul.f32 %v7573, %v7689
          %v7797 = vmul.f32 %v7578, %v7689
          %v7798 = vmul.f32 %v7583, %v7689
          %v7799 = vmul.f32 %v7588, %v7689
          %v7800 = vmul.f32 %v7593, %v7689
          %v7801 = vmul.f32 %v7598, %v7689
          %v7802 = vmul.f32 %v7603, %v7689
          %v7803 = vmul.f32 %v7608, %v7689
          %v7804 = vmul.f32 %v7613, %v7689
          %v7805 = vmul.f32 %v7618, %v7689
          %v7806 = vmul.f32 %v7623, %v7689
          %v7807 = vmul.f32 %v7628, %v7689
          %v7808 = vmul.f32 %v7633, %v7689
          %v7809 = vmul.f32 %v7638, %v7689
          %v7810 = vmul.f32 %v7643, %v7689
          %v7811 = vmul.f32 %v7648, %v7689
          %v7812 = vmul.f32 %v7653, %v7689
          %v7813 = vmul.f32 %v7658, %v7689
          %v7814 = vmul.f32 %v7663, %v7689
          %v7815 = vmul.f32 %v7668, %v7689
          %v7816 = vmul.f32 %v7673, %v7689
          %v7817 = vmul.f32 %v7678, %v7689
          %v7818 = vmul.f32 %v7683, %v7689
          %v7819 = vadd.f32 %v6916, %v7691
          %v7820 = vadd.f32 %v6917, %v7692
          %v7821 = vadd.f32 %v6918, %v7693
          %v7822 = vadd.f32 %v6919, %v7694
          %v7823 = vadd.f32 %v6920, %v7695
          %v7824 = vadd.f32 %v6921, %v7696
          %v7825 = vadd.f32 %v6922, %v7697
          %v7826 = vadd.f32 %v6923, %v7698
          %v7827 = vadd.f32 %v6924, %v7699
          %v7828 = vadd.f32 %v6925, %v7700
          %v7829 = vadd.f32 %v6926, %v7701
          %v7830 = vadd.f32 %v6927, %v7702
          %v7831 = vadd.f32 %v6928, %v7703
          %v7832 = vadd.f32 %v6929, %v7704
          %v7833 = vadd.f32 %v6930, %v7705
          %v7834 = vadd.f32 %v6931, %v7706
          %v7835 = vadd.f32 %v6932, %v7707
          %v7836 = vadd.f32 %v6933, %v7708
          %v7837 = vadd.f32 %v6934, %v7709
          %v7838 = vadd.f32 %v6935, %v7710
          %v7839 = vadd.f32 %v6936, %v7711
          %v7840 = vadd.f32 %v6937, %v7712
          %v7841 = vadd.f32 %v6938, %v7713
          %v7842 = vadd.f32 %v6939, %v7714
          %v7843 = vadd.f32 %v6940, %v7715
          %v7844 = vadd.f32 %v6941, %v7716
          %v7845 = vadd.f32 %v6942, %v7717
          %v7846 = vadd.f32 %v6943, %v7718
          %v7847 = vadd.f32 %v6944, %v7719
          %v7848 = vadd.f32 %v6945, %v7720
          %v7849 = vadd.f32 %v6946, %v7721
          %v7850 = vadd.f32 %v6947, %v7722
          %v7851 = vadd.f32 %v6948, %v7723
          %v7852 = vadd.f32 %v6949, %v7724
          %v7853 = vadd.f32 %v6950, %v7725
          %v7854 = vadd.f32 %v6951, %v7726
          %v7855 = vadd.f32 %v6952, %v7727
          %v7856 = vadd.f32 %v6953, %v7728
          %v7857 = vadd.f32 %v6954, %v7729
          %v7858 = vadd.f32 %v6955, %v7730
          %v7859 = vadd.f32 %v6956, %v7731
          %v7860 = vadd.f32 %v6957, %v7732
          %v7861 = vadd.f32 %v6958, %v7733
          %v7862 = vadd.f32 %v6959, %v7734
          %v7863 = vadd.f32 %v6960, %v7735
          %v7864 = vadd.f32 %v6961, %v7736
          %v7865 = vadd.f32 %v6962, %v7737
          %v7866 = vadd.f32 %v6963, %v7738
          %v7867 = vadd.f32 %v6964, %v7739
          %v7868 = vadd.f32 %v6965, %v7740
          %v7869 = vadd.f32 %v6966, %v7741
          %v7870 = vadd.f32 %v6967, %v7742
          %v7871 = vadd.f32 %v6968, %v7743
          %v7872 = vadd.f32 %v6969, %v7744
          %v7873 = vadd.f32 %v6970, %v7745
          %v7874 = vadd.f32 %v6971, %v7746
          %v7875 = vadd.f32 %v6972, %v7747
          %v7876 = vadd.f32 %v6973, %v7748
          %v7877 = vadd.f32 %v6974, %v7749
          %v7878 = vadd.f32 %v6975, %v7750
          %v7879 = vadd.f32 %v6976, %v7751
          %v7880 = vadd.f32 %v6977, %v7752
          %v7881 = vadd.f32 %v6978, %v7753
          %v7882 = vadd.f32 %v6979, %v7754
          %v7883 = vadd.f32 %v6980, %v7755
          %v7884 = vadd.f32 %v6981, %v7756
          %v7885 = vadd.f32 %v6982, %v7757
          %v7886 = vadd.f32 %v6983, %v7758
          %v7887 = vadd.f32 %v6984, %v7759
          %v7888 = vadd.f32 %v6985, %v7760
          %v7889 = vadd.f32 %v6986, %v7761
          %v7890 = vadd.f32 %v6987, %v7762
          %v7891 = vadd.f32 %v6988, %v7763
          %v7892 = vadd.f32 %v6989, %v7764
          %v7893 = vadd.f32 %v6990, %v7765
          %v7894 = vadd.f32 %v6991, %v7766
          %v7895 = vadd.f32 %v6992, %v7767
          %v7896 = vadd.f32 %v6993, %v7768
          %v7897 = vadd.f32 %v6994, %v7769
          %v7898 = vadd.f32 %v6995, %v7770
          %v7899 = vadd.f32 %v6996, %v7771
          %v7900 = vadd.f32 %v6997, %v7772
          %v7901 = vadd.f32 %v6998, %v7773
          %v7902 = vadd.f32 %v6999, %v7774
          %v7903 = vadd.f32 %v7000, %v7775
          %v7904 = vadd.f32 %v7001, %v7776
          %v7905 = vadd.f32 %v7002, %v7777
          %v7906 = vadd.f32 %v7003, %v7778
          %v7907 = vadd.f32 %v7004, %v7779
          %v7908 = vadd.f32 %v7005, %v7780
          %v7909 = vadd.f32 %v7006, %v7781
          %v7910 = vadd.f32 %v7007, %v7782
          %v7911 = vadd.f32 %v7008, %v7783
          %v7912 = vadd.f32 %v7009, %v7784
          %v7913 = vadd.f32 %v7010, %v7785
          %v7914 = vadd.f32 %v7011, %v7786
          %v7915 = vadd.f32 %v7012, %v7787
          %v7916 = vadd.f32 %v7013, %v7788
          %v7917 = vadd.f32 %v7014, %v7789
          %v7918 = vadd.f32 %v7015, %v7790
          %v7919 = vadd.f32 %v7016, %v7791
          %v7920 = vadd.f32 %v7017, %v7792
          %v7921 = vadd.f32 %v7018, %v7793
          %v7922 = vadd.f32 %v7019, %v7794
          %v7923 = vadd.f32 %v7020, %v7795
          %v7924 = vadd.f32 %v7021, %v7796
          %v7925 = vadd.f32 %v7022, %v7797
          %v7926 = vadd.f32 %v7023, %v7798
          %v7927 = vadd.f32 %v7024, %v7799
          %v7928 = vadd.f32 %v7025, %v7800
          %v7929 = vadd.f32 %v7026, %v7801
          %v7930 = vadd.f32 %v7027, %v7802
          %v7931 = vadd.f32 %v7028, %v7803
          %v7932 = vadd.f32 %v7029, %v7804
          %v7933 = vadd.f32 %v7030, %v7805
          %v7934 = vadd.f32 %v7031, %v7806
          %v7935 = vadd.f32 %v7032, %v7807
          %v7936 = vadd.f32 %v7033, %v7808
          %v7937 = vadd.f32 %v7034, %v7809
          %v7938 = vadd.f32 %v7035, %v7810
          %v7939 = vadd.f32 %v7036, %v7811
          %v7940 = vadd.f32 %v7037, %v7812
          %v7941 = vadd.f32 %v7038, %v7813
          %v7942 = vadd.f32 %v7039, %v7814
          %v7943 = vadd.f32 %v7040, %v7815
          %v7944 = vadd.f32 %v7041, %v7816
          %v7945 = vadd.f32 %v7042, %v7817
          %v7946 = vadd.f32 %v7043, %v7818
          %v7947 = vlaneseq
          %v7948 = vand.u32 %v7947, 127
          %v7949 = vsel %vm6527, %v7819, -inf
          %7950 = vmax.xlane.f32.xlu0 %v7949
          %v7951 = vpop.xlane.xlu0 %7950
          %v7952 = vsel %vm6527, %v7820, -inf
          %7953 = vmax.xlane.f32.xlu0 %v7952
          %v7954 = vpop.xlane.xlu0 %7953
          %v7955 = vsel %vm6527, %v7821, -inf
          %7956 = vmax.xlane.f32.xlu0 %v7955
          %v7957 = vpop.xlane.xlu0 %7956
          %v7958 = vsel %vm6527, %v7822, -inf
          %7959 = vmax.xlane.f32.xlu0 %v7958
          %v7960 = vpop.xlane.xlu0 %7959
          %v7961 = vsel %vm6527, %v7823, -inf
          %7962 = vmax.xlane.f32.xlu0 %v7961
          %v7963 = vpop.xlane.xlu0 %7962
          %v7964 = vsel %vm6527, %v7824, -inf
          %7965 = vmax.xlane.f32.xlu0 %v7964
          %v7966 = vpop.xlane.xlu0 %7965
          %v7967 = vsel %vm6527, %v7825, -inf
          %7968 = vmax.xlane.f32.xlu0 %v7967
          %v7969 = vpop.xlane.xlu0 %7968
          %v7970 = vsel %vm6527, %v7826, -inf
          %7971 = vmax.xlane.f32.xlu0 %v7970
          %v7972 = vpop.xlane.xlu0 %7971
          %v7973 = vsel %vm6527, %v7827, -inf
          %7974 = vmax.xlane.f32.xlu0 %v7973
          %v7975 = vpop.xlane.xlu0 %7974
          %v7976 = vsel %vm6527, %v7828, -inf
          %7977 = vmax.xlane.f32.xlu0 %v7976
          %v7978 = vpop.xlane.xlu0 %7977
          %v7979 = vsel %vm6527, %v7829, -inf
          %7980 = vmax.xlane.f32.xlu0 %v7979
          %v7981 = vpop.xlane.xlu0 %7980
          %v7982 = vsel %vm6527, %v7830, -inf
          %7983 = vmax.xlane.f32.xlu0 %v7982
          %v7984 = vpop.xlane.xlu0 %7983
          %v7985 = vsel %vm6527, %v7831, -inf
          %7986 = vmax.xlane.f32.xlu0 %v7985
          %v7987 = vpop.xlane.xlu0 %7986
          %v7988 = vsel %vm6527, %v7832, -inf
          %7989 = vmax.xlane.f32.xlu0 %v7988
          %v7990 = vpop.xlane.xlu0 %7989
          %v7991 = vsel %vm6527, %v7833, -inf
          %7992 = vmax.xlane.f32.xlu0 %v7991
          %v7993 = vpop.xlane.xlu0 %7992
          %v7994 = vsel %vm6527, %v7834, -inf
          %7995 = vmax.xlane.f32.xlu0 %v7994
          %v7996 = vpop.xlane.xlu0 %7995
          %v7997 = vsel %vm6527, %v7835, -inf
          %7998 = vmax.xlane.f32.xlu0 %v7997
          %v7999 = vpop.xlane.xlu0 %7998
          %v8000 = vsel %vm6527, %v7836, -inf
          %8001 = vmax.xlane.f32.xlu0 %v8000
          %v8002 = vpop.xlane.xlu0 %8001
          %v8003 = vsel %vm6527, %v7837, -inf
          %8004 = vmax.xlane.f32.xlu0 %v8003
          %v8005 = vpop.xlane.xlu0 %8004
          %v8006 = vsel %vm6527, %v7838, -inf
          %8007 = vmax.xlane.f32.xlu0 %v8006
          %v8008 = vpop.xlane.xlu0 %8007
          %v8009 = vsel %vm6527, %v7839, -inf
          %8010 = vmax.xlane.f32.xlu0 %v8009
          %v8011 = vpop.xlane.xlu0 %8010
          %v8012 = vsel %vm6527, %v7840, -inf
          %8013 = vmax.xlane.f32.xlu0 %v8012
          %v8014 = vpop.xlane.xlu0 %8013
          %v8015 = vsel %vm6527, %v7841, -inf
          %8016 = vmax.xlane.f32.xlu0 %v8015
          %v8017 = vpop.xlane.xlu0 %8016
          %v8018 = vsel %vm6527, %v7842, -inf
          %8019 = vmax.xlane.f32.xlu0 %v8018
          %v8020 = vpop.xlane.xlu0 %8019
          %v8021 = vsel %vm6527, %v7843, -inf
          %8022 = vmax.xlane.f32.xlu0 %v8021
          %v8023 = vpop.xlane.xlu0 %8022
          %v8024 = vsel %vm6527, %v7844, -inf
          %8025 = vmax.xlane.f32.xlu0 %v8024
          %v8026 = vpop.xlane.xlu0 %8025
          %v8027 = vsel %vm6527, %v7845, -inf
          %8028 = vmax.xlane.f32.xlu0 %v8027
          %v8029 = vpop.xlane.xlu0 %8028
          %v8030 = vsel %vm6527, %v7846, -inf
          %8031 = vmax.xlane.f32.xlu0 %v8030
          %v8032 = vpop.xlane.xlu0 %8031
          %v8033 = vsel %vm6527, %v7847, -inf
          %8034 = vmax.xlane.f32.xlu0 %v8033
          %v8035 = vpop.xlane.xlu0 %8034
          %v8036 = vsel %vm6527, %v7848, -inf
          %8037 = vmax.xlane.f32.xlu0 %v8036
          %v8038 = vpop.xlane.xlu0 %8037
          %v8039 = vsel %vm6527, %v7849, -inf
          %8040 = vmax.xlane.f32.xlu0 %v8039
          %v8041 = vpop.xlane.xlu0 %8040
          %v8042 = vsel %vm6527, %v7850, -inf
          %8043 = vmax.xlane.f32.xlu0 %v8042
          %v8044 = vpop.xlane.xlu0 %8043
          %v8045 = vsel %vm6527, %v7851, -inf
          %8046 = vmax.xlane.f32.xlu0 %v8045
          %v8047 = vpop.xlane.xlu0 %8046
          %v8048 = vsel %vm6527, %v7852, -inf
          %8049 = vmax.xlane.f32.xlu0 %v8048
          %v8050 = vpop.xlane.xlu0 %8049
          %v8051 = vsel %vm6527, %v7853, -inf
          %8052 = vmax.xlane.f32.xlu0 %v8051
          %v8053 = vpop.xlane.xlu0 %8052
          %v8054 = vsel %vm6527, %v7854, -inf
          %8055 = vmax.xlane.f32.xlu0 %v8054
          %v8056 = vpop.xlane.xlu0 %8055
          %v8057 = vsel %vm6527, %v7855, -inf
          %8058 = vmax.xlane.f32.xlu0 %v8057
          %v8059 = vpop.xlane.xlu0 %8058
          %v8060 = vsel %vm6527, %v7856, -inf
          %8061 = vmax.xlane.f32.xlu0 %v8060
          %v8062 = vpop.xlane.xlu0 %8061
          %v8063 = vsel %vm6527, %v7857, -inf
          %8064 = vmax.xlane.f32.xlu0 %v8063
          %v8065 = vpop.xlane.xlu0 %8064
          %v8066 = vsel %vm6527, %v7858, -inf
          %8067 = vmax.xlane.f32.xlu0 %v8066
          %v8068 = vpop.xlane.xlu0 %8067
          %v8069 = vsel %vm6527, %v7859, -inf
          %8070 = vmax.xlane.f32.xlu0 %v8069
          %v8071 = vpop.xlane.xlu0 %8070
          %v8072 = vsel %vm6527, %v7860, -inf
          %8073 = vmax.xlane.f32.xlu0 %v8072
          %v8074 = vpop.xlane.xlu0 %8073
          %v8075 = vsel %vm6527, %v7861, -inf
          %8076 = vmax.xlane.f32.xlu0 %v8075
          %v8077 = vpop.xlane.xlu0 %8076
          %v8078 = vsel %vm6527, %v7862, -inf
          %8079 = vmax.xlane.f32.xlu0 %v8078
          %v8080 = vpop.xlane.xlu0 %8079
          %v8081 = vsel %vm6527, %v7863, -inf
          %8082 = vmax.xlane.f32.xlu0 %v8081
          %v8083 = vpop.xlane.xlu0 %8082
          %v8084 = vsel %vm6527, %v7864, -inf
          %8085 = vmax.xlane.f32.xlu0 %v8084
          %v8086 = vpop.xlane.xlu0 %8085
          %v8087 = vsel %vm6527, %v7865, -inf
          %8088 = vmax.xlane.f32.xlu0 %v8087
          %v8089 = vpop.xlane.xlu0 %8088
          %v8090 = vsel %vm6527, %v7866, -inf
          %8091 = vmax.xlane.f32.xlu0 %v8090
          %v8092 = vpop.xlane.xlu0 %8091
          %v8093 = vsel %vm6527, %v7867, -inf
          %8094 = vmax.xlane.f32.xlu0 %v8093
          %v8095 = vpop.xlane.xlu0 %8094
          %v8096 = vsel %vm6527, %v7868, -inf
          %8097 = vmax.xlane.f32.xlu0 %v8096
          %v8098 = vpop.xlane.xlu0 %8097
          %v8099 = vsel %vm6527, %v7869, -inf
          %8100 = vmax.xlane.f32.xlu0 %v8099
          %v8101 = vpop.xlane.xlu0 %8100
          %v8102 = vsel %vm6527, %v7870, -inf
          %8103 = vmax.xlane.f32.xlu0 %v8102
          %v8104 = vpop.xlane.xlu0 %8103
          %v8105 = vsel %vm6527, %v7871, -inf
          %8106 = vmax.xlane.f32.xlu0 %v8105
          %v8107 = vpop.xlane.xlu0 %8106
          %v8108 = vsel %vm6527, %v7872, -inf
          %8109 = vmax.xlane.f32.xlu0 %v8108
          %v8110 = vpop.xlane.xlu0 %8109
          %v8111 = vsel %vm6527, %v7873, -inf
          %8112 = vmax.xlane.f32.xlu0 %v8111
          %v8113 = vpop.xlane.xlu0 %8112
          %v8114 = vsel %vm6527, %v7874, -inf
          %8115 = vmax.xlane.f32.xlu0 %v8114
          %v8116 = vpop.xlane.xlu0 %8115
          %v8117 = vsel %vm6527, %v7875, -inf
          %8118 = vmax.xlane.f32.xlu0 %v8117
          %v8119 = vpop.xlane.xlu0 %8118
          %v8120 = vsel %vm6527, %v7876, -inf
          %8121 = vmax.xlane.f32.xlu0 %v8120
          %v8122 = vpop.xlane.xlu0 %8121
          %v8123 = vsel %vm6527, %v7877, -inf
          %8124 = vmax.xlane.f32.xlu0 %v8123
          %v8125 = vpop.xlane.xlu0 %8124
          %v8126 = vsel %vm6527, %v7878, -inf
          %8127 = vmax.xlane.f32.xlu0 %v8126
          %v8128 = vpop.xlane.xlu0 %8127
          %v8129 = vsel %vm6527, %v7879, -inf
          %8130 = vmax.xlane.f32.xlu0 %v8129
          %v8131 = vpop.xlane.xlu0 %8130
          %v8132 = vsel %vm6527, %v7880, -inf
          %8133 = vmax.xlane.f32.xlu0 %v8132
          %v8134 = vpop.xlane.xlu0 %8133
          %v8135 = vsel %vm6527, %v7881, -inf
          %8136 = vmax.xlane.f32.xlu0 %v8135
          %v8137 = vpop.xlane.xlu0 %8136
          %v8138 = vsel %vm6527, %v7882, -inf
          %8139 = vmax.xlane.f32.xlu0 %v8138
          %v8140 = vpop.xlane.xlu0 %8139
          %v8141 = vsel %vm6527, %v7883, -inf
          %8142 = vmax.xlane.f32.xlu0 %v8141
          %v8143 = vpop.xlane.xlu0 %8142
          %v8144 = vsel %vm6527, %v7884, -inf
          %8145 = vmax.xlane.f32.xlu0 %v8144
          %v8146 = vpop.xlane.xlu0 %8145
          %v8147 = vsel %vm6527, %v7885, -inf
          %8148 = vmax.xlane.f32.xlu0 %v8147
          %v8149 = vpop.xlane.xlu0 %8148
          %v8150 = vsel %vm6527, %v7886, -inf
          %8151 = vmax.xlane.f32.xlu0 %v8150
          %v8152 = vpop.xlane.xlu0 %8151
          %v8153 = vsel %vm6527, %v7887, -inf
          %8154 = vmax.xlane.f32.xlu0 %v8153
          %v8155 = vpop.xlane.xlu0 %8154
          %v8156 = vsel %vm6527, %v7888, -inf
          %8157 = vmax.xlane.f32.xlu0 %v8156
          %v8158 = vpop.xlane.xlu0 %8157
          %v8159 = vsel %vm6527, %v7889, -inf
          %8160 = vmax.xlane.f32.xlu0 %v8159
          %v8161 = vpop.xlane.xlu0 %8160
          %v8162 = vsel %vm6527, %v7890, -inf
          %8163 = vmax.xlane.f32.xlu0 %v8162
          %v8164 = vpop.xlane.xlu0 %8163
          %v8165 = vsel %vm6527, %v7891, -inf
          %8166 = vmax.xlane.f32.xlu0 %v8165
          %v8167 = vpop.xlane.xlu0 %8166
          %v8168 = vsel %vm6527, %v7892, -inf
          %8169 = vmax.xlane.f32.xlu0 %v8168
          %v8170 = vpop.xlane.xlu0 %8169
          %v8171 = vsel %vm6527, %v7893, -inf
          %8172 = vmax.xlane.f32.xlu0 %v8171
          %v8173 = vpop.xlane.xlu0 %8172
          %v8174 = vsel %vm6527, %v7894, -inf
          %8175 = vmax.xlane.f32.xlu0 %v8174
          %v8176 = vpop.xlane.xlu0 %8175
          %v8177 = vsel %vm6527, %v7895, -inf
          %8178 = vmax.xlane.f32.xlu0 %v8177
          %v8179 = vpop.xlane.xlu0 %8178
          %v8180 = vsel %vm6527, %v7896, -inf
          %8181 = vmax.xlane.f32.xlu0 %v8180
          %v8182 = vpop.xlane.xlu0 %8181
          %v8183 = vsel %vm6527, %v7897, -inf
          %8184 = vmax.xlane.f32.xlu0 %v8183
          %v8185 = vpop.xlane.xlu0 %8184
          %v8186 = vsel %vm6527, %v7898, -inf
          %8187 = vmax.xlane.f32.xlu0 %v8186
          %v8188 = vpop.xlane.xlu0 %8187
          %v8189 = vsel %vm6527, %v7899, -inf
          %8190 = vmax.xlane.f32.xlu0 %v8189
          %v8191 = vpop.xlane.xlu0 %8190
          %v8192 = vsel %vm6527, %v7900, -inf
          %8193 = vmax.xlane.f32.xlu0 %v8192
          %v8194 = vpop.xlane.xlu0 %8193
          %v8195 = vsel %vm6527, %v7901, -inf
          %8196 = vmax.xlane.f32.xlu0 %v8195
          %v8197 = vpop.xlane.xlu0 %8196
          %v8198 = vsel %vm6527, %v7902, -inf
          %8199 = vmax.xlane.f32.xlu0 %v8198
          %v8200 = vpop.xlane.xlu0 %8199
          %v8201 = vsel %vm6527, %v7903, -inf
          %8202 = vmax.xlane.f32.xlu0 %v8201
          %v8203 = vpop.xlane.xlu0 %8202
          %v8204 = vsel %vm6527, %v7904, -inf
          %8205 = vmax.xlane.f32.xlu0 %v8204
          %v8206 = vpop.xlane.xlu0 %8205
          %v8207 = vsel %vm6527, %v7905, -inf
          %8208 = vmax.xlane.f32.xlu0 %v8207
          %v8209 = vpop.xlane.xlu0 %8208
          %v8210 = vsel %vm6527, %v7906, -inf
          %8211 = vmax.xlane.f32.xlu0 %v8210
          %v8212 = vpop.xlane.xlu0 %8211
          %v8213 = vsel %vm6527, %v7907, -inf
          %8214 = vmax.xlane.f32.xlu0 %v8213
          %v8215 = vpop.xlane.xlu0 %8214
          %v8216 = vsel %vm6527, %v7908, -inf
          %8217 = vmax.xlane.f32.xlu0 %v8216
          %v8218 = vpop.xlane.xlu0 %8217
          %v8219 = vsel %vm6527, %v7909, -inf
          %8220 = vmax.xlane.f32.xlu0 %v8219
          %v8221 = vpop.xlane.xlu0 %8220
          %v8222 = vsel %vm6527, %v7910, -inf
          %8223 = vmax.xlane.f32.xlu0 %v8222
          %v8224 = vpop.xlane.xlu0 %8223
          %v8225 = vsel %vm6527, %v7911, -inf
          %8226 = vmax.xlane.f32.xlu0 %v8225
          %v8227 = vpop.xlane.xlu0 %8226
          %v8228 = vsel %vm6527, %v7912, -inf
          %8229 = vmax.xlane.f32.xlu0 %v8228
          %v8230 = vpop.xlane.xlu0 %8229
          %v8231 = vsel %vm6527, %v7913, -inf
          %8232 = vmax.xlane.f32.xlu0 %v8231
          %v8233 = vpop.xlane.xlu0 %8232
          %v8234 = vsel %vm6527, %v7914, -inf
          %8235 = vmax.xlane.f32.xlu0 %v8234
          %v8236 = vpop.xlane.xlu0 %8235
          %v8237 = vsel %vm6527, %v7915, -inf
          %8238 = vmax.xlane.f32.xlu0 %v8237
          %v8239 = vpop.xlane.xlu0 %8238
          %v8240 = vsel %vm6527, %v7916, -inf
          %8241 = vmax.xlane.f32.xlu0 %v8240
          %v8242 = vpop.xlane.xlu0 %8241
          %v8243 = vsel %vm6527, %v7917, -inf
          %8244 = vmax.xlane.f32.xlu0 %v8243
          %v8245 = vpop.xlane.xlu0 %8244
          %v8246 = vsel %vm6527, %v7918, -inf
          %8247 = vmax.xlane.f32.xlu0 %v8246
          %v8248 = vpop.xlane.xlu0 %8247
          %v8249 = vsel %vm6527, %v7919, -inf
          %8250 = vmax.xlane.f32.xlu0 %v8249
          %v8251 = vpop.xlane.xlu0 %8250
          %v8252 = vsel %vm6527, %v7920, -inf
          %8253 = vmax.xlane.f32.xlu0 %v8252
          %v8254 = vpop.xlane.xlu0 %8253
          %v8255 = vsel %vm6527, %v7921, -inf
          %8256 = vmax.xlane.f32.xlu0 %v8255
          %v8257 = vpop.xlane.xlu0 %8256
          %v8258 = vsel %vm6527, %v7922, -inf
          %8259 = vmax.xlane.f32.xlu0 %v8258
          %v8260 = vpop.xlane.xlu0 %8259
          %v8261 = vsel %vm6527, %v7923, -inf
          %8262 = vmax.xlane.f32.xlu0 %v8261
          %v8263 = vpop.xlane.xlu0 %8262
          %v8264 = vsel %vm6527, %v7924, -inf
          %8265 = vmax.xlane.f32.xlu0 %v8264
          %v8266 = vpop.xlane.xlu0 %8265
          %v8267 = vsel %vm6527, %v7925, -inf
          %8268 = vmax.xlane.f32.xlu0 %v8267
          %v8269 = vpop.xlane.xlu0 %8268
          %v8270 = vsel %vm6527, %v7926, -inf
          %8271 = vmax.xlane.f32.xlu0 %v8270
          %v8272 = vpop.xlane.xlu0 %8271
          %v8273 = vsel %vm6527, %v7927, -inf
          %8274 = vmax.xlane.f32.xlu0 %v8273
          %v8275 = vpop.xlane.xlu0 %8274
          %v8276 = vsel %vm6527, %v7928, -inf
          %8277 = vmax.xlane.f32.xlu0 %v8276
          %v8278 = vpop.xlane.xlu0 %8277
          %v8279 = vsel %vm6527, %v7929, -inf
          %8280 = vmax.xlane.f32.xlu0 %v8279
          %v8281 = vpop.xlane.xlu0 %8280
          %v8282 = vsel %vm6527, %v7930, -inf
          %8283 = vmax.xlane.f32.xlu0 %v8282
          %v8284 = vpop.xlane.xlu0 %8283
          %v8285 = vsel %vm6527, %v7931, -inf
          %8286 = vmax.xlane.f32.xlu0 %v8285
          %v8287 = vpop.xlane.xlu0 %8286
          %v8288 = vsel %vm6527, %v7932, -inf
          %8289 = vmax.xlane.f32.xlu0 %v8288
          %v8290 = vpop.xlane.xlu0 %8289
          %v8291 = vsel %vm6527, %v7933, -inf
          %8292 = vmax.xlane.f32.xlu0 %v8291
          %v8293 = vpop.xlane.xlu0 %8292
          %v8294 = vsel %vm6527, %v7934, -inf
          %8295 = vmax.xlane.f32.xlu0 %v8294
          %v8296 = vpop.xlane.xlu0 %8295
          %v8297 = vsel %vm6527, %v7935, -inf
          %8298 = vmax.xlane.f32.xlu0 %v8297
          %v8299 = vpop.xlane.xlu0 %8298
          %v8300 = vsel %vm6527, %v7936, -inf
          %8301 = vmax.xlane.f32.xlu0 %v8300
          %v8302 = vpop.xlane.xlu0 %8301
          %v8303 = vsel %vm6527, %v7937, -inf
          %8304 = vmax.xlane.f32.xlu0 %v8303
          %v8305 = vpop.xlane.xlu0 %8304
          %v8306 = vsel %vm6527, %v7938, -inf
          %8307 = vmax.xlane.f32.xlu0 %v8306
          %v8308 = vpop.xlane.xlu0 %8307
          %v8309 = vsel %vm6527, %v7939, -inf
          %8310 = vmax.xlane.f32.xlu0 %v8309
          %v8311 = vpop.xlane.xlu0 %8310
          %v8312 = vsel %vm6527, %v7940, -inf
          %8313 = vmax.xlane.f32.xlu0 %v8312
          %v8314 = vpop.xlane.xlu0 %8313
          %v8315 = vsel %vm6527, %v7941, -inf
          %8316 = vmax.xlane.f32.xlu0 %v8315
          %v8317 = vpop.xlane.xlu0 %8316
          %v8318 = vsel %vm6527, %v7942, -inf
          %8319 = vmax.xlane.f32.xlu0 %v8318
          %v8320 = vpop.xlane.xlu0 %8319
          %v8321 = vsel %vm6527, %v7943, -inf
          %8322 = vmax.xlane.f32.xlu0 %v8321
          %v8323 = vpop.xlane.xlu0 %8322
          %v8324 = vsel %vm6527, %v7944, -inf
          %8325 = vmax.xlane.f32.xlu0 %v8324
          %v8326 = vpop.xlane.xlu0 %8325
          %v8327 = vsel %vm6527, %v7945, -inf
          %8328 = vmax.xlane.f32.xlu0 %v8327
          %v8329 = vpop.xlane.xlu0 %8328
          %v8330 = vsel %vm6527, %v7946, -inf
          %8331 = vmax.xlane.f32.xlu0 %v8330
          %v8332 = vpop.xlane.xlu0 %8331
          %vm8333 = vcmp.eq.f32.partialorder %v7819, %v7951
          %vm8334 = vcmp.eq.f32.partialorder %v7820, %v7954
          %vm8335 = vcmp.eq.f32.partialorder %v7821, %v7957
          %vm8336 = vcmp.eq.f32.partialorder %v7822, %v7960
          %vm8337 = vcmp.eq.f32.partialorder %v7823, %v7963
          %vm8338 = vcmp.eq.f32.partialorder %v7824, %v7966
          %vm8339 = vcmp.eq.f32.partialorder %v7825, %v7969
          %vm8340 = vcmp.eq.f32.partialorder %v7826, %v7972
          %vm8341 = vcmp.eq.f32.partialorder %v7827, %v7975
          %vm8342 = vcmp.eq.f32.partialorder %v7828, %v7978
          %vm8343 = vcmp.eq.f32.partialorder %v7829, %v7981
          %vm8344 = vcmp.eq.f32.partialorder %v7830, %v7984
          %vm8345 = vcmp.eq.f32.partialorder %v7831, %v7987
          %vm8346 = vcmp.eq.f32.partialorder %v7832, %v7990
          %vm8347 = vcmp.eq.f32.partialorder %v7833, %v7993
          %vm8348 = vcmp.eq.f32.partialorder %v7834, %v7996
          %vm8349 = vcmp.eq.f32.partialorder %v7835, %v7999
          %vm8350 = vcmp.eq.f32.partialorder %v7836, %v8002
          %vm8351 = vcmp.eq.f32.partialorder %v7837, %v8005
          %vm8352 = vcmp.eq.f32.partialorder %v7838, %v8008
          %vm8353 = vcmp.eq.f32.partialorder %v7839, %v8011
          %vm8354 = vcmp.eq.f32.partialorder %v7840, %v8014
          %vm8355 = vcmp.eq.f32.partialorder %v7841, %v8017
          %vm8356 = vcmp.eq.f32.partialorder %v7842, %v8020
          %vm8357 = vcmp.eq.f32.partialorder %v7843, %v8023
          %vm8358 = vcmp.eq.f32.partialorder %v7844, %v8026
          %vm8359 = vcmp.eq.f32.partialorder %v7845, %v8029
          %vm8360 = vcmp.eq.f32.partialorder %v7846, %v8032
          %vm8361 = vcmp.eq.f32.partialorder %v7847, %v8035
          %vm8362 = vcmp.eq.f32.partialorder %v7848, %v8038
          %vm8363 = vcmp.eq.f32.partialorder %v7849, %v8041
          %vm8364 = vcmp.eq.f32.partialorder %v7850, %v8044
          %vm8365 = vcmp.eq.f32.partialorder %v7851, %v8047
          %vm8366 = vcmp.eq.f32.partialorder %v7852, %v8050
          %vm8367 = vcmp.eq.f32.partialorder %v7853, %v8053
          %vm8368 = vcmp.eq.f32.partialorder %v7854, %v8056
          %vm8369 = vcmp.eq.f32.partialorder %v7855, %v8059
          %vm8370 = vcmp.eq.f32.partialorder %v7856, %v8062
          %vm8371 = vcmp.eq.f32.partialorder %v7857, %v8065
          %vm8372 = vcmp.eq.f32.partialorder %v7858, %v8068
          %vm8373 = vcmp.eq.f32.partialorder %v7859, %v8071
          %vm8374 = vcmp.eq.f32.partialorder %v7860, %v8074
          %vm8375 = vcmp.eq.f32.partialorder %v7861, %v8077
          %vm8376 = vcmp.eq.f32.partialorder %v7862, %v8080
          %vm8377 = vcmp.eq.f32.partialorder %v7863, %v8083
          %vm8378 = vcmp.eq.f32.partialorder %v7864, %v8086
          %vm8379 = vcmp.eq.f32.partialorder %v7865, %v8089
          %vm8380 = vcmp.eq.f32.partialorder %v7866, %v8092
          %vm8381 = vcmp.eq.f32.partialorder %v7867, %v8095
          %vm8382 = vcmp.eq.f32.partialorder %v7868, %v8098
          %vm8383 = vcmp.eq.f32.partialorder %v7869, %v8101
          %vm8384 = vcmp.eq.f32.partialorder %v7870, %v8104
          %vm8385 = vcmp.eq.f32.partialorder %v7871, %v8107
          %vm8386 = vcmp.eq.f32.partialorder %v7872, %v8110
          %vm8387 = vcmp.eq.f32.partialorder %v7873, %v8113
          %vm8388 = vcmp.eq.f32.partialorder %v7874, %v8116
          %vm8389 = vcmp.eq.f32.partialorder %v7875, %v8119
          %vm8390 = vcmp.eq.f32.partialorder %v7876, %v8122
          %vm8391 = vcmp.eq.f32.partialorder %v7877, %v8125
          %vm8392 = vcmp.eq.f32.partialorder %v7878, %v8128
          %vm8393 = vcmp.eq.f32.partialorder %v7879, %v8131
          %vm8394 = vcmp.eq.f32.partialorder %v7880, %v8134
          %vm8395 = vcmp.eq.f32.partialorder %v7881, %v8137
          %vm8396 = vcmp.eq.f32.partialorder %v7882, %v8140
          %vm8397 = vcmp.eq.f32.partialorder %v7883, %v8143
          %vm8398 = vcmp.eq.f32.partialorder %v7884, %v8146
          %vm8399 = vcmp.eq.f32.partialorder %v7885, %v8149
          %vm8400 = vcmp.eq.f32.partialorder %v7886, %v8152
          %vm8401 = vcmp.eq.f32.partialorder %v7887, %v8155
          %vm8402 = vcmp.eq.f32.partialorder %v7888, %v8158
          %vm8403 = vcmp.eq.f32.partialorder %v7889, %v8161
          %vm8404 = vcmp.eq.f32.partialorder %v7890, %v8164
          %vm8405 = vcmp.eq.f32.partialorder %v7891, %v8167
          %vm8406 = vcmp.eq.f32.partialorder %v7892, %v8170
          %vm8407 = vcmp.eq.f32.partialorder %v7893, %v8173
          %vm8408 = vcmp.eq.f32.partialorder %v7894, %v8176
          %vm8409 = vcmp.eq.f32.partialorder %v7895, %v8179
          %vm8410 = vcmp.eq.f32.partialorder %v7896, %v8182
          %vm8411 = vcmp.eq.f32.partialorder %v7897, %v8185
          %vm8412 = vcmp.eq.f32.partialorder %v7898, %v8188
          %vm8413 = vcmp.eq.f32.partialorder %v7899, %v8191
          %vm8414 = vcmp.eq.f32.partialorder %v7900, %v8194
          %vm8415 = vcmp.eq.f32.partialorder %v7901, %v8197
          %vm8416 = vcmp.eq.f32.partialorder %v7902, %v8200
          %vm8417 = vcmp.eq.f32.partialorder %v7903, %v8203
          %vm8418 = vcmp.eq.f32.partialorder %v7904, %v8206
          %vm8419 = vcmp.eq.f32.partialorder %v7905, %v8209
          %vm8420 = vcmp.eq.f32.partialorder %v7906, %v8212
          %vm8421 = vcmp.eq.f32.partialorder %v7907, %v8215
          %vm8422 = vcmp.eq.f32.partialorder %v7908, %v8218
          %vm8423 = vcmp.eq.f32.partialorder %v7909, %v8221
          %vm8424 = vcmp.eq.f32.partialorder %v7910, %v8224
          %vm8425 = vcmp.eq.f32.partialorder %v7911, %v8227
          %vm8426 = vcmp.eq.f32.partialorder %v7912, %v8230
          %vm8427 = vcmp.eq.f32.partialorder %v7913, %v8233
          %vm8428 = vcmp.eq.f32.partialorder %v7914, %v8236
          %vm8429 = vcmp.eq.f32.partialorder %v7915, %v8239
          %vm8430 = vcmp.eq.f32.partialorder %v7916, %v8242
          %vm8431 = vcmp.eq.f32.partialorder %v7917, %v8245
          %vm8432 = vcmp.eq.f32.partialorder %v7918, %v8248
          %vm8433 = vcmp.eq.f32.partialorder %v7919, %v8251
          %vm8434 = vcmp.eq.f32.partialorder %v7920, %v8254
          %vm8435 = vcmp.eq.f32.partialorder %v7921, %v8257
          %vm8436 = vcmp.eq.f32.partialorder %v7922, %v8260
          %vm8437 = vcmp.eq.f32.partialorder %v7923, %v8263
          %vm8438 = vcmp.eq.f32.partialorder %v7924, %v8266
          %vm8439 = vcmp.eq.f32.partialorder %v7925, %v8269
          %vm8440 = vcmp.eq.f32.partialorder %v7926, %v8272
          %vm8441 = vcmp.eq.f32.partialorder %v7927, %v8275
          %vm8442 = vcmp.eq.f32.partialorder %v7928, %v8278
          %vm8443 = vcmp.eq.f32.partialorder %v7929, %v8281
          %vm8444 = vcmp.eq.f32.partialorder %v7930, %v8284
          %vm8445 = vcmp.eq.f32.partialorder %v7931, %v8287
          %vm8446 = vcmp.eq.f32.partialorder %v7932, %v8290
          %vm8447 = vcmp.eq.f32.partialorder %v7933, %v8293
          %vm8448 = vcmp.eq.f32.partialorder %v7934, %v8296
          %vm8449 = vcmp.eq.f32.partialorder %v7935, %v8299
          %vm8450 = vcmp.eq.f32.partialorder %v7936, %v8302
          %vm8451 = vcmp.eq.f32.partialorder %v7937, %v8305
          %vm8452 = vcmp.eq.f32.partialorder %v7938, %v8308
          %vm8453 = vcmp.eq.f32.partialorder %v7939, %v8311
          %vm8454 = vcmp.eq.f32.partialorder %v7940, %v8314
          %vm8455 = vcmp.eq.f32.partialorder %v7941, %v8317
          %vm8456 = vcmp.eq.f32.partialorder %v7942, %v8320
          %vm8457 = vcmp.eq.f32.partialorder %v7943, %v8323
          %vm8458 = vcmp.eq.f32.partialorder %v7944, %v8326
          %vm8459 = vcmp.eq.f32.partialorder %v7945, %v8329
          %vm8460 = vcmp.eq.f32.partialorder %v7946, %v8332
          %v8461 = vsel %vm8333, %v7948, 8
          %v8462 = vsel %vm8334, %v7948, 8
          %v8463 = vsel %vm8335, %v7948, 8
          %v8464 = vsel %vm8336, %v7948, 8
          %v8465 = vsel %vm8337, %v7948, 8
          %v8466 = vsel %vm8338, %v7948, 8
          %v8467 = vsel %vm8339, %v7948, 8
          %v8468 = vsel %vm8340, %v7948, 8
          %v8469 = vsel %vm8341, %v7948, 8
          %v8470 = vsel %vm8342, %v7948, 8
          %v8471 = vsel %vm8343, %v7948, 8
          %v8472 = vsel %vm8344, %v7948, 8
          %v8473 = vsel %vm8345, %v7948, 8
          %v8474 = vsel %vm8346, %v7948, 8
          %v8475 = vsel %vm8347, %v7948, 8
          %v8476 = vsel %vm8348, %v7948, 8
          %v8477 = vsel %vm8349, %v7948, 8
          %v8478 = vsel %vm8350, %v7948, 8
          %v8479 = vsel %vm8351, %v7948, 8
          %v8480 = vsel %vm8352, %v7948, 8
          %v8481 = vsel %vm8353, %v7948, 8
          %v8482 = vsel %vm8354, %v7948, 8
          %v8483 = vsel %vm8355, %v7948, 8
          %v8484 = vsel %vm8356, %v7948, 8
          %v8485 = vsel %vm8357, %v7948, 8
          %v8486 = vsel %vm8358, %v7948, 8
          %v8487 = vsel %vm8359, %v7948, 8
          %v8488 = vsel %vm8360, %v7948, 8
          %v8489 = vsel %vm8361, %v7948, 8
          %v8490 = vsel %vm8362, %v7948, 8
          %v8491 = vsel %vm8363, %v7948, 8
          %v8492 = vsel %vm8364, %v7948, 8
          %v8493 = vsel %vm8365, %v7948, 8
          %v8494 = vsel %vm8366, %v7948, 8
          %v8495 = vsel %vm8367, %v7948, 8
          %v8496 = vsel %vm8368, %v7948, 8
          %v8497 = vsel %vm8369, %v7948, 8
          %v8498 = vsel %vm8370, %v7948, 8
          %v8499 = vsel %vm8371, %v7948, 8
          %v8500 = vsel %vm8372, %v7948, 8
          %v8501 = vsel %vm8373, %v7948, 8
          %v8502 = vsel %vm8374, %v7948, 8
          %v8503 = vsel %vm8375, %v7948, 8
          %v8504 = vsel %vm8376, %v7948, 8
          %v8505 = vsel %vm8377, %v7948, 8
          %v8506 = vsel %vm8378, %v7948, 8
          %v8507 = vsel %vm8379, %v7948, 8
          %v8508 = vsel %vm8380, %v7948, 8
          %v8509 = vsel %vm8381, %v7948, 8
          %v8510 = vsel %vm8382, %v7948, 8
          %v8511 = vsel %vm8383, %v7948, 8
          %v8512 = vsel %vm8384, %v7948, 8
          %v8513 = vsel %vm8385, %v7948, 8
          %v8514 = vsel %vm8386, %v7948, 8
          %v8515 = vsel %vm8387, %v7948, 8
          %v8516 = vsel %vm8388, %v7948, 8
          %v8517 = vsel %vm8389, %v7948, 8
          %v8518 = vsel %vm8390, %v7948, 8
          %v8519 = vsel %vm8391, %v7948, 8
          %v8520 = vsel %vm8392, %v7948, 8
          %v8521 = vsel %vm8393, %v7948, 8
          %v8522 = vsel %vm8394, %v7948, 8
          %v8523 = vsel %vm8395, %v7948, 8
          %v8524 = vsel %vm8396, %v7948, 8
          %v8525 = vsel %vm8397, %v7948, 8
          %v8526 = vsel %vm8398, %v7948, 8
          %v8527 = vsel %vm8399, %v7948, 8
          %v8528 = vsel %vm8400, %v7948, 8
          %v8529 = vsel %vm8401, %v7948, 8
          %v8530 = vsel %vm8402, %v7948, 8
          %v8531 = vsel %vm8403, %v7948, 8
          %v8532 = vsel %vm8404, %v7948, 8
          %v8533 = vsel %vm8405, %v7948, 8
          %v8534 = vsel %vm8406, %v7948, 8
          %v8535 = vsel %vm8407, %v7948, 8
          %v8536 = vsel %vm8408, %v7948, 8
          %v8537 = vsel %vm8409, %v7948, 8
          %v8538 = vsel %vm8410, %v7948, 8
          %v8539 = vsel %vm8411, %v7948, 8
          %v8540 = vsel %vm8412, %v7948, 8
          %v8541 = vsel %vm8413, %v7948, 8
          %v8542 = vsel %vm8414, %v7948, 8
          %v8543 = vsel %vm8415, %v7948, 8
          %v8544 = vsel %vm8416, %v7948, 8
          %v8545 = vsel %vm8417, %v7948, 8
          %v8546 = vsel %vm8418, %v7948, 8
          %v8547 = vsel %vm8419, %v7948, 8
          %v8548 = vsel %vm8420, %v7948, 8
          %v8549 = vsel %vm8421, %v7948, 8
          %v8550 = vsel %vm8422, %v7948, 8
          %v8551 = vsel %vm8423, %v7948, 8
          %v8552 = vsel %vm8424, %v7948, 8
          %v8553 = vsel %vm8425, %v7948, 8
          %v8554 = vsel %vm8426, %v7948, 8
          %v8555 = vsel %vm8427, %v7948, 8
          %v8556 = vsel %vm8428, %v7948, 8
          %v8557 = vsel %vm8429, %v7948, 8
          %v8558 = vsel %vm8430, %v7948, 8
          %v8559 = vsel %vm8431, %v7948, 8
          %v8560 = vsel %vm8432, %v7948, 8
          %v8561 = vsel %vm8433, %v7948, 8
          %v8562 = vsel %vm8434, %v7948, 8
          %v8563 = vsel %vm8435, %v7948, 8
          %v8564 = vsel %vm8436, %v7948, 8
          %v8565 = vsel %vm8437, %v7948, 8
          %v8566 = vsel %vm8438, %v7948, 8
          %v8567 = vsel %vm8439, %v7948, 8
          %v8568 = vsel %vm8440, %v7948, 8
          %v8569 = vsel %vm8441, %v7948, 8
          %v8570 = vsel %vm8442, %v7948, 8
          %v8571 = vsel %vm8443, %v7948, 8
          %v8572 = vsel %vm8444, %v7948, 8
          %v8573 = vsel %vm8445, %v7948, 8
          %v8574 = vsel %vm8446, %v7948, 8
          %v8575 = vsel %vm8447, %v7948, 8
          %v8576 = vsel %vm8448, %v7948, 8
          %v8577 = vsel %vm8449, %v7948, 8
          %v8578 = vsel %vm8450, %v7948, 8
          %v8579 = vsel %vm8451, %v7948, 8
          %v8580 = vsel %vm8452, %v7948, 8
          %v8581 = vsel %vm8453, %v7948, 8
          %v8582 = vsel %vm8454, %v7948, 8
          %v8583 = vsel %vm8455, %v7948, 8
          %v8584 = vsel %vm8456, %v7948, 8
          %v8585 = vsel %vm8457, %v7948, 8
          %v8586 = vsel %vm8458, %v7948, 8
          %v8587 = vsel %vm8459, %v7948, 8
          %v8588 = vsel %vm8460, %v7948, 8
          %v8589 = vsel %vm6527, %v8461, 2147483647
          %v8590 = vand.u32 %v8589, 65535
          %v8591 = vshra.s32 %v8589, 16
          %v8592 = vcvt.s32.f32 %v8590
          %v8593 = vcvt.s32.f32 %v8591
          %8594 = vmin.xlane.f32.xlu0 %v8593
          %v8595 = vpop.xlane.xlu0 %8594
          %vm8596 = vcmp.eq.f32.partialorder %v8593, %v8595
          %v8597 = vsel %vm8596, %v8592, inf
          %8598 = vmin.xlane.f32.xlu0 %v8597
          %v8599 = vpop.xlane.xlu0 %8598
          %v8600 = vcvt.f32.s32 %v8599
          %v8601 = vcvt.f32.s32 %v8595
          %v8602 = vshll.u32 %v8601, 16
          %v8603 = vadd.s32 %v8602, %v8600
          %v8604 = vsel %vm6527, %v8462, 2147483647
          %v8605 = vand.u32 %v8604, 65535
          %v8606 = vshra.s32 %v8604, 16
          %v8607 = vcvt.s32.f32 %v8605
          %v8608 = vcvt.s32.f32 %v8606
          %8609 = vmin.xlane.f32.xlu0 %v8608
          %v8610 = vpop.xlane.xlu0 %8609
          %vm8611 = vcmp.eq.f32.partialorder %v8608, %v8610
          %v8612 = vsel %vm8611, %v8607, inf
          %8613 = vmin.xlane.f32.xlu0 %v8612
          %v8614 = vpop.xlane.xlu0 %8613
          %v8615 = vcvt.f32.s32 %v8614
          %v8616 = vcvt.f32.s32 %v8610
          %v8617 = vshll.u32 %v8616, 16
          %v8618 = vadd.s32 %v8617, %v8615
          %v8619 = vsel %vm6527, %v8463, 2147483647
          %v8620 = vand.u32 %v8619, 65535
          %v8621 = vshra.s32 %v8619, 16
          %v8622 = vcvt.s32.f32 %v8620
          %v8623 = vcvt.s32.f32 %v8621
          %8624 = vmin.xlane.f32.xlu0 %v8623
          %v8625 = vpop.xlane.xlu0 %8624
          %vm8626 = vcmp.eq.f32.partialorder %v8623, %v8625
          %v8627 = vsel %vm8626, %v8622, inf
          %8628 = vmin.xlane.f32.xlu0 %v8627
          %v8629 = vpop.xlane.xlu0 %8628
          %v8630 = vcvt.f32.s32 %v8629
          %v8631 = vcvt.f32.s32 %v8625
          %v8632 = vshll.u32 %v8631, 16
          %v8633 = vadd.s32 %v8632, %v8630
          %v8634 = vsel %vm6527, %v8464, 2147483647
          %v8635 = vand.u32 %v8634, 65535
          %v8636 = vshra.s32 %v8634, 16
          %v8637 = vcvt.s32.f32 %v8635
          %v8638 = vcvt.s32.f32 %v8636
          %8639 = vmin.xlane.f32.xlu0 %v8638
          %v8640 = vpop.xlane.xlu0 %8639
          %vm8641 = vcmp.eq.f32.partialorder %v8638, %v8640
          %v8642 = vsel %vm8641, %v8637, inf
          %8643 = vmin.xlane.f32.xlu0 %v8642
          %v8644 = vpop.xlane.xlu0 %8643
          %v8645 = vcvt.f32.s32 %v8644
          %v8646 = vcvt.f32.s32 %v8640
          %v8647 = vshll.u32 %v8646, 16
          %v8648 = vadd.s32 %v8647, %v8645
          %v8649 = vsel %vm6527, %v8465, 2147483647
          %v8650 = vand.u32 %v8649, 65535
          %v8651 = vshra.s32 %v8649, 16
          %v8652 = vcvt.s32.f32 %v8650
          %v8653 = vcvt.s32.f32 %v8651
          %8654 = vmin.xlane.f32.xlu0 %v8653
          %v8655 = vpop.xlane.xlu0 %8654
          %vm8656 = vcmp.eq.f32.partialorder %v8653, %v8655
          %v8657 = vsel %vm8656, %v8652, inf
          %8658 = vmin.xlane.f32.xlu0 %v8657
          %v8659 = vpop.xlane.xlu0 %8658
          %v8660 = vcvt.f32.s32 %v8659
          %v8661 = vcvt.f32.s32 %v8655
          %v8662 = vshll.u32 %v8661, 16
          %v8663 = vadd.s32 %v8662, %v8660
          %v8664 = vsel %vm6527, %v8466, 2147483647
          %v8665 = vand.u32 %v8664, 65535
          %v8666 = vshra.s32 %v8664, 16
          %v8667 = vcvt.s32.f32 %v8665
          %v8668 = vcvt.s32.f32 %v8666
          %8669 = vmin.xlane.f32.xlu0 %v8668
          %v8670 = vpop.xlane.xlu0 %8669
          %vm8671 = vcmp.eq.f32.partialorder %v8668, %v8670
          %v8672 = vsel %vm8671, %v8667, inf
          %8673 = vmin.xlane.f32.xlu0 %v8672
          %v8674 = vpop.xlane.xlu0 %8673
          %v8675 = vcvt.f32.s32 %v8674
          %v8676 = vcvt.f32.s32 %v8670
          %v8677 = vshll.u32 %v8676, 16
          %v8678 = vadd.s32 %v8677, %v8675
          %v8679 = vsel %vm6527, %v8467, 2147483647
          %v8680 = vand.u32 %v8679, 65535
          %v8681 = vshra.s32 %v8679, 16
          %v8682 = vcvt.s32.f32 %v8680
          %v8683 = vcvt.s32.f32 %v8681
          %8684 = vmin.xlane.f32.xlu0 %v8683
          %v8685 = vpop.xlane.xlu0 %8684
          %vm8686 = vcmp.eq.f32.partialorder %v8683, %v8685
          %v8687 = vsel %vm8686, %v8682, inf
          %8688 = vmin.xlane.f32.xlu0 %v8687
          %v8689 = vpop.xlane.xlu0 %8688
          %v8690 = vcvt.f32.s32 %v8689
          %v8691 = vcvt.f32.s32 %v8685
          %v8692 = vshll.u32 %v8691, 16
          %v8693 = vadd.s32 %v8692, %v8690
          %v8694 = vsel %vm6527, %v8468, 2147483647
          %v8695 = vand.u32 %v8694, 65535
          %v8696 = vshra.s32 %v8694, 16
          %v8697 = vcvt.s32.f32 %v8695
          %v8698 = vcvt.s32.f32 %v8696
          %8699 = vmin.xlane.f32.xlu0 %v8698
          %v8700 = vpop.xlane.xlu0 %8699
          %vm8701 = vcmp.eq.f32.partialorder %v8698, %v8700
          %v8702 = vsel %vm8701, %v8697, inf
          %8703 = vmin.xlane.f32.xlu0 %v8702
          %v8704 = vpop.xlane.xlu0 %8703
          %v8705 = vcvt.f32.s32 %v8704
          %v8706 = vcvt.f32.s32 %v8700
          %v8707 = vshll.u32 %v8706, 16
          %v8708 = vadd.s32 %v8707, %v8705
          %v8709 = vsel %vm6527, %v8469, 2147483647
          %v8710 = vand.u32 %v8709, 65535
          %v8711 = vshra.s32 %v8709, 16
          %v8712 = vcvt.s32.f32 %v8710
          %v8713 = vcvt.s32.f32 %v8711
          %8714 = vmin.xlane.f32.xlu0 %v8713
          %v8715 = vpop.xlane.xlu0 %8714
          %vm8716 = vcmp.eq.f32.partialorder %v8713, %v8715
          %v8717 = vsel %vm8716, %v8712, inf
          %8718 = vmin.xlane.f32.xlu0 %v8717
          %v8719 = vpop.xlane.xlu0 %8718
          %v8720 = vcvt.f32.s32 %v8719
          %v8721 = vcvt.f32.s32 %v8715
          %v8722 = vshll.u32 %v8721, 16
          %v8723 = vadd.s32 %v8722, %v8720
          %v8724 = vsel %vm6527, %v8470, 2147483647
          %v8725 = vand.u32 %v8724, 65535
          %v8726 = vshra.s32 %v8724, 16
          %v8727 = vcvt.s32.f32 %v8725
          %v8728 = vcvt.s32.f32 %v8726
          %8729 = vmin.xlane.f32.xlu0 %v8728
          %v8730 = vpop.xlane.xlu0 %8729
          %vm8731 = vcmp.eq.f32.partialorder %v8728, %v8730
          %v8732 = vsel %vm8731, %v8727, inf
          %8733 = vmin.xlane.f32.xlu0 %v8732
          %v8734 = vpop.xlane.xlu0 %8733
          %v8735 = vcvt.f32.s32 %v8734
          %v8736 = vcvt.f32.s32 %v8730
          %v8737 = vshll.u32 %v8736, 16
          %v8738 = vadd.s32 %v8737, %v8735
          %v8739 = vsel %vm6527, %v8471, 2147483647
          %v8740 = vand.u32 %v8739, 65535
          %v8741 = vshra.s32 %v8739, 16
          %v8742 = vcvt.s32.f32 %v8740
          %v8743 = vcvt.s32.f32 %v8741
          %8744 = vmin.xlane.f32.xlu0 %v8743
          %v8745 = vpop.xlane.xlu0 %8744
          %vm8746 = vcmp.eq.f32.partialorder %v8743, %v8745
          %v8747 = vsel %vm8746, %v8742, inf
          %8748 = vmin.xlane.f32.xlu0 %v8747
          %v8749 = vpop.xlane.xlu0 %8748
          %v8750 = vcvt.f32.s32 %v8749
          %v8751 = vcvt.f32.s32 %v8745
          %v8752 = vshll.u32 %v8751, 16
          %v8753 = vadd.s32 %v8752, %v8750
          %v8754 = vsel %vm6527, %v8472, 2147483647
          %v8755 = vand.u32 %v8754, 65535
          %v8756 = vshra.s32 %v8754, 16
          %v8757 = vcvt.s32.f32 %v8755
          %v8758 = vcvt.s32.f32 %v8756
          %8759 = vmin.xlane.f32.xlu0 %v8758
          %v8760 = vpop.xlane.xlu0 %8759
          %vm8761 = vcmp.eq.f32.partialorder %v8758, %v8760
          %v8762 = vsel %vm8761, %v8757, inf
          %8763 = vmin.xlane.f32.xlu0 %v8762
          %v8764 = vpop.xlane.xlu0 %8763
          %v8765 = vcvt.f32.s32 %v8764
          %v8766 = vcvt.f32.s32 %v8760
          %v8767 = vshll.u32 %v8766, 16
          %v8768 = vadd.s32 %v8767, %v8765
          %v8769 = vsel %vm6527, %v8473, 2147483647
          %v8770 = vand.u32 %v8769, 65535
          %v8771 = vshra.s32 %v8769, 16
          %v8772 = vcvt.s32.f32 %v8770
          %v8773 = vcvt.s32.f32 %v8771
          %8774 = vmin.xlane.f32.xlu0 %v8773
          %v8775 = vpop.xlane.xlu0 %8774
          %vm8776 = vcmp.eq.f32.partialorder %v8773, %v8775
          %v8777 = vsel %vm8776, %v8772, inf
          %8778 = vmin.xlane.f32.xlu0 %v8777
          %v8779 = vpop.xlane.xlu0 %8778
          %v8780 = vcvt.f32.s32 %v8779
          %v8781 = vcvt.f32.s32 %v8775
          %v8782 = vshll.u32 %v8781, 16
          %v8783 = vadd.s32 %v8782, %v8780
          %v8784 = vsel %vm6527, %v8474, 2147483647
          %v8785 = vand.u32 %v8784, 65535
          %v8786 = vshra.s32 %v8784, 16
          %v8787 = vcvt.s32.f32 %v8785
          %v8788 = vcvt.s32.f32 %v8786
          %8789 = vmin.xlane.f32.xlu0 %v8788
          %v8790 = vpop.xlane.xlu0 %8789
          %vm8791 = vcmp.eq.f32.partialorder %v8788, %v8790
          %v8792 = vsel %vm8791, %v8787, inf
          %8793 = vmin.xlane.f32.xlu0 %v8792
          %v8794 = vpop.xlane.xlu0 %8793
          %v8795 = vcvt.f32.s32 %v8794
          %v8796 = vcvt.f32.s32 %v8790
          %v8797 = vshll.u32 %v8796, 16
          %v8798 = vadd.s32 %v8797, %v8795
          %v8799 = vsel %vm6527, %v8475, 2147483647
          %v8800 = vand.u32 %v8799, 65535
          %v8801 = vshra.s32 %v8799, 16
          %v8802 = vcvt.s32.f32 %v8800
          %v8803 = vcvt.s32.f32 %v8801
          %8804 = vmin.xlane.f32.xlu0 %v8803
          %v8805 = vpop.xlane.xlu0 %8804
          %vm8806 = vcmp.eq.f32.partialorder %v8803, %v8805
          %v8807 = vsel %vm8806, %v8802, inf
          %8808 = vmin.xlane.f32.xlu0 %v8807
          %v8809 = vpop.xlane.xlu0 %8808
          %v8810 = vcvt.f32.s32 %v8809
          %v8811 = vcvt.f32.s32 %v8805
          %v8812 = vshll.u32 %v8811, 16
          %v8813 = vadd.s32 %v8812, %v8810
          %v8814 = vsel %vm6527, %v8476, 2147483647
          %v8815 = vand.u32 %v8814, 65535
          %v8816 = vshra.s32 %v8814, 16
          %v8817 = vcvt.s32.f32 %v8815
          %v8818 = vcvt.s32.f32 %v8816
          %8819 = vmin.xlane.f32.xlu0 %v8818
          %v8820 = vpop.xlane.xlu0 %8819
          %vm8821 = vcmp.eq.f32.partialorder %v8818, %v8820
          %v8822 = vsel %vm8821, %v8817, inf
          %8823 = vmin.xlane.f32.xlu0 %v8822
          %v8824 = vpop.xlane.xlu0 %8823
          %v8825 = vcvt.f32.s32 %v8824
          %v8826 = vcvt.f32.s32 %v8820
          %v8827 = vshll.u32 %v8826, 16
          %v8828 = vadd.s32 %v8827, %v8825
          %v8829 = vsel %vm6527, %v8477, 2147483647
          %v8830 = vand.u32 %v8829, 65535
          %v8831 = vshra.s32 %v8829, 16
          %v8832 = vcvt.s32.f32 %v8830
          %v8833 = vcvt.s32.f32 %v8831
          %8834 = vmin.xlane.f32.xlu0 %v8833
          %v8835 = vpop.xlane.xlu0 %8834
          %vm8836 = vcmp.eq.f32.partialorder %v8833, %v8835
          %v8837 = vsel %vm8836, %v8832, inf
          %8838 = vmin.xlane.f32.xlu0 %v8837
          %v8839 = vpop.xlane.xlu0 %8838
          %v8840 = vcvt.f32.s32 %v8839
          %v8841 = vcvt.f32.s32 %v8835
          %v8842 = vshll.u32 %v8841, 16
          %v8843 = vadd.s32 %v8842, %v8840
          %v8844 = vsel %vm6527, %v8478, 2147483647
          %v8845 = vand.u32 %v8844, 65535
          %v8846 = vshra.s32 %v8844, 16
          %v8847 = vcvt.s32.f32 %v8845
          %v8848 = vcvt.s32.f32 %v8846
          %8849 = vmin.xlane.f32.xlu0 %v8848
          %v8850 = vpop.xlane.xlu0 %8849
          %vm8851 = vcmp.eq.f32.partialorder %v8848, %v8850
          %v8852 = vsel %vm8851, %v8847, inf
          %8853 = vmin.xlane.f32.xlu0 %v8852
          %v8854 = vpop.xlane.xlu0 %8853
          %v8855 = vcvt.f32.s32 %v8854
          %v8856 = vcvt.f32.s32 %v8850
          %v8857 = vshll.u32 %v8856, 16
          %v8858 = vadd.s32 %v8857, %v8855
          %v8859 = vsel %vm6527, %v8479, 2147483647
          %v8860 = vand.u32 %v8859, 65535
          %v8861 = vshra.s32 %v8859, 16
          %v8862 = vcvt.s32.f32 %v8860
          %v8863 = vcvt.s32.f32 %v8861
          %8864 = vmin.xlane.f32.xlu0 %v8863
          %v8865 = vpop.xlane.xlu0 %8864
          %vm8866 = vcmp.eq.f32.partialorder %v8863, %v8865
          %v8867 = vsel %vm8866, %v8862, inf
          %8868 = vmin.xlane.f32.xlu0 %v8867
          %v8869 = vpop.xlane.xlu0 %8868
          %v8870 = vcvt.f32.s32 %v8869
          %v8871 = vcvt.f32.s32 %v8865
          %v8872 = vshll.u32 %v8871, 16
          %v8873 = vadd.s32 %v8872, %v8870
          %v8874 = vsel %vm6527, %v8480, 2147483647
          %v8875 = vand.u32 %v8874, 65535
          %v8876 = vshra.s32 %v8874, 16
          %v8877 = vcvt.s32.f32 %v8875
          %v8878 = vcvt.s32.f32 %v8876
          %8879 = vmin.xlane.f32.xlu0 %v8878
          %v8880 = vpop.xlane.xlu0 %8879
          %vm8881 = vcmp.eq.f32.partialorder %v8878, %v8880
          %v8882 = vsel %vm8881, %v8877, inf
          %8883 = vmin.xlane.f32.xlu0 %v8882
          %v8884 = vpop.xlane.xlu0 %8883
          %v8885 = vcvt.f32.s32 %v8884
          %v8886 = vcvt.f32.s32 %v8880
          %v8887 = vshll.u32 %v8886, 16
          %v8888 = vadd.s32 %v8887, %v8885
          %v8889 = vsel %vm6527, %v8481, 2147483647
          %v8890 = vand.u32 %v8889, 65535
          %v8891 = vshra.s32 %v8889, 16
          %v8892 = vcvt.s32.f32 %v8890
          %v8893 = vcvt.s32.f32 %v8891
          %8894 = vmin.xlane.f32.xlu0 %v8893
          %v8895 = vpop.xlane.xlu0 %8894
          %vm8896 = vcmp.eq.f32.partialorder %v8893, %v8895
          %v8897 = vsel %vm8896, %v8892, inf
          %8898 = vmin.xlane.f32.xlu0 %v8897
          %v8899 = vpop.xlane.xlu0 %8898
          %v8900 = vcvt.f32.s32 %v8899
          %v8901 = vcvt.f32.s32 %v8895
          %v8902 = vshll.u32 %v8901, 16
          %v8903 = vadd.s32 %v8902, %v8900
          %v8904 = vsel %vm6527, %v8482, 2147483647
          %v8905 = vand.u32 %v8904, 65535
          %v8906 = vshra.s32 %v8904, 16
          %v8907 = vcvt.s32.f32 %v8905
          %v8908 = vcvt.s32.f32 %v8906
          %8909 = vmin.xlane.f32.xlu0 %v8908
          %v8910 = vpop.xlane.xlu0 %8909
          %vm8911 = vcmp.eq.f32.partialorder %v8908, %v8910
          %v8912 = vsel %vm8911, %v8907, inf
          %8913 = vmin.xlane.f32.xlu0 %v8912
          %v8914 = vpop.xlane.xlu0 %8913
          %v8915 = vcvt.f32.s32 %v8914
          %v8916 = vcvt.f32.s32 %v8910
          %v8917 = vshll.u32 %v8916, 16
          %v8918 = vadd.s32 %v8917, %v8915
          %v8919 = vsel %vm6527, %v8483, 2147483647
          %v8920 = vand.u32 %v8919, 65535
          %v8921 = vshra.s32 %v8919, 16
          %v8922 = vcvt.s32.f32 %v8920
          %v8923 = vcvt.s32.f32 %v8921
          %8924 = vmin.xlane.f32.xlu0 %v8923
          %v8925 = vpop.xlane.xlu0 %8924
          %vm8926 = vcmp.eq.f32.partialorder %v8923, %v8925
          %v8927 = vsel %vm8926, %v8922, inf
          %8928 = vmin.xlane.f32.xlu0 %v8927
          %v8929 = vpop.xlane.xlu0 %8928
          %v8930 = vcvt.f32.s32 %v8929
          %v8931 = vcvt.f32.s32 %v8925
          %v8932 = vshll.u32 %v8931, 16
          %v8933 = vadd.s32 %v8932, %v8930
          %v8934 = vsel %vm6527, %v8484, 2147483647
          %v8935 = vand.u32 %v8934, 65535
          %v8936 = vshra.s32 %v8934, 16
          %v8937 = vcvt.s32.f32 %v8935
          %v8938 = vcvt.s32.f32 %v8936
          %8939 = vmin.xlane.f32.xlu0 %v8938
          %v8940 = vpop.xlane.xlu0 %8939
          %vm8941 = vcmp.eq.f32.partialorder %v8938, %v8940
          %v8942 = vsel %vm8941, %v8937, inf
          %8943 = vmin.xlane.f32.xlu0 %v8942
          %v8944 = vpop.xlane.xlu0 %8943
          %v8945 = vcvt.f32.s32 %v8944
          %v8946 = vcvt.f32.s32 %v8940
          %v8947 = vshll.u32 %v8946, 16
          %v8948 = vadd.s32 %v8947, %v8945
          %v8949 = vsel %vm6527, %v8485, 2147483647
          %v8950 = vand.u32 %v8949, 65535
          %v8951 = vshra.s32 %v8949, 16
          %v8952 = vcvt.s32.f32 %v8950
          %v8953 = vcvt.s32.f32 %v8951
          %8954 = vmin.xlane.f32.xlu0 %v8953
          %v8955 = vpop.xlane.xlu0 %8954
          %vm8956 = vcmp.eq.f32.partialorder %v8953, %v8955
          %v8957 = vsel %vm8956, %v8952, inf
          %8958 = vmin.xlane.f32.xlu0 %v8957
          %v8959 = vpop.xlane.xlu0 %8958
          %v8960 = vcvt.f32.s32 %v8959
          %v8961 = vcvt.f32.s32 %v8955
          %v8962 = vshll.u32 %v8961, 16
          %v8963 = vadd.s32 %v8962, %v8960
          %v8964 = vsel %vm6527, %v8486, 2147483647
          %v8965 = vand.u32 %v8964, 65535
          %v8966 = vshra.s32 %v8964, 16
          %v8967 = vcvt.s32.f32 %v8965
          %v8968 = vcvt.s32.f32 %v8966
          %8969 = vmin.xlane.f32.xlu0 %v8968
          %v8970 = vpop.xlane.xlu0 %8969
          %vm8971 = vcmp.eq.f32.partialorder %v8968, %v8970
          %v8972 = vsel %vm8971, %v8967, inf
          %8973 = vmin.xlane.f32.xlu0 %v8972
          %v8974 = vpop.xlane.xlu0 %8973
          %v8975 = vcvt.f32.s32 %v8974
          %v8976 = vcvt.f32.s32 %v8970
          %v8977 = vshll.u32 %v8976, 16
          %v8978 = vadd.s32 %v8977, %v8975
          %v8979 = vsel %vm6527, %v8487, 2147483647
          %v8980 = vand.u32 %v8979, 65535
          %v8981 = vshra.s32 %v8979, 16
          %v8982 = vcvt.s32.f32 %v8980
          %v8983 = vcvt.s32.f32 %v8981
          %8984 = vmin.xlane.f32.xlu0 %v8983
          %v8985 = vpop.xlane.xlu0 %8984
          %vm8986 = vcmp.eq.f32.partialorder %v8983, %v8985
          %v8987 = vsel %vm8986, %v8982, inf
          %8988 = vmin.xlane.f32.xlu0 %v8987
          %v8989 = vpop.xlane.xlu0 %8988
          %v8990 = vcvt.f32.s32 %v8989
          %v8991 = vcvt.f32.s32 %v8985
          %v8992 = vshll.u32 %v8991, 16
          %v8993 = vadd.s32 %v8992, %v8990
          %v8994 = vsel %vm6527, %v8488, 2147483647
          %v8995 = vand.u32 %v8994, 65535
          %v8996 = vshra.s32 %v8994, 16
          %v8997 = vcvt.s32.f32 %v8995
          %v8998 = vcvt.s32.f32 %v8996
          %8999 = vmin.xlane.f32.xlu0 %v8998
          %v9000 = vpop.xlane.xlu0 %8999
          %vm9001 = vcmp.eq.f32.partialorder %v8998, %v9000
          %v9002 = vsel %vm9001, %v8997, inf
          %9003 = vmin.xlane.f32.xlu0 %v9002
          %v9004 = vpop.xlane.xlu0 %9003
          %v9005 = vcvt.f32.s32 %v9004
          %v9006 = vcvt.f32.s32 %v9000
          %v9007 = vshll.u32 %v9006, 16
          %v9008 = vadd.s32 %v9007, %v9005
          %v9009 = vsel %vm6527, %v8489, 2147483647
          %v9010 = vand.u32 %v9009, 65535
          %v9011 = vshra.s32 %v9009, 16
          %v9012 = vcvt.s32.f32 %v9010
          %v9013 = vcvt.s32.f32 %v9011
          %9014 = vmin.xlane.f32.xlu0 %v9013
          %v9015 = vpop.xlane.xlu0 %9014
          %vm9016 = vcmp.eq.f32.partialorder %v9013, %v9015
          %v9017 = vsel %vm9016, %v9012, inf
          %9018 = vmin.xlane.f32.xlu0 %v9017
          %v9019 = vpop.xlane.xlu0 %9018
          %v9020 = vcvt.f32.s32 %v9019
          %v9021 = vcvt.f32.s32 %v9015
          %v9022 = vshll.u32 %v9021, 16
          %v9023 = vadd.s32 %v9022, %v9020
          %v9024 = vsel %vm6527, %v8490, 2147483647
          %v9025 = vand.u32 %v9024, 65535
          %v9026 = vshra.s32 %v9024, 16
          %v9027 = vcvt.s32.f32 %v9025
          %v9028 = vcvt.s32.f32 %v9026
          %9029 = vmin.xlane.f32.xlu0 %v9028
          %v9030 = vpop.xlane.xlu0 %9029
          %vm9031 = vcmp.eq.f32.partialorder %v9028, %v9030
          %v9032 = vsel %vm9031, %v9027, inf
          %9033 = vmin.xlane.f32.xlu0 %v9032
          %v9034 = vpop.xlane.xlu0 %9033
          %v9035 = vcvt.f32.s32 %v9034
          %v9036 = vcvt.f32.s32 %v9030
          %v9037 = vshll.u32 %v9036, 16
          %v9038 = vadd.s32 %v9037, %v9035
          %v9039 = vsel %vm6527, %v8491, 2147483647
          %v9040 = vand.u32 %v9039, 65535
          %v9041 = vshra.s32 %v9039, 16
          %v9042 = vcvt.s32.f32 %v9040
          %v9043 = vcvt.s32.f32 %v9041
          %9044 = vmin.xlane.f32.xlu0 %v9043
          %v9045 = vpop.xlane.xlu0 %9044
          %vm9046 = vcmp.eq.f32.partialorder %v9043, %v9045
          %v9047 = vsel %vm9046, %v9042, inf
          %9048 = vmin.xlane.f32.xlu0 %v9047
          %v9049 = vpop.xlane.xlu0 %9048
          %v9050 = vcvt.f32.s32 %v9049
          %v9051 = vcvt.f32.s32 %v9045
          %v9052 = vshll.u32 %v9051, 16
          %v9053 = vadd.s32 %v9052, %v9050
          %v9054 = vsel %vm6527, %v8492, 2147483647
          %v9055 = vand.u32 %v9054, 65535
          %v9056 = vshra.s32 %v9054, 16
          %v9057 = vcvt.s32.f32 %v9055
          %v9058 = vcvt.s32.f32 %v9056
          %9059 = vmin.xlane.f32.xlu0 %v9058
          %v9060 = vpop.xlane.xlu0 %9059
          %vm9061 = vcmp.eq.f32.partialorder %v9058, %v9060
          %v9062 = vsel %vm9061, %v9057, inf
          %9063 = vmin.xlane.f32.xlu0 %v9062
          %v9064 = vpop.xlane.xlu0 %9063
          %v9065 = vcvt.f32.s32 %v9064
          %v9066 = vcvt.f32.s32 %v9060
          %v9067 = vshll.u32 %v9066, 16
          %v9068 = vadd.s32 %v9067, %v9065
          %v9069 = vsel %vm6527, %v8493, 2147483647
          %v9070 = vand.u32 %v9069, 65535
          %v9071 = vshra.s32 %v9069, 16
          %v9072 = vcvt.s32.f32 %v9070
          %v9073 = vcvt.s32.f32 %v9071
          %9074 = vmin.xlane.f32.xlu0 %v9073
          %v9075 = vpop.xlane.xlu0 %9074
          %vm9076 = vcmp.eq.f32.partialorder %v9073, %v9075
          %v9077 = vsel %vm9076, %v9072, inf
          %9078 = vmin.xlane.f32.xlu0 %v9077
          %v9079 = vpop.xlane.xlu0 %9078
          %v9080 = vcvt.f32.s32 %v9079
          %v9081 = vcvt.f32.s32 %v9075
          %v9082 = vshll.u32 %v9081, 16
          %v9083 = vadd.s32 %v9082, %v9080
          %v9084 = vsel %vm6527, %v8494, 2147483647
          %v9085 = vand.u32 %v9084, 65535
          %v9086 = vshra.s32 %v9084, 16
          %v9087 = vcvt.s32.f32 %v9085
          %v9088 = vcvt.s32.f32 %v9086
          %9089 = vmin.xlane.f32.xlu0 %v9088
          %v9090 = vpop.xlane.xlu0 %9089
          %vm9091 = vcmp.eq.f32.partialorder %v9088, %v9090
          %v9092 = vsel %vm9091, %v9087, inf
          %9093 = vmin.xlane.f32.xlu0 %v9092
          %v9094 = vpop.xlane.xlu0 %9093
          %v9095 = vcvt.f32.s32 %v9094
          %v9096 = vcvt.f32.s32 %v9090
          %v9097 = vshll.u32 %v9096, 16
          %v9098 = vadd.s32 %v9097, %v9095
          %v9099 = vsel %vm6527, %v8495, 2147483647
          %v9100 = vand.u32 %v9099, 65535
          %v9101 = vshra.s32 %v9099, 16
          %v9102 = vcvt.s32.f32 %v9100
          %v9103 = vcvt.s32.f32 %v9101
          %9104 = vmin.xlane.f32.xlu0 %v9103
          %v9105 = vpop.xlane.xlu0 %9104
          %vm9106 = vcmp.eq.f32.partialorder %v9103, %v9105
          %v9107 = vsel %vm9106, %v9102, inf
          %9108 = vmin.xlane.f32.xlu0 %v9107
          %v9109 = vpop.xlane.xlu0 %9108
          %v9110 = vcvt.f32.s32 %v9109
          %v9111 = vcvt.f32.s32 %v9105
          %v9112 = vshll.u32 %v9111, 16
          %v9113 = vadd.s32 %v9112, %v9110
          %v9114 = vsel %vm6527, %v8496, 2147483647
          %v9115 = vand.u32 %v9114, 65535
          %v9116 = vshra.s32 %v9114, 16
          %v9117 = vcvt.s32.f32 %v9115
          %v9118 = vcvt.s32.f32 %v9116
          %9119 = vmin.xlane.f32.xlu0 %v9118
          %v9120 = vpop.xlane.xlu0 %9119
          %vm9121 = vcmp.eq.f32.partialorder %v9118, %v9120
          %v9122 = vsel %vm9121, %v9117, inf
          %9123 = vmin.xlane.f32.xlu0 %v9122
          %v9124 = vpop.xlane.xlu0 %9123
          %v9125 = vcvt.f32.s32 %v9124
          %v9126 = vcvt.f32.s32 %v9120
          %v9127 = vshll.u32 %v9126, 16
          %v9128 = vadd.s32 %v9127, %v9125
          %v9129 = vsel %vm6527, %v8497, 2147483647
          %v9130 = vand.u32 %v9129, 65535
          %v9131 = vshra.s32 %v9129, 16
          %v9132 = vcvt.s32.f32 %v9130
          %v9133 = vcvt.s32.f32 %v9131
          %9134 = vmin.xlane.f32.xlu0 %v9133
          %v9135 = vpop.xlane.xlu0 %9134
          %vm9136 = vcmp.eq.f32.partialorder %v9133, %v9135
          %v9137 = vsel %vm9136, %v9132, inf
          %9138 = vmin.xlane.f32.xlu0 %v9137
          %v9139 = vpop.xlane.xlu0 %9138
          %v9140 = vcvt.f32.s32 %v9139
          %v9141 = vcvt.f32.s32 %v9135
          %v9142 = vshll.u32 %v9141, 16
          %v9143 = vadd.s32 %v9142, %v9140
          %v9144 = vsel %vm6527, %v8498, 2147483647
          %v9145 = vand.u32 %v9144, 65535
          %v9146 = vshra.s32 %v9144, 16
          %v9147 = vcvt.s32.f32 %v9145
          %v9148 = vcvt.s32.f32 %v9146
          %9149 = vmin.xlane.f32.xlu0 %v9148
          %v9150 = vpop.xlane.xlu0 %9149
          %vm9151 = vcmp.eq.f32.partialorder %v9148, %v9150
          %v9152 = vsel %vm9151, %v9147, inf
          %9153 = vmin.xlane.f32.xlu0 %v9152
          %v9154 = vpop.xlane.xlu0 %9153
          %v9155 = vcvt.f32.s32 %v9154
          %v9156 = vcvt.f32.s32 %v9150
          %v9157 = vshll.u32 %v9156, 16
          %v9158 = vadd.s32 %v9157, %v9155
          %v9159 = vsel %vm6527, %v8499, 2147483647
          %v9160 = vand.u32 %v9159, 65535
          %v9161 = vshra.s32 %v9159, 16
          %v9162 = vcvt.s32.f32 %v9160
          %v9163 = vcvt.s32.f32 %v9161
          %9164 = vmin.xlane.f32.xlu0 %v9163
          %v9165 = vpop.xlane.xlu0 %9164
          %vm9166 = vcmp.eq.f32.partialorder %v9163, %v9165
          %v9167 = vsel %vm9166, %v9162, inf
          %9168 = vmin.xlane.f32.xlu0 %v9167
          %v9169 = vpop.xlane.xlu0 %9168
          %v9170 = vcvt.f32.s32 %v9169
          %v9171 = vcvt.f32.s32 %v9165
          %v9172 = vshll.u32 %v9171, 16
          %v9173 = vadd.s32 %v9172, %v9170
          %v9174 = vsel %vm6527, %v8500, 2147483647
          %v9175 = vand.u32 %v9174, 65535
          %v9176 = vshra.s32 %v9174, 16
          %v9177 = vcvt.s32.f32 %v9175
          %v9178 = vcvt.s32.f32 %v9176
          %9179 = vmin.xlane.f32.xlu0 %v9178
          %v9180 = vpop.xlane.xlu0 %9179
          %vm9181 = vcmp.eq.f32.partialorder %v9178, %v9180
          %v9182 = vsel %vm9181, %v9177, inf
          %9183 = vmin.xlane.f32.xlu0 %v9182
          %v9184 = vpop.xlane.xlu0 %9183
          %v9185 = vcvt.f32.s32 %v9184
          %v9186 = vcvt.f32.s32 %v9180
          %v9187 = vshll.u32 %v9186, 16
          %v9188 = vadd.s32 %v9187, %v9185
          %v9189 = vsel %vm6527, %v8501, 2147483647
          %v9190 = vand.u32 %v9189, 65535
          %v9191 = vshra.s32 %v9189, 16
          %v9192 = vcvt.s32.f32 %v9190
          %v9193 = vcvt.s32.f32 %v9191
          %9194 = vmin.xlane.f32.xlu0 %v9193
          %v9195 = vpop.xlane.xlu0 %9194
          %vm9196 = vcmp.eq.f32.partialorder %v9193, %v9195
          %v9197 = vsel %vm9196, %v9192, inf
          %9198 = vmin.xlane.f32.xlu0 %v9197
          %v9199 = vpop.xlane.xlu0 %9198
          %v9200 = vcvt.f32.s32 %v9199
          %v9201 = vcvt.f32.s32 %v9195
          %v9202 = vshll.u32 %v9201, 16
          %v9203 = vadd.s32 %v9202, %v9200
          %v9204 = vsel %vm6527, %v8502, 2147483647
          %v9205 = vand.u32 %v9204, 65535
          %v9206 = vshra.s32 %v9204, 16
          %v9207 = vcvt.s32.f32 %v9205
          %v9208 = vcvt.s32.f32 %v9206
          %9209 = vmin.xlane.f32.xlu0 %v9208
          %v9210 = vpop.xlane.xlu0 %9209
          %vm9211 = vcmp.eq.f32.partialorder %v9208, %v9210
          %v9212 = vsel %vm9211, %v9207, inf
          %9213 = vmin.xlane.f32.xlu0 %v9212
          %v9214 = vpop.xlane.xlu0 %9213
          %v9215 = vcvt.f32.s32 %v9214
          %v9216 = vcvt.f32.s32 %v9210
          %v9217 = vshll.u32 %v9216, 16
          %v9218 = vadd.s32 %v9217, %v9215
          %v9219 = vsel %vm6527, %v8503, 2147483647
          %v9220 = vand.u32 %v9219, 65535
          %v9221 = vshra.s32 %v9219, 16
          %v9222 = vcvt.s32.f32 %v9220
          %v9223 = vcvt.s32.f32 %v9221
          %9224 = vmin.xlane.f32.xlu0 %v9223
          %v9225 = vpop.xlane.xlu0 %9224
          %vm9226 = vcmp.eq.f32.partialorder %v9223, %v9225
          %v9227 = vsel %vm9226, %v9222, inf
          %9228 = vmin.xlane.f32.xlu0 %v9227
          %v9229 = vpop.xlane.xlu0 %9228
          %v9230 = vcvt.f32.s32 %v9229
          %v9231 = vcvt.f32.s32 %v9225
          %v9232 = vshll.u32 %v9231, 16
          %v9233 = vadd.s32 %v9232, %v9230
          %v9234 = vsel %vm6527, %v8504, 2147483647
          %v9235 = vand.u32 %v9234, 65535
          %v9236 = vshra.s32 %v9234, 16
          %v9237 = vcvt.s32.f32 %v9235
          %v9238 = vcvt.s32.f32 %v9236
          %9239 = vmin.xlane.f32.xlu0 %v9238
          %v9240 = vpop.xlane.xlu0 %9239
          %vm9241 = vcmp.eq.f32.partialorder %v9238, %v9240
          %v9242 = vsel %vm9241, %v9237, inf
          %9243 = vmin.xlane.f32.xlu0 %v9242
          %v9244 = vpop.xlane.xlu0 %9243
          %v9245 = vcvt.f32.s32 %v9244
          %v9246 = vcvt.f32.s32 %v9240
          %v9247 = vshll.u32 %v9246, 16
          %v9248 = vadd.s32 %v9247, %v9245
          %v9249 = vsel %vm6527, %v8505, 2147483647
          %v9250 = vand.u32 %v9249, 65535
          %v9251 = vshra.s32 %v9249, 16
          %v9252 = vcvt.s32.f32 %v9250
          %v9253 = vcvt.s32.f32 %v9251
          %9254 = vmin.xlane.f32.xlu0 %v9253
          %v9255 = vpop.xlane.xlu0 %9254
          %vm9256 = vcmp.eq.f32.partialorder %v9253, %v9255
          %v9257 = vsel %vm9256, %v9252, inf
          %9258 = vmin.xlane.f32.xlu0 %v9257
          %v9259 = vpop.xlane.xlu0 %9258
          %v9260 = vcvt.f32.s32 %v9259
          %v9261 = vcvt.f32.s32 %v9255
          %v9262 = vshll.u32 %v9261, 16
          %v9263 = vadd.s32 %v9262, %v9260
          %v9264 = vsel %vm6527, %v8506, 2147483647
          %v9265 = vand.u32 %v9264, 65535
          %v9266 = vshra.s32 %v9264, 16
          %v9267 = vcvt.s32.f32 %v9265
          %v9268 = vcvt.s32.f32 %v9266
          %9269 = vmin.xlane.f32.xlu0 %v9268
          %v9270 = vpop.xlane.xlu0 %9269
          %vm9271 = vcmp.eq.f32.partialorder %v9268, %v9270
          %v9272 = vsel %vm9271, %v9267, inf
          %9273 = vmin.xlane.f32.xlu0 %v9272
          %v9274 = vpop.xlane.xlu0 %9273
          %v9275 = vcvt.f32.s32 %v9274
          %v9276 = vcvt.f32.s32 %v9270
          %v9277 = vshll.u32 %v9276, 16
          %v9278 = vadd.s32 %v9277, %v9275
          %v9279 = vsel %vm6527, %v8507, 2147483647
          %v9280 = vand.u32 %v9279, 65535
          %v9281 = vshra.s32 %v9279, 16
          %v9282 = vcvt.s32.f32 %v9280
          %v9283 = vcvt.s32.f32 %v9281
          %9284 = vmin.xlane.f32.xlu0 %v9283
          %v9285 = vpop.xlane.xlu0 %9284
          %vm9286 = vcmp.eq.f32.partialorder %v9283, %v9285
          %v9287 = vsel %vm9286, %v9282, inf
          %9288 = vmin.xlane.f32.xlu0 %v9287
          %v9289 = vpop.xlane.xlu0 %9288
          %v9290 = vcvt.f32.s32 %v9289
          %v9291 = vcvt.f32.s32 %v9285
          %v9292 = vshll.u32 %v9291, 16
          %v9293 = vadd.s32 %v9292, %v9290
          %v9294 = vsel %vm6527, %v8508, 2147483647
          %v9295 = vand.u32 %v9294, 65535
          %v9296 = vshra.s32 %v9294, 16
          %v9297 = vcvt.s32.f32 %v9295
          %v9298 = vcvt.s32.f32 %v9296
          %9299 = vmin.xlane.f32.xlu0 %v9298
          %v9300 = vpop.xlane.xlu0 %9299
          %vm9301 = vcmp.eq.f32.partialorder %v9298, %v9300
          %v9302 = vsel %vm9301, %v9297, inf
          %9303 = vmin.xlane.f32.xlu0 %v9302
          %v9304 = vpop.xlane.xlu0 %9303
          %v9305 = vcvt.f32.s32 %v9304
          %v9306 = vcvt.f32.s32 %v9300
          %v9307 = vshll.u32 %v9306, 16
          %v9308 = vadd.s32 %v9307, %v9305
          %v9309 = vsel %vm6527, %v8509, 2147483647
          %v9310 = vand.u32 %v9309, 65535
          %v9311 = vshra.s32 %v9309, 16
          %v9312 = vcvt.s32.f32 %v9310
          %v9313 = vcvt.s32.f32 %v9311
          %9314 = vmin.xlane.f32.xlu0 %v9313
          %v9315 = vpop.xlane.xlu0 %9314
          %vm9316 = vcmp.eq.f32.partialorder %v9313, %v9315
          %v9317 = vsel %vm9316, %v9312, inf
          %9318 = vmin.xlane.f32.xlu0 %v9317
          %v9319 = vpop.xlane.xlu0 %9318
          %v9320 = vcvt.f32.s32 %v9319
          %v9321 = vcvt.f32.s32 %v9315
          %v9322 = vshll.u32 %v9321, 16
          %v9323 = vadd.s32 %v9322, %v9320
          %v9324 = vsel %vm6527, %v8510, 2147483647
          %v9325 = vand.u32 %v9324, 65535
          %v9326 = vshra.s32 %v9324, 16
          %v9327 = vcvt.s32.f32 %v9325
          %v9328 = vcvt.s32.f32 %v9326
          %9329 = vmin.xlane.f32.xlu0 %v9328
          %v9330 = vpop.xlane.xlu0 %9329
          %vm9331 = vcmp.eq.f32.partialorder %v9328, %v9330
          %v9332 = vsel %vm9331, %v9327, inf
          %9333 = vmin.xlane.f32.xlu0 %v9332
          %v9334 = vpop.xlane.xlu0 %9333
          %v9335 = vcvt.f32.s32 %v9334
          %v9336 = vcvt.f32.s32 %v9330
          %v9337 = vshll.u32 %v9336, 16
          %v9338 = vadd.s32 %v9337, %v9335
          %v9339 = vsel %vm6527, %v8511, 2147483647
          %v9340 = vand.u32 %v9339, 65535
          %v9341 = vshra.s32 %v9339, 16
          %v9342 = vcvt.s32.f32 %v9340
          %v9343 = vcvt.s32.f32 %v9341
          %9344 = vmin.xlane.f32.xlu0 %v9343
          %v9345 = vpop.xlane.xlu0 %9344
          %vm9346 = vcmp.eq.f32.partialorder %v9343, %v9345
          %v9347 = vsel %vm9346, %v9342, inf
          %9348 = vmin.xlane.f32.xlu0 %v9347
          %v9349 = vpop.xlane.xlu0 %9348
          %v9350 = vcvt.f32.s32 %v9349
          %v9351 = vcvt.f32.s32 %v9345
          %v9352 = vshll.u32 %v9351, 16
          %v9353 = vadd.s32 %v9352, %v9350
          %v9354 = vsel %vm6527, %v8512, 2147483647
          %v9355 = vand.u32 %v9354, 65535
          %v9356 = vshra.s32 %v9354, 16
          %v9357 = vcvt.s32.f32 %v9355
          %v9358 = vcvt.s32.f32 %v9356
          %9359 = vmin.xlane.f32.xlu0 %v9358
          %v9360 = vpop.xlane.xlu0 %9359
          %vm9361 = vcmp.eq.f32.partialorder %v9358, %v9360
          %v9362 = vsel %vm9361, %v9357, inf
          %9363 = vmin.xlane.f32.xlu0 %v9362
          %v9364 = vpop.xlane.xlu0 %9363
          %v9365 = vcvt.f32.s32 %v9364
          %v9366 = vcvt.f32.s32 %v9360
          %v9367 = vshll.u32 %v9366, 16
          %v9368 = vadd.s32 %v9367, %v9365
          %v9369 = vsel %vm6527, %v8513, 2147483647
          %v9370 = vand.u32 %v9369, 65535
          %v9371 = vshra.s32 %v9369, 16
          %v9372 = vcvt.s32.f32 %v9370
          %v9373 = vcvt.s32.f32 %v9371
          %9374 = vmin.xlane.f32.xlu0 %v9373
          %v9375 = vpop.xlane.xlu0 %9374
          %vm9376 = vcmp.eq.f32.partialorder %v9373, %v9375
          %v9377 = vsel %vm9376, %v9372, inf
          %9378 = vmin.xlane.f32.xlu0 %v9377
          %v9379 = vpop.xlane.xlu0 %9378
          %v9380 = vcvt.f32.s32 %v9379
          %v9381 = vcvt.f32.s32 %v9375
          %v9382 = vshll.u32 %v9381, 16
          %v9383 = vadd.s32 %v9382, %v9380
          %v9384 = vsel %vm6527, %v8514, 2147483647
          %v9385 = vand.u32 %v9384, 65535
          %v9386 = vshra.s32 %v9384, 16
          %v9387 = vcvt.s32.f32 %v9385
          %v9388 = vcvt.s32.f32 %v9386
          %9389 = vmin.xlane.f32.xlu0 %v9388
          %v9390 = vpop.xlane.xlu0 %9389
          %vm9391 = vcmp.eq.f32.partialorder %v9388, %v9390
          %v9392 = vsel %vm9391, %v9387, inf
          %9393 = vmin.xlane.f32.xlu0 %v9392
          %v9394 = vpop.xlane.xlu0 %9393
          %v9395 = vcvt.f32.s32 %v9394
          %v9396 = vcvt.f32.s32 %v9390
          %v9397 = vshll.u32 %v9396, 16
          %v9398 = vadd.s32 %v9397, %v9395
          %v9399 = vsel %vm6527, %v8515, 2147483647
          %v9400 = vand.u32 %v9399, 65535
          %v9401 = vshra.s32 %v9399, 16
          %v9402 = vcvt.s32.f32 %v9400
          %v9403 = vcvt.s32.f32 %v9401
          %9404 = vmin.xlane.f32.xlu0 %v9403
          %v9405 = vpop.xlane.xlu0 %9404
          %vm9406 = vcmp.eq.f32.partialorder %v9403, %v9405
          %v9407 = vsel %vm9406, %v9402, inf
          %9408 = vmin.xlane.f32.xlu0 %v9407
          %v9409 = vpop.xlane.xlu0 %9408
          %v9410 = vcvt.f32.s32 %v9409
          %v9411 = vcvt.f32.s32 %v9405
          %v9412 = vshll.u32 %v9411, 16
          %v9413 = vadd.s32 %v9412, %v9410
          %v9414 = vsel %vm6527, %v8516, 2147483647
          %v9415 = vand.u32 %v9414, 65535
          %v9416 = vshra.s32 %v9414, 16
          %v9417 = vcvt.s32.f32 %v9415
          %v9418 = vcvt.s32.f32 %v9416
          %9419 = vmin.xlane.f32.xlu0 %v9418
          %v9420 = vpop.xlane.xlu0 %9419
          %vm9421 = vcmp.eq.f32.partialorder %v9418, %v9420
          %v9422 = vsel %vm9421, %v9417, inf
          %9423 = vmin.xlane.f32.xlu0 %v9422
          %v9424 = vpop.xlane.xlu0 %9423
          %v9425 = vcvt.f32.s32 %v9424
          %v9426 = vcvt.f32.s32 %v9420
          %v9427 = vshll.u32 %v9426, 16
          %v9428 = vadd.s32 %v9427, %v9425
          %v9429 = vsel %vm6527, %v8517, 2147483647
          %v9430 = vand.u32 %v9429, 65535
          %v9431 = vshra.s32 %v9429, 16
          %v9432 = vcvt.s32.f32 %v9430
          %v9433 = vcvt.s32.f32 %v9431
          %9434 = vmin.xlane.f32.xlu0 %v9433
          %v9435 = vpop.xlane.xlu0 %9434
          %vm9436 = vcmp.eq.f32.partialorder %v9433, %v9435
          %v9437 = vsel %vm9436, %v9432, inf
          %9438 = vmin.xlane.f32.xlu0 %v9437
          %v9439 = vpop.xlane.xlu0 %9438
          %v9440 = vcvt.f32.s32 %v9439
          %v9441 = vcvt.f32.s32 %v9435
          %v9442 = vshll.u32 %v9441, 16
          %v9443 = vadd.s32 %v9442, %v9440
          %v9444 = vsel %vm6527, %v8518, 2147483647
          %v9445 = vand.u32 %v9444, 65535
          %v9446 = vshra.s32 %v9444, 16
          %v9447 = vcvt.s32.f32 %v9445
          %v9448 = vcvt.s32.f32 %v9446
          %9449 = vmin.xlane.f32.xlu0 %v9448
          %v9450 = vpop.xlane.xlu0 %9449
          %vm9451 = vcmp.eq.f32.partialorder %v9448, %v9450
          %v9452 = vsel %vm9451, %v9447, inf
          %9453 = vmin.xlane.f32.xlu0 %v9452
          %v9454 = vpop.xlane.xlu0 %9453
          %v9455 = vcvt.f32.s32 %v9454
          %v9456 = vcvt.f32.s32 %v9450
          %v9457 = vshll.u32 %v9456, 16
          %v9458 = vadd.s32 %v9457, %v9455
          %v9459 = vsel %vm6527, %v8519, 2147483647
          %v9460 = vand.u32 %v9459, 65535
          %v9461 = vshra.s32 %v9459, 16
          %v9462 = vcvt.s32.f32 %v9460
          %v9463 = vcvt.s32.f32 %v9461
          %9464 = vmin.xlane.f32.xlu0 %v9463
          %v9465 = vpop.xlane.xlu0 %9464
          %vm9466 = vcmp.eq.f32.partialorder %v9463, %v9465
          %v9467 = vsel %vm9466, %v9462, inf
          %9468 = vmin.xlane.f32.xlu0 %v9467
          %v9469 = vpop.xlane.xlu0 %9468
          %v9470 = vcvt.f32.s32 %v9469
          %v9471 = vcvt.f32.s32 %v9465
          %v9472 = vshll.u32 %v9471, 16
          %v9473 = vadd.s32 %v9472, %v9470
          %v9474 = vsel %vm6527, %v8520, 2147483647
          %v9475 = vand.u32 %v9474, 65535
          %v9476 = vshra.s32 %v9474, 16
          %v9477 = vcvt.s32.f32 %v9475
          %v9478 = vcvt.s32.f32 %v9476
          %9479 = vmin.xlane.f32.xlu0 %v9478
          %v9480 = vpop.xlane.xlu0 %9479
          %vm9481 = vcmp.eq.f32.partialorder %v9478, %v9480
          %v9482 = vsel %vm9481, %v9477, inf
          %9483 = vmin.xlane.f32.xlu0 %v9482
          %v9484 = vpop.xlane.xlu0 %9483
          %v9485 = vcvt.f32.s32 %v9484
          %v9486 = vcvt.f32.s32 %v9480
          %v9487 = vshll.u32 %v9486, 16
          %v9488 = vadd.s32 %v9487, %v9485
          %v9489 = vsel %vm6527, %v8521, 2147483647
          %v9490 = vand.u32 %v9489, 65535
          %v9491 = vshra.s32 %v9489, 16
          %v9492 = vcvt.s32.f32 %v9490
          %v9493 = vcvt.s32.f32 %v9491
          %9494 = vmin.xlane.f32.xlu0 %v9493
          %v9495 = vpop.xlane.xlu0 %9494
          %vm9496 = vcmp.eq.f32.partialorder %v9493, %v9495
          %v9497 = vsel %vm9496, %v9492, inf
          %9498 = vmin.xlane.f32.xlu0 %v9497
          %v9499 = vpop.xlane.xlu0 %9498
          %v9500 = vcvt.f32.s32 %v9499
          %v9501 = vcvt.f32.s32 %v9495
          %v9502 = vshll.u32 %v9501, 16
          %v9503 = vadd.s32 %v9502, %v9500
          %v9504 = vsel %vm6527, %v8522, 2147483647
          %v9505 = vand.u32 %v9504, 65535
          %v9506 = vshra.s32 %v9504, 16
          %v9507 = vcvt.s32.f32 %v9505
          %v9508 = vcvt.s32.f32 %v9506
          %9509 = vmin.xlane.f32.xlu0 %v9508
          %v9510 = vpop.xlane.xlu0 %9509
          %vm9511 = vcmp.eq.f32.partialorder %v9508, %v9510
          %v9512 = vsel %vm9511, %v9507, inf
          %9513 = vmin.xlane.f32.xlu0 %v9512
          %v9514 = vpop.xlane.xlu0 %9513
          %v9515 = vcvt.f32.s32 %v9514
          %v9516 = vcvt.f32.s32 %v9510
          %v9517 = vshll.u32 %v9516, 16
          %v9518 = vadd.s32 %v9517, %v9515
          %v9519 = vsel %vm6527, %v8523, 2147483647
          %v9520 = vand.u32 %v9519, 65535
          %v9521 = vshra.s32 %v9519, 16
          %v9522 = vcvt.s32.f32 %v9520
          %v9523 = vcvt.s32.f32 %v9521
          %9524 = vmin.xlane.f32.xlu0 %v9523
          %v9525 = vpop.xlane.xlu0 %9524
          %vm9526 = vcmp.eq.f32.partialorder %v9523, %v9525
          %v9527 = vsel %vm9526, %v9522, inf
          %9528 = vmin.xlane.f32.xlu0 %v9527
          %v9529 = vpop.xlane.xlu0 %9528
          %v9530 = vcvt.f32.s32 %v9529
          %v9531 = vcvt.f32.s32 %v9525
          %v9532 = vshll.u32 %v9531, 16
          %v9533 = vadd.s32 %v9532, %v9530
          %v9534 = vsel %vm6527, %v8524, 2147483647
          %v9535 = vand.u32 %v9534, 65535
          %v9536 = vshra.s32 %v9534, 16
          %v9537 = vcvt.s32.f32 %v9535
          %v9538 = vcvt.s32.f32 %v9536
          %9539 = vmin.xlane.f32.xlu0 %v9538
          %v9540 = vpop.xlane.xlu0 %9539
          %vm9541 = vcmp.eq.f32.partialorder %v9538, %v9540
          %v9542 = vsel %vm9541, %v9537, inf
          %9543 = vmin.xlane.f32.xlu0 %v9542
          %v9544 = vpop.xlane.xlu0 %9543
          %v9545 = vcvt.f32.s32 %v9544
          %v9546 = vcvt.f32.s32 %v9540
          %v9547 = vshll.u32 %v9546, 16
          %v9548 = vadd.s32 %v9547, %v9545
          %v9549 = vsel %vm6527, %v8525, 2147483647
          %v9550 = vand.u32 %v9549, 65535
          %v9551 = vshra.s32 %v9549, 16
          %v9552 = vcvt.s32.f32 %v9550
          %v9553 = vcvt.s32.f32 %v9551
          %9554 = vmin.xlane.f32.xlu0 %v9553
          %v9555 = vpop.xlane.xlu0 %9554
          %vm9556 = vcmp.eq.f32.partialorder %v9553, %v9555
          %v9557 = vsel %vm9556, %v9552, inf
          %9558 = vmin.xlane.f32.xlu0 %v9557
          %v9559 = vpop.xlane.xlu0 %9558
          %v9560 = vcvt.f32.s32 %v9559
          %v9561 = vcvt.f32.s32 %v9555
          %v9562 = vshll.u32 %v9561, 16
          %v9563 = vadd.s32 %v9562, %v9560
          %v9564 = vsel %vm6527, %v8526, 2147483647
          %v9565 = vand.u32 %v9564, 65535
          %v9566 = vshra.s32 %v9564, 16
          %v9567 = vcvt.s32.f32 %v9565
          %v9568 = vcvt.s32.f32 %v9566
          %9569 = vmin.xlane.f32.xlu0 %v9568
          %v9570 = vpop.xlane.xlu0 %9569
          %vm9571 = vcmp.eq.f32.partialorder %v9568, %v9570
          %v9572 = vsel %vm9571, %v9567, inf
          %9573 = vmin.xlane.f32.xlu0 %v9572
          %v9574 = vpop.xlane.xlu0 %9573
          %v9575 = vcvt.f32.s32 %v9574
          %v9576 = vcvt.f32.s32 %v9570
          %v9577 = vshll.u32 %v9576, 16
          %v9578 = vadd.s32 %v9577, %v9575
          %v9579 = vsel %vm6527, %v8527, 2147483647
          %v9580 = vand.u32 %v9579, 65535
          %v9581 = vshra.s32 %v9579, 16
          %v9582 = vcvt.s32.f32 %v9580
          %v9583 = vcvt.s32.f32 %v9581
          %9584 = vmin.xlane.f32.xlu0 %v9583
          %v9585 = vpop.xlane.xlu0 %9584
          %vm9586 = vcmp.eq.f32.partialorder %v9583, %v9585
          %v9587 = vsel %vm9586, %v9582, inf
          %9588 = vmin.xlane.f32.xlu0 %v9587
          %v9589 = vpop.xlane.xlu0 %9588
          %v9590 = vcvt.f32.s32 %v9589
          %v9591 = vcvt.f32.s32 %v9585
          %v9592 = vshll.u32 %v9591, 16
          %v9593 = vadd.s32 %v9592, %v9590
          %v9594 = vsel %vm6527, %v8528, 2147483647
          %v9595 = vand.u32 %v9594, 65535
          %v9596 = vshra.s32 %v9594, 16
          %v9597 = vcvt.s32.f32 %v9595
          %v9598 = vcvt.s32.f32 %v9596
          %9599 = vmin.xlane.f32.xlu0 %v9598
          %v9600 = vpop.xlane.xlu0 %9599
          %vm9601 = vcmp.eq.f32.partialorder %v9598, %v9600
          %v9602 = vsel %vm9601, %v9597, inf
          %9603 = vmin.xlane.f32.xlu0 %v9602
          %v9604 = vpop.xlane.xlu0 %9603
          %v9605 = vcvt.f32.s32 %v9604
          %v9606 = vcvt.f32.s32 %v9600
          %v9607 = vshll.u32 %v9606, 16
          %v9608 = vadd.s32 %v9607, %v9605
          %v9609 = vsel %vm6527, %v8529, 2147483647
          %v9610 = vand.u32 %v9609, 65535
          %v9611 = vshra.s32 %v9609, 16
          %v9612 = vcvt.s32.f32 %v9610
          %v9613 = vcvt.s32.f32 %v9611
          %9614 = vmin.xlane.f32.xlu0 %v9613
          %v9615 = vpop.xlane.xlu0 %9614
          %vm9616 = vcmp.eq.f32.partialorder %v9613, %v9615
          %v9617 = vsel %vm9616, %v9612, inf
          %9618 = vmin.xlane.f32.xlu0 %v9617
          %v9619 = vpop.xlane.xlu0 %9618
          %v9620 = vcvt.f32.s32 %v9619
          %v9621 = vcvt.f32.s32 %v9615
          %v9622 = vshll.u32 %v9621, 16
          %v9623 = vadd.s32 %v9622, %v9620
          %v9624 = vsel %vm6527, %v8530, 2147483647
          %v9625 = vand.u32 %v9624, 65535
          %v9626 = vshra.s32 %v9624, 16
          %v9627 = vcvt.s32.f32 %v9625
          %v9628 = vcvt.s32.f32 %v9626
          %9629 = vmin.xlane.f32.xlu0 %v9628
          %v9630 = vpop.xlane.xlu0 %9629
          %vm9631 = vcmp.eq.f32.partialorder %v9628, %v9630
          %v9632 = vsel %vm9631, %v9627, inf
          %9633 = vmin.xlane.f32.xlu0 %v9632
          %v9634 = vpop.xlane.xlu0 %9633
          %v9635 = vcvt.f32.s32 %v9634
          %v9636 = vcvt.f32.s32 %v9630
          %v9637 = vshll.u32 %v9636, 16
          %v9638 = vadd.s32 %v9637, %v9635
          %v9639 = vsel %vm6527, %v8531, 2147483647
          %v9640 = vand.u32 %v9639, 65535
          %v9641 = vshra.s32 %v9639, 16
          %v9642 = vcvt.s32.f32 %v9640
          %v9643 = vcvt.s32.f32 %v9641
          %9644 = vmin.xlane.f32.xlu0 %v9643
          %v9645 = vpop.xlane.xlu0 %9644
          %vm9646 = vcmp.eq.f32.partialorder %v9643, %v9645
          %v9647 = vsel %vm9646, %v9642, inf
          %9648 = vmin.xlane.f32.xlu0 %v9647
          %v9649 = vpop.xlane.xlu0 %9648
          %v9650 = vcvt.f32.s32 %v9649
          %v9651 = vcvt.f32.s32 %v9645
          %v9652 = vshll.u32 %v9651, 16
          %v9653 = vadd.s32 %v9652, %v9650
          %v9654 = vsel %vm6527, %v8532, 2147483647
          %v9655 = vand.u32 %v9654, 65535
          %v9656 = vshra.s32 %v9654, 16
          %v9657 = vcvt.s32.f32 %v9655
          %v9658 = vcvt.s32.f32 %v9656
          %9659 = vmin.xlane.f32.xlu0 %v9658
          %v9660 = vpop.xlane.xlu0 %9659
          %vm9661 = vcmp.eq.f32.partialorder %v9658, %v9660
          %v9662 = vsel %vm9661, %v9657, inf
          %9663 = vmin.xlane.f32.xlu0 %v9662
          %v9664 = vpop.xlane.xlu0 %9663
          %v9665 = vcvt.f32.s32 %v9664
          %v9666 = vcvt.f32.s32 %v9660
          %v9667 = vshll.u32 %v9666, 16
          %v9668 = vadd.s32 %v9667, %v9665
          %v9669 = vsel %vm6527, %v8533, 2147483647
          %v9670 = vand.u32 %v9669, 65535
          %v9671 = vshra.s32 %v9669, 16
          %v9672 = vcvt.s32.f32 %v9670
          %v9673 = vcvt.s32.f32 %v9671
          %9674 = vmin.xlane.f32.xlu0 %v9673
          %v9675 = vpop.xlane.xlu0 %9674
          %vm9676 = vcmp.eq.f32.partialorder %v9673, %v9675
          %v9677 = vsel %vm9676, %v9672, inf
          %9678 = vmin.xlane.f32.xlu0 %v9677
          %v9679 = vpop.xlane.xlu0 %9678
          %v9680 = vcvt.f32.s32 %v9679
          %v9681 = vcvt.f32.s32 %v9675
          %v9682 = vshll.u32 %v9681, 16
          %v9683 = vadd.s32 %v9682, %v9680
          %v9684 = vsel %vm6527, %v8534, 2147483647
          %v9685 = vand.u32 %v9684, 65535
          %v9686 = vshra.s32 %v9684, 16
          %v9687 = vcvt.s32.f32 %v9685
          %v9688 = vcvt.s32.f32 %v9686
          %9689 = vmin.xlane.f32.xlu0 %v9688
          %v9690 = vpop.xlane.xlu0 %9689
          %vm9691 = vcmp.eq.f32.partialorder %v9688, %v9690
          %v9692 = vsel %vm9691, %v9687, inf
          %9693 = vmin.xlane.f32.xlu0 %v9692
          %v9694 = vpop.xlane.xlu0 %9693
          %v9695 = vcvt.f32.s32 %v9694
          %v9696 = vcvt.f32.s32 %v9690
          %v9697 = vshll.u32 %v9696, 16
          %v9698 = vadd.s32 %v9697, %v9695
          %v9699 = vsel %vm6527, %v8535, 2147483647
          %v9700 = vand.u32 %v9699, 65535
          %v9701 = vshra.s32 %v9699, 16
          %v9702 = vcvt.s32.f32 %v9700
          %v9703 = vcvt.s32.f32 %v9701
          %9704 = vmin.xlane.f32.xlu0 %v9703
          %v9705 = vpop.xlane.xlu0 %9704
          %vm9706 = vcmp.eq.f32.partialorder %v9703, %v9705
          %v9707 = vsel %vm9706, %v9702, inf
          %9708 = vmin.xlane.f32.xlu0 %v9707
          %v9709 = vpop.xlane.xlu0 %9708
          %v9710 = vcvt.f32.s32 %v9709
          %v9711 = vcvt.f32.s32 %v9705
          %v9712 = vshll.u32 %v9711, 16
          %v9713 = vadd.s32 %v9712, %v9710
          %v9714 = vsel %vm6527, %v8536, 2147483647
          %v9715 = vand.u32 %v9714, 65535
          %v9716 = vshra.s32 %v9714, 16
          %v9717 = vcvt.s32.f32 %v9715
          %v9718 = vcvt.s32.f32 %v9716
          %9719 = vmin.xlane.f32.xlu0 %v9718
          %v9720 = vpop.xlane.xlu0 %9719
          %vm9721 = vcmp.eq.f32.partialorder %v9718, %v9720
          %v9722 = vsel %vm9721, %v9717, inf
          %9723 = vmin.xlane.f32.xlu0 %v9722
          %v9724 = vpop.xlane.xlu0 %9723
          %v9725 = vcvt.f32.s32 %v9724
          %v9726 = vcvt.f32.s32 %v9720
          %v9727 = vshll.u32 %v9726, 16
          %v9728 = vadd.s32 %v9727, %v9725
          %v9729 = vsel %vm6527, %v8537, 2147483647
          %v9730 = vand.u32 %v9729, 65535
          %v9731 = vshra.s32 %v9729, 16
          %v9732 = vcvt.s32.f32 %v9730
          %v9733 = vcvt.s32.f32 %v9731
          %9734 = vmin.xlane.f32.xlu0 %v9733
          %v9735 = vpop.xlane.xlu0 %9734
          %vm9736 = vcmp.eq.f32.partialorder %v9733, %v9735
          %v9737 = vsel %vm9736, %v9732, inf
          %9738 = vmin.xlane.f32.xlu0 %v9737
          %v9739 = vpop.xlane.xlu0 %9738
          %v9740 = vcvt.f32.s32 %v9739
          %v9741 = vcvt.f32.s32 %v9735
          %v9742 = vshll.u32 %v9741, 16
          %v9743 = vadd.s32 %v9742, %v9740
          %v9744 = vsel %vm6527, %v8538, 2147483647
          %v9745 = vand.u32 %v9744, 65535
          %v9746 = vshra.s32 %v9744, 16
          %v9747 = vcvt.s32.f32 %v9745
          %v9748 = vcvt.s32.f32 %v9746
          %9749 = vmin.xlane.f32.xlu0 %v9748
          %v9750 = vpop.xlane.xlu0 %9749
          %vm9751 = vcmp.eq.f32.partialorder %v9748, %v9750
          %v9752 = vsel %vm9751, %v9747, inf
          %9753 = vmin.xlane.f32.xlu0 %v9752
          %v9754 = vpop.xlane.xlu0 %9753
          %v9755 = vcvt.f32.s32 %v9754
          %v9756 = vcvt.f32.s32 %v9750
          %v9757 = vshll.u32 %v9756, 16
          %v9758 = vadd.s32 %v9757, %v9755
          %v9759 = vsel %vm6527, %v8539, 2147483647
          %v9760 = vand.u32 %v9759, 65535
          %v9761 = vshra.s32 %v9759, 16
          %v9762 = vcvt.s32.f32 %v9760
          %v9763 = vcvt.s32.f32 %v9761
          %9764 = vmin.xlane.f32.xlu0 %v9763
          %v9765 = vpop.xlane.xlu0 %9764
          %vm9766 = vcmp.eq.f32.partialorder %v9763, %v9765
          %v9767 = vsel %vm9766, %v9762, inf
          %9768 = vmin.xlane.f32.xlu0 %v9767
          %v9769 = vpop.xlane.xlu0 %9768
          %v9770 = vcvt.f32.s32 %v9769
          %v9771 = vcvt.f32.s32 %v9765
          %v9772 = vshll.u32 %v9771, 16
          %v9773 = vadd.s32 %v9772, %v9770
          %v9774 = vsel %vm6527, %v8540, 2147483647
          %v9775 = vand.u32 %v9774, 65535
          %v9776 = vshra.s32 %v9774, 16
          %v9777 = vcvt.s32.f32 %v9775
          %v9778 = vcvt.s32.f32 %v9776
          %9779 = vmin.xlane.f32.xlu0 %v9778
          %v9780 = vpop.xlane.xlu0 %9779
          %vm9781 = vcmp.eq.f32.partialorder %v9778, %v9780
          %v9782 = vsel %vm9781, %v9777, inf
          %9783 = vmin.xlane.f32.xlu0 %v9782
          %v9784 = vpop.xlane.xlu0 %9783
          %v9785 = vcvt.f32.s32 %v9784
          %v9786 = vcvt.f32.s32 %v9780
          %v9787 = vshll.u32 %v9786, 16
          %v9788 = vadd.s32 %v9787, %v9785
          %v9789 = vsel %vm6527, %v8541, 2147483647
          %v9790 = vand.u32 %v9789, 65535
          %v9791 = vshra.s32 %v9789, 16
          %v9792 = vcvt.s32.f32 %v9790
          %v9793 = vcvt.s32.f32 %v9791
          %9794 = vmin.xlane.f32.xlu0 %v9793
          %v9795 = vpop.xlane.xlu0 %9794
          %vm9796 = vcmp.eq.f32.partialorder %v9793, %v9795
          %v9797 = vsel %vm9796, %v9792, inf
          %9798 = vmin.xlane.f32.xlu0 %v9797
          %v9799 = vpop.xlane.xlu0 %9798
          %v9800 = vcvt.f32.s32 %v9799
          %v9801 = vcvt.f32.s32 %v9795
          %v9802 = vshll.u32 %v9801, 16
          %v9803 = vadd.s32 %v9802, %v9800
          %v9804 = vsel %vm6527, %v8542, 2147483647
          %v9805 = vand.u32 %v9804, 65535
          %v9806 = vshra.s32 %v9804, 16
          %v9807 = vcvt.s32.f32 %v9805
          %v9808 = vcvt.s32.f32 %v9806
          %9809 = vmin.xlane.f32.xlu0 %v9808
          %v9810 = vpop.xlane.xlu0 %9809
          %vm9811 = vcmp.eq.f32.partialorder %v9808, %v9810
          %v9812 = vsel %vm9811, %v9807, inf
          %9813 = vmin.xlane.f32.xlu0 %v9812
          %v9814 = vpop.xlane.xlu0 %9813
          %v9815 = vcvt.f32.s32 %v9814
          %v9816 = vcvt.f32.s32 %v9810
          %v9817 = vshll.u32 %v9816, 16
          %v9818 = vadd.s32 %v9817, %v9815
          %v9819 = vsel %vm6527, %v8543, 2147483647
          %v9820 = vand.u32 %v9819, 65535
          %v9821 = vshra.s32 %v9819, 16
          %v9822 = vcvt.s32.f32 %v9820
          %v9823 = vcvt.s32.f32 %v9821
          %9824 = vmin.xlane.f32.xlu0 %v9823
          %v9825 = vpop.xlane.xlu0 %9824
          %vm9826 = vcmp.eq.f32.partialorder %v9823, %v9825
          %v9827 = vsel %vm9826, %v9822, inf
          %9828 = vmin.xlane.f32.xlu0 %v9827
          %v9829 = vpop.xlane.xlu0 %9828
          %v9830 = vcvt.f32.s32 %v9829
          %v9831 = vcvt.f32.s32 %v9825
          %v9832 = vshll.u32 %v9831, 16
          %v9833 = vadd.s32 %v9832, %v9830
          %v9834 = vsel %vm6527, %v8544, 2147483647
          %v9835 = vand.u32 %v9834, 65535
          %v9836 = vshra.s32 %v9834, 16
          %v9837 = vcvt.s32.f32 %v9835
          %v9838 = vcvt.s32.f32 %v9836
          %9839 = vmin.xlane.f32.xlu0 %v9838
          %v9840 = vpop.xlane.xlu0 %9839
          %vm9841 = vcmp.eq.f32.partialorder %v9838, %v9840
          %v9842 = vsel %vm9841, %v9837, inf
          %9843 = vmin.xlane.f32.xlu0 %v9842
          %v9844 = vpop.xlane.xlu0 %9843
          %v9845 = vcvt.f32.s32 %v9844
          %v9846 = vcvt.f32.s32 %v9840
          %v9847 = vshll.u32 %v9846, 16
          %v9848 = vadd.s32 %v9847, %v9845
          %v9849 = vsel %vm6527, %v8545, 2147483647
          %v9850 = vand.u32 %v9849, 65535
          %v9851 = vshra.s32 %v9849, 16
          %v9852 = vcvt.s32.f32 %v9850
          %v9853 = vcvt.s32.f32 %v9851
          %9854 = vmin.xlane.f32.xlu0 %v9853
          %v9855 = vpop.xlane.xlu0 %9854
          %vm9856 = vcmp.eq.f32.partialorder %v9853, %v9855
          %v9857 = vsel %vm9856, %v9852, inf
          %9858 = vmin.xlane.f32.xlu0 %v9857
          %v9859 = vpop.xlane.xlu0 %9858
          %v9860 = vcvt.f32.s32 %v9859
          %v9861 = vcvt.f32.s32 %v9855
          %v9862 = vshll.u32 %v9861, 16
          %v9863 = vadd.s32 %v9862, %v9860
          %v9864 = vsel %vm6527, %v8546, 2147483647
          %v9865 = vand.u32 %v9864, 65535
          %v9866 = vshra.s32 %v9864, 16
          %v9867 = vcvt.s32.f32 %v9865
          %v9868 = vcvt.s32.f32 %v9866
          %9869 = vmin.xlane.f32.xlu0 %v9868
          %v9870 = vpop.xlane.xlu0 %9869
          %vm9871 = vcmp.eq.f32.partialorder %v9868, %v9870
          %v9872 = vsel %vm9871, %v9867, inf
          %9873 = vmin.xlane.f32.xlu0 %v9872
          %v9874 = vpop.xlane.xlu0 %9873
          %v9875 = vcvt.f32.s32 %v9874
          %v9876 = vcvt.f32.s32 %v9870
          %v9877 = vshll.u32 %v9876, 16
          %v9878 = vadd.s32 %v9877, %v9875
          %v9879 = vsel %vm6527, %v8547, 2147483647
          %v9880 = vand.u32 %v9879, 65535
          %v9881 = vshra.s32 %v9879, 16
          %v9882 = vcvt.s32.f32 %v9880
          %v9883 = vcvt.s32.f32 %v9881
          %9884 = vmin.xlane.f32.xlu0 %v9883
          %v9885 = vpop.xlane.xlu0 %9884
          %vm9886 = vcmp.eq.f32.partialorder %v9883, %v9885
          %v9887 = vsel %vm9886, %v9882, inf
          %9888 = vmin.xlane.f32.xlu0 %v9887
          %v9889 = vpop.xlane.xlu0 %9888
          %v9890 = vcvt.f32.s32 %v9889
          %v9891 = vcvt.f32.s32 %v9885
          %v9892 = vshll.u32 %v9891, 16
          %v9893 = vadd.s32 %v9892, %v9890
          %v9894 = vsel %vm6527, %v8548, 2147483647
          %v9895 = vand.u32 %v9894, 65535
          %v9896 = vshra.s32 %v9894, 16
          %v9897 = vcvt.s32.f32 %v9895
          %v9898 = vcvt.s32.f32 %v9896
          %9899 = vmin.xlane.f32.xlu0 %v9898
          %v9900 = vpop.xlane.xlu0 %9899
          %vm9901 = vcmp.eq.f32.partialorder %v9898, %v9900
          %v9902 = vsel %vm9901, %v9897, inf
          %9903 = vmin.xlane.f32.xlu0 %v9902
          %v9904 = vpop.xlane.xlu0 %9903
          %v9905 = vcvt.f32.s32 %v9904
          %v9906 = vcvt.f32.s32 %v9900
          %v9907 = vshll.u32 %v9906, 16
          %v9908 = vadd.s32 %v9907, %v9905
          %v9909 = vsel %vm6527, %v8549, 2147483647
          %v9910 = vand.u32 %v9909, 65535
          %v9911 = vshra.s32 %v9909, 16
          %v9912 = vcvt.s32.f32 %v9910
          %v9913 = vcvt.s32.f32 %v9911
          %9914 = vmin.xlane.f32.xlu0 %v9913
          %v9915 = vpop.xlane.xlu0 %9914
          %vm9916 = vcmp.eq.f32.partialorder %v9913, %v9915
          %v9917 = vsel %vm9916, %v9912, inf
          %9918 = vmin.xlane.f32.xlu0 %v9917
          %v9919 = vpop.xlane.xlu0 %9918
          %v9920 = vcvt.f32.s32 %v9919
          %v9921 = vcvt.f32.s32 %v9915
          %v9922 = vshll.u32 %v9921, 16
          %v9923 = vadd.s32 %v9922, %v9920
          %v9924 = vsel %vm6527, %v8550, 2147483647
          %v9925 = vand.u32 %v9924, 65535
          %v9926 = vshra.s32 %v9924, 16
          %v9927 = vcvt.s32.f32 %v9925
          %v9928 = vcvt.s32.f32 %v9926
          %9929 = vmin.xlane.f32.xlu0 %v9928
          %v9930 = vpop.xlane.xlu0 %9929
          %vm9931 = vcmp.eq.f32.partialorder %v9928, %v9930
          %v9932 = vsel %vm9931, %v9927, inf
          %9933 = vmin.xlane.f32.xlu0 %v9932
          %v9934 = vpop.xlane.xlu0 %9933
          %v9935 = vcvt.f32.s32 %v9934
          %v9936 = vcvt.f32.s32 %v9930
          %v9937 = vshll.u32 %v9936, 16
          %v9938 = vadd.s32 %v9937, %v9935
          %v9939 = vsel %vm6527, %v8551, 2147483647
          %v9940 = vand.u32 %v9939, 65535
          %v9941 = vshra.s32 %v9939, 16
          %v9942 = vcvt.s32.f32 %v9940
          %v9943 = vcvt.s32.f32 %v9941
          %9944 = vmin.xlane.f32.xlu0 %v9943
          %v9945 = vpop.xlane.xlu0 %9944
          %vm9946 = vcmp.eq.f32.partialorder %v9943, %v9945
          %v9947 = vsel %vm9946, %v9942, inf
          %9948 = vmin.xlane.f32.xlu0 %v9947
          %v9949 = vpop.xlane.xlu0 %9948
          %v9950 = vcvt.f32.s32 %v9949
          %v9951 = vcvt.f32.s32 %v9945
          %v9952 = vshll.u32 %v9951, 16
          %v9953 = vadd.s32 %v9952, %v9950
          %v9954 = vsel %vm6527, %v8552, 2147483647
          %v9955 = vand.u32 %v9954, 65535
          %v9956 = vshra.s32 %v9954, 16
          %v9957 = vcvt.s32.f32 %v9955
          %v9958 = vcvt.s32.f32 %v9956
          %9959 = vmin.xlane.f32.xlu0 %v9958
          %v9960 = vpop.xlane.xlu0 %9959
          %vm9961 = vcmp.eq.f32.partialorder %v9958, %v9960
          %v9962 = vsel %vm9961, %v9957, inf
          %9963 = vmin.xlane.f32.xlu0 %v9962
          %v9964 = vpop.xlane.xlu0 %9963
          %v9965 = vcvt.f32.s32 %v9964
          %v9966 = vcvt.f32.s32 %v9960
          %v9967 = vshll.u32 %v9966, 16
          %v9968 = vadd.s32 %v9967, %v9965
          %v9969 = vsel %vm6527, %v8553, 2147483647
          %v9970 = vand.u32 %v9969, 65535
          %v9971 = vshra.s32 %v9969, 16
          %v9972 = vcvt.s32.f32 %v9970
          %v9973 = vcvt.s32.f32 %v9971
          %9974 = vmin.xlane.f32.xlu0 %v9973
          %v9975 = vpop.xlane.xlu0 %9974
          %vm9976 = vcmp.eq.f32.partialorder %v9973, %v9975
          %v9977 = vsel %vm9976, %v9972, inf
          %9978 = vmin.xlane.f32.xlu0 %v9977
          %v9979 = vpop.xlane.xlu0 %9978
          %v9980 = vcvt.f32.s32 %v9979
          %v9981 = vcvt.f32.s32 %v9975
          %v9982 = vshll.u32 %v9981, 16
          %v9983 = vadd.s32 %v9982, %v9980
          %v9984 = vsel %vm6527, %v8554, 2147483647
          %v9985 = vand.u32 %v9984, 65535
          %v9986 = vshra.s32 %v9984, 16
          %v9987 = vcvt.s32.f32 %v9985
          %v9988 = vcvt.s32.f32 %v9986
          %9989 = vmin.xlane.f32.xlu0 %v9988
          %v9990 = vpop.xlane.xlu0 %9989
          %vm9991 = vcmp.eq.f32.partialorder %v9988, %v9990
          %v9992 = vsel %vm9991, %v9987, inf
          %9993 = vmin.xlane.f32.xlu0 %v9992
          %v9994 = vpop.xlane.xlu0 %9993
          %v9995 = vcvt.f32.s32 %v9994
          %v9996 = vcvt.f32.s32 %v9990
          %v9997 = vshll.u32 %v9996, 16
          %v9998 = vadd.s32 %v9997, %v9995
          %v9999 = vsel %vm6527, %v8555, 2147483647
          %v10000 = vand.u32 %v9999, 65535
          %v10001 = vshra.s32 %v9999, 16
          %v10002 = vcvt.s32.f32 %v10000
          %v10003 = vcvt.s32.f32 %v10001
          %10004 = vmin.xlane.f32.xlu0 %v10003
          %v10005 = vpop.xlane.xlu0 %10004
          %vm10006 = vcmp.eq.f32.partialorder %v10003, %v10005
          %v10007 = vsel %vm10006, %v10002, inf
          %10008 = vmin.xlane.f32.xlu0 %v10007
          %v10009 = vpop.xlane.xlu0 %10008
          %v10010 = vcvt.f32.s32 %v10009
          %v10011 = vcvt.f32.s32 %v10005
          %v10012 = vshll.u32 %v10011, 16
          %v10013 = vadd.s32 %v10012, %v10010
          %v10014 = vsel %vm6527, %v8556, 2147483647
          %v10015 = vand.u32 %v10014, 65535
          %v10016 = vshra.s32 %v10014, 16
          %v10017 = vcvt.s32.f32 %v10015
          %v10018 = vcvt.s32.f32 %v10016
          %10019 = vmin.xlane.f32.xlu0 %v10018
          %v10020 = vpop.xlane.xlu0 %10019
          %vm10021 = vcmp.eq.f32.partialorder %v10018, %v10020
          %v10022 = vsel %vm10021, %v10017, inf
          %10023 = vmin.xlane.f32.xlu0 %v10022
          %v10024 = vpop.xlane.xlu0 %10023
          %v10025 = vcvt.f32.s32 %v10024
          %v10026 = vcvt.f32.s32 %v10020
          %v10027 = vshll.u32 %v10026, 16
          %v10028 = vadd.s32 %v10027, %v10025
          %v10029 = vsel %vm6527, %v8557, 2147483647
          %v10030 = vand.u32 %v10029, 65535
          %v10031 = vshra.s32 %v10029, 16
          %v10032 = vcvt.s32.f32 %v10030
          %v10033 = vcvt.s32.f32 %v10031
          %10034 = vmin.xlane.f32.xlu0 %v10033
          %v10035 = vpop.xlane.xlu0 %10034
          %vm10036 = vcmp.eq.f32.partialorder %v10033, %v10035
          %v10037 = vsel %vm10036, %v10032, inf
          %10038 = vmin.xlane.f32.xlu0 %v10037
          %v10039 = vpop.xlane.xlu0 %10038
          %v10040 = vcvt.f32.s32 %v10039
          %v10041 = vcvt.f32.s32 %v10035
          %v10042 = vshll.u32 %v10041, 16
          %v10043 = vadd.s32 %v10042, %v10040
          %v10044 = vsel %vm6527, %v8558, 2147483647
          %v10045 = vand.u32 %v10044, 65535
          %v10046 = vshra.s32 %v10044, 16
          %v10047 = vcvt.s32.f32 %v10045
          %v10048 = vcvt.s32.f32 %v10046
          %10049 = vmin.xlane.f32.xlu0 %v10048
          %v10050 = vpop.xlane.xlu0 %10049
          %vm10051 = vcmp.eq.f32.partialorder %v10048, %v10050
          %v10052 = vsel %vm10051, %v10047, inf
          %10053 = vmin.xlane.f32.xlu0 %v10052
          %v10054 = vpop.xlane.xlu0 %10053
          %v10055 = vcvt.f32.s32 %v10054
          %v10056 = vcvt.f32.s32 %v10050
          %v10057 = vshll.u32 %v10056, 16
          %v10058 = vadd.s32 %v10057, %v10055
          %v10059 = vsel %vm6527, %v8559, 2147483647
          %v10060 = vand.u32 %v10059, 65535
          %v10061 = vshra.s32 %v10059, 16
          %v10062 = vcvt.s32.f32 %v10060
          %v10063 = vcvt.s32.f32 %v10061
          %10064 = vmin.xlane.f32.xlu0 %v10063
          %v10065 = vpop.xlane.xlu0 %10064
          %vm10066 = vcmp.eq.f32.partialorder %v10063, %v10065
          %v10067 = vsel %vm10066, %v10062, inf
          %10068 = vmin.xlane.f32.xlu0 %v10067
          %v10069 = vpop.xlane.xlu0 %10068
          %v10070 = vcvt.f32.s32 %v10069
          %v10071 = vcvt.f32.s32 %v10065
          %v10072 = vshll.u32 %v10071, 16
          %v10073 = vadd.s32 %v10072, %v10070
          %v10074 = vsel %vm6527, %v8560, 2147483647
          %v10075 = vand.u32 %v10074, 65535
          %v10076 = vshra.s32 %v10074, 16
          %v10077 = vcvt.s32.f32 %v10075
          %v10078 = vcvt.s32.f32 %v10076
          %10079 = vmin.xlane.f32.xlu0 %v10078
          %v10080 = vpop.xlane.xlu0 %10079
          %vm10081 = vcmp.eq.f32.partialorder %v10078, %v10080
          %v10082 = vsel %vm10081, %v10077, inf
          %10083 = vmin.xlane.f32.xlu0 %v10082
          %v10084 = vpop.xlane.xlu0 %10083
          %v10085 = vcvt.f32.s32 %v10084
          %v10086 = vcvt.f32.s32 %v10080
          %v10087 = vshll.u32 %v10086, 16
          %v10088 = vadd.s32 %v10087, %v10085
          %v10089 = vsel %vm6527, %v8561, 2147483647
          %v10090 = vand.u32 %v10089, 65535
          %v10091 = vshra.s32 %v10089, 16
          %v10092 = vcvt.s32.f32 %v10090
          %v10093 = vcvt.s32.f32 %v10091
          %10094 = vmin.xlane.f32.xlu0 %v10093
          %v10095 = vpop.xlane.xlu0 %10094
          %vm10096 = vcmp.eq.f32.partialorder %v10093, %v10095
          %v10097 = vsel %vm10096, %v10092, inf
          %10098 = vmin.xlane.f32.xlu0 %v10097
          %v10099 = vpop.xlane.xlu0 %10098
          %v10100 = vcvt.f32.s32 %v10099
          %v10101 = vcvt.f32.s32 %v10095
          %v10102 = vshll.u32 %v10101, 16
          %v10103 = vadd.s32 %v10102, %v10100
          %v10104 = vsel %vm6527, %v8562, 2147483647
          %v10105 = vand.u32 %v10104, 65535
          %v10106 = vshra.s32 %v10104, 16
          %v10107 = vcvt.s32.f32 %v10105
          %v10108 = vcvt.s32.f32 %v10106
          %10109 = vmin.xlane.f32.xlu0 %v10108
          %v10110 = vpop.xlane.xlu0 %10109
          %vm10111 = vcmp.eq.f32.partialorder %v10108, %v10110
          %v10112 = vsel %vm10111, %v10107, inf
          %10113 = vmin.xlane.f32.xlu0 %v10112
          %v10114 = vpop.xlane.xlu0 %10113
          %v10115 = vcvt.f32.s32 %v10114
          %v10116 = vcvt.f32.s32 %v10110
          %v10117 = vshll.u32 %v10116, 16
          %v10118 = vadd.s32 %v10117, %v10115
          %v10119 = vsel %vm6527, %v8563, 2147483647
          %v10120 = vand.u32 %v10119, 65535
          %v10121 = vshra.s32 %v10119, 16
          %v10122 = vcvt.s32.f32 %v10120
          %v10123 = vcvt.s32.f32 %v10121
          %10124 = vmin.xlane.f32.xlu0 %v10123
          %v10125 = vpop.xlane.xlu0 %10124
          %vm10126 = vcmp.eq.f32.partialorder %v10123, %v10125
          %v10127 = vsel %vm10126, %v10122, inf
          %10128 = vmin.xlane.f32.xlu0 %v10127
          %v10129 = vpop.xlane.xlu0 %10128
          %v10130 = vcvt.f32.s32 %v10129
          %v10131 = vcvt.f32.s32 %v10125
          %v10132 = vshll.u32 %v10131, 16
          %v10133 = vadd.s32 %v10132, %v10130
          %v10134 = vsel %vm6527, %v8564, 2147483647
          %v10135 = vand.u32 %v10134, 65535
          %v10136 = vshra.s32 %v10134, 16
          %v10137 = vcvt.s32.f32 %v10135
          %v10138 = vcvt.s32.f32 %v10136
          %10139 = vmin.xlane.f32.xlu0 %v10138
          %v10140 = vpop.xlane.xlu0 %10139
          %vm10141 = vcmp.eq.f32.partialorder %v10138, %v10140
          %v10142 = vsel %vm10141, %v10137, inf
          %10143 = vmin.xlane.f32.xlu0 %v10142
          %v10144 = vpop.xlane.xlu0 %10143
          %v10145 = vcvt.f32.s32 %v10144
          %v10146 = vcvt.f32.s32 %v10140
          %v10147 = vshll.u32 %v10146, 16
          %v10148 = vadd.s32 %v10147, %v10145
          %v10149 = vsel %vm6527, %v8565, 2147483647
          %v10150 = vand.u32 %v10149, 65535
          %v10151 = vshra.s32 %v10149, 16
          %v10152 = vcvt.s32.f32 %v10150
          %v10153 = vcvt.s32.f32 %v10151
          %10154 = vmin.xlane.f32.xlu0 %v10153
          %v10155 = vpop.xlane.xlu0 %10154
          %vm10156 = vcmp.eq.f32.partialorder %v10153, %v10155
          %v10157 = vsel %vm10156, %v10152, inf
          %10158 = vmin.xlane.f32.xlu0 %v10157
          %v10159 = vpop.xlane.xlu0 %10158
          %v10160 = vcvt.f32.s32 %v10159
          %v10161 = vcvt.f32.s32 %v10155
          %v10162 = vshll.u32 %v10161, 16
          %v10163 = vadd.s32 %v10162, %v10160
          %v10164 = vsel %vm6527, %v8566, 2147483647
          %v10165 = vand.u32 %v10164, 65535
          %v10166 = vshra.s32 %v10164, 16
          %v10167 = vcvt.s32.f32 %v10165
          %v10168 = vcvt.s32.f32 %v10166
          %10169 = vmin.xlane.f32.xlu0 %v10168
          %v10170 = vpop.xlane.xlu0 %10169
          %vm10171 = vcmp.eq.f32.partialorder %v10168, %v10170
          %v10172 = vsel %vm10171, %v10167, inf
          %10173 = vmin.xlane.f32.xlu0 %v10172
          %v10174 = vpop.xlane.xlu0 %10173
          %v10175 = vcvt.f32.s32 %v10174
          %v10176 = vcvt.f32.s32 %v10170
          %v10177 = vshll.u32 %v10176, 16
          %v10178 = vadd.s32 %v10177, %v10175
          %v10179 = vsel %vm6527, %v8567, 2147483647
          %v10180 = vand.u32 %v10179, 65535
          %v10181 = vshra.s32 %v10179, 16
          %v10182 = vcvt.s32.f32 %v10180
          %v10183 = vcvt.s32.f32 %v10181
          %10184 = vmin.xlane.f32.xlu0 %v10183
          %v10185 = vpop.xlane.xlu0 %10184
          %vm10186 = vcmp.eq.f32.partialorder %v10183, %v10185
          %v10187 = vsel %vm10186, %v10182, inf
          %10188 = vmin.xlane.f32.xlu0 %v10187
          %v10189 = vpop.xlane.xlu0 %10188
          %v10190 = vcvt.f32.s32 %v10189
          %v10191 = vcvt.f32.s32 %v10185
          %v10192 = vshll.u32 %v10191, 16
          %v10193 = vadd.s32 %v10192, %v10190
          %v10194 = vsel %vm6527, %v8568, 2147483647
          %v10195 = vand.u32 %v10194, 65535
          %v10196 = vshra.s32 %v10194, 16
          %v10197 = vcvt.s32.f32 %v10195
          %v10198 = vcvt.s32.f32 %v10196
          %10199 = vmin.xlane.f32.xlu0 %v10198
          %v10200 = vpop.xlane.xlu0 %10199
          %vm10201 = vcmp.eq.f32.partialorder %v10198, %v10200
          %v10202 = vsel %vm10201, %v10197, inf
          %10203 = vmin.xlane.f32.xlu0 %v10202
          %v10204 = vpop.xlane.xlu0 %10203
          %v10205 = vcvt.f32.s32 %v10204
          %v10206 = vcvt.f32.s32 %v10200
          %v10207 = vshll.u32 %v10206, 16
          %v10208 = vadd.s32 %v10207, %v10205
          %v10209 = vsel %vm6527, %v8569, 2147483647
          %v10210 = vand.u32 %v10209, 65535
          %v10211 = vshra.s32 %v10209, 16
          %v10212 = vcvt.s32.f32 %v10210
          %v10213 = vcvt.s32.f32 %v10211
          %10214 = vmin.xlane.f32.xlu0 %v10213
          %v10215 = vpop.xlane.xlu0 %10214
          %vm10216 = vcmp.eq.f32.partialorder %v10213, %v10215
          %v10217 = vsel %vm10216, %v10212, inf
          %10218 = vmin.xlane.f32.xlu0 %v10217
          %v10219 = vpop.xlane.xlu0 %10218
          %v10220 = vcvt.f32.s32 %v10219
          %v10221 = vcvt.f32.s32 %v10215
          %v10222 = vshll.u32 %v10221, 16
          %v10223 = vadd.s32 %v10222, %v10220
          %v10224 = vsel %vm6527, %v8570, 2147483647
          %v10225 = vand.u32 %v10224, 65535
          %v10226 = vshra.s32 %v10224, 16
          %v10227 = vcvt.s32.f32 %v10225
          %v10228 = vcvt.s32.f32 %v10226
          %10229 = vmin.xlane.f32.xlu0 %v10228
          %v10230 = vpop.xlane.xlu0 %10229
          %vm10231 = vcmp.eq.f32.partialorder %v10228, %v10230
          %v10232 = vsel %vm10231, %v10227, inf
          %10233 = vmin.xlane.f32.xlu0 %v10232
          %v10234 = vpop.xlane.xlu0 %10233
          %v10235 = vcvt.f32.s32 %v10234
          %v10236 = vcvt.f32.s32 %v10230
          %v10237 = vshll.u32 %v10236, 16
          %v10238 = vadd.s32 %v10237, %v10235
          %v10239 = vsel %vm6527, %v8571, 2147483647
          %v10240 = vand.u32 %v10239, 65535
          %v10241 = vshra.s32 %v10239, 16
          %v10242 = vcvt.s32.f32 %v10240
          %v10243 = vcvt.s32.f32 %v10241
          %10244 = vmin.xlane.f32.xlu0 %v10243
          %v10245 = vpop.xlane.xlu0 %10244
          %vm10246 = vcmp.eq.f32.partialorder %v10243, %v10245
          %v10247 = vsel %vm10246, %v10242, inf
          %10248 = vmin.xlane.f32.xlu0 %v10247
          %v10249 = vpop.xlane.xlu0 %10248
          %v10250 = vcvt.f32.s32 %v10249
          %v10251 = vcvt.f32.s32 %v10245
          %v10252 = vshll.u32 %v10251, 16
          %v10253 = vadd.s32 %v10252, %v10250
          %v10254 = vsel %vm6527, %v8572, 2147483647
          %v10255 = vand.u32 %v10254, 65535
          %v10256 = vshra.s32 %v10254, 16
          %v10257 = vcvt.s32.f32 %v10255
          %v10258 = vcvt.s32.f32 %v10256
          %10259 = vmin.xlane.f32.xlu0 %v10258
          %v10260 = vpop.xlane.xlu0 %10259
          %vm10261 = vcmp.eq.f32.partialorder %v10258, %v10260
          %v10262 = vsel %vm10261, %v10257, inf
          %10263 = vmin.xlane.f32.xlu0 %v10262
          %v10264 = vpop.xlane.xlu0 %10263
          %v10265 = vcvt.f32.s32 %v10264
          %v10266 = vcvt.f32.s32 %v10260
          %v10267 = vshll.u32 %v10266, 16
          %v10268 = vadd.s32 %v10267, %v10265
          %v10269 = vsel %vm6527, %v8573, 2147483647
          %v10270 = vand.u32 %v10269, 65535
          %v10271 = vshra.s32 %v10269, 16
          %v10272 = vcvt.s32.f32 %v10270
          %v10273 = vcvt.s32.f32 %v10271
          %10274 = vmin.xlane.f32.xlu0 %v10273
          %v10275 = vpop.xlane.xlu0 %10274
          %vm10276 = vcmp.eq.f32.partialorder %v10273, %v10275
          %v10277 = vsel %vm10276, %v10272, inf
          %10278 = vmin.xlane.f32.xlu0 %v10277
          %v10279 = vpop.xlane.xlu0 %10278
          %v10280 = vcvt.f32.s32 %v10279
          %v10281 = vcvt.f32.s32 %v10275
          %v10282 = vshll.u32 %v10281, 16
          %v10283 = vadd.s32 %v10282, %v10280
          %v10284 = vsel %vm6527, %v8574, 2147483647
          %v10285 = vand.u32 %v10284, 65535
          %v10286 = vshra.s32 %v10284, 16
          %v10287 = vcvt.s32.f32 %v10285
          %v10288 = vcvt.s32.f32 %v10286
          %10289 = vmin.xlane.f32.xlu0 %v10288
          %v10290 = vpop.xlane.xlu0 %10289
          %vm10291 = vcmp.eq.f32.partialorder %v10288, %v10290
          %v10292 = vsel %vm10291, %v10287, inf
          %10293 = vmin.xlane.f32.xlu0 %v10292
          %v10294 = vpop.xlane.xlu0 %10293
          %v10295 = vcvt.f32.s32 %v10294
          %v10296 = vcvt.f32.s32 %v10290
          %v10297 = vshll.u32 %v10296, 16
          %v10298 = vadd.s32 %v10297, %v10295
          %v10299 = vsel %vm6527, %v8575, 2147483647
          %v10300 = vand.u32 %v10299, 65535
          %v10301 = vshra.s32 %v10299, 16
          %v10302 = vcvt.s32.f32 %v10300
          %v10303 = vcvt.s32.f32 %v10301
          %10304 = vmin.xlane.f32.xlu0 %v10303
          %v10305 = vpop.xlane.xlu0 %10304
          %vm10306 = vcmp.eq.f32.partialorder %v10303, %v10305
          %v10307 = vsel %vm10306, %v10302, inf
          %10308 = vmin.xlane.f32.xlu0 %v10307
          %v10309 = vpop.xlane.xlu0 %10308
          %v10310 = vcvt.f32.s32 %v10309
          %v10311 = vcvt.f32.s32 %v10305
          %v10312 = vshll.u32 %v10311, 16
          %v10313 = vadd.s32 %v10312, %v10310
          %v10314 = vsel %vm6527, %v8576, 2147483647
          %v10315 = vand.u32 %v10314, 65535
          %v10316 = vshra.s32 %v10314, 16
          %v10317 = vcvt.s32.f32 %v10315
          %v10318 = vcvt.s32.f32 %v10316
          %10319 = vmin.xlane.f32.xlu0 %v10318
          %v10320 = vpop.xlane.xlu0 %10319
          %vm10321 = vcmp.eq.f32.partialorder %v10318, %v10320
          %v10322 = vsel %vm10321, %v10317, inf
          %10323 = vmin.xlane.f32.xlu0 %v10322
          %v10324 = vpop.xlane.xlu0 %10323
          %v10325 = vcvt.f32.s32 %v10324
          %v10326 = vcvt.f32.s32 %v10320
          %v10327 = vshll.u32 %v10326, 16
          %v10328 = vadd.s32 %v10327, %v10325
          %v10329 = vsel %vm6527, %v8577, 2147483647
          %v10330 = vand.u32 %v10329, 65535
          %v10331 = vshra.s32 %v10329, 16
          %v10332 = vcvt.s32.f32 %v10330
          %v10333 = vcvt.s32.f32 %v10331
          %10334 = vmin.xlane.f32.xlu0 %v10333
          %v10335 = vpop.xlane.xlu0 %10334
          %vm10336 = vcmp.eq.f32.partialorder %v10333, %v10335
          %v10337 = vsel %vm10336, %v10332, inf
          %10338 = vmin.xlane.f32.xlu0 %v10337
          %v10339 = vpop.xlane.xlu0 %10338
          %v10340 = vcvt.f32.s32 %v10339
          %v10341 = vcvt.f32.s32 %v10335
          %v10342 = vshll.u32 %v10341, 16
          %v10343 = vadd.s32 %v10342, %v10340
          %v10344 = vsel %vm6527, %v8578, 2147483647
          %v10345 = vand.u32 %v10344, 65535
          %v10346 = vshra.s32 %v10344, 16
          %v10347 = vcvt.s32.f32 %v10345
          %v10348 = vcvt.s32.f32 %v10346
          %10349 = vmin.xlane.f32.xlu0 %v10348
          %v10350 = vpop.xlane.xlu0 %10349
          %vm10351 = vcmp.eq.f32.partialorder %v10348, %v10350
          %v10352 = vsel %vm10351, %v10347, inf
          %10353 = vmin.xlane.f32.xlu0 %v10352
          %v10354 = vpop.xlane.xlu0 %10353
          %v10355 = vcvt.f32.s32 %v10354
          %v10356 = vcvt.f32.s32 %v10350
          %v10357 = vshll.u32 %v10356, 16
          %v10358 = vadd.s32 %v10357, %v10355
          %v10359 = vsel %vm6527, %v8579, 2147483647
          %v10360 = vand.u32 %v10359, 65535
          %v10361 = vshra.s32 %v10359, 16
          %v10362 = vcvt.s32.f32 %v10360
          %v10363 = vcvt.s32.f32 %v10361
          %10364 = vmin.xlane.f32.xlu0 %v10363
          %v10365 = vpop.xlane.xlu0 %10364
          %vm10366 = vcmp.eq.f32.partialorder %v10363, %v10365
          %v10367 = vsel %vm10366, %v10362, inf
          %10368 = vmin.xlane.f32.xlu0 %v10367
          %v10369 = vpop.xlane.xlu0 %10368
          %v10370 = vcvt.f32.s32 %v10369
          %v10371 = vcvt.f32.s32 %v10365
          %v10372 = vshll.u32 %v10371, 16
          %v10373 = vadd.s32 %v10372, %v10370
          %v10374 = vsel %vm6527, %v8580, 2147483647
          %v10375 = vand.u32 %v10374, 65535
          %v10376 = vshra.s32 %v10374, 16
          %v10377 = vcvt.s32.f32 %v10375
          %v10378 = vcvt.s32.f32 %v10376
          %10379 = vmin.xlane.f32.xlu0 %v10378
          %v10380 = vpop.xlane.xlu0 %10379
          %vm10381 = vcmp.eq.f32.partialorder %v10378, %v10380
          %v10382 = vsel %vm10381, %v10377, inf
          %10383 = vmin.xlane.f32.xlu0 %v10382
          %v10384 = vpop.xlane.xlu0 %10383
          %v10385 = vcvt.f32.s32 %v10384
          %v10386 = vcvt.f32.s32 %v10380
          %v10387 = vshll.u32 %v10386, 16
          %v10388 = vadd.s32 %v10387, %v10385
          %v10389 = vsel %vm6527, %v8581, 2147483647
          %v10390 = vand.u32 %v10389, 65535
          %v10391 = vshra.s32 %v10389, 16
          %v10392 = vcvt.s32.f32 %v10390
          %v10393 = vcvt.s32.f32 %v10391
          %10394 = vmin.xlane.f32.xlu0 %v10393
          %v10395 = vpop.xlane.xlu0 %10394
          %vm10396 = vcmp.eq.f32.partialorder %v10393, %v10395
          %v10397 = vsel %vm10396, %v10392, inf
          %10398 = vmin.xlane.f32.xlu0 %v10397
          %v10399 = vpop.xlane.xlu0 %10398
          %v10400 = vcvt.f32.s32 %v10399
          %v10401 = vcvt.f32.s32 %v10395
          %v10402 = vshll.u32 %v10401, 16
          %v10403 = vadd.s32 %v10402, %v10400
          %v10404 = vsel %vm6527, %v8582, 2147483647
          %v10405 = vand.u32 %v10404, 65535
          %v10406 = vshra.s32 %v10404, 16
          %v10407 = vcvt.s32.f32 %v10405
          %v10408 = vcvt.s32.f32 %v10406
          %10409 = vmin.xlane.f32.xlu0 %v10408
          %v10410 = vpop.xlane.xlu0 %10409
          %vm10411 = vcmp.eq.f32.partialorder %v10408, %v10410
          %v10412 = vsel %vm10411, %v10407, inf
          %10413 = vmin.xlane.f32.xlu0 %v10412
          %v10414 = vpop.xlane.xlu0 %10413
          %v10415 = vcvt.f32.s32 %v10414
          %v10416 = vcvt.f32.s32 %v10410
          %v10417 = vshll.u32 %v10416, 16
          %v10418 = vadd.s32 %v10417, %v10415
          %v10419 = vsel %vm6527, %v8583, 2147483647
          %v10420 = vand.u32 %v10419, 65535
          %v10421 = vshra.s32 %v10419, 16
          %v10422 = vcvt.s32.f32 %v10420
          %v10423 = vcvt.s32.f32 %v10421
          %10424 = vmin.xlane.f32.xlu0 %v10423
          %v10425 = vpop.xlane.xlu0 %10424
          %vm10426 = vcmp.eq.f32.partialorder %v10423, %v10425
          %v10427 = vsel %vm10426, %v10422, inf
          %10428 = vmin.xlane.f32.xlu0 %v10427
          %v10429 = vpop.xlane.xlu0 %10428
          %v10430 = vcvt.f32.s32 %v10429
          %v10431 = vcvt.f32.s32 %v10425
          %v10432 = vshll.u32 %v10431, 16
          %v10433 = vadd.s32 %v10432, %v10430
          %v10434 = vsel %vm6527, %v8584, 2147483647
          %v10435 = vand.u32 %v10434, 65535
          %v10436 = vshra.s32 %v10434, 16
          %v10437 = vcvt.s32.f32 %v10435
          %v10438 = vcvt.s32.f32 %v10436
          %10439 = vmin.xlane.f32.xlu0 %v10438
          %v10440 = vpop.xlane.xlu0 %10439
          %vm10441 = vcmp.eq.f32.partialorder %v10438, %v10440
          %v10442 = vsel %vm10441, %v10437, inf
          %10443 = vmin.xlane.f32.xlu0 %v10442
          %v10444 = vpop.xlane.xlu0 %10443
          %v10445 = vcvt.f32.s32 %v10444
          %v10446 = vcvt.f32.s32 %v10440
          %v10447 = vshll.u32 %v10446, 16
          %v10448 = vadd.s32 %v10447, %v10445
          %v10449 = vsel %vm6527, %v8585, 2147483647
          %v10450 = vand.u32 %v10449, 65535
          %v10451 = vshra.s32 %v10449, 16
          %v10452 = vcvt.s32.f32 %v10450
          %v10453 = vcvt.s32.f32 %v10451
          %10454 = vmin.xlane.f32.xlu0 %v10453
          %v10455 = vpop.xlane.xlu0 %10454
          %vm10456 = vcmp.eq.f32.partialorder %v10453, %v10455
          %v10457 = vsel %vm10456, %v10452, inf
          %10458 = vmin.xlane.f32.xlu0 %v10457
          %v10459 = vpop.xlane.xlu0 %10458
          %v10460 = vcvt.f32.s32 %v10459
          %v10461 = vcvt.f32.s32 %v10455
          %v10462 = vshll.u32 %v10461, 16
          %v10463 = vadd.s32 %v10462, %v10460
          %v10464 = vsel %vm6527, %v8586, 2147483647
          %v10465 = vand.u32 %v10464, 65535
          %v10466 = vshra.s32 %v10464, 16
          %v10467 = vcvt.s32.f32 %v10465
          %v10468 = vcvt.s32.f32 %v10466
          %10469 = vmin.xlane.f32.xlu0 %v10468
          %v10470 = vpop.xlane.xlu0 %10469
          %vm10471 = vcmp.eq.f32.partialorder %v10468, %v10470
          %v10472 = vsel %vm10471, %v10467, inf
          %10473 = vmin.xlane.f32.xlu0 %v10472
          %v10474 = vpop.xlane.xlu0 %10473
          %v10475 = vcvt.f32.s32 %v10474
          %v10476 = vcvt.f32.s32 %v10470
          %v10477 = vshll.u32 %v10476, 16
          %v10478 = vadd.s32 %v10477, %v10475
          %v10479 = vsel %vm6527, %v8587, 2147483647
          %v10480 = vand.u32 %v10479, 65535
          %v10481 = vshra.s32 %v10479, 16
          %v10482 = vcvt.s32.f32 %v10480
          %v10483 = vcvt.s32.f32 %v10481
          %10484 = vmin.xlane.f32.xlu0 %v10483
          %v10485 = vpop.xlane.xlu0 %10484
          %vm10486 = vcmp.eq.f32.partialorder %v10483, %v10485
          %v10487 = vsel %vm10486, %v10482, inf
          %10488 = vmin.xlane.f32.xlu0 %v10487
          %v10489 = vpop.xlane.xlu0 %10488
          %v10490 = vcvt.f32.s32 %v10489
          %v10491 = vcvt.f32.s32 %v10485
          %v10492 = vshll.u32 %v10491, 16
          %v10493 = vadd.s32 %v10492, %v10490
          %v10494 = vsel %vm6527, %v8588, 2147483647
          %v10495 = vand.u32 %v10494, 65535
          %v10496 = vshra.s32 %v10494, 16
          %v10497 = vcvt.s32.f32 %v10495
          %v10498 = vcvt.s32.f32 %v10496
          %10499 = vmin.xlane.f32.xlu0 %v10498
          %v10500 = vpop.xlane.xlu0 %10499
          %vm10501 = vcmp.eq.f32.partialorder %v10498, %v10500
          %v10502 = vsel %vm10501, %v10497, inf
          %10503 = vmin.xlane.f32.xlu0 %v10502
          %v10504 = vpop.xlane.xlu0 %10503
          %v10505 = vcvt.f32.s32 %v10504
          %v10506 = vcvt.f32.s32 %v10500
          %v10507 = vshll.u32 %v10506, 16
          %v10508 = vadd.s32 %v10507, %v10505
          %v10509 = vlaneseq
          %v10510 = vshrl.u32 %v10509, 7
          %v10511 = vsub.s32 %v7948, %v10510
          %v10512 = vrot.slane %v8603, %v10511
          %v10513 = vadd.s32 %v7948, 4294967288
          %v10514 = vlaneseq
          %v10515 = vshrl.u32 %v10514, 7
          %v10516 = vsub.s32 %v10513, %v10515
          %v10517 = vrot.slane %v8618, %v10516
          %vm10518 = vcmask 130112
          %v10519 = vsel %vm10518, %v10517, %v10512
          %v10520 = vadd.s32 %v7948, 4294967280
          %v10521 = vlaneseq
          %v10522 = vshrl.u32 %v10521, 7
          %v10523 = vsub.s32 %v10520, %v10522
          %v10524 = vrot.slane %v8633, %v10523
          %vm10525 = vcmask 195712
          %v10526 = vsel %vm10525, %v10524, %v10519
          %v10527 = vadd.s32 %v7948, 4294967272
          %v10528 = vlaneseq
          %v10529 = vshrl.u32 %v10528, 7
          %v10530 = vsub.s32 %v10527, %v10529
          %v10531 = vrot.slane %v8648, %v10530
          %vm10532 = vcmask 261312
          %v10533 = vsel %vm10532, %v10531, %v10526
          %v10534 = vadd.s32 %v7948, 4294967264
          %v10535 = vlaneseq
          %v10536 = vshrl.u32 %v10535, 7
          %v10537 = vsub.s32 %v10534, %v10536
          %v10538 = vrot.slane %v8663, %v10537
          %vm10539 = vcmask 326912
          %v10540 = vsel %vm10539, %v10538, %v10533
          %v10541 = vadd.s32 %v7948, 4294967256
          %v10542 = vlaneseq
          %v10543 = vshrl.u32 %v10542, 7
          %v10544 = vsub.s32 %v10541, %v10543
          %v10545 = vrot.slane %v8678, %v10544
          %vm10546 = vcmask 392512
          %v10547 = vsel %vm10546, %v10545, %v10540
          %v10548 = vadd.s32 %v7948, 4294967248
          %v10549 = vlaneseq
          %v10550 = vshrl.u32 %v10549, 7
          %v10551 = vsub.s32 %v10548, %v10550
          %v10552 = vrot.slane %v8693, %v10551
          %vm10553 = vcmask 458112
          %v10554 = vsel %vm10553, %v10552, %v10547
          %v10555 = vadd.s32 %v7948, 4294967240
          %v10556 = vlaneseq
          %v10557 = vshrl.u32 %v10556, 7
          %v10558 = vsub.s32 %v10555, %v10557
          %v10559 = vrot.slane %v8708, %v10558
          %vm10560 = vcmask 523712
          %v10561 = vsel %vm10560, %v10559, %v10554
          %v10562 = vadd.s32 %v7948, 4294967232
          %v10563 = vlaneseq
          %v10564 = vshrl.u32 %v10563, 7
          %v10565 = vsub.s32 %v10562, %v10564
          %v10566 = vrot.slane %v8723, %v10565
          %vm10567 = vcmask 589312
          %v10568 = vsel %vm10567, %v10566, %v10561
          %v10569 = vadd.s32 %v7948, 4294967224
          %v10570 = vlaneseq
          %v10571 = vshrl.u32 %v10570, 7
          %v10572 = vsub.s32 %v10569, %v10571
          %v10573 = vrot.slane %v8738, %v10572
          %vm10574 = vcmask 654912
          %v10575 = vsel %vm10574, %v10573, %v10568
          %v10576 = vadd.s32 %v7948, 4294967216
          %v10577 = vlaneseq
          %v10578 = vshrl.u32 %v10577, 7
          %v10579 = vsub.s32 %v10576, %v10578
          %v10580 = vrot.slane %v8753, %v10579
          %vm10581 = vcmask 720512
          %v10582 = vsel %vm10581, %v10580, %v10575
          %v10583 = vadd.s32 %v7948, 4294967208
          %v10584 = vlaneseq
          %v10585 = vshrl.u32 %v10584, 7
          %v10586 = vsub.s32 %v10583, %v10585
          %v10587 = vrot.slane %v8768, %v10586
          %vm10588 = vcmask 786112
          %v10589 = vsel %vm10588, %v10587, %v10582
          %v10590 = vadd.s32 %v7948, 4294967200
          %v10591 = vlaneseq
          %v10592 = vshrl.u32 %v10591, 7
          %v10593 = vsub.s32 %v10590, %v10592
          %v10594 = vrot.slane %v8783, %v10593
          %vm10595 = vcmask 851712
          %v10596 = vsel %vm10595, %v10594, %v10589
          %v10597 = vadd.s32 %v7948, 4294967192
          %v10598 = vlaneseq
          %v10599 = vshrl.u32 %v10598, 7
          %v10600 = vsub.s32 %v10597, %v10599
          %v10601 = vrot.slane %v8798, %v10600
          %vm10602 = vcmask 917312
          %v10603 = vsel %vm10602, %v10601, %v10596
          %v10604 = vadd.s32 %v7948, 4294967184
          %v10605 = vlaneseq
          %v10606 = vshrl.u32 %v10605, 7
          %v10607 = vsub.s32 %v10604, %v10606
          %v10608 = vrot.slane %v8813, %v10607
          %vm10609 = vcmask 982912
          %v10610 = vsel %vm10609, %v10608, %v10603
          %v10611 = vadd.s32 %v7948, 4294967176
          %v10612 = vlaneseq
          %v10613 = vshrl.u32 %v10612, 7
          %v10614 = vsub.s32 %v10611, %v10613
          %v10615 = vrot.slane %v8828, %v10614
          %vm10616 = vcmask 1048512
          %v10617 = vsel %vm10616, %v10615, %v10610
          %10618 = vst [vmem:[%s186] ss:$8 sm:$0x1] %v10617
          %10619 = vst [vmem:[%s186] ss:$8 sm:$0x0] %v10617
          %v10620 = vlaneseq
          %v10621 = vshrl.u32 %v10620, 7
          %v10622 = vsub.s32 %v7948, %v10621
          %v10623 = vrot.slane %v8843, %v10622
          %v10624 = vlaneseq
          %v10625 = vshrl.u32 %v10624, 7
          %v10626 = vsub.s32 %v10513, %v10625
          %v10627 = vrot.slane %v8858, %v10626
          %v10628 = vsel %vm10518, %v10627, %v10623
          %v10629 = vlaneseq
          %v10630 = vshrl.u32 %v10629, 7
          %v10631 = vsub.s32 %v10520, %v10630
          %v10632 = vrot.slane %v8873, %v10631
          %v10633 = vsel %vm10525, %v10632, %v10628
          %v10634 = vlaneseq
          %v10635 = vshrl.u32 %v10634, 7
          %v10636 = vsub.s32 %v10527, %v10635
          %v10637 = vrot.slane %v8888, %v10636
          %v10638 = vsel %vm10532, %v10637, %v10633
          %v10639 = vlaneseq
          %v10640 = vshrl.u32 %v10639, 7
          %v10641 = vsub.s32 %v10534, %v10640
          %v10642 = vrot.slane %v8903, %v10641
          %v10643 = vsel %vm10539, %v10642, %v10638
          %v10644 = vlaneseq
          %v10645 = vshrl.u32 %v10644, 7
          %v10646 = vsub.s32 %v10541, %v10645
          %v10647 = vrot.slane %v8918, %v10646
          %v10648 = vsel %vm10546, %v10647, %v10643
          %v10649 = vlaneseq
          %v10650 = vshrl.u32 %v10649, 7
          %v10651 = vsub.s32 %v10548, %v10650
          %v10652 = vrot.slane %v8933, %v10651
          %v10653 = vsel %vm10553, %v10652, %v10648
          %v10654 = vlaneseq
          %v10655 = vshrl.u32 %v10654, 7
          %v10656 = vsub.s32 %v10555, %v10655
          %v10657 = vrot.slane %v8948, %v10656
          %v10658 = vsel %vm10560, %v10657, %v10653
          %v10659 = vlaneseq
          %v10660 = vshrl.u32 %v10659, 7
          %v10661 = vsub.s32 %v10562, %v10660
          %v10662 = vrot.slane %v8963, %v10661
          %v10663 = vsel %vm10567, %v10662, %v10658
          %v10664 = vlaneseq
          %v10665 = vshrl.u32 %v10664, 7
          %v10666 = vsub.s32 %v10569, %v10665
          %v10667 = vrot.slane %v8978, %v10666
          %v10668 = vsel %vm10574, %v10667, %v10663
          %v10669 = vlaneseq
          %v10670 = vshrl.u32 %v10669, 7
          %v10671 = vsub.s32 %v10576, %v10670
          %v10672 = vrot.slane %v8993, %v10671
          %v10673 = vsel %vm10581, %v10672, %v10668
          %v10674 = vlaneseq
          %v10675 = vshrl.u32 %v10674, 7
          %v10676 = vsub.s32 %v10583, %v10675
          %v10677 = vrot.slane %v9008, %v10676
          %v10678 = vsel %vm10588, %v10677, %v10673
          %v10679 = vlaneseq
          %v10680 = vshrl.u32 %v10679, 7
          %v10681 = vsub.s32 %v10590, %v10680
          %v10682 = vrot.slane %v9023, %v10681
          %v10683 = vsel %vm10595, %v10682, %v10678
          %v10684 = vlaneseq
          %v10685 = vshrl.u32 %v10684, 7
          %v10686 = vsub.s32 %v10597, %v10685
          %v10687 = vrot.slane %v9038, %v10686
          %v10688 = vsel %vm10602, %v10687, %v10683
          %v10689 = vlaneseq
          %v10690 = vshrl.u32 %v10689, 7
          %v10691 = vsub.s32 %v10604, %v10690
          %v10692 = vrot.slane %v9053, %v10691
          %v10693 = vsel %vm10609, %v10692, %v10688
          %v10694 = vlaneseq
          %v10695 = vshrl.u32 %v10694, 7
          %v10696 = vsub.s32 %v10611, %v10695
          %v10697 = vrot.slane %v9068, %v10696
          %v10698 = vsel %vm10616, %v10697, %v10693
          %s10699 = scalar_lea.vmem %s186, 1 [#allocation5]
          %10700 = vst [vmem:[%s10699] ss:$8 sm:$0x1] %v10698
          %10701 = vst [vmem:[%s10699] ss:$8 sm:$0x0] %v10698
          %v10702 = vlaneseq
          %v10703 = vshrl.u32 %v10702, 7
          %v10704 = vsub.s32 %v7948, %v10703
          %v10705 = vrot.slane %v9083, %v10704
          %v10706 = vlaneseq
          %v10707 = vshrl.u32 %v10706, 7
          %v10708 = vsub.s32 %v10513, %v10707
          %v10709 = vrot.slane %v9098, %v10708
          %v10710 = vsel %vm10518, %v10709, %v10705
          %v10711 = vlaneseq
          %v10712 = vshrl.u32 %v10711, 7
          %v10713 = vsub.s32 %v10520, %v10712
          %v10714 = vrot.slane %v9113, %v10713
          %v10715 = vsel %vm10525, %v10714, %v10710
          %v10716 = vlaneseq
          %v10717 = vshrl.u32 %v10716, 7
          %v10718 = vsub.s32 %v10527, %v10717
          %v10719 = vrot.slane %v9128, %v10718
          %v10720 = vsel %vm10532, %v10719, %v10715
          %v10721 = vlaneseq
          %v10722 = vshrl.u32 %v10721, 7
          %v10723 = vsub.s32 %v10534, %v10722
          %v10724 = vrot.slane %v9143, %v10723
          %v10725 = vsel %vm10539, %v10724, %v10720
          %v10726 = vlaneseq
          %v10727 = vshrl.u32 %v10726, 7
          %v10728 = vsub.s32 %v10541, %v10727
          %v10729 = vrot.slane %v9158, %v10728
          %v10730 = vsel %vm10546, %v10729, %v10725
          %v10731 = vlaneseq
          %v10732 = vshrl.u32 %v10731, 7
          %v10733 = vsub.s32 %v10548, %v10732
          %v10734 = vrot.slane %v9173, %v10733
          %v10735 = vsel %vm10553, %v10734, %v10730
          %v10736 = vlaneseq
          %v10737 = vshrl.u32 %v10736, 7
          %v10738 = vsub.s32 %v10555, %v10737
          %v10739 = vrot.slane %v9188, %v10738
          %v10740 = vsel %vm10560, %v10739, %v10735
          %v10741 = vlaneseq
          %v10742 = vshrl.u32 %v10741, 7
          %v10743 = vsub.s32 %v10562, %v10742
          %v10744 = vrot.slane %v9203, %v10743
          %v10745 = vsel %vm10567, %v10744, %v10740
          %v10746 = vlaneseq
          %v10747 = vshrl.u32 %v10746, 7
          %v10748 = vsub.s32 %v10569, %v10747
          %v10749 = vrot.slane %v9218, %v10748
          %v10750 = vsel %vm10574, %v10749, %v10745
          %v10751 = vlaneseq
          %v10752 = vshrl.u32 %v10751, 7
          %v10753 = vsub.s32 %v10576, %v10752
          %v10754 = vrot.slane %v9233, %v10753
          %v10755 = vsel %vm10581, %v10754, %v10750
          %v10756 = vlaneseq
          %v10757 = vshrl.u32 %v10756, 7
          %v10758 = vsub.s32 %v10583, %v10757
          %v10759 = vrot.slane %v9248, %v10758
          %v10760 = vsel %vm10588, %v10759, %v10755
          %v10761 = vlaneseq
          %v10762 = vshrl.u32 %v10761, 7
          %v10763 = vsub.s32 %v10590, %v10762
          %v10764 = vrot.slane %v9263, %v10763
          %v10765 = vsel %vm10595, %v10764, %v10760
          %v10766 = vlaneseq
          %v10767 = vshrl.u32 %v10766, 7
          %v10768 = vsub.s32 %v10597, %v10767
          %v10769 = vrot.slane %v9278, %v10768
          %v10770 = vsel %vm10602, %v10769, %v10765
          %v10771 = vlaneseq
          %v10772 = vshrl.u32 %v10771, 7
          %v10773 = vsub.s32 %v10604, %v10772
          %v10774 = vrot.slane %v9293, %v10773
          %v10775 = vsel %vm10609, %v10774, %v10770
          %v10776 = vlaneseq
          %v10777 = vshrl.u32 %v10776, 7
          %v10778 = vsub.s32 %v10611, %v10777
          %v10779 = vrot.slane %v9308, %v10778
          %v10780 = vsel %vm10616, %v10779, %v10775
          %s10781 = scalar_lea.vmem %s186, 2 [#allocation5]
          %10782 = vst [vmem:[%s10781] ss:$8 sm:$0x1] %v10780
          %10783 = vst [vmem:[%s10781] ss:$8 sm:$0x0] %v10780
          %v10784 = vlaneseq
          %v10785 = vshrl.u32 %v10784, 7
          %v10786 = vsub.s32 %v7948, %v10785
          %v10787 = vrot.slane %v9323, %v10786
          %v10788 = vlaneseq
          %v10789 = vshrl.u32 %v10788, 7
          %v10790 = vsub.s32 %v10513, %v10789
          %v10791 = vrot.slane %v9338, %v10790
          %v10792 = vsel %vm10518, %v10791, %v10787
          %v10793 = vlaneseq
          %v10794 = vshrl.u32 %v10793, 7
          %v10795 = vsub.s32 %v10520, %v10794
          %v10796 = vrot.slane %v9353, %v10795
          %v10797 = vsel %vm10525, %v10796, %v10792
          %v10798 = vlaneseq
          %v10799 = vshrl.u32 %v10798, 7
          %v10800 = vsub.s32 %v10527, %v10799
          %v10801 = vrot.slane %v9368, %v10800
          %v10802 = vsel %vm10532, %v10801, %v10797
          %v10803 = vlaneseq
          %v10804 = vshrl.u32 %v10803, 7
          %v10805 = vsub.s32 %v10534, %v10804
          %v10806 = vrot.slane %v9383, %v10805
          %v10807 = vsel %vm10539, %v10806, %v10802
          %v10808 = vlaneseq
          %v10809 = vshrl.u32 %v10808, 7
          %v10810 = vsub.s32 %v10541, %v10809
          %v10811 = vrot.slane %v9398, %v10810
          %v10812 = vsel %vm10546, %v10811, %v10807
          %v10813 = vlaneseq
          %v10814 = vshrl.u32 %v10813, 7
          %v10815 = vsub.s32 %v10548, %v10814
          %v10816 = vrot.slane %v9413, %v10815
          %v10817 = vsel %vm10553, %v10816, %v10812
          %v10818 = vlaneseq
          %v10819 = vshrl.u32 %v10818, 7
          %v10820 = vsub.s32 %v10555, %v10819
          %v10821 = vrot.slane %v9428, %v10820
          %v10822 = vsel %vm10560, %v10821, %v10817
          %v10823 = vlaneseq
          %v10824 = vshrl.u32 %v10823, 7
          %v10825 = vsub.s32 %v10562, %v10824
          %v10826 = vrot.slane %v9443, %v10825
          %v10827 = vsel %vm10567, %v10826, %v10822
          %v10828 = vlaneseq
          %v10829 = vshrl.u32 %v10828, 7
          %v10830 = vsub.s32 %v10569, %v10829
          %v10831 = vrot.slane %v9458, %v10830
          %v10832 = vsel %vm10574, %v10831, %v10827
          %v10833 = vlaneseq
          %v10834 = vshrl.u32 %v10833, 7
          %v10835 = vsub.s32 %v10576, %v10834
          %v10836 = vrot.slane %v9473, %v10835
          %v10837 = vsel %vm10581, %v10836, %v10832
          %v10838 = vlaneseq
          %v10839 = vshrl.u32 %v10838, 7
          %v10840 = vsub.s32 %v10583, %v10839
          %v10841 = vrot.slane %v9488, %v10840
          %v10842 = vsel %vm10588, %v10841, %v10837
          %v10843 = vlaneseq
          %v10844 = vshrl.u32 %v10843, 7
          %v10845 = vsub.s32 %v10590, %v10844
          %v10846 = vrot.slane %v9503, %v10845
          %v10847 = vsel %vm10595, %v10846, %v10842
          %v10848 = vlaneseq
          %v10849 = vshrl.u32 %v10848, 7
          %v10850 = vsub.s32 %v10597, %v10849
          %v10851 = vrot.slane %v9518, %v10850
          %v10852 = vsel %vm10602, %v10851, %v10847
          %v10853 = vlaneseq
          %v10854 = vshrl.u32 %v10853, 7
          %v10855 = vsub.s32 %v10604, %v10854
          %v10856 = vrot.slane %v9533, %v10855
          %v10857 = vsel %vm10609, %v10856, %v10852
          %v10858 = vlaneseq
          %v10859 = vshrl.u32 %v10858, 7
          %v10860 = vsub.s32 %v10611, %v10859
          %v10861 = vrot.slane %v9548, %v10860
          %v10862 = vsel %vm10616, %v10861, %v10857
          %s10863 = scalar_lea.vmem %s186, 3 [#allocation5]
          %10864 = vst [vmem:[%s10863] ss:$8 sm:$0x1] %v10862
          %10865 = vst [vmem:[%s10863] ss:$8 sm:$0x0] %v10862
          %v10866 = vlaneseq
          %v10867 = vshrl.u32 %v10866, 7
          %v10868 = vsub.s32 %v7948, %v10867
          %v10869 = vrot.slane %v9563, %v10868
          %v10870 = vlaneseq
          %v10871 = vshrl.u32 %v10870, 7
          %v10872 = vsub.s32 %v10513, %v10871
          %v10873 = vrot.slane %v9578, %v10872
          %v10874 = vsel %vm10518, %v10873, %v10869
          %v10875 = vlaneseq
          %v10876 = vshrl.u32 %v10875, 7
          %v10877 = vsub.s32 %v10520, %v10876
          %v10878 = vrot.slane %v9593, %v10877
          %v10879 = vsel %vm10525, %v10878, %v10874
          %v10880 = vlaneseq
          %v10881 = vshrl.u32 %v10880, 7
          %v10882 = vsub.s32 %v10527, %v10881
          %v10883 = vrot.slane %v9608, %v10882
          %v10884 = vsel %vm10532, %v10883, %v10879
          %v10885 = vlaneseq
          %v10886 = vshrl.u32 %v10885, 7
          %v10887 = vsub.s32 %v10534, %v10886
          %v10888 = vrot.slane %v9623, %v10887
          %v10889 = vsel %vm10539, %v10888, %v10884
          %v10890 = vlaneseq
          %v10891 = vshrl.u32 %v10890, 7
          %v10892 = vsub.s32 %v10541, %v10891
          %v10893 = vrot.slane %v9638, %v10892
          %v10894 = vsel %vm10546, %v10893, %v10889
          %v10895 = vlaneseq
          %v10896 = vshrl.u32 %v10895, 7
          %v10897 = vsub.s32 %v10548, %v10896
          %v10898 = vrot.slane %v9653, %v10897
          %v10899 = vsel %vm10553, %v10898, %v10894
          %v10900 = vlaneseq
          %v10901 = vshrl.u32 %v10900, 7
          %v10902 = vsub.s32 %v10555, %v10901
          %v10903 = vrot.slane %v9668, %v10902
          %v10904 = vsel %vm10560, %v10903, %v10899
          %v10905 = vlaneseq
          %v10906 = vshrl.u32 %v10905, 7
          %v10907 = vsub.s32 %v10562, %v10906
          %v10908 = vrot.slane %v9683, %v10907
          %v10909 = vsel %vm10567, %v10908, %v10904
          %v10910 = vlaneseq
          %v10911 = vshrl.u32 %v10910, 7
          %v10912 = vsub.s32 %v10569, %v10911
          %v10913 = vrot.slane %v9698, %v10912
          %v10914 = vsel %vm10574, %v10913, %v10909
          %v10915 = vlaneseq
          %v10916 = vshrl.u32 %v10915, 7
          %v10917 = vsub.s32 %v10576, %v10916
          %v10918 = vrot.slane %v9713, %v10917
          %v10919 = vsel %vm10581, %v10918, %v10914
          %v10920 = vlaneseq
          %v10921 = vshrl.u32 %v10920, 7
          %v10922 = vsub.s32 %v10583, %v10921
          %v10923 = vrot.slane %v9728, %v10922
          %v10924 = vsel %vm10588, %v10923, %v10919
          %v10925 = vlaneseq
          %v10926 = vshrl.u32 %v10925, 7
          %v10927 = vsub.s32 %v10590, %v10926
          %v10928 = vrot.slane %v9743, %v10927
          %v10929 = vsel %vm10595, %v10928, %v10924
          %v10930 = vlaneseq
          %v10931 = vshrl.u32 %v10930, 7
          %v10932 = vsub.s32 %v10597, %v10931
          %v10933 = vrot.slane %v9758, %v10932
          %v10934 = vsel %vm10602, %v10933, %v10929
          %v10935 = vlaneseq
          %v10936 = vshrl.u32 %v10935, 7
          %v10937 = vsub.s32 %v10604, %v10936
          %v10938 = vrot.slane %v9773, %v10937
          %v10939 = vsel %vm10609, %v10938, %v10934
          %v10940 = vlaneseq
          %v10941 = vshrl.u32 %v10940, 7
          %v10942 = vsub.s32 %v10611, %v10941
          %v10943 = vrot.slane %v9788, %v10942
          %v10944 = vsel %vm10616, %v10943, %v10939
          %s10945 = scalar_lea.vmem %s186, 4 [#allocation5]
          %10946 = vst [vmem:[%s10945] ss:$8 sm:$0x1] %v10944
          %10947 = vst [vmem:[%s10945] ss:$8 sm:$0x0] %v10944
          %v10948 = vlaneseq
          %v10949 = vshrl.u32 %v10948, 7
          %v10950 = vsub.s32 %v7948, %v10949
          %v10951 = vrot.slane %v9803, %v10950
          %v10952 = vlaneseq
          %v10953 = vshrl.u32 %v10952, 7
          %v10954 = vsub.s32 %v10513, %v10953
          %v10955 = vrot.slane %v9818, %v10954
          %v10956 = vsel %vm10518, %v10955, %v10951
          %v10957 = vlaneseq
          %v10958 = vshrl.u32 %v10957, 7
          %v10959 = vsub.s32 %v10520, %v10958
          %v10960 = vrot.slane %v9833, %v10959
          %v10961 = vsel %vm10525, %v10960, %v10956
          %v10962 = vlaneseq
          %v10963 = vshrl.u32 %v10962, 7
          %v10964 = vsub.s32 %v10527, %v10963
          %v10965 = vrot.slane %v9848, %v10964
          %v10966 = vsel %vm10532, %v10965, %v10961
          %v10967 = vlaneseq
          %v10968 = vshrl.u32 %v10967, 7
          %v10969 = vsub.s32 %v10534, %v10968
          %v10970 = vrot.slane %v9863, %v10969
          %v10971 = vsel %vm10539, %v10970, %v10966
          %v10972 = vlaneseq
          %v10973 = vshrl.u32 %v10972, 7
          %v10974 = vsub.s32 %v10541, %v10973
          %v10975 = vrot.slane %v9878, %v10974
          %v10976 = vsel %vm10546, %v10975, %v10971
          %v10977 = vlaneseq
          %v10978 = vshrl.u32 %v10977, 7
          %v10979 = vsub.s32 %v10548, %v10978
          %v10980 = vrot.slane %v9893, %v10979
          %v10981 = vsel %vm10553, %v10980, %v10976
          %v10982 = vlaneseq
          %v10983 = vshrl.u32 %v10982, 7
          %v10984 = vsub.s32 %v10555, %v10983
          %v10985 = vrot.slane %v9908, %v10984
          %v10986 = vsel %vm10560, %v10985, %v10981
          %v10987 = vlaneseq
          %v10988 = vshrl.u32 %v10987, 7
          %v10989 = vsub.s32 %v10562, %v10988
          %v10990 = vrot.slane %v9923, %v10989
          %v10991 = vsel %vm10567, %v10990, %v10986
          %v10992 = vlaneseq
          %v10993 = vshrl.u32 %v10992, 7
          %v10994 = vsub.s32 %v10569, %v10993
          %v10995 = vrot.slane %v9938, %v10994
          %v10996 = vsel %vm10574, %v10995, %v10991
          %v10997 = vlaneseq
          %v10998 = vshrl.u32 %v10997, 7
          %v10999 = vsub.s32 %v10576, %v10998
          %v11000 = vrot.slane %v9953, %v10999
          %v11001 = vsel %vm10581, %v11000, %v10996
          %v11002 = vlaneseq
          %v11003 = vshrl.u32 %v11002, 7
          %v11004 = vsub.s32 %v10583, %v11003
          %v11005 = vrot.slane %v9968, %v11004
          %v11006 = vsel %vm10588, %v11005, %v11001
          %v11007 = vlaneseq
          %v11008 = vshrl.u32 %v11007, 7
          %v11009 = vsub.s32 %v10590, %v11008
          %v11010 = vrot.slane %v9983, %v11009
          %v11011 = vsel %vm10595, %v11010, %v11006
          %v11012 = vlaneseq
          %v11013 = vshrl.u32 %v11012, 7
          %v11014 = vsub.s32 %v10597, %v11013
          %v11015 = vrot.slane %v9998, %v11014
          %v11016 = vsel %vm10602, %v11015, %v11011
          %v11017 = vlaneseq
          %v11018 = vshrl.u32 %v11017, 7
          %v11019 = vsub.s32 %v10604, %v11018
          %v11020 = vrot.slane %v10013, %v11019
          %v11021 = vsel %vm10609, %v11020, %v11016
          %v11022 = vlaneseq
          %v11023 = vshrl.u32 %v11022, 7
          %v11024 = vsub.s32 %v10611, %v11023
          %v11025 = vrot.slane %v10028, %v11024
          %v11026 = vsel %vm10616, %v11025, %v11021
          %s11027 = scalar_lea.vmem %s186, 5 [#allocation5]
          %11028 = vst [vmem:[%s11027] ss:$8 sm:$0x1] %v11026
          %11029 = vst [vmem:[%s11027] ss:$8 sm:$0x0] %v11026
          %v11030 = vlaneseq
          %v11031 = vshrl.u32 %v11030, 7
          %v11032 = vsub.s32 %v7948, %v11031
          %v11033 = vrot.slane %v10043, %v11032
          %v11034 = vlaneseq
          %v11035 = vshrl.u32 %v11034, 7
          %v11036 = vsub.s32 %v10513, %v11035
          %v11037 = vrot.slane %v10058, %v11036
          %v11038 = vsel %vm10518, %v11037, %v11033
          %v11039 = vlaneseq
          %v11040 = vshrl.u32 %v11039, 7
          %v11041 = vsub.s32 %v10520, %v11040
          %v11042 = vrot.slane %v10073, %v11041
          %v11043 = vsel %vm10525, %v11042, %v11038
          %v11044 = vlaneseq
          %v11045 = vshrl.u32 %v11044, 7
          %v11046 = vsub.s32 %v10527, %v11045
          %v11047 = vrot.slane %v10088, %v11046
          %v11048 = vsel %vm10532, %v11047, %v11043
          %v11049 = vlaneseq
          %v11050 = vshrl.u32 %v11049, 7
          %v11051 = vsub.s32 %v10534, %v11050
          %v11052 = vrot.slane %v10103, %v11051
          %v11053 = vsel %vm10539, %v11052, %v11048
          %v11054 = vlaneseq
          %v11055 = vshrl.u32 %v11054, 7
          %v11056 = vsub.s32 %v10541, %v11055
          %v11057 = vrot.slane %v10118, %v11056
          %v11058 = vsel %vm10546, %v11057, %v11053
          %v11059 = vlaneseq
          %v11060 = vshrl.u32 %v11059, 7
          %v11061 = vsub.s32 %v10548, %v11060
          %v11062 = vrot.slane %v10133, %v11061
          %v11063 = vsel %vm10553, %v11062, %v11058
          %v11064 = vlaneseq
          %v11065 = vshrl.u32 %v11064, 7
          %v11066 = vsub.s32 %v10555, %v11065
          %v11067 = vrot.slane %v10148, %v11066
          %v11068 = vsel %vm10560, %v11067, %v11063
          %v11069 = vlaneseq
          %v11070 = vshrl.u32 %v11069, 7
          %v11071 = vsub.s32 %v10562, %v11070
          %v11072 = vrot.slane %v10163, %v11071
          %v11073 = vsel %vm10567, %v11072, %v11068
          %v11074 = vlaneseq
          %v11075 = vshrl.u32 %v11074, 7
          %v11076 = vsub.s32 %v10569, %v11075
          %v11077 = vrot.slane %v10178, %v11076
          %v11078 = vsel %vm10574, %v11077, %v11073
          %v11079 = vlaneseq
          %v11080 = vshrl.u32 %v11079, 7
          %v11081 = vsub.s32 %v10576, %v11080
          %v11082 = vrot.slane %v10193, %v11081
          %v11083 = vsel %vm10581, %v11082, %v11078
          %v11084 = vlaneseq
          %v11085 = vshrl.u32 %v11084, 7
          %v11086 = vsub.s32 %v10583, %v11085
          %v11087 = vrot.slane %v10208, %v11086
          %v11088 = vsel %vm10588, %v11087, %v11083
          %v11089 = vlaneseq
          %v11090 = vshrl.u32 %v11089, 7
          %v11091 = vsub.s32 %v10590, %v11090
          %v11092 = vrot.slane %v10223, %v11091
          %v11093 = vsel %vm10595, %v11092, %v11088
          %v11094 = vlaneseq
          %v11095 = vshrl.u32 %v11094, 7
          %v11096 = vsub.s32 %v10597, %v11095
          %v11097 = vrot.slane %v10238, %v11096
          %v11098 = vsel %vm10602, %v11097, %v11093
          %v11099 = vlaneseq
          %v11100 = vshrl.u32 %v11099, 7
          %v11101 = vsub.s32 %v10604, %v11100
          %v11102 = vrot.slane %v10253, %v11101
          %v11103 = vsel %vm10609, %v11102, %v11098
          %v11104 = vlaneseq
          %v11105 = vshrl.u32 %v11104, 7
          %v11106 = vsub.s32 %v10611, %v11105
          %v11107 = vrot.slane %v10268, %v11106
          %v11108 = vsel %vm10616, %v11107, %v11103
          %s11109 = scalar_lea.vmem %s186, 6 [#allocation5]
          %11110 = vst [vmem:[%s11109] ss:$8 sm:$0x1] %v11108
          %11111 = vst [vmem:[%s11109] ss:$8 sm:$0x0] %v11108
          %v11112 = vlaneseq
          %v11113 = vshrl.u32 %v11112, 7
          %v11114 = vsub.s32 %v7948, %v11113
          %v11115 = vrot.slane %v10283, %v11114
          %v11116 = vlaneseq
          %v11117 = vshrl.u32 %v11116, 7
          %v11118 = vsub.s32 %v10513, %v11117
          %v11119 = vrot.slane %v10298, %v11118
          %v11120 = vsel %vm10518, %v11119, %v11115
          %v11121 = vlaneseq
          %v11122 = vshrl.u32 %v11121, 7
          %v11123 = vsub.s32 %v10520, %v11122
          %v11124 = vrot.slane %v10313, %v11123
          %v11125 = vsel %vm10525, %v11124, %v11120
          %v11126 = vlaneseq
          %v11127 = vshrl.u32 %v11126, 7
          %v11128 = vsub.s32 %v10527, %v11127
          %v11129 = vrot.slane %v10328, %v11128
          %v11130 = vsel %vm10532, %v11129, %v11125
          %v11131 = vlaneseq
          %v11132 = vshrl.u32 %v11131, 7
          %v11133 = vsub.s32 %v10534, %v11132
          %v11134 = vrot.slane %v10343, %v11133
          %v11135 = vsel %vm10539, %v11134, %v11130
          %v11136 = vlaneseq
          %v11137 = vshrl.u32 %v11136, 7
          %v11138 = vsub.s32 %v10541, %v11137
          %v11139 = vrot.slane %v10358, %v11138
          %v11140 = vsel %vm10546, %v11139, %v11135
          %v11141 = vlaneseq
          %v11142 = vshrl.u32 %v11141, 7
          %v11143 = vsub.s32 %v10548, %v11142
          %v11144 = vrot.slane %v10373, %v11143
          %v11145 = vsel %vm10553, %v11144, %v11140
          %v11146 = vlaneseq
          %v11147 = vshrl.u32 %v11146, 7
          %v11148 = vsub.s32 %v10555, %v11147
          %v11149 = vrot.slane %v10388, %v11148
          %v11150 = vsel %vm10560, %v11149, %v11145
          %v11151 = vlaneseq
          %v11152 = vshrl.u32 %v11151, 7
          %v11153 = vsub.s32 %v10562, %v11152
          %v11154 = vrot.slane %v10403, %v11153
          %v11155 = vsel %vm10567, %v11154, %v11150
          %v11156 = vlaneseq
          %v11157 = vshrl.u32 %v11156, 7
          %v11158 = vsub.s32 %v10569, %v11157
          %v11159 = vrot.slane %v10418, %v11158
          %v11160 = vsel %vm10574, %v11159, %v11155
          %v11161 = vlaneseq
          %v11162 = vshrl.u32 %v11161, 7
          %v11163 = vsub.s32 %v10576, %v11162
          %v11164 = vrot.slane %v10433, %v11163
          %v11165 = vsel %vm10581, %v11164, %v11160
          %v11166 = vlaneseq
          %v11167 = vshrl.u32 %v11166, 7
          %v11168 = vsub.s32 %v10583, %v11167
          %v11169 = vrot.slane %v10448, %v11168
          %v11170 = vsel %vm10588, %v11169, %v11165
          %v11171 = vlaneseq
          %v11172 = vshrl.u32 %v11171, 7
          %v11173 = vsub.s32 %v10590, %v11172
          %v11174 = vrot.slane %v10463, %v11173
          %v11175 = vsel %vm10595, %v11174, %v11170
          %v11176 = vlaneseq
          %v11177 = vshrl.u32 %v11176, 7
          %v11178 = vsub.s32 %v10597, %v11177
          %v11179 = vrot.slane %v10478, %v11178
          %v11180 = vsel %vm10602, %v11179, %v11175
          %v11181 = vlaneseq
          %v11182 = vshrl.u32 %v11181, 7
          %v11183 = vsub.s32 %v10604, %v11182
          %v11184 = vrot.slane %v10493, %v11183
          %v11185 = vsel %vm10609, %v11184, %v11180
          %v11186 = vlaneseq
          %v11187 = vshrl.u32 %v11186, 7
          %v11188 = vsub.s32 %v10611, %v11187
          %v11189 = vrot.slane %v10508, %v11188
          %v11190 = vsel %vm10616, %v11189, %v11185
          %s11191 = scalar_lea.vmem %s186, 7 [#allocation5]
          %11192 = vst [vmem:[%s11191] ss:$8 sm:$0x1] %v11190
          %11193 = vst [vmem:[%s11191] ss:$8 sm:$0x0] %v11190
        $region40: #{tpu_custom_call.1} parent=31 // pred_fallthru
          _
        %s11194 = sand.u32 %s107, 1
        %s11195 = scalar_lea.sflag [#allocation6], %s11194
        %s11196 = sand.u32 %s107, 1
        %s11197 = smul.addr %s11196, 8
        %s11198 = scalar_lea.vmem [#allocation5], %s11197
        // Predicated region
        $region41: #{tpu_custom_call.1} parent=31 // pred_check
          %p11199 = pneg %p117
        $region42: #{tpu_custom_call.1} parent=31 // pred_check_branch
          %11201 = sbr.rel (%p11199) target = $region44
        $region43: #{tpu_custom_call.1} parent=31 // pred_region
          %s11203 = ssub.s32 128, 128
          %11204 = vsyncadd %s11195, %s11203
          %s11205 = smul.addr %s21, 128
          %s11206 = scalar_lea.hbm %s3, %s11205
          %s11208 = sshll.u32 %s11198, 4
          %s11209 = int_to_ptr.vmem [resolvable:$true] %s11208
          %11211 = dma.vmem_to_hbm [thread:$0]  %s11209, 128, %s11206, %s11195
        $region44: #{tpu_custom_call.1} parent=31 // pred_fallthru
          _
      $region32: #{tpu_custom_call.1} parent=5 // pred_fallthru
        _
      %p11212 = scmp.le.s32.totalorder 2, %s12
      // Predicated region
      $region45: #{tpu_custom_call.1} parent=5 // pred_check
        %p11213 = pneg %p11212
      $region46: #{tpu_custom_call.1} parent=5 // pred_check_branch
        %11215 = sbr.rel (%p11213) target = $region48
      $region47: #{tpu_custom_call.1} parent=5 // pred_region
        %s11216 = ssub.s32 %s12, 2
        // Predicated region
        $region49: #{tpu_custom_call.1} parent=47 // pred_check
          %p11217 = pneg %p123
        $region50: #{tpu_custom_call.1} parent=47 // pred_check_branch
          %11219 = sbr.rel (%p11217) target = $region52
        $region51: #{tpu_custom_call.1} parent=47 // pred_region
          %s11220 = sand.u32 %s108, 1
          %s11221 = scalar_lea.sflag [#allocation6], %s11220
          %s11222 = sand.u32 %s108, 1
          %s11223 = smul.addr %s11222, 8
          %s11224 = scalar_lea.vmem [#allocation5], %s11223
          %11225 = dma.done %s11221, 128
        $region52: #{tpu_custom_call.1} parent=47 // pred_fallthru
          _
      $region48: #{tpu_custom_call.1} parent=5 // pred_fallthru
        _
    $region6: #{tpu_custom_call.1} parent=1 // loop_footer
      %s16 = sadd.s32 1, %s12
    $region7: #{tpu_custom_call.1} parent=1 // loop_footer_branch
      %11 = sbr.rel target = $region3
    $region8: #{tpu_custom_call.1} parent=1 // loop_exit
      _
    %11226 = vsyncpa [#allocation6], 1
    %s11227 = scalar_lea.sflag [#allocation6], 1
    %11228 = vsyncpa %s11227, 1

</llo_original>
